<compile_context>
chip_gen: v7x
topology: tpu7x:2x2x1
jax: 0.10.0
libtpu: 0.0.40
codegen_flags: <defaults>
</compile_context>

<pallas_src>
import functools
import math

import jax
import jax.numpy as jnp
from jax.experimental import pallas as pl
from jax.experimental.pallas import tpu as pltpu

# ----------------- small, Tacotron2-consistent hyper-parameters -----------------
VOCAB = 40
EMB = 32              # symbols_embedding_dim == cfg.encoder.embed_dim
ENC_LAYERS = 2        # cfg.encoder.n_layers
ENC_K = 5             # cfg.encoder.kernel_size
ATTN_RNN = 32         # cfg.attention.rnn_dim
ATTN_DIM = 16         # cfg.attention.attn_dim
LOC_FILTERS = 8       # cfg.location.n_filters
LOC_K = 5             # cfg.location.kernel_size
DEC_RNN = 32          # cfg.decoder.rnn_dim
PRENET = 16           # cfg.decoder.prenet_dim
N_MEL = 8             # n_mel_channels
R = 1                 # n_frames_per_step
POST_EMB = 32         # cfg.postnet.embed_dim
POST_K = 5            # cfg.postnet.kernel_size
POST_LAYERS = 5       # cfg.postnet.n_layers
BN_EPS = 1e-5
MASK_VAL = -1e30      # score_mask_value for padded encoder positions
LOC_PAD = (LOC_K - 1) // 2

VMEM = pltpu.MemorySpace.VMEM


def _vspecs(n):
    return [pl.BlockSpec(memory_space=VMEM) for _ in range(n)]


def _resident(arr):
    # Full-array block with a constant block index: DMA'd once, stays resident in VMEM
    # across the whole sequential grid (weight-resident pattern).
    nd = arr.ndim
    return pl.BlockSpec(arr.shape, lambda t: (0,) * nd)


# ================================ shared math helpers ================================

def _lstm_from_gates(gates, c):
    # PyTorch LSTMCell gate order (i, f, g, o); gates: (B, 4H), c: (B, H)
    H = c.shape[-1]
    i = jax.nn.sigmoid(gates[:, 0:H])
    f = jax.nn.sigmoid(gates[:, H:2 * H])
    g = jnp.tanh(gates[:, 2 * H:3 * H])
    o = jax.nn.sigmoid(gates[:, 3 * H:4 * H])
    c_new = f * c + i * g
    h_new = o * jnp.tanh(c_new)
    return h_new, c_new


# ================================ simple linear kernels ================================

def _linear_kernel(x_ref, w_ref, b_ref, o_ref, *, activation):
    y = jnp.dot(x_ref[...], w_ref[...], preferred_element_type=jnp.float32) + b_ref[...]
    if activation == "relu":
        y = jnp.maximum(y, 0.0)
    elif activation == "tanh":
        y = jnp.tanh(y)
    o_ref[...] = y


def pallas_linear(x, w, b=None, activation=None):
    # x: (M, K), w: (K, N), b: (N,) or None  ->  (M, N)
    M, _ = x.shape
    N = w.shape[1]
    b = jnp.zeros((1, N), jnp.float32) if b is None else b.reshape(1, N)
    return pl.pallas_call(
        functools.partial(_linear_kernel, activation=activation),
        out_shape=jax.ShapeDtypeStruct((M, N), jnp.float32),
        in_specs=_vspecs(3),
        out_specs=pl.BlockSpec(memory_space=VMEM),
    )(x, w, b)


def _prenet_kernel(x_ref, w1_ref, w2_ref, o_ref):
    h = jnp.maximum(jnp.dot(x_ref[...], w1_ref[...], preferred_element_type=jnp.float32), 0.0)
    o_ref[...] = jnp.maximum(jnp.dot(h, w2_ref[...], preferred_element_type=jnp.float32), 0.0)


def pallas_prenet(x, w1, w2):
    # fused Linear(no bias)+ReLU twice
    M = x.shape[0]
    return pl.pallas_call(
        _prenet_kernel,
        out_shape=jax.ShapeDtypeStruct((M, w2.shape[1]), jnp.float32),
        in_specs=_vspecs(3),
        out_specs=pl.BlockSpec(memory_space=VMEM),
    )(x, w1, w2)


# ================================ fused conv stack ================================

def _conv_stack_kernel(*refs, n_layers, K, acts):
    # refs = (x_ref, [w, b, gamma, beta] * n_layers, out_ref)
    # x layout: (B, T, C) channels-last; each conv = K shifted (B*T, Cin)@(Cin, Cout)
    # matmuls accumulated in f32, then training-mode BatchNorm (batch stats) + activation.
    x_ref = refs[0]
    out_ref = refs[-1]
    pad = (K - 1) // 2
    x = x_ref[...]
    B, T = x.shape[0], x.shape[1]
    for li in range(n_layers):
        w_ref, b_ref, g_ref, bt_ref = refs[1 + 4 * li:5 + 4 * li]
        Cin, Cout = w_ref.shape[1], w_ref.shape[2]
        xp = jnp.concatenate(
            [jnp.zeros((B, pad, Cin), jnp.float32), x,
             jnp.zeros((B, pad, Cin), jnp.float32)], axis=1)          # (B, T+2p, Cin)
        acc = jnp.zeros((B * T, Cout), jnp.float32)
        for k in range(K):
            acc = acc + jnp.dot(xp[:, k:k + T, :].reshape(B * T, Cin), w_ref[k],
                                preferred_element_type=jnp.float32)
        y = acc + b_ref[...]
        mu = jnp.mean(y, axis=0, keepdims=True)
        var = jnp.mean((y - mu) ** 2, axis=0, keepdims=True)
        y = (y - mu) * jax.lax.rsqrt(var + BN_EPS)
        y = g_ref[...] * y + bt_ref[...]
        if acts[li] == "relu":
            y = jnp.maximum(y, 0.0)
        elif acts[li] == "tanh":
            y = jnp.tanh(y)
        x = y.reshape(B, T, Cout)
    out_ref[...] = x


def conv_stack(x_btc, layers, K, acts):
    # x_btc: (B, T, Cin) channels-last -> (B, T, Cout_last); whole stack in ONE kernel.
    B, T, _ = x_btc.shape
    args = [x_btc]
    for layer in layers:
        Cout = layer["w"].shape[0]
        args += [jnp.transpose(layer["w"], (2, 1, 0)),      # (K, Cin, Cout)
                 layer["b"].reshape(1, Cout),
                 layer["gamma"].reshape(1, Cout),
                 layer["beta"].reshape(1, Cout)]
    Cout_last = layers[-1]["w"].shape[0]
    return pl.pallas_call(
        functools.partial(_conv_stack_kernel, n_layers=len(layers), K=K, acts=tuple(acts)),
        out_shape=jax.ShapeDtypeStruct((B, T, Cout_last), jnp.float32),
        in_specs=_vspecs(len(args)),
        out_specs=pl.BlockSpec(memory_space=VMEM),
    )(*args)


# ================================ fused BiLSTM encoder ================================

def _bilstm_kernel(xf_ref, xb_ref, mb_ref,
                   fw_ih, fw_hh, fw_b, bw_ih, bw_hh, bw_b,
                   fwd_ref, bwd_ref,
                   hf_s, cf_s, hb_s, cb_s):
    @pl.when(pl.program_id(0) == 0)
    def _():
        hf_s[...] = jnp.zeros_like(hf_s)
        cf_s[...] = jnp.zeros_like(cf_s)
        hb_s[...] = jnp.zeros_like(hb_s)
        cb_s[...] = jnp.zeros_like(cb_s)

    # forward direction (time index t)
    xf = xf_ref[0]
    gates_f = (jnp.dot(xf, fw_ih[...], preferred_element_type=jnp.float32)
               + jnp.dot(hf_s[...], fw_hh[...], preferred_element_type=jnp.float32)
               + fw_b[...])
    hf, cf = _lstm_from_gates(gates_f, cf_s[...])
    hf_s[...] = hf
    cf_s[...] = cf
    fwd_ref[0] = hf

    # backward direction (time index T-1-t) — packed-sequence semantics: only update
    # the carry inside valid frames.
    xb = xb_ref[0]
    gates_b = (jnp.dot(xb, bw_ih[...], preferred_element_type=jnp.float32)
               + jnp.dot(hb_s[...], bw_hh[...], preferred_element_type=jnp.float32)
               + bw_b[...])
    hbn, cbn = _lstm_from_gates(gates_b, cb_s[...])
    valid = mb_ref[0]                                     # (B, 1)
    hb = valid * hbn + (1.0 - valid) * hb_s[...]
    cb = valid * cbn + (1.0 - valid) * cb_s[...]
    hb_s[...] = hb
    cb_s[...] = cb
    bwd_ref[0] = hb


def encoder_forward(P, emb_btc, text_lengths):
    # emb_btc: (B, T_enc, EMB) channels-last
    x = conv_stack(emb_btc, P["enc_convs"], ENC_K, ["relu"] * ENC_LAYERS)
    # TODO(synk): F.dropout(p=0.5, training) after each encoder conv omitted (stochastic).
    B, T, E = x.shape
    H = E // 2
    x_tbe = jnp.transpose(x, (1, 0, 2))                                  # (T, B, E)
    mask_bw = (jnp.arange(T)[:, None] < text_lengths[None, :]).astype(jnp.float32)[:, :, None]

    step = lambda t: (t, 0, 0)
    rstep = lambda t: (T - 1 - t, 0, 0)
    fwd, bwd = pl.pallas_call(
        _bilstm_kernel,
        out_shape=(jax.ShapeDtypeStruct((T, B, H), jnp.float32),
                   jax.ShapeDtypeStruct((T, B, H), jnp.float32)),
        grid=(T,),
        in_specs=[pl.BlockSpec((1, B, E), step),
                  pl.BlockSpec((1, B, E), rstep),
                  pl.BlockSpec((1, B, 1), rstep),
                  _resident(P["enc_fw_ih"]), _resident(P["enc_fw_hh"]), _resident(P["enc_fw_b"]),
                  _resident(P["enc_bw_ih"]), _resident(P["enc_bw_hh"]), _resident(P["enc_bw_b"])],
        out_specs=(pl.BlockSpec((1, B, H), step),
                   pl.BlockSpec((1, B, H), rstep)),
        scratch_shapes=[pltpu.VMEM((B, H), jnp.float32)] * 4,
        compiler_params=pltpu.CompilerParams(dimension_semantics=("arbitrary",)),
    )(x_tbe, x_tbe, mask_bw,
      P["enc_fw_ih"], P["enc_fw_hh"], P["enc_fw_b"],
      P["enc_bw_ih"], P["enc_bw_hh"], P["enc_bw_b"])

    out = jnp.concatenate([fwd, bwd], axis=-1)                           # (T, B, E)
    out = jnp.transpose(out, (1, 0, 2))                                  # (B, T, E)
    valid = (jnp.arange(T)[None, :] < text_lengths[:, None]).astype(jnp.float32)
    return out * valid[:, :, None]                                       # pad_packed zeros


# ================================ fused decoder loop ================================

def _decoder_step_kernel(prenet_ref, mem_ref, pmem_ref, amask_ref, v_ref, weff_ref,
                         a_ih_x, a_ih_c, a_hh, a_b, q_w,
                         d_ih_h, d_ih_c, d_hh, d_b,
                         dh_out, ctx_out, align_out,
                         ah_s, ac_s, dh_s, dc_s, aw_s, awc_s, ctx_s,
                         *, T_enc):
    @pl.when(pl.program_id(0) == 0)
    def _():
        ah_s[...] = jnp.zeros_like(ah_s)
        ac_s[...] = jnp.zeros_like(ac_s)
        dh_s[...] = jnp.zeros_like(dh_s)
        dc_s[...] = jnp.zeros_like(dc_s)
        aw_s[...] = jnp.zeros_like(aw_s)        # includes zero halo of width LOC_PAD
        awc_s[...] = jnp.zeros_like(awc_s)
        ctx_s[...] = jnp.zeros_like(ctx_s)

    B = ah_s.shape[0]
    T = T_enc

    # ---- attention LSTM cell (input weights split so no in-kernel concat is needed) ----
    di = prenet_ref[0]                                            # (B, PRENET)
    ctx_prev = ctx_s[...]                                         # (B, EMB)
    gates = (jnp.dot(di, a_ih_x[...], preferred_element_type=jnp.float32)
             + jnp.dot(ctx_prev, a_ih_c[...], preferred_element_type=jnp.float32)
             + jnp.dot(ah_s[...], a_hh[...], preferred_element_type=jnp.float32)
             + a_b[...])
    ah, ac = _lstm_from_gates(gates, ac_s[...])
    ah_s[...] = ah
    ac_s[...] = ac
    # TODO(synk): attention-LSTM dropout (p_attn_dropout) omitted (eval semantics).

    # ---- location-sensitive attention ----
    # location conv (2->F, K) and location dense (F->A) are folded host-side into
    # weff (2K, A); the attention weights are kept in halo-padded scratch so the K taps
    # are plain static lane slices (no im2col, no extra kernel launches).
    Weff = weff_ref[...]                                          # (2*LOC_K, ATTN_DIM)
    aw_pad = aw_s[...]                                            # (B, T + 2*LOC_PAD)
    awc_pad = awc_s[...]
    ploc = jnp.zeros((B, T, ATTN_DIM), jnp.float32)
    for c, src in enumerate((aw_pad, awc_pad)):
        for k in range(LOC_K):
            idx = c * LOC_K + k
            w_row = Weff[idx:idx + 1, :][None]                    # (1, 1, ATTN_DIM)
            ploc = ploc + src[:, k:k + T][:, :, None] * w_row

    pq = jnp.dot(ah, q_w[...], preferred_element_type=jnp.float32)        # (B, A)
    e = jnp.tanh(pq[:, None, :] + ploc + pmem_ref[...])                   # (B, T, A)
    energies = jnp.sum(e * v_ref[...], axis=-1) + amask_ref[...]          # (B, T)
    m = jnp.max(energies, axis=-1, keepdims=True)
    p = jnp.exp(energies - m)
    w = p / jnp.sum(p, axis=-1, keepdims=True)                            # (B, T)
    align_out[0] = w
    aw_s[:, LOC_PAD:LOC_PAD + T] = w
    awc_s[:, LOC_PAD:LOC_PAD + T] = awc_pad[:, LOC_PAD:LOC_PAD + T] + w

    # context via batched MXU contraction
    ctx = jnp.einsum('bqt,bte->bqe', w[:, None, :], mem_ref[...],
                     preferred_element_type=jnp.float32)[:, 0, :]         # (B, EMB)
    ctx_s[...] = ctx
    ctx_out[0] = ctx

    # ---- decoder LSTM cell ----
    gates_d = (jnp.dot(ah, d_ih_h[...], preferred_element_type=jnp.float32)
               + jnp.dot(ctx, d_ih_c[...], preferred_element_type=jnp.float32)
               + jnp.dot(dh_s[...], d_hh[...], preferred_element_type=jnp.float32)
               + d_b[...])
    dh, dc = _lstm_from_gates(gates_d, dc_s[...])
    dh_s[...] = dh
    dc_s[...] = dc
    # TODO(synk): decoder-LSTM dropout (p_decoder_dropout) omitted (eval semantics).
    dh_out[0] = dh


def decoder_forward(P, memory, mels, text_lengths):
    B, T_enc, E = memory.shape
    T_out = mels.shape[2]
    T_dec = T_out // R

    # parse_decoder_inputs + go frame -> (T_dec+1, B, n_mel*R); prenet on all frames at once
    dec_in = jnp.transpose(mels, (0, 2, 1)).reshape(B, T_dec, N_MEL * R)
    dec_in = jnp.transpose(dec_in, (1, 0, 2))
    frames = jnp.concatenate([jnp.zeros((1, B, N_MEL * R), jnp.float32), dec_in], axis=0)
    pn = pallas_prenet(frames.reshape((T_dec + 1) * B, N_MEL * R),
                       P["prenet_w1"], P["prenet_w2"])
    # TODO(synk): prenet dropout (p=0.5, always on in the reference) omitted for determinism.
    prenet_steps = pn.reshape(T_dec + 1, B, PRENET)[:T_dec]               # (T_dec, B, PRENET)

    processed_memory = pallas_linear(memory.reshape(B * T_enc, E),
                                     P["memory_w"]).reshape(B, T_enc, ATTN_DIM)
    addmask = jnp.where(jnp.arange(T_enc)[None, :] < text_lengths[:, None],
                        0.0, MASK_VAL).astype(jnp.float32)
    v3 = P["v_w"].reshape(1, 1, ATTN_DIM)
    # fold location conv (F,2,K) and location dense (F,A) into one (2K, A) operator
    w_eff = jnp.einsum('fck,fa->cka', P["loc_conv_w"],
                       P["loc_dense_w"]).reshape(2 * LOC_K, ATTN_DIM)

    a_ih_x = P["attn_rnn_ih"][:PRENET]
    a_ih_c = P["attn_rnn_ih"][PRENET:]
    d_ih_h = P["dec_rnn_ih"][:ATTN_RNN]
    d_ih_c = P["dec_rnn_ih"][ATTN_RNN:]

    step = lambda t: (t, 0, 0)
    dh_all, ctx_all, align_all = pl.pallas_call(
        functools.partial(_decoder_step_kernel, T_enc=T_enc),
        out_shape=(jax.ShapeDtypeStruct((T_dec, B, DEC_RNN), jnp.float32),
                   jax.ShapeDtypeStruct((T_dec, B, E), jnp.float32),
                   jax.ShapeDtypeStruct((T_dec, B, T_enc), jnp.float32)),
        grid=(T_dec,),
        in_specs=[pl.BlockSpec((1, B, PRENET), step),
                  _resident(memory), _resident(processed_memory), _resident(addmask),
                  _resident(v3), _resident(w_eff),
                  _resident(a_ih_x), _resident(a_ih_c),
                  _resident(P["attn_rnn_hh"]), _resident(P["attn_rnn_b"]),
                  _resident(P["query_w"]),
                  _resident(d_ih_h), _resident(d_ih_c),
                  _resident(P["dec_rnn_hh"]), _resident(P["dec_rnn_b"])],
        out_specs=(pl.BlockSpec((1, B, DEC_RNN), step),
                   pl.BlockSpec((1, B, E), step),
                   pl.BlockSpec((1, B, T_enc), step)),
        scratch_shapes=[pltpu.VMEM((B, ATTN_RNN), jnp.float32),
                        pltpu.VMEM((B, ATTN_RNN), jnp.float32),
                        pltpu.VMEM((B, DEC_RNN), jnp.float32),
                        pltpu.VMEM((B, DEC_RNN), jnp.float32),
                        pltpu.VMEM((B, T_enc + 2 * LOC_PAD), jnp.float32),
                        pltpu.VMEM((B, T_enc + 2 * LOC_PAD), jnp.float32),
                        pltpu.VMEM((B, E), jnp.float32)],
        compiler_params=pltpu.CompilerParams(dimension_semantics=("arbitrary",)),
    )(prenet_steps, memory, processed_memory, addmask, v3, w_eff,
      a_ih_x, a_ih_c, P["attn_rnn_hh"], P["attn_rnn_b"], P["query_w"],
      d_ih_h, d_ih_c, P["dec_rnn_hh"], P["dec_rnn_b"])

    # hoisted frame+gate projection: one batched matmul for all steps, [proj | gate]
    hc = jnp.concatenate([dh_all, ctx_all], axis=-1).reshape(T_dec * B, DEC_RNN + E)
    comb_w = jnp.concatenate([P["proj_w"], P["gate_w"]], axis=1)          # (D, n_mel*R+1)
    comb_b = jnp.concatenate([P["proj_b"], P["gate_b"]])
    y = pallas_linear(hc, comb_w, comb_b)                                 # (T_dec*B, n_mel*R+1)
    mel = y[:, :N_MEL * R].reshape(T_dec, B, N_MEL * R)
    gate = y[:, N_MEL * R:].reshape(T_dec, B)

    mel_ntc = jnp.transpose(mel, (1, 0, 2)).reshape(B, T_dec * R, N_MEL)  # (B, T_out, n_mel)
    gate_outputs = jnp.transpose(gate, (1, 0))                            # (B, T_dec)
    alignments = jnp.transpose(align_all, (1, 0, 2))                      # (B, T_dec, T_enc)
    return mel_ntc, gate_outputs, alignments


# ================================ parameters ================================

def init_params(key):
    keys = iter(jax.random.split(key, 64))

    def nrm(shape, scale=0.1):
        return scale * jax.random.normal(next(keys), shape, dtype=jnp.float32)

    P = {}
    std = math.sqrt(2.0 / (VOCAB + EMB))
    val = math.sqrt(3.0) * std
    P["embedding"] = jax.random.uniform(next(keys), (VOCAB, EMB), jnp.float32, -val, val)

    P["enc_convs"] = []
    for _ in range(ENC_LAYERS):
        P["enc_convs"].append(dict(
            w=nrm((EMB, EMB, ENC_K)), b=nrm((EMB,)),
            gamma=jnp.ones((EMB,), jnp.float32) + nrm((EMB,), 0.01),
            beta=nrm((EMB,), 0.01)))

    H = EMB // 2
    for d in ("fw", "bw"):
        P[f"enc_{d}_ih"] = nrm((EMB, 4 * H))
        P[f"enc_{d}_hh"] = nrm((H, 4 * H))
        P[f"enc_{d}_b"] = nrm((1, 4 * H))

    P["prenet_w1"] = nrm((N_MEL * R, PRENET))
    P["prenet_w2"] = nrm((PRENET, PRENET))

    P["attn_rnn_ih"] = nrm((PRENET + EMB, 4 * ATTN_RNN))
    P["attn_rnn_hh"] = nrm((ATTN_RNN, 4 * ATTN_RNN))
    P["attn_rnn_b"] = nrm((1, 4 * ATTN_RNN))

    P["query_w"] = nrm((ATTN_RNN, ATTN_DIM))
    P["memory_w"] = nrm((EMB, ATTN_DIM))
    P["v_w"] = nrm((ATTN_DIM,))
    P["loc_conv_w"] = nrm((LOC_FILTERS, 2, LOC_K))
    P["loc_dense_w"] = nrm((LOC_FILTERS, ATTN_DIM))

    P["dec_rnn_ih"] = nrm((ATTN_RNN + EMB, 4 * DEC_RNN))
    P["dec_rnn_hh"] = nrm((DEC_RNN, 4 * DEC_RNN))
    P["dec_rnn_b"] = nrm((1, 4 * DEC_RNN))

    P["proj_w"] = nrm((DEC_RNN + EMB, N_MEL * R))
    P["proj_b"] = nrm((N_MEL * R,))
    P["gate_w"] = nrm((DEC_RNN + EMB, 1))
    P["gate_b"] = nrm((1,))

    P["postnet"] = []
    chans = [N_MEL] + [POST_EMB] * (POST_LAYERS - 1) + [N_MEL]
    for i in range(POST_LAYERS):
        cin, cout = chans[i], chans[i + 1]
        P["postnet"].append(dict(
            w=nrm((cout, cin, POST_K)), b=nrm((cout,)),
            gamma=jnp.ones((cout,), jnp.float32) + nrm((cout,), 0.01),
            beta=nrm((cout,), 0.01)))
    return P


# ================================ full forward ================================

def tacotron2_forward(P, text_inputs, text_lengths, mels, output_lengths):
    emb = P["embedding"][text_inputs]                       # (B, T_enc, EMB) channels-last
    memory = encoder_forward(P, emb, text_lengths)          # (B, T_enc, EMB)
    mel_ntc, gate_outputs, alignments = decoder_forward(P, memory, mels, text_lengths)

    post_ntc = conv_stack(mel_ntc, P["postnet"], POST_K,
                          ["tanh"] * (POST_LAYERS - 1) + [None])
    # TODO(synk): postnet dropout (p=0.5, training) omitted (eval semantics).

    mel_outputs = jnp.transpose(mel_ntc, (0, 2, 1))                        # (B, n_mel, T_out)
    mel_post = mel_outputs + jnp.transpose(post_ntc, (0, 2, 1))

    # parse_output (mask_padding=True)
    T_out = mels.shape[2]
    pad = jnp.arange(T_out)[None, :] >= output_lengths[:, None]            # (B, T_out)
    mel_outputs = jnp.where(pad[:, None, :], 0.0, mel_outputs)
    mel_post = jnp.where(pad[:, None, :], 0.0, mel_post)
    gate_outputs = jnp.where(pad, 1000.0, gate_outputs)
    return mel_outputs, mel_post, gate_outputs, alignments


# ================================ driver ================================

if __name__ == "__main__":
    key = jax.random.PRNGKey(0)
    kp, kt, km = jax.random.split(key, 3)
    P = init_params(kp)

    B, T_ENC, T_OUT = 2, 8, 6
    text_inputs = jax.random.randint(kt, (B, T_ENC), 0, VOCAB, dtype=jnp.int32)
    text_lengths = jnp.array([8, 6], dtype=jnp.int32)
    mels = jax.random.normal(km, (B, N_MEL, T_OUT), dtype=jnp.float32)
    output_lengths = jnp.array([6, 4], dtype=jnp.int32)

    fwd = jax.jit(tacotron2_forward)
    outs = fwd(P, text_inputs, text_lengths, mels, output_lengths)
    outs = jax.block_until_ready(outs)
    mel_outputs, mel_post, gate_outputs, alignments = outs

    assert mel_outputs.shape == (B, N_MEL, T_OUT)
    assert mel_post.shape == (B, N_MEL, T_OUT)
    assert gate_outputs.shape == (B, T_OUT // R)
    assert alignments.shape == (B, T_OUT // R, T_ENC)
    assert all(bool(jnp.all(jnp.isfinite(o))) for o in outs)
    print("KERNEL_OK")
</pallas_src>

<mosaic_0001>
module attributes {stable_mosaic.version = 11 : i64} {
  func.func @_prenet_kernel(%arg0: memref<14x8xf32, #tpu.memory_space<vmem>>, %arg1: memref<8x16xf32, #tpu.memory_space<vmem>>, %arg2: memref<16x16xf32, #tpu.memory_space<vmem>>, %arg3: memref<14x16xf32, #tpu.memory_space<vmem>>) attributes {dimension_semantics = [], scalar_prefetch = 0 : i64, scratch_operands = 0 : i64, tpu.core_type = #tpu.core_type<tc>} {
    %c0 = arith.constant 0 : index
    %c0_0 = arith.constant 0 : index
    %0 = vector.load %arg0[%c0, %c0_0] : memref<14x8xf32, #tpu.memory_space<vmem>>, vector<14x8xf32>
    %c0_1 = arith.constant 0 : index
    %c0_2 = arith.constant 0 : index
    %1 = vector.load %arg1[%c0_1, %c0_2] : memref<8x16xf32, #tpu.memory_space<vmem>>, vector<8x16xf32>
    %cst = arith.constant dense<0.000000e+00> : vector<14x16xf32>
    %2 = tpu.matmul %0, %1, %cst {dimension_numbers = #tpu.dot_dimension_numbers<[1], [0], [0], [1], [0, 0, 1, 1], [], []>} : vector<14x8xf32>, vector<8x16xf32>, vector<14x16xf32> -> vector<14x16xf32>
    %cst_3 = arith.constant 0.000000e+00 : f32
    %3 = vector.broadcast %cst_3 : f32 to vector<14x16xf32>
    %4 = arith.maximumf %2, %3 : vector<14x16xf32>
    %c0_4 = arith.constant 0 : index
    %c0_5 = arith.constant 0 : index
    %5 = vector.load %arg2[%c0_4, %c0_5] : memref<16x16xf32, #tpu.memory_space<vmem>>, vector<16x16xf32>
    %cst_6 = arith.constant dense<0.000000e+00> : vector<14x16xf32>
    %6 = tpu.matmul %4, %5, %cst_6 {dimension_numbers = #tpu.dot_dimension_numbers<[1], [0], [0], [1], [0, 0, 1, 1], [], []>} : vector<14x16xf32>, vector<16x16xf32>, vector<14x16xf32> -> vector<14x16xf32>
    %cst_7 = arith.constant 0.000000e+00 : f32
    %7 = vector.broadcast %cst_7 : f32 to vector<14x16xf32>
    %8 = arith.maximumf %6, %7 : vector<14x16xf32>
    %c0_8 = arith.constant 0 : index
    %c0_9 = arith.constant 0 : index
    %9 = vector.load %arg3[%c0_8, %c0_9] : memref<14x16xf32, #tpu.memory_space<vmem>>, vector<14x16xf32>
    tpu.vector_store %arg3[%c0_8, %c0_9], %8 {strides = array<i32>} : memref<14x16xf32, #tpu.memory_space<vmem>>, vector<14x16xf32>,
    return
  }
}

module attributes {stable_mosaic.version = 11 : i64} {
  func.func @_conv_stack_kernel(%arg0: memref<2x8x32xf32, #tpu.memory_space<vmem>>, %arg1: memref<5x32x32xf32, #tpu.memory_space<vmem>>, %arg2: memref<1x32xf32, #tpu.memory_space<vmem>>, %arg3: memref<1x32xf32, #tpu.memory_space<vmem>>, %arg4: memref<1x32xf32, #tpu.memory_space<vmem>>, %arg5: memref<5x32x32xf32, #tpu.memory_space<vmem>>, %arg6: memref<1x32xf32, #tpu.memory_space<vmem>>, %arg7: memref<1x32xf32, #tpu.memory_space<vmem>>, %arg8: memref<1x32xf32, #tpu.memory_space<vmem>>, %arg9: memref<2x8x32xf32, #tpu.memory_space<vmem>>) attributes {dimension_semantics = [], scalar_prefetch = 0 : i64, scratch_operands = 0 : i64, tpu.core_type = #tpu.core_type<tc>} {
    %c0 = arith.constant 0 : index
    %c0_0 = arith.constant 0 : index
    %c0_1 = arith.constant 0 : index
    %0 = vector.load %arg0[%c0, %c0_0, %c0_1] : memref<2x8x32xf32, #tpu.memory_space<vmem>>, vector<2x8x32xf32>
    %cst = arith.constant 0.000000e+00 : f32
    %1 = vector.broadcast %cst : f32 to vector<2x2x32xf32>
    %cst_2 = arith.constant 0.000000e+00 : f32
    %2 = vector.broadcast %cst_2 : f32 to vector<2x2x32xf32>
    %3 = tpu.concatenate %1, %0, %2 in 1 : vector<2x2x32xf32>, vector<2x8x32xf32>, vector<2x2x32xf32> -> vector<2x12x32xf32>
    %cst_3 = arith.constant 0.000000e+00 : f32
    %4 = vector.broadcast %cst_3 : f32 to vector<16x32xf32>
    %5 = vector.extract_strided_slice %3 {offsets = [0, 0, 0], sizes = [2, 8, 32], strides = [1, 1, 1]} : vector<2x12x32xf32> to vector<2x8x32xf32>
    %6 = vector.shape_cast %5 : vector<2x8x32xf32> to vector<16x32xf32>
    %c0_4 = arith.constant 0 : index
    %c0_5 = arith.constant 0 : index
    %c0_6 = arith.constant 0 : index
    %7 = vector.load %arg1[%c0_4, %c0_5, %c0_6] : memref<5x32x32xf32, #tpu.memory_space<vmem>>, vector<1x32x32xf32>
    %8 = vector.shape_cast %7 : vector<1x32x32xf32> to vector<32x32xf32>
    %cst_7 = arith.constant dense<0.000000e+00> : vector<16x32xf32>
    %9 = tpu.matmul %6, %8, %cst_7 {dimension_numbers = #tpu.dot_dimension_numbers<[1], [0], [0], [1], [0, 0, 1, 1], [], []>} : vector<16x32xf32>, vector<32x32xf32>, vector<16x32xf32> -> vector<16x32xf32>
    %10 = arith.addf %4, %9 : vector<16x32xf32>
    %11 = vector.extract_strided_slice %3 {offsets = [0, 1, 0], sizes = [2, 8, 32], strides = [1, 1, 1]} : vector<2x12x32xf32> to vector<2x8x32xf32>
    %12 = vector.shape_cast %11 : vector<2x8x32xf32> to vector<16x32xf32>
    %c1 = arith.constant 1 : index
    %c0_8 = arith.constant 0 : index
    %c0_9 = arith.constant 0 : index
    %13 = vector.load %arg1[%c1, %c0_8, %c0_9] : memref<5x32x32xf32, #tpu.memory_space<vmem>>, vector<1x32x32xf32>
    %14 = vector.shape_cast %13 : vector<1x32x32xf32> to vector<32x32xf32>
    %cst_10 = arith.constant dense<0.000000e+00> : vector<16x32xf32>
    %15 = tpu.matmul %12, %14, %cst_10 {dimension_numbers = #tpu.dot_dimension_numbers<[1], [0], [0], [1], [0, 0, 1, 1], [], []>} : vector<16x32xf32>, vector<32x32xf32>, vector<16x32xf32> -> vector<16x32xf32>
    %16 = arith.addf %10, %15 : vector<16x32xf32>
    %17 = vector.extract_strided_slice %3 {offsets = [0, 2, 0], sizes = [2, 8, 32], strides = [1, 1, 1]} : vector<2x12x32xf32> to vector<2x8x32xf32>
    %18 = vector.shape_cast %17 : vector<2x8x32xf32> to vector<16x32xf32>
    %c2 = arith.constant 2 : index
    %c0_11 = arith.constant 0 : index
    %c0_12 = arith.constant 0 : index
    %19 = vector.load %arg1[%c2, %c0_11, %c0_12] : memref<5x32x32xf32, #tpu.memory_space<vmem>>, vector<1x32x32xf32>
    %20 = vector.shape_cast %19 : vector<1x32x32xf32> to vector<32x32xf32>
    %cst_13 = arith.constant dense<0.000000e+00> : vector<16x32xf32>
    %21 = tpu.matmul %18, %20, %cst_13 {dimension_numbers = #tpu.dot_dimension_numbers<[1], [0], [0], [1], [0, 0, 1, 1], [], []>} : vector<16x32xf32>, vector<32x32xf32>, vector<16x32xf32> -> vector<16x32xf32>
    %22 = arith.addf %16, %21 : vector<16x32xf32>
    %23 = vector.extract_strided_slice %3 {offsets = [0, 3, 0], sizes = [2, 8, 32], strides = [1, 1, 1]} : vector<2x12x32xf32> to vector<2x8x32xf32>
    %24 = vector.shape_cast %23 : vector<2x8x32xf32> to vector<16x32xf32>
    %c3 = arith.constant 3 : index
    %c0_14 = arith.constant 0 : index
    %c0_15 = arith.constant 0 : index
    %25 = vector.load %arg1[%c3, %c0_14, %c0_15] : memref<5x32x32xf32, #tpu.memory_space<vmem>>, vector<1x32x32xf32>
    %26 = vector.shape_cast %25 : vector<1x32x32xf32> to vector<32x32xf32>
    %cst_16 = arith.constant dense<0.000000e+00> : vector<16x32xf32>
    %27 = tpu.matmul %24, %26, %cst_16 {dimension_numbers = #tpu.dot_dimension_numbers<[1], [0], [0], [1], [0, 0, 1, 1], [], []>} : vector<16x32xf32>, vector<32x32xf32>, vector<16x32xf32> -> vector<16x32xf32>
    %28 = arith.addf %22, %27 : vector<16x32xf32>
    %29 = vector.extract_strided_slice %3 {offsets = [0, 4, 0], sizes = [2, 8, 32], strides = [1, 1, 1]} : vector<2x12x32xf32> to vector<2x8x32xf32>
    %30 = vector.shape_cast %29 : vector<2x8x32xf32> to vector<16x32xf32>
    %c4 = arith.constant 4 : index
    %c0_17 = arith.constant 0 : index
    %c0_18 = arith.constant 0 : index
    %31 = vector.load %arg1[%c4, %c0_17, %c0_18] : memref<5x32x32xf32, #tpu.memory_space<vmem>>, vector<1x32x32xf32>
    %32 = vector.shape_cast %31 : vector<1x32x32xf32> to vector<32x32xf32>
    %cst_19 = arith.constant dense<0.000000e+00> : vector<16x32xf32>
    %33 = tpu.matmul %30, %32, %cst_19 {dimension_numbers = #tpu.dot_dimension_numbers<[1], [0], [0], [1], [0, 0, 1, 1], [], []>} : vector<16x32xf32>, vector<32x32xf32>, vector<16x32xf32> -> vector<16x32xf32>
    %34 = arith.addf %28, %33 : vector<16x32xf32>
    %c0_20 = arith.constant 0 : index
    %c0_21 = arith.constant 0 : index
    %35 = vector.load %arg2[%c0_20, %c0_21] : memref<1x32xf32, #tpu.memory_space<vmem>>, vector<1x32xf32>
    %36 = vector.broadcast %35 : vector<1x32xf32> to vector<16x32xf32>
    %37 = arith.addf %34, %36 : vector<16x32xf32>
    %cst_22 = arith.constant dense<0.000000e+00> : vector<32xf32>
    %38 = vector.multi_reduction <add>, %37, %cst_22 [0] : vector<16x32xf32> to vector<32xf32>
    %39 = vector.shape_cast %38 : vector<32xf32> to vector<1x32xf32>
    %cst_23 = arith.constant 1.600000e+01 : f32
    %40 = vector.broadcast %cst_23 : f32 to vector<1x32xf32>
    %41 = arith.divf %39, %40 : vector<1x32xf32>
    %42 = vector.broadcast %41 : vector<1x32xf32> to vector<16x32xf32>
    %43 = arith.subf %37, %42 : vector<16x32xf32>
    %44 = arith.mulf %43, %43 : vector<16x32xf32>
    %cst_24 = arith.constant dense<0.000000e+00> : vector<32xf32>
    %45 = vector.multi_reduction <add>, %44, %cst_24 [0] : vector<16x32xf32> to vector<32xf32>
    %46 = vector.shape_cast %45 : vector<32xf32> to vector<1x32xf32>
    %cst_25 = arith.constant 1.600000e+01 : f32
    %47 = vector.broadcast %cst_25 : f32 to vector<1x32xf32>
    %48 = arith.divf %46, %47 : vector<1x32xf32>
    %49 = vector.broadcast %41 : vector<1x32xf32> to vector<16x32xf32>
    %50 = arith.subf %37, %49 : vector<16x32xf32>
    %cst_26 = arith.constant 9.99999974E-6 : f32
    %51 = vector.broadcast %cst_26 : f32 to vector<1x32xf32>
    %52 = arith.addf %48, %51 : vector<1x32xf32>
    %53 = math.rsqrt %52 : vector<1x32xf32>
    %54 = vector.broadcast %53 : vector<1x32xf32> to vector<16x32xf32>
    %55 = arith.mulf %50, %54 : vector<16x32xf32>
    %c0_27 = arith.constant 0 : index
    %c0_28 = arith.constant 0 : index
    %56 = vector.load %arg3[%c0_27, %c0_28] : memref<1x32xf32, #tpu.memory_space<vmem>>, vector<1x32xf32>
    %57 = vector.broadcast %56 : vector<1x32xf32> to vector<16x32xf32>
    %58 = arith.mulf %57, %55 : vector<16x32xf32>
    %c0_29 = arith.constant 0 : index
    %c0_30 = arith.constant 0 : index
    %59 = vector.load %arg4[%c0_29, %c0_30] : memref<1x32xf32, #tpu.memory_space<vmem>>, vector<1x32xf32>
    %60 = vector.broadcast %59 : vector<1x32xf32> to vector<16x32xf32>
    %61 = arith.addf %58, %60 : vector<16x32xf32>
    %cst_31 = arith.constant 0.000000e+00 : f32
    %62 = vector.broadcast %cst_31 : f32 to vector<16x32xf32>
    %63 = arith.maximumf %61, %62 : vector<16x32xf32>
    %64 = vector.shape_cast %63 : vector<16x32xf32> to vector<2x8x32xf32>
    %cst_32 = arith.constant 0.000000e+00 : f32
    %65 = vector.broadcast %cst_32 : f32 to vector<2x2x32xf32>
    %cst_33 = arith.constant 0.000000e+00 : f32
    %66 = vector.broadcast %cst_33 : f32 to vector<2x2x32xf32>
    %67 = tpu.concatenate %65, %64, %66 in 1 : vector<2x2x32xf32>, vector<2x8x32xf32>, vector<2x2x32xf32> -> vector<2x12x32xf32>
    %cst_34 = arith.constant 0.000000e+00 : f32
    %68 = vector.broadcast %cst_34 : f32 to vector<16x32xf32>
    %69 = vector.extract_strided_slice %67 {offsets = [0, 0, 0], sizes = [2, 8, 32], strides = [1, 1, 1]} : vector<2x12x32xf32> to vector<2x8x32xf32>
    %70 = vector.shape_cast %69 : vector<2x8x32xf32> to vector<16x32xf32>
    %c0_35 = arith.constant 0 : index
    %c0_36 = arith.constant 0 : index
    %c0_37 = arith.constant 0 : index
    %71 = vector.load %arg5[%c0_35, %c0_36, %c0_37] : memref<5x32x32xf32, #tpu.memory_space<vmem>>, vector<1x32x32xf32>
    %72 = vector.shape_cast %71 : vector<1x32x32xf32> to vector<32x32xf32>
    %cst_38 = arith.constant dense<0.000000e+00> : vector<16x32xf32>
    %73 = tpu.matmul %70, %72, %cst_38 {dimension_numbers = #tpu.dot_dimension_numbers<[1], [0], [0], [1], [0, 0, 1, 1], [], []>} : vector<16x32xf32>, vector<32x32xf32>, vector<16x32xf32> -> vector<16x32xf32>
    %74 = arith.addf %68, %73 : vector<16x32xf32>
    %75 = vector.extract_strided_slice %67 {offsets = [0, 1, 0], sizes = [2, 8, 32], strides = [1, 1, 1]} : vector<2x12x32xf32> to vector<2x8x32xf32>
    %76 = vector.shape_cast %75 : vector<2x8x32xf32> to vector<16x32xf32>
    %c1_39 = arith.constant 1 : index
    %c0_40 = arith.constant 0 : index
    %c0_41 = arith.constant 0 : index
    %77 = vector.load %arg5[%c1_39, %c0_40, %c0_41] : memref<5x32x32xf32, #tpu.memory_space<vmem>>, vector<1x32x32xf32>
    %78 = vector.shape_cast %77 : vector<1x32x32xf32> to vector<32x32xf32>
    %cst_42 = arith.constant dense<0.000000e+00> : vector<16x32xf32>
    %79 = tpu.matmul %76, %78, %cst_42 {dimension_numbers = #tpu.dot_dimension_numbers<[1], [0], [0], [1], [0, 0, 1, 1], [], []>} : vector<16x32xf32>, vector<32x32xf32>, vector<16x32xf32> -> vector<16x32xf32>
    %80 = arith.addf %74, %79 : vector<16x32xf32>
    %81 = vector.extract_strided_slice %67 {offsets = [0, 2, 0], sizes = [2, 8, 32], strides = [1, 1, 1]} : vector<2x12x32xf32> to vector<2x8x32xf32>
    %82 = vector.shape_cast %81 : vector<2x8x32xf32> to vector<16x32xf32>
    %c2_43 = arith.constant 2 : index
    %c0_44 = arith.constant 0 : index
    %c0_45 = arith.constant 0 : index
    %83 = vector.load %arg5[%c2_43, %c0_44, %c0_45] : memref<5x32x32xf32, #tpu.memory_space<vmem>>, vector<1x32x32xf32>
    %84 = vector.shape_cast %83 : vector<1x32x32xf32> to vector<32x32xf32>
    %cst_46 = arith.constant dense<0.000000e+00> : vector<16x32xf32>
    %85 = tpu.matmul %82, %84, %cst_46 {dimension_numbers = #tpu.dot_dimension_numbers<[1], [0], [0], [1], [0, 0, 1, 1], [], []>} : vector<16x32xf32>, vector<32x32xf32>, vector<16x32xf32> -> vector<16x32xf32>
    %86 = arith.addf %80, %85 : vector<16x32xf32>
    %87 = vector.extract_strided_slice %67 {offsets = [0, 3, 0], sizes = [2, 8, 32], strides = [1, 1, 1]} : vector<2x12x32xf32> to vector<2x8x32xf32>
    %88 = vector.shape_cast %87 : vector<2x8x32xf32> to vector<16x32xf32>
    %c3_47 = arith.constant 3 : index
    %c0_48 = arith.constant 0 : index
    %c0_49 = arith.constant 0 : index
    %89 = vector.load %arg5[%c3_47, %c0_48, %c0_49] : memref<5x32x32xf32, #tpu.memory_space<vmem>>, vector<1x32x32xf32>
    %90 = vector.shape_cast %89 : vector<1x32x32xf32> to vector<32x32xf32>
    %cst_50 = arith.constant dense<0.000000e+00> : vector<16x32xf32>
    %91 = tpu.matmul %88, %90, %cst_50 {dimension_numbers = #tpu.dot_dimension_numbers<[1], [0], [0], [1], [0, 0, 1, 1], [], []>} : vector<16x32xf32>, vector<32x32xf32>, vector<16x32xf32> -> vector<16x32xf32>
    %92 = arith.addf %86, %91 : vector<16x32xf32>
    %93 = vector.extract_strided_slice %67 {offsets = [0, 4, 0], sizes = [2, 8, 32], strides = [1, 1, 1]} : vector<2x12x32xf32> to vector<2x8x32xf32>
    %94 = vector.shape_cast %93 : vector<2x8x32xf32> to vector<16x32xf32>
    %c4_51 = arith.constant 4 : index
    %c0_52 = arith.constant 0 : index
    %c0_53 = arith.constant 0 : index
    %95 = vector.load %arg5[%c4_51, %c0_52, %c0_53] : memref<5x32x32xf32, #tpu.memory_space<vmem>>, vector<1x32x32xf32>
    %96 = vector.shape_cast %95 : vector<1x32x32xf32> to vector<32x32xf32>
    %cst_54 = arith.constant dense<0.000000e+00> : vector<16x32xf32>
    %97 = tpu.matmul %94, %96, %cst_54 {dimension_numbers = #tpu.dot_dimension_numbers<[1], [0], [0], [1], [0, 0, 1, 1], [], []>} : vector<16x32xf32>, vector<32x32xf32>, vector<16x32xf32> -> vector<16x32xf32>
    %98 = arith.addf %92, %97 : vector<16x32xf32>
    %c0_55 = arith.constant 0 : index
    %c0_56 = arith.constant 0 : index
    %99 = vector.load %arg6[%c0_55, %c0_56] : memref<1x32xf32, #tpu.memory_space<vmem>>, vector<1x32xf32>
    %100 = vector.broadcast %99 : vector<1x32xf32> to vector<16x32xf32>
    %101 = arith.addf %98, %100 : vector<16x32xf32>
    %cst_57 = arith.constant dense<0.000000e+00> : vector<32xf32>
    %102 = vector.multi_reduction <add>, %101, %cst_57 [0] : vector<16x32xf32> to vector<32xf32>
    %103 = vector.shape_cast %102 : vector<32xf32> to vector<1x32xf32>
    %cst_58 = arith.constant 1.600000e+01 : f32
    %104 = vector.broadcast %cst_58 : f32 to vector<1x32xf32>
    %105 = arith.divf %103, %104 : vector<1x32xf32>
    %106 = vector.broadcast %105 : vector<1x32xf32> to vector<16x32xf32>
    %107 = arith.subf %101, %106 : vector<16x32xf32>
    %108 = arith.mulf %107, %107 : vector<16x32xf32>
    %cst_59 = arith.constant dense<0.000000e+00> : vector<32xf32>
    %109 = vector.multi_reduction <add>, %108, %cst_59 [0] : vector<16x32xf32> to vector<32xf32>
    %110 = vector.shape_cast %109 : vector<32xf32> to vector<1x32xf32>
    %cst_60 = arith.constant 1.600000e+01 : f32
    %111 = vector.broadcast %cst_60 : f32 to vector<1x32xf32>
    %112 = arith.divf %110, %111 : vector<1x32xf32>
    %113 = vector.broadcast %105 : vector<1x32xf32> to vector<16x32xf32>
    %114 = arith.subf %101, %113 : vector<16x32xf32>
    %cst_61 = arith.constant 9.99999974E-6 : f32
    %115 = vector.broadcast %cst_61 : f32 to vector<1x32xf32>
    %116 = arith.addf %112, %115 : vector<1x32xf32>
    %117 = math.rsqrt %116 : vector<1x32xf32>
    %118 = vector.broadcast %117 : vector<1x32xf32> to vector<16x32xf32>
    %119 = arith.mulf %114, %118 : vector<16x32xf32>
    %c0_62 = arith.constant 0 : index
    %c0_63 = arith.constant 0 : index
    %120 = vector.load %arg7[%c0_62, %c0_63] : memref<1x32xf32, #tpu.memory_space<vmem>>, vector<1x32xf32>
    %121 = vector.broadcast %120 : vector<1x32xf32> to vector<16x32xf32>
    %122 = arith.mulf %121, %119 : vector<16x32xf32>
    %c0_64 = arith.constant 0 : index
    %c0_65 = arith.constant 0 : index
    %123 = vector.load %arg8[%c0_64, %c0_65] : memref<1x32xf32, #tpu.memory_space<vmem>>, vector<1x32xf32>
    %124 = vector.broadcast %123 : vector<1x32xf32> to vector<16x32xf32>
    %125 = arith.addf %122, %124 : vector<16x32xf32>
    %cst_66 = arith.constant 0.000000e+00 : f32
    %126 = vector.broadcast %cst_66 : f32 to vector<16x32xf32>
    %127 = arith.maximumf %125, %126 : vector<16x32xf32>
    %128 = vector.shape_cast %127 : vector<16x32xf32> to vector<2x8x32xf32>
    %c0_67 = arith.constant 0 : index
    %c0_68 = arith.constant 0 : index
    %c0_69 = arith.constant 0 : index
    %129 = vector.load %arg9[%c0_67, %c0_68, %c0_69] : memref<2x8x32xf32, #tpu.memory_space<vmem>>, vector<2x8x32xf32>
    tpu.vector_store %arg9[%c0_67, %c0_68, %c0_69], %128 {strides = array<i32>} : memref<2x8x32xf32, #tpu.memory_space<vmem>>, vector<2x8x32xf32>,
    return
  }
}

module attributes {stable_mosaic.version = 11 : i64} {
  func.func @_linear_kernel(%arg0: memref<16x32xf32, #tpu.memory_space<vmem>>, %arg1: memref<32x16xf32, #tpu.memory_space<vmem>>, %arg2: memref<1x16xf32, #tpu.memory_space<vmem>>, %arg3: memref<16x16xf32, #tpu.memory_space<vmem>>) attributes {dimension_semantics = [], scalar_prefetch = 0 : i64, scratch_operands = 0 : i64, tpu.core_type = #tpu.core_type<tc>} {
    %c0 = arith.constant 0 : index
    %c0_0 = arith.constant 0 : index
    %0 = vector.load %arg0[%c0, %c0_0] : memref<16x32xf32, #tpu.memory_space<vmem>>, vector<16x32xf32>
    %c0_1 = arith.constant 0 : index
    %c0_2 = arith.constant 0 : index
    %1 = vector.load %arg1[%c0_1, %c0_2] : memref<32x16xf32, #tpu.memory_space<vmem>>, vector<32x16xf32>
    %cst = arith.constant dense<0.000000e+00> : vector<16x16xf32>
    %2 = tpu.matmul %0, %1, %cst {dimension_numbers = #tpu.dot_dimension_numbers<[1], [0], [0], [1], [0, 0, 1, 1], [], []>} : vector<16x32xf32>, vector<32x16xf32>, vector<16x16xf32> -> vector<16x16xf32>
    %c0_3 = arith.constant 0 : index
    %c0_4 = arith.constant 0 : index
    %3 = vector.load %arg2[%c0_3, %c0_4] : memref<1x16xf32, #tpu.memory_space<vmem>>, vector<1x16xf32>
    %4 = vector.broadcast %3 : vector<1x16xf32> to vector<16x16xf32>
    %5 = arith.addf %2, %4 : vector<16x16xf32>
    %c0_5 = arith.constant 0 : index
    %c0_6 = arith.constant 0 : index
    %6 = vector.load %arg3[%c0_5, %c0_6] : memref<16x16xf32, #tpu.memory_space<vmem>>, vector<16x16xf32>
    tpu.vector_store %arg3[%c0_5, %c0_6], %5 {strides = array<i32>} : memref<16x16xf32, #tpu.memory_space<vmem>>, vector<16x16xf32>,
    return
  }
}

module attributes {stable_mosaic.version = 11 : i64} {
  func.func @_bilstm_kernel(%arg0: i32, %arg1: memref<1x2x32xf32, #tpu.memory_space<vmem>>, %arg2: memref<1x2x32xf32, #tpu.memory_space<vmem>>, %arg3: memref<1x2x1xf32, #tpu.memory_space<vmem>>, %arg4: memref<32x64xf32, #tpu.memory_space<vmem>>, %arg5: memref<16x64xf32, #tpu.memory_space<vmem>>, %arg6: memref<1x64xf32, #tpu.memory_space<vmem>>, %arg7: memref<32x64xf32, #tpu.memory_space<vmem>>, %arg8: memref<16x64xf32, #tpu.memory_space<vmem>>, %arg9: memref<1x64xf32, #tpu.memory_space<vmem>>, %arg10: memref<1x2x16xf32, #tpu.memory_space<vmem>>, %arg11: memref<1x2x16xf32, #tpu.memory_space<vmem>>, %arg12: memref<2x16xf32, #tpu.memory_space<vmem>>, %arg13: memref<2x16xf32, #tpu.memory_space<vmem>>, %arg14: memref<2x16xf32, #tpu.memory_space<vmem>>, %arg15: memref<2x16xf32, #tpu.memory_space<vmem>>) attributes {dimension_semantics = [#tpu.dimension_semantics<arbitrary>], iteration_bounds = array<i64: 8>, scalar_prefetch = 0 : i64, scratch_operands = 4 : i64, tpu.core_type = #tpu.core_type<tc>, window_params = [{transform_indices = @transform_0, window_bounds = array<i64: 1, 2, 32>}, {transform_indices = @transform_1, window_bounds = array<i64: 1, 2, 32>}, {transform_indices = @transform_2, window_bounds = array<i64: 1, 2, 1>}, {pipeline_mode = #tpu.pipeline_mode<synchronous>, transform_indices = @transform_3, window_bounds = array<i64: 32, 64>}, {pipeline_mode = #tpu.pipeline_mode<synchronous>, transform_indices = @transform_4, window_bounds = array<i64: 16, 64>}, {pipeline_mode = #tpu.pipeline_mode<synchronous>, transform_indices = @transform_5, window_bounds = array<i64: 1, 64>}, {pipeline_mode = #tpu.pipeline_mode<synchronous>, transform_indices = @transform_6, window_bounds = array<i64: 32, 64>}, {pipeline_mode = #tpu.pipeline_mode<synchronous>, transform_indices = @transform_7, window_bounds = array<i64: 16, 64>}, {pipeline_mode = #tpu.pipeline_mode<synchronous>, transform_indices = @transform_8, window_bounds = array<i64: 1, 64>}, {transform_indices = @transform_9, window_bounds = array<i64: 1, 2, 16>}, {transform_indices = @transform_10, window_bounds = array<i64: 1, 2, 16>}]} {
    %c0_i32 = arith.constant 0 : i32
    %0 = arith.cmpi eq, %arg0, %c0_i32 : i32
    %1 = arith.extui %0 : i1 to i32
    %c0_i32_0 = arith.constant 0 : i32
    %2 = arith.cmpi ne, %1, %c0_i32_0 : i32
    scf.if %2 {
      %cst_58 = arith.constant 0.000000e+00 : f32
      %105 = vector.broadcast %cst_58 : f32 to vector<2x16xf32>
      %c0_59 = arith.constant 0 : index
      %c0_60 = arith.constant 0 : index
      %106 = vector.load %arg12[%c0_59, %c0_60] : memref<2x16xf32, #tpu.memory_space<vmem>>, vector<2x16xf32>
      tpu.vector_store %arg12[%c0_59, %c0_60], %105 {strides = array<i32>} : memref<2x16xf32, #tpu.memory_space<vmem>>, vector<2x16xf32>,
      %cst_61 = arith.constant 0.000000e+00 : f32
      %107 = vector.broadcast %cst_61 : f32 to vector<2x16xf32>
      %c0_62 = arith.constant 0 : index
      %c0_63 = arith.constant 0 : index
      %108 = vector.load %arg13[%c0_62, %c0_63] : memref<2x16xf32, #tpu.memory_space<vmem>>, vector<2x16xf32>
      tpu.vector_store %arg13[%c0_62, %c0_63], %107 {strides = array<i32>} : memref<2x16xf32, #tpu.memory_space<vmem>>, vector<2x16xf32>,
      %cst_64 = arith.constant 0.000000e+00 : f32
      %109 = vector.broadcast %cst_64 : f32 to vector<2x16xf32>
      %c0_65 = arith.constant 0 : index
      %c0_66 = arith.constant 0 : index
      %110 = vector.load %arg14[%c0_65, %c0_66] : memref<2x16xf32, #tpu.memory_space<vmem>>, vector<2x16xf32>
      tpu.vector_store %arg14[%c0_65, %c0_66], %109 {strides = array<i32>} : memref<2x16xf32, #tpu.memory_space<vmem>>, vector<2x16xf32>,
      %cst_67 = arith.constant 0.000000e+00 : f32
      %111 = vector.broadcast %cst_67 : f32 to vector<2x16xf32>
      %c0_68 = arith.constant 0 : index
      %c0_69 = arith.constant 0 : index
      %112 = vector.load %arg15[%c0_68, %c0_69] : memref<2x16xf32, #tpu.memory_space<vmem>>, vector<2x16xf32>
      tpu.vector_store %arg15[%c0_68, %c0_69], %111 {strides = array<i32>} : memref<2x16xf32, #tpu.memory_space<vmem>>, vector<2x16xf32>,
    } else {
    }
    %c0 = arith.constant 0 : index
    %c0_1 = arith.constant 0 : index
    %c0_2 = arith.constant 0 : index
    %3 = vector.load %arg1[%c0, %c0_1, %c0_2] : memref<1x2x32xf32, #tpu.memory_space<vmem>>, vector<1x2x32xf32>
    %4 = vector.shape_cast %3 : vector<1x2x32xf32> to vector<2x32xf32>
    %c0_3 = arith.constant 0 : index
    %c0_4 = arith.constant 0 : index
    %5 = vector.load %arg4[%c0_3, %c0_4] : memref<32x64xf32, #tpu.memory_space<vmem>>, vector<32x64xf32>
    %cst = arith.constant dense<0.000000e+00> : vector<2x64xf32>
    %6 = tpu.matmul %4, %5, %cst {dimension_numbers = #tpu.dot_dimension_numbers<[1], [0], [0], [1], [0, 0, 1, 1], [], []>} : vector<2x32xf32>, vector<32x64xf32>, vector<2x64xf32> -> vector<2x64xf32>
    %c0_5 = arith.constant 0 : index
    %c0_6 = arith.constant 0 : index
    %7 = vector.load %arg12[%c0_5, %c0_6] : memref<2x16xf32, #tpu.memory_space<vmem>>, vector<2x16xf32>
    %c0_7 = arith.constant 0 : index
    %c0_8 = arith.constant 0 : index
    %8 = vector.load %arg5[%c0_7, %c0_8] : memref<16x64xf32, #tpu.memory_space<vmem>>, vector<16x64xf32>
    %cst_9 = arith.constant dense<0.000000e+00> : vector<2x64xf32>
    %9 = tpu.matmul %7, %8, %cst_9 {dimension_numbers = #tpu.dot_dimension_numbers<[1], [0], [0], [1], [0, 0, 1, 1], [], []>} : vector<2x16xf32>, vector<16x64xf32>, vector<2x64xf32> -> vector<2x64xf32>
    %10 = arith.addf %6, %9 : vector<2x64xf32>
    %c0_10 = arith.constant 0 : index
    %c0_11 = arith.constant 0 : index
    %11 = vector.load %arg6[%c0_10, %c0_11] : memref<1x64xf32, #tpu.memory_space<vmem>>, vector<1x64xf32>
    %12 = vector.broadcast %11 : vector<1x64xf32> to vector<2x64xf32>
    %13 = arith.addf %10, %12 : vector<2x64xf32>
    %c0_12 = arith.constant 0 : index
    %c0_13 = arith.constant 0 : index
    %14 = vector.load %arg13[%c0_12, %c0_13] : memref<2x16xf32, #tpu.memory_space<vmem>>, vector<2x16xf32>
    %15 = vector.extract_strided_slice %13 {offsets = [0, 0], sizes = [2, 16], strides = [1, 1]} : vector<2x64xf32> to vector<2x16xf32>
    %16 = arith.negf %15 : vector<2x16xf32>
    %17 = math.exp %16 : vector<2x16xf32>
    %cst_14 = arith.constant 1.000000e+00 : f32
    %18 = vector.broadcast %cst_14 : f32 to vector<2x16xf32>
    %19 = arith.addf %18, %17 : vector<2x16xf32>
    %20 = arith.divf %18, %19 : vector<2x16xf32>
    %21 = vector.extract_strided_slice %13 {offsets = [0, 16], sizes = [2, 16], strides = [1, 1]} : vector<2x64xf32> to vector<2x16xf32>
    %22 = arith.negf %21 : vector<2x16xf32>
    %23 = math.exp %22 : vector<2x16xf32>
    %cst_15 = arith.constant 1.000000e+00 : f32
    %24 = vector.broadcast %cst_15 : f32 to vector<2x16xf32>
    %25 = arith.addf %24, %23 : vector<2x16xf32>
    %26 = arith.divf %24, %25 : vector<2x16xf32>
    %27 = vector.extract_strided_slice %13 {offsets = [0, 32], sizes = [2, 16], strides = [1, 1]} : vector<2x64xf32> to vector<2x16xf32>
    %28 = math.tanh %27 : vector<2x16xf32>
    %29 = vector.extract_strided_slice %13 {offsets = [0, 48], sizes = [2, 16], strides = [1, 1]} : vector<2x64xf32> to vector<2x16xf32>
    %30 = arith.negf %29 : vector<2x16xf32>
    %31 = math.exp %30 : vector<2x16xf32>
    %cst_16 = arith.constant 1.000000e+00 : f32
    %32 = vector.broadcast %cst_16 : f32 to vector<2x16xf32>
    %33 = arith.addf %32, %31 : vector<2x16xf32>
    %34 = arith.divf %32, %33 : vector<2x16xf32>
    %35 = arith.mulf %26, %14 : vector<2x16xf32>
    %36 = arith.mulf %20, %28 : vector<2x16xf32>
    %37 = arith.addf %35, %36 : vector<2x16xf32>
    %38 = math.tanh %37 : vector<2x16xf32>
    %39 = arith.mulf %34, %38 : vector<2x16xf32>
    %c0_17 = arith.constant 0 : index
    %c0_18 = arith.constant 0 : index
    %40 = vector.load %arg12[%c0_17, %c0_18] : memref<2x16xf32, #tpu.memory_space<vmem>>, vector<2x16xf32>
    tpu.vector_store %arg12[%c0_17, %c0_18], %39 {strides = array<i32>} : memref<2x16xf32, #tpu.memory_space<vmem>>, vector<2x16xf32>,
    %c0_19 = arith.constant 0 : index
    %c0_20 = arith.constant 0 : index
    %41 = vector.load %arg13[%c0_19, %c0_20] : memref<2x16xf32, #tpu.memory_space<vmem>>, vector<2x16xf32>
    tpu.vector_store %arg13[%c0_19, %c0_20], %37 {strides = array<i32>} : memref<2x16xf32, #tpu.memory_space<vmem>>, vector<2x16xf32>,
    %c0_21 = arith.constant 0 : index
    %c0_22 = arith.constant 0 : index
    %c0_23 = arith.constant 0 : index
    %42 = vector.load %arg10[%c0_21, %c0_22, %c0_23] : memref<1x2x16xf32, #tpu.memory_space<vmem>>, vector<1x2x16xf32>
    %43 = vector.shape_cast %42 : vector<1x2x16xf32> to vector<2x16xf32>
    %44 = vector.shape_cast %39 : vector<2x16xf32> to vector<1x2x16xf32>
    tpu.vector_store %arg10[%c0_21, %c0_22, %c0_23], %44 {strides = array<i32>} : memref<1x2x16xf32, #tpu.memory_space<vmem>>, vector<1x2x16xf32>,
    %c0_24 = arith.constant 0 : index
    %c0_25 = arith.constant 0 : index
    %c0_26 = arith.constant 0 : index
    %45 = vector.load %arg2[%c0_24, %c0_25, %c0_26] : memref<1x2x32xf32, #tpu.memory_space<vmem>>, vector<1x2x32xf32>
    %46 = vector.shape_cast %45 : vector<1x2x32xf32> to vector<2x32xf32>
    %c0_27 = arith.constant 0 : index
    %c0_28 = arith.constant 0 : index
    %47 = vector.load %arg7[%c0_27, %c0_28] : memref<32x64xf32, #tpu.memory_space<vmem>>, vector<32x64xf32>
    %cst_29 = arith.constant dense<0.000000e+00> : vector<2x64xf32>
    %48 = tpu.matmul %46, %47, %cst_29 {dimension_numbers = #tpu.dot_dimension_numbers<[1], [0], [0], [1], [0, 0, 1, 1], [], []>} : vector<2x32xf32>, vector<32x64xf32>, vector<2x64xf32> -> vector<2x64xf32>
    %c0_30 = arith.constant 0 : index
    %c0_31 = arith.constant 0 : index
    %49 = vector.load %arg14[%c0_30, %c0_31] : memref<2x16xf32, #tpu.memory_space<vmem>>, vector<2x16xf32>
    %c0_32 = arith.constant 0 : index
    %c0_33 = arith.constant 0 : index
    %50 = vector.load %arg8[%c0_32, %c0_33] : memref<16x64xf32, #tpu.memory_space<vmem>>, vector<16x64xf32>
    %cst_34 = arith.constant dense<0.000000e+00> : vector<2x64xf32>
    %51 = tpu.matmul %49, %50, %cst_34 {dimension_numbers = #tpu.dot_dimension_numbers<[1], [0], [0], [1], [0, 0, 1, 1], [], []>} : vector<2x16xf32>, vector<16x64xf32>, vector<2x64xf32> -> vector<2x64xf32>
    %52 = arith.addf %48, %51 : vector<2x64xf32>
    %c0_35 = arith.constant 0 : index
    %c0_36 = arith.constant 0 : index
    %53 = vector.load %arg9[%c0_35, %c0_36] : memref<1x64xf32, #tpu.memory_space<vmem>>, vector<1x64xf32>
    %54 = vector.broadcast %53 : vector<1x64xf32> to vector<2x64xf32>
    %55 = arith.addf %52, %54 : vector<2x64xf32>
    %c0_37 = arith.constant 0 : index
    %c0_38 = arith.constant 0 : index
    %56 = vector.load %arg15[%c0_37, %c0_38] : memref<2x16xf32, #tpu.memory_space<vmem>>, vector<2x16xf32>
    %57 = vector.extract_strided_slice %55 {offsets = [0, 0], sizes = [2, 16], strides = [1, 1]} : vector<2x64xf32> to vector<2x16xf32>
    %58 = arith.negf %57 : vector<2x16xf32>
    %59 = math.exp %58 : vector<2x16xf32>
    %cst_39 = arith.constant 1.000000e+00 : f32
    %60 = vector.broadcast %cst_39 : f32 to vector<2x16xf32>
    %61 = arith.addf %60, %59 : vector<2x16xf32>
    %62 = arith.divf %60, %61 : vector<2x16xf32>
    %63 = vector.extract_strided_slice %55 {offsets = [0, 16], sizes = [2, 16], strides = [1, 1]} : vector<2x64xf32> to vector<2x16xf32>
    %64 = arith.negf %63 : vector<2x16xf32>
    %65 = math.exp %64 : vector<2x16xf32>
    %cst_40 = arith.constant 1.000000e+00 : f32
    %66 = vector.broadcast %cst_40 : f32 to vector<2x16xf32>
    %67 = arith.addf %66, %65 : vector<2x16xf32>
    %68 = arith.divf %66, %67 : vector<2x16xf32>
    %69 = vector.extract_strided_slice %55 {offsets = [0, 32], sizes = [2, 16], strides = [1, 1]} : vector<2x64xf32> to vector<2x16xf32>
    %70 = math.tanh %69 : vector<2x16xf32>
    %71 = vector.extract_strided_slice %55 {offsets = [0, 48], sizes = [2, 16], strides = [1, 1]} : vector<2x64xf32> to vector<2x16xf32>
    %72 = arith.negf %71 : vector<2x16xf32>
    %73 = math.exp %72 : vector<2x16xf32>
    %cst_41 = arith.constant 1.000000e+00 : f32
    %74 = vector.broadcast %cst_41 : f32 to vector<2x16xf32>
    %75 = arith.addf %74, %73 : vector<2x16xf32>
    %76 = arith.divf %74, %75 : vector<2x16xf32>
    %77 = arith.mulf %68, %56 : vector<2x16xf32>
    %78 = arith.mulf %62, %70 : vector<2x16xf32>
    %79 = arith.addf %77, %78 : vector<2x16xf32>
    %80 = math.tanh %79 : vector<2x16xf32>
    %81 = arith.mulf %76, %80 : vector<2x16xf32>
    %c0_42 = arith.constant 0 : index
    %c0_43 = arith.constant 0 : index
    %c0_44 = arith.constant 0 : index
    %82 = vector.load %arg3[%c0_42, %c0_43, %c0_44] : memref<1x2x1xf32, #tpu.memory_space<vmem>>, vector<1x2x1xf32>
    %83 = vector.shape_cast %82 : vector<1x2x1xf32> to vector<2x1xf32>
    %84 = vector.broadcast %83 : vector<2x1xf32> to vector<2x16xf32>
    %85 = arith.mulf %84, %81 : vector<2x16xf32>
    %cst_45 = arith.constant 1.000000e+00 : f32
    %86 = vector.broadcast %cst_45 : f32 to vector<2x1xf32>
    %87 = arith.subf %86, %83 : vector<2x1xf32>
    %c0_46 = arith.constant 0 : index
    %c0_47 = arith.constant 0 : index
    %88 = vector.load %arg14[%c0_46, %c0_47] : memref<2x16xf32, #tpu.memory_space<vmem>>, vector<2x16xf32>
    %89 = vector.broadcast %87 : vector<2x1xf32> to vector<2x16xf32>
    %90 = arith.mulf %89, %88 : vector<2x16xf32>
    %91 = arith.addf %85, %90 : vector<2x16xf32>
    %92 = vector.broadcast %83 : vector<2x1xf32> to vector<2x16xf32>
    %93 = arith.mulf %92, %79 : vector<2x16xf32>
    %cst_48 = arith.constant 1.000000e+00 : f32
    %94 = vector.broadcast %cst_48 : f32 to vector<2x1xf32>
    %95 = arith.subf %94, %83 : vector<2x1xf32>
    %c0_49 = arith.constant 0 : index
    %c0_50 = arith.constant 0 : index
    %96 = vector.load %arg15[%c0_49, %c0_50] : memref<2x16xf32, #tpu.memory_space<vmem>>, vector<2x16xf32>
    %97 = vector.broadcast %95 : vector<2x1xf32> to vector<2x16xf32>
    %98 = arith.mulf %97, %96 : vector<2x16xf32>
    %99 = arith.addf %93, %98 : vector<2x16xf32>
    %c0_51 = arith.constant 0 : index
    %c0_52 = arith.constant 0 : index
    %100 = vector.load %arg14[%c0_51, %c0_52] : memref<2x16xf32, #tpu.memory_space<vmem>>, vector<2x16xf32>
    tpu.vector_store %arg14[%c0_51, %c0_52], %91 {strides = array<i32>} : memref<2x16xf32, #tpu.memory_space<vmem>>, vector<2x16xf32>,
    %c0_53 = arith.constant 0 : index
    %c0_54 = arith.constant 0 : index
    %101 = vector.load %arg15[%c0_53, %c0_54] : memref<2x16xf32, #tpu.memory_space<vmem>>, vector<2x16xf32>
    tpu.vector_store %arg15[%c0_53, %c0_54], %99 {strides = array<i32>} : memref<2x16xf32, #tpu.memory_space<vmem>>, vector<2x16xf32>,
    %c0_55 = arith.constant 0 : index
    %c0_56 = arith.constant 0 : index
    %c0_57 = arith.constant 0 : index
    %102 = vector.load %arg11[%c0_55, %c0_56, %c0_57] : memref<1x2x16xf32, #tpu.memory_space<vmem>>, vector<1x2x16xf32>
    %103 = vector.shape_cast %102 : vector<1x2x16xf32> to vector<2x16xf32>
    %104 = vector.shape_cast %91 : vector<2x16xf32> to vector<1x2x16xf32>
    tpu.vector_store %arg11[%c0_55, %c0_56, %c0_57], %104 {strides = array<i32>} : memref<1x2x16xf32, #tpu.memory_space<vmem>>, vector<1x2x16xf32>,
    return
  }
  func.func @transform_0(%arg0: i32) -> (i32, i32, i32) {
    %c0_i32 = arith.constant 0 : i32
    %c0_i32_0 = arith.constant 0 : i32
    %c0_i32_1 = arith.constant 0 : i32
    return %arg0, %c0_i32, %c0_i32_0 : i32, i32, i32
  }
  func.func @transform_1(%arg0: i32) -> (i32, i32, i32) {
    %c7_i32 = arith.constant 7 : i32
    %0 = arith.subi %c7_i32, %arg0 : i32
    %c0_i32 = arith.constant 0 : i32
    %c0_i32_0 = arith.constant 0 : i32
    %c0_i32_1 = arith.constant 0 : i32
    return %0, %c0_i32, %c0_i32_0 : i32, i32, i32
  }
  func.func @transform_2(%arg0: i32) -> (i32, i32, i32) {
    %c7_i32 = arith.constant 7 : i32
    %0 = arith.subi %c7_i32, %arg0 : i32
    %c0_i32 = arith.constant 0 : i32
    %c0_i32_0 = arith.constant 0 : i32
    %c0_i32_1 = arith.constant 0 : i32
    return %0, %c0_i32, %c0_i32_0 : i32, i32, i32
  }
  func.func @transform_3(%arg0: i32) -> (i32, i32) {
    %c0_i32 = arith.constant 0 : i32
    %c0_i32_0 = arith.constant 0 : i32
    %c0_i32_1 = arith.constant 0 : i32
    return %c0_i32, %c0_i32_0 : i32, i32
  }
  func.func @transform_4(%arg0: i32) -> (i32, i32) {
    %c0_i32 = arith.constant 0 : i32
    %c0_i32_0 = arith.constant 0 : i32
    %c0_i32_1 = arith.constant 0 : i32
    return %c0_i32, %c0_i32_0 : i32, i32
  }
  func.func @transform_5(%arg0: i32) -> (i32, i32) {
    %c0_i32 = arith.constant 0 : i32
    %c0_i32_0 = arith.constant 0 : i32
    %c0_i32_1 = arith.constant 0 : i32
    return %c0_i32, %c0_i32_0 : i32, i32
  }
  func.func @transform_6(%arg0: i32) -> (i32, i32) {
    %c0_i32 = arith.constant 0 : i32
    %c0_i32_0 = arith.constant 0 : i32
    %c0_i32_1 = arith.constant 0 : i32
    return %c0_i32, %c0_i32_0 : i32, i32
  }
  func.func @transform_7(%arg0: i32) -> (i32, i32) {
    %c0_i32 = arith.constant 0 : i32
    %c0_i32_0 = arith.constant 0 : i32
    %c0_i32_1 = arith.constant 0 : i32
    return %c0_i32, %c0_i32_0 : i32, i32
  }
  func.func @transform_8(%arg0: i32) -> (i32, i32) {
    %c0_i32 = arith.constant 0 : i32
    %c0_i32_0 = arith.constant 0 : i32
    %c0_i32_1 = arith.constant 0 : i32
    return %c0_i32, %c0_i32_0 : i32, i32
  }
  func.func @transform_9(%arg0: i32) -> (i32, i32, i32) {
    %c0_i32 = arith.constant 0 : i32
    %c0_i32_0 = arith.constant 0 : i32
    %c0_i32_1 = arith.constant 0 : i32
    return %arg0, %c0_i32, %c0_i32_0 : i32, i32, i32
  }
  func.func @transform_10(%arg0: i32) -> (i32, i32, i32) {
    %c7_i32 = arith.constant 7 : i32
    %0 = arith.subi %c7_i32, %arg0 : i32
    %c0_i32 = arith.constant 0 : i32
    %c0_i32_0 = arith.constant 0 : i32
    %c0_i32_1 = arith.constant 0 : i32
    return %0, %c0_i32, %c0_i32_0 : i32, i32, i32
  }
}

module attributes {stable_mosaic.version = 11 : i64} {
  func.func @_decoder_step_kernel(%arg0: i32, %arg1: memref<1x2x16xf32, #tpu.memory_space<vmem>>, %arg2: memref<2x8x32xf32, #tpu.memory_space<vmem>>, %arg3: memref<2x8x16xf32, #tpu.memory_space<vmem>>, %arg4: memref<2x8xf32, #tpu.memory_space<vmem>>, %arg5: memref<1x1x16xf32, #tpu.memory_space<vmem>>, %arg6: memref<10x16xf32, #tpu.memory_space<vmem>>, %arg7: memref<16x128xf32, #tpu.memory_space<vmem>>, %arg8: memref<32x128xf32, #tpu.memory_space<vmem>>, %arg9: memref<32x128xf32, #tpu.memory_space<vmem>>, %arg10: memref<1x128xf32, #tpu.memory_space<vmem>>, %arg11: memref<32x16xf32, #tpu.memory_space<vmem>>, %arg12: memref<32x128xf32, #tpu.memory_space<vmem>>, %arg13: memref<32x128xf32, #tpu.memory_space<vmem>>, %arg14: memref<32x128xf32, #tpu.memory_space<vmem>>, %arg15: memref<1x128xf32, #tpu.memory_space<vmem>>, %arg16: memref<1x2x32xf32, #tpu.memory_space<vmem>>, %arg17: memref<1x2x32xf32, #tpu.memory_space<vmem>>, %arg18: memref<1x2x8xf32, #tpu.memory_space<vmem>>, %arg19: memref<2x32xf32, #tpu.memory_space<vmem>>, %arg20: memref<2x32xf32, #tpu.memory_space<vmem>>, %arg21: memref<2x32xf32, #tpu.memory_space<vmem>>, %arg22: memref<2x32xf32, #tpu.memory_space<vmem>>, %arg23: memref<2x12xf32, #tpu.memory_space<vmem>>, %arg24: memref<2x12xf32, #tpu.memory_space<vmem>>, %arg25: memref<2x32xf32, #tpu.memory_space<vmem>>) attributes {dimension_semantics = [#tpu.dimension_semantics<arbitrary>], iteration_bounds = array<i64: 6>, scalar_prefetch = 0 : i64, scratch_operands = 7 : i64, tpu.core_type = #tpu.core_type<tc>, window_params = [{transform_indices = @transform_0, window_bounds = array<i64: 1, 2, 16>}, {pipeline_mode = #tpu.pipeline_mode<synchronous>, transform_indices = @transform_1, window_bounds = array<i64: 2, 8, 32>}, {pipeline_mode = #tpu.pipeline_mode<synchronous>, transform_indices = @transform_2, window_bounds = array<i64: 2, 8, 16>}, {pipeline_mode = #tpu.pipeline_mode<synchronous>, transform_indices = @transform_3, window_bounds = array<i64: 2, 8>}, {pipeline_mode = #tpu.pipeline_mode<synchronous>, transform_indices = @transform_4, window_bounds = array<i64: 1, 1, 16>}, {pipeline_mode = #tpu.pipeline_mode<synchronous>, transform_indices = @transform_5, window_bounds = array<i64: 10, 16>}, {pipeline_mode = #tpu.pipeline_mode<synchronous>, transform_indices = @transform_6, window_bounds = array<i64: 16, 128>}, {pipeline_mode = #tpu.pipeline_mode<synchronous>, transform_indices = @transform_7, window_bounds = array<i64: 32, 128>}, {pipeline_mode = #tpu.pipeline_mode<synchronous>, transform_indices = @transform_8, window_bounds = array<i64: 32, 128>}, {pipeline_mode = #tpu.pipeline_mode<synchronous>, transform_indices = @transform_9, window_bounds = array<i64: 1, 128>}, {pipeline_mode = #tpu.pipeline_mode<synchronous>, transform_indices = @transform_10, window_bounds = array<i64: 32, 16>}, {pipeline_mode = #tpu.pipeline_mode<synchronous>, transform_indices = @transform_11, window_bounds = array<i64: 32, 128>}, {pipeline_mode = #tpu.pipeline_mode<synchronous>, transform_indices = @transform_12, window_bounds = array<i64: 32, 128>}, {pipeline_mode = #tpu.pipeline_mode<synchronous>, transform_indices = @transform_13, window_bounds = array<i64: 32, 128>}, {pipeline_mode = #tpu.pipeline_mode<synchronous>, transform_indices = @transform_14, window_bounds = array<i64: 1, 128>}, {transform_indices = @transform_15, window_bounds = array<i64: 1, 2, 32>}, {transform_indices = @transform_16, window_bounds = array<i64: 1, 2, 32>}, {transform_indices = @transform_17, window_bounds = array<i64: 1, 2, 8>}]} {
    %c0_i32 = arith.constant 0 : i32
    %0 = arith.cmpi eq, %arg0, %c0_i32 : i32
    %1 = arith.extui %0 : i1 to i32
    %c0_i32_0 = arith.constant 0 : i32
    %2 = arith.cmpi ne, %1, %c0_i32_0 : i32
    scf.if %2 {
      %cst_87 = arith.constant 0.000000e+00 : f32
      %211 = vector.broadcast %cst_87 : f32 to vector<2x32xf32>
      %c0_88 = arith.constant 0 : index
      %c0_89 = arith.constant 0 : index
      %212 = vector.load %arg19[%c0_88, %c0_89] : memref<2x32xf32, #tpu.memory_space<vmem>>, vector<2x32xf32>
      tpu.vector_store %arg19[%c0_88, %c0_89], %211 {strides = array<i32>} : memref<2x32xf32, #tpu.memory_space<vmem>>, vector<2x32xf32>,
      %cst_90 = arith.constant 0.000000e+00 : f32
      %213 = vector.broadcast %cst_90 : f32 to vector<2x32xf32>
      %c0_91 = arith.constant 0 : index
      %c0_92 = arith.constant 0 : index
      %214 = vector.load %arg20[%c0_91, %c0_92] : memref<2x32xf32, #tpu.memory_space<vmem>>, vector<2x32xf32>
      tpu.vector_store %arg20[%c0_91, %c0_92], %213 {strides = array<i32>} : memref<2x32xf32, #tpu.memory_space<vmem>>, vector<2x32xf32>,
      %cst_93 = arith.constant 0.000000e+00 : f32
      %215 = vector.broadcast %cst_93 : f32 to vector<2x32xf32>
      %c0_94 = arith.constant 0 : index
      %c0_95 = arith.constant 0 : index
      %216 = vector.load %arg21[%c0_94, %c0_95] : memref<2x32xf32, #tpu.memory_space<vmem>>, vector<2x32xf32>
      tpu.vector_store %arg21[%c0_94, %c0_95], %215 {strides = array<i32>} : memref<2x32xf32, #tpu.memory_space<vmem>>, vector<2x32xf32>,
      %cst_96 = arith.constant 0.000000e+00 : f32
      %217 = vector.broadcast %cst_96 : f32 to vector<2x32xf32>
      %c0_97 = arith.constant 0 : index
      %c0_98 = arith.constant 0 : index
      %218 = vector.load %arg22[%c0_97, %c0_98] : memref<2x32xf32, #tpu.memory_space<vmem>>, vector<2x32xf32>
      tpu.vector_store %arg22[%c0_97, %c0_98], %217 {strides = array<i32>} : memref<2x32xf32, #tpu.memory_space<vmem>>, vector<2x32xf32>,
      %cst_99 = arith.constant 0.000000e+00 : f32
      %219 = vector.broadcast %cst_99 : f32 to vector<2x12xf32>
      %c0_100 = arith.constant 0 : index
      %c0_101 = arith.constant 0 : index
      %220 = vector.load %arg23[%c0_100, %c0_101] : memref<2x12xf32, #tpu.memory_space<vmem>>, vector<2x12xf32>
      tpu.vector_store %arg23[%c0_100, %c0_101], %219 {strides = array<i32>} : memref<2x12xf32, #tpu.memory_space<vmem>>, vector<2x12xf32>,
      %cst_102 = arith.constant 0.000000e+00 : f32
      %221 = vector.broadcast %cst_102 : f32 to vector<2x12xf32>
      %c0_103 = arith.constant 0 : index
      %c0_104 = arith.constant 0 : index
      %222 = vector.load %arg24[%c0_103, %c0_104] : memref<2x12xf32, #tpu.memory_space<vmem>>, vector<2x12xf32>
      tpu.vector_store %arg24[%c0_103, %c0_104], %221 {strides = array<i32>} : memref<2x12xf32, #tpu.memory_space<vmem>>, vector<2x12xf32>,
      %cst_105 = arith.constant 0.000000e+00 : f32
      %223 = vector.broadcast %cst_105 : f32 to vector<2x32xf32>
      %c0_106 = arith.constant 0 : index
      %c0_107 = arith.constant 0 : index
      %224 = vector.load %arg25[%c0_106, %c0_107] : memref<2x32xf32, #tpu.memory_space<vmem>>, vector<2x32xf32>
      tpu.vector_store %arg25[%c0_106, %c0_107], %223 {strides = array<i32>} : memref<2x32xf32, #tpu.memory_space<vmem>>, vector<2x32xf32>,
    } else {
    }
    %c0 = arith.constant 0 : index
    %c0_1 = arith.constant 0 : index
    %c0_2 = arith.constant 0 : index
    %3 = vector.load %arg1[%c0, %c0_1, %c0_2] : memref<1x2x16xf32, #tpu.memory_space<vmem>>, vector<1x2x16xf32>
    %4 = vector.shape_cast %3 : vector<1x2x16xf32> to vector<2x16xf32>
    %c0_3 = arith.constant 0 : index
    %c0_4 = arith.constant 0 : index
    %5 = vector.load %arg25[%c0_3, %c0_4] : memref<2x32xf32, #tpu.memory_space<vmem>>, vector<2x32xf32>
    %c0_5 = arith.constant 0 : index
    %c0_6 = arith.constant 0 : index
    %6 = vector.load %arg7[%c0_5, %c0_6] : memref<16x128xf32, #tpu.memory_space<vmem>>, vector<16x128xf32>
    %cst = arith.constant dense<0.000000e+00> : vector<2x128xf32>
    %7 = tpu.matmul %4, %6, %cst {dimension_numbers = #tpu.dot_dimension_numbers<[1], [0], [0], [1], [0, 0, 1, 1], [], []>} : vector<2x16xf32>, vector<16x128xf32>, vector<2x128xf32> -> vector<2x128xf32>
    %c0_7 = arith.constant 0 : index
    %c0_8 = arith.constant 0 : index
    %8 = vector.load %arg8[%c0_7, %c0_8] : memref<32x128xf32, #tpu.memory_space<vmem>>, vector<32x128xf32>
    %cst_9 = arith.constant dense<0.000000e+00> : vector<2x128xf32>
    %9 = tpu.matmul %5, %8, %cst_9 {dimension_numbers = #tpu.dot_dimension_numbers<[1], [0], [0], [1], [0, 0, 1, 1], [], []>} : vector<2x32xf32>, vector<32x128xf32>, vector<2x128xf32> -> vector<2x128xf32>
    %10 = arith.addf %7, %9 : vector<2x128xf32>
    %c0_10 = arith.constant 0 : index
    %c0_11 = arith.constant 0 : index
    %11 = vector.load %arg19[%c0_10, %c0_11] : memref<2x32xf32, #tpu.memory_space<vmem>>, vector<2x32xf32>
    %c0_12 = arith.constant 0 : index
    %c0_13 = arith.constant 0 : index
    %12 = vector.load %arg9[%c0_12, %c0_13] : memref<32x128xf32, #tpu.memory_space<vmem>>, vector<32x128xf32>
    %cst_14 = arith.constant dense<0.000000e+00> : vector<2x128xf32>
    %13 = tpu.matmul %11, %12, %cst_14 {dimension_numbers = #tpu.dot_dimension_numbers<[1], [0], [0], [1], [0, 0, 1, 1], [], []>} : vector<2x32xf32>, vector<32x128xf32>, vector<2x128xf32> -> vector<2x128xf32>
    %14 = arith.addf %10, %13 : vector<2x128xf32>
    %c0_15 = arith.constant 0 : index
    %c0_16 = arith.constant 0 : index
    %15 = vector.load %arg10[%c0_15, %c0_16] : memref<1x128xf32, #tpu.memory_space<vmem>>, vector<1x128xf32>
    %16 = vector.broadcast %15 : vector<1x128xf32> to vector<2x128xf32>
    %17 = arith.addf %14, %16 : vector<2x128xf32>
    %c0_17 = arith.constant 0 : index
    %c0_18 = arith.constant 0 : index
    %18 = vector.load %arg20[%c0_17, %c0_18] : memref<2x32xf32, #tpu.memory_space<vmem>>, vector<2x32xf32>
    %19 = vector.extract_strided_slice %17 {offsets = [0, 0], sizes = [2, 32], strides = [1, 1]} : vector<2x128xf32> to vector<2x32xf32>
    %20 = arith.negf %19 : vector<2x32xf32>
    %21 = math.exp %20 : vector<2x32xf32>
    %cst_19 = arith.constant 1.000000e+00 : f32
    %22 = vector.broadcast %cst_19 : f32 to vector<2x32xf32>
    %23 = arith.addf %22, %21 : vector<2x32xf32>
    %24 = arith.divf %22, %23 : vector<2x32xf32>
    %25 = vector.extract_strided_slice %17 {offsets = [0, 32], sizes = [2, 32], strides = [1, 1]} : vector<2x128xf32> to vector<2x32xf32>
    %26 = arith.negf %25 : vector<2x32xf32>
    %27 = math.exp %26 : vector<2x32xf32>
    %cst_20 = arith.constant 1.000000e+00 : f32
    %28 = vector.broadcast %cst_20 : f32 to vector<2x32xf32>
    %29 = arith.addf %28, %27 : vector<2x32xf32>
    %30 = arith.divf %28, %29 : vector<2x32xf32>
    %31 = vector.extract_strided_slice %17 {offsets = [0, 64], sizes = [2, 32], strides = [1, 1]} : vector<2x128xf32> to vector<2x32xf32>
    %32 = math.tanh %31 : vector<2x32xf32>
    %33 = vector.extract_strided_slice %17 {offsets = [0, 96], sizes = [2, 32], strides = [1, 1]} : vector<2x128xf32> to vector<2x32xf32>
    %34 = arith.negf %33 : vector<2x32xf32>
    %35 = math.exp %34 : vector<2x32xf32>
    %cst_21 = arith.constant 1.000000e+00 : f32
    %36 = vector.broadcast %cst_21 : f32 to vector<2x32xf32>
    %37 = arith.addf %36, %35 : vector<2x32xf32>
    %38 = arith.divf %36, %37 : vector<2x32xf32>
    %39 = arith.mulf %30, %18 : vector<2x32xf32>
    %40 = arith.mulf %24, %32 : vector<2x32xf32>
    %41 = arith.addf %39, %40 : vector<2x32xf32>
    %42 = math.tanh %41 : vector<2x32xf32>
    %43 = arith.mulf %38, %42 : vector<2x32xf32>
    %c0_22 = arith.constant 0 : index
    %c0_23 = arith.constant 0 : index
    %44 = vector.load %arg19[%c0_22, %c0_23] : memref<2x32xf32, #tpu.memory_space<vmem>>, vector<2x32xf32>
    tpu.vector_store %arg19[%c0_22, %c0_23], %43 {strides = array<i32>} : memref<2x32xf32, #tpu.memory_space<vmem>>, vector<2x32xf32>,
    %c0_24 = arith.constant 0 : index
    %c0_25 = arith.constant 0 : index
    %45 = vector.load %arg20[%c0_24, %c0_25] : memref<2x32xf32, #tpu.memory_space<vmem>>, vector<2x32xf32>
    tpu.vector_store %arg20[%c0_24, %c0_25], %41 {strides = array<i32>} : memref<2x32xf32, #tpu.memory_space<vmem>>, vector<2x32xf32>,
    %c0_26 = arith.constant 0 : index
    %c0_27 = arith.constant 0 : index
    %46 = vector.load %arg6[%c0_26, %c0_27] : memref<10x16xf32, #tpu.memory_space<vmem>>, vector<10x16xf32>
    %c0_28 = arith.constant 0 : index
    %c0_29 = arith.constant 0 : index
    %47 = vector.load %arg23[%c0_28, %c0_29] : memref<2x12xf32, #tpu.memory_space<vmem>>, vector<2x12xf32>
    %c0_30 = arith.constant 0 : index
    %c0_31 = arith.constant 0 : index
    %48 = vector.load %arg24[%c0_30, %c0_31] : memref<2x12xf32, #tpu.memory_space<vmem>>, vector<2x12xf32>
    %cst_32 = arith.constant 0.000000e+00 : f32
    %49 = vector.broadcast %cst_32 : f32 to vector<2x8x16xf32>
    %50 = vector.extract_strided_slice %46 {offsets = [0, 0], sizes = [1, 16], strides = [1, 1]} : vector<10x16xf32> to vector<1x16xf32>
    %51 = vector.shape_cast %50 : vector<1x16xf32> to vector<1x1x16xf32>
    %52 = vector.extract_strided_slice %47 {offsets = [0, 0], sizes = [2, 8], strides = [1, 1]} : vector<2x12xf32> to vector<2x8xf32>
    %53 = vector.shape_cast %52 : vector<2x8xf32> to vector<2x8x1xf32>
    %54 = vector.broadcast %53 : vector<2x8x1xf32> to vector<2x8x16xf32>
    %55 = vector.broadcast %51 : vector<1x1x16xf32> to vector<2x8x16xf32>
    %56 = arith.mulf %54, %55 : vector<2x8x16xf32>
    %57 = arith.addf %49, %56 : vector<2x8x16xf32>
    %58 = vector.extract_strided_slice %46 {offsets = [1, 0], sizes = [1, 16], strides = [1, 1]} : vector<10x16xf32> to vector<1x16xf32>
    %59 = vector.shape_cast %58 : vector<1x16xf32> to vector<1x1x16xf32>
    %60 = vector.extract_strided_slice %47 {offsets = [0, 1], sizes = [2, 8], strides = [1, 1]} : vector<2x12xf32> to vector<2x8xf32>
    %61 = vector.shape_cast %60 : vector<2x8xf32> to vector<2x8x1xf32>
    %62 = vector.broadcast %61 : vector<2x8x1xf32> to vector<2x8x16xf32>
    %63 = vector.broadcast %59 : vector<1x1x16xf32> to vector<2x8x16xf32>
    %64 = arith.mulf %62, %63 : vector<2x8x16xf32>
    %65 = arith.addf %57, %64 : vector<2x8x16xf32>
    %66 = vector.extract_strided_slice %46 {offsets = [2, 0], sizes = [1, 16], strides = [1, 1]} : vector<10x16xf32> to vector<1x16xf32>
    %67 = vector.shape_cast %66 : vector<1x16xf32> to vector<1x1x16xf32>
    %68 = vector.extract_strided_slice %47 {offsets = [0, 2], sizes = [2, 8], strides = [1, 1]} : vector<2x12xf32> to vector<2x8xf32>
    %69 = vector.shape_cast %68 : vector<2x8xf32> to vector<2x8x1xf32>
    %70 = vector.broadcast %69 : vector<2x8x1xf32> to vector<2x8x16xf32>
    %71 = vector.broadcast %67 : vector<1x1x16xf32> to vector<2x8x16xf32>
    %72 = arith.mulf %70, %71 : vector<2x8x16xf32>
    %73 = arith.addf %65, %72 : vector<2x8x16xf32>
    %74 = vector.extract_strided_slice %46 {offsets = [3, 0], sizes = [1, 16], strides = [1, 1]} : vector<10x16xf32> to vector<1x16xf32>
    %75 = vector.shape_cast %74 : vector<1x16xf32> to vector<1x1x16xf32>
    %76 = vector.extract_strided_slice %47 {offsets = [0, 3], sizes = [2, 8], strides = [1, 1]} : vector<2x12xf32> to vector<2x8xf32>
    %77 = vector.shape_cast %76 : vector<2x8xf32> to vector<2x8x1xf32>
    %78 = vector.broadcast %77 : vector<2x8x1xf32> to vector<2x8x16xf32>
    %79 = vector.broadcast %75 : vector<1x1x16xf32> to vector<2x8x16xf32>
    %80 = arith.mulf %78, %79 : vector<2x8x16xf32>
    %81 = arith.addf %73, %80 : vector<2x8x16xf32>
    %82 = vector.extract_strided_slice %46 {offsets = [4, 0], sizes = [1, 16], strides = [1, 1]} : vector<10x16xf32> to vector<1x16xf32>
    %83 = vector.shape_cast %82 : vector<1x16xf32> to vector<1x1x16xf32>
    %84 = vector.extract_strided_slice %47 {offsets = [0, 4], sizes = [2, 8], strides = [1, 1]} : vector<2x12xf32> to vector<2x8xf32>
    %85 = vector.shape_cast %84 : vector<2x8xf32> to vector<2x8x1xf32>
    %86 = vector.broadcast %85 : vector<2x8x1xf32> to vector<2x8x16xf32>
    %87 = vector.broadcast %83 : vector<1x1x16xf32> to vector<2x8x16xf32>
    %88 = arith.mulf %86, %87 : vector<2x8x16xf32>
    %89 = arith.addf %81, %88 : vector<2x8x16xf32>
    %90 = vector.extract_strided_slice %46 {offsets = [5, 0], sizes = [1, 16], strides = [1, 1]} : vector<10x16xf32> to vector<1x16xf32>
    %91 = vector.shape_cast %90 : vector<1x16xf32> to vector<1x1x16xf32>
    %92 = vector.extract_strided_slice %48 {offsets = [0, 0], sizes = [2, 8], strides = [1, 1]} : vector<2x12xf32> to vector<2x8xf32>
    %93 = vector.shape_cast %92 : vector<2x8xf32> to vector<2x8x1xf32>
    %94 = vector.broadcast %93 : vector<2x8x1xf32> to vector<2x8x16xf32>
    %95 = vector.broadcast %91 : vector<1x1x16xf32> to vector<2x8x16xf32>
    %96 = arith.mulf %94, %95 : vector<2x8x16xf32>
    %97 = arith.addf %89, %96 : vector<2x8x16xf32>
    %98 = vector.extract_strided_slice %46 {offsets = [6, 0], sizes = [1, 16], strides = [1, 1]} : vector<10x16xf32> to vector<1x16xf32>
    %99 = vector.shape_cast %98 : vector<1x16xf32> to vector<1x1x16xf32>
    %100 = vector.extract_strided_slice %48 {offsets = [0, 1], sizes = [2, 8], strides = [1, 1]} : vector<2x12xf32> to vector<2x8xf32>
    %101 = vector.shape_cast %100 : vector<2x8xf32> to vector<2x8x1xf32>
    %102 = vector.broadcast %101 : vector<2x8x1xf32> to vector<2x8x16xf32>
    %103 = vector.broadcast %99 : vector<1x1x16xf32> to vector<2x8x16xf32>
    %104 = arith.mulf %102, %103 : vector<2x8x16xf32>
    %105 = arith.addf %97, %104 : vector<2x8x16xf32>
    %106 = vector.extract_strided_slice %46 {offsets = [7, 0], sizes = [1, 16], strides = [1, 1]} : vector<10x16xf32> to vector<1x16xf32>
    %107 = vector.shape_cast %106 : vector<1x16xf32> to vector<1x1x16xf32>
    %108 = vector.extract_strided_slice %48 {offsets = [0, 2], sizes = [2, 8], strides = [1, 1]} : vector<2x12xf32> to vector<2x8xf32>
    %109 = vector.shape_cast %108 : vector<2x8xf32> to vector<2x8x1xf32>
    %110 = vector.broadcast %109 : vector<2x8x1xf32> to vector<2x8x16xf32>
    %111 = vector.broadcast %107 : vector<1x1x16xf32> to vector<2x8x16xf32>
    %112 = arith.mulf %110, %111 : vector<2x8x16xf32>
    %113 = arith.addf %105, %112 : vector<2x8x16xf32>
    %114 = vector.extract_strided_slice %46 {offsets = [8, 0], sizes = [1, 16], strides = [1, 1]} : vector<10x16xf32> to vector<1x16xf32>
    %115 = vector.shape_cast %114 : vector<1x16xf32> to vector<1x1x16xf32>
    %116 = vector.extract_strided_slice %48 {offsets = [0, 3], sizes = [2, 8], strides = [1, 1]} : vector<2x12xf32> to vector<2x8xf32>
    %117 = vector.shape_cast %116 : vector<2x8xf32> to vector<2x8x1xf32>
    %118 = vector.broadcast %117 : vector<2x8x1xf32> to vector<2x8x16xf32>
    %119 = vector.broadcast %115 : vector<1x1x16xf32> to vector<2x8x16xf32>
    %120 = arith.mulf %118, %119 : vector<2x8x16xf32>
    %121 = arith.addf %113, %120 : vector<2x8x16xf32>
    %122 = vector.extract_strided_slice %46 {offsets = [9, 0], sizes = [1, 16], strides = [1, 1]} : vector<10x16xf32> to vector<1x16xf32>
    %123 = vector.shape_cast %122 : vector<1x16xf32> to vector<1x1x16xf32>
    %124 = vector.extract_strided_slice %48 {offsets = [0, 4], sizes = [2, 8], strides = [1, 1]} : vector<2x12xf32> to vector<2x8xf32>
    %125 = vector.shape_cast %124 : vector<2x8xf32> to vector<2x8x1xf32>
    %126 = vector.broadcast %125 : vector<2x8x1xf32> to vector<2x8x16xf32>
    %127 = vector.broadcast %123 : vector<1x1x16xf32> to vector<2x8x16xf32>
    %128 = arith.mulf %126, %127 : vector<2x8x16xf32>
    %129 = arith.addf %121, %128 : vector<2x8x16xf32>
    %c0_33 = arith.constant 0 : index
    %c0_34 = arith.constant 0 : index
    %130 = vector.load %arg11[%c0_33, %c0_34] : memref<32x16xf32, #tpu.memory_space<vmem>>, vector<32x16xf32>
    %cst_35 = arith.constant dense<0.000000e+00> : vector<2x16xf32>
    %131 = tpu.matmul %43, %130, %cst_35 {dimension_numbers = #tpu.dot_dimension_numbers<[1], [0], [0], [1], [0, 0, 1, 1], [], []>} : vector<2x32xf32>, vector<32x16xf32>, vector<2x16xf32> -> vector<2x16xf32>
    %132 = vector.shape_cast %131 : vector<2x16xf32> to vector<2x1x16xf32>
    %133 = vector.broadcast %132 : vector<2x1x16xf32> to vector<2x8x16xf32>
    %134 = arith.addf %133, %129 : vector<2x8x16xf32>
    %c0_36 = arith.constant 0 : index
    %c0_37 = arith.constant 0 : index
    %c0_38 = arith.constant 0 : index
    %135 = vector.load %arg3[%c0_36, %c0_37, %c0_38] : memref<2x8x16xf32, #tpu.memory_space<vmem>>, vector<2x8x16xf32>
    %136 = arith.addf %134, %135 : vector<2x8x16xf32>
    %137 = math.tanh %136 : vector<2x8x16xf32>
    %c0_39 = arith.constant 0 : index
    %c0_40 = arith.constant 0 : index
    %c0_41 = arith.constant 0 : index
    %138 = vector.load %arg5[%c0_39, %c0_40, %c0_41] : memref<1x1x16xf32, #tpu.memory_space<vmem>>, vector<1x1x16xf32>
    %139 = vector.broadcast %138 : vector<1x1x16xf32> to vector<2x8x16xf32>
    %140 = arith.mulf %137, %139 : vector<2x8x16xf32>
    %cst_42 = arith.constant dense<0.000000e+00> : vector<2x8xf32>
    %141 = vector.multi_reduction <add>, %140, %cst_42 [2] : vector<2x8x16xf32> to vector<2x8xf32>
    %c0_43 = arith.constant 0 : index
    %c0_44 = arith.constant 0 : index
    %142 = vector.load %arg4[%c0_43, %c0_44] : memref<2x8xf32, #tpu.memory_space<vmem>>, vector<2x8xf32>
    %143 = arith.addf %141, %142 : vector<2x8xf32>
    %cst_45 = arith.constant dense<0xFF800000> : vector<2xf32>
    %144 = vector.multi_reduction <maximumf>, %143, %cst_45 [1] : vector<2x8xf32> to vector<2xf32>
    %145 = vector.shape_cast %144 : vector<2xf32> to vector<2x1xf32>
    %146 = vector.broadcast %145 : vector<2x1xf32> to vector<2x8xf32>
    %147 = arith.subf %143, %146 : vector<2x8xf32>
    %148 = math.exp %147 : vector<2x8xf32>
    %cst_46 = arith.constant dense<0.000000e+00> : vector<2xf32>
    %149 = vector.multi_reduction <add>, %148, %cst_46 [1] : vector<2x8xf32> to vector<2xf32>
    %150 = vector.shape_cast %149 : vector<2xf32> to vector<2x1xf32>
    %151 = vector.broadcast %150 : vector<2x1xf32> to vector<2x8xf32>
    %152 = arith.divf %148, %151 : vector<2x8xf32>
    %c0_47 = arith.constant 0 : index
    %c0_48 = arith.constant 0 : index
    %c0_49 = arith.constant 0 : index
    %153 = vector.load %arg18[%c0_47, %c0_48, %c0_49] : memref<1x2x8xf32, #tpu.memory_space<vmem>>, vector<1x2x8xf32>
    %154 = vector.shape_cast %153 : vector<1x2x8xf32> to vector<2x8xf32>
    %155 = vector.shape_cast %152 : vector<2x8xf32> to vector<1x2x8xf32>
    tpu.vector_store %arg18[%c0_47, %c0_48, %c0_49], %155 {strides = array<i32>} : memref<1x2x8xf32, #tpu.memory_space<vmem>>, vector<1x2x8xf32>,
    %c0_50 = arith.constant 0 : index
    %c2 = arith.constant 2 : index
    %156 = vector.load %arg23[%c0_50, %c2] : memref<2x12xf32, #tpu.memory_space<vmem>>, vector<2x8xf32>
    tpu.vector_store %arg23[%c0_50, %c2], %152 {strides = array<i32>} : memref<2x12xf32, #tpu.memory_space<vmem>>, vector<2x8xf32>,
    %157 = vector.extract_strided_slice %48 {offsets = [0, 2], sizes = [2, 8], strides = [1, 1]} : vector<2x12xf32> to vector<2x8xf32>
    %158 = arith.addf %157, %152 : vector<2x8xf32>
    %c0_51 = arith.constant 0 : index
    %c2_52 = arith.constant 2 : index
    %159 = vector.load %arg24[%c0_51, %c2_52] : memref<2x12xf32, #tpu.memory_space<vmem>>, vector<2x8xf32>
    tpu.vector_store %arg24[%c0_51, %c2_52], %158 {strides = array<i32>} : memref<2x12xf32, #tpu.memory_space<vmem>>, vector<2x8xf32>,
    %160 = vector.shape_cast %152 : vector<2x8xf32> to vector<2x1x8xf32>
    %c0_53 = arith.constant 0 : index
    %c0_54 = arith.constant 0 : index
    %c0_55 = arith.constant 0 : index
    %161 = vector.load %arg2[%c0_53, %c0_54, %c0_55] : memref<2x8x32xf32, #tpu.memory_space<vmem>>, vector<2x8x32xf32>
    "tpu.trace_start"() <{level = 10 : i32, message = "bqt,bte->bqe"}> : () -> ()
    %cst_56 = arith.constant dense<0.000000e+00> : vector<2x1x32xf32>
    %162 = tpu.matmul %160, %161, %cst_56 {dimension_numbers = #tpu.dot_dimension_numbers<[2], [1], [1], [2], [0, 0, 0, 1, 1, 2], [0], [0]>} : vector<2x1x8xf32>, vector<2x8x32xf32>, vector<2x1x32xf32> -> vector<2x1x32xf32>
    "tpu.trace_stop"() : () -> ()
    %163 = vector.shape_cast %162 : vector<2x1x32xf32> to vector<2x32xf32>
    %c0_57 = arith.constant 0 : index
    %c0_58 = arith.constant 0 : index
    %164 = vector.load %arg25[%c0_57, %c0_58] : memref<2x32xf32, #tpu.memory_space<vmem>>, vector<2x32xf32>
    tpu.vector_store %arg25[%c0_57, %c0_58], %163 {strides = array<i32>} : memref<2x32xf32, #tpu.memory_space<vmem>>, vector<2x32xf32>,
    %c0_59 = arith.constant 0 : index
    %c0_60 = arith.constant 0 : index
    %c0_61 = arith.constant 0 : index
    %165 = vector.load %arg17[%c0_59, %c0_60, %c0_61] : memref<1x2x32xf32, #tpu.memory_space<vmem>>, vector<1x2x32xf32>
    %166 = vector.shape_cast %165 : vector<1x2x32xf32> to vector<2x32xf32>
    %167 = vector.shape_cast %163 : vector<2x32xf32> to vector<1x2x32xf32>
    tpu.vector_store %arg17[%c0_59, %c0_60, %c0_61], %167 {strides = array<i32>} : memref<1x2x32xf32, #tpu.memory_space<vmem>>, vector<1x2x32xf32>,
    %c0_62 = arith.constant 0 : index
    %c0_63 = arith.constant 0 : index
    %168 = vector.load %arg12[%c0_62, %c0_63] : memref<32x128xf32, #tpu.memory_space<vmem>>, vector<32x128xf32>
    %cst_64 = arith.constant dense<0.000000e+00> : vector<2x128xf32>
    %169 = tpu.matmul %43, %168, %cst_64 {dimension_numbers = #tpu.dot_dimension_numbers<[1], [0], [0], [1], [0, 0, 1, 1], [], []>} : vector<2x32xf32>, vector<32x128xf32>, vector<2x128xf32> -> vector<2x128xf32>
    %c0_65 = arith.constant 0 : index
    %c0_66 = arith.constant 0 : index
    %170 = vector.load %arg13[%c0_65, %c0_66] : memref<32x128xf32, #tpu.memory_space<vmem>>, vector<32x128xf32>
    %cst_67 = arith.constant dense<0.000000e+00> : vector<2x128xf32>
    %171 = tpu.matmul %163, %170, %cst_67 {dimension_numbers = #tpu.dot_dimension_numbers<[1], [0], [0], [1], [0, 0, 1, 1], [], []>} : vector<2x32xf32>, vector<32x128xf32>, vector<2x128xf32> -> vector<2x128xf32>
    %172 = arith.addf %169, %171 : vector<2x128xf32>
    %c0_68 = arith.constant 0 : index
    %c0_69 = arith.constant 0 : index
    %173 = vector.load %arg21[%c0_68, %c0_69] : memref<2x32xf32, #tpu.memory_space<vmem>>, vector<2x32xf32>
    %c0_70 = arith.constant 0 : index
    %c0_71 = arith.constant 0 : index
    %174 = vector.load %arg14[%c0_70, %c0_71] : memref<32x128xf32, #tpu.memory_space<vmem>>, vector<32x128xf32>
    %cst_72 = arith.constant dense<0.000000e+00> : vector<2x128xf32>
    %175 = tpu.matmul %173, %174, %cst_72 {dimension_numbers = #tpu.dot_dimension_numbers<[1], [0], [0], [1], [0, 0, 1, 1], [], []>} : vector<2x32xf32>, vector<32x128xf32>, vector<2x128xf32> -> vector<2x128xf32>
    %176 = arith.addf %172, %175 : vector<2x128xf32>
    %c0_73 = arith.constant 0 : index
    %c0_74 = arith.constant 0 : index
    %177 = vector.load %arg15[%c0_73, %c0_74] : memref<1x128xf32, #tpu.memory_space<vmem>>, vector<1x128xf32>
    %178 = vector.broadcast %177 : vector<1x128xf32> to vector<2x128xf32>
    %179 = arith.addf %176, %178 : vector<2x128xf32>
    %c0_75 = arith.constant 0 : index
    %c0_76 = arith.constant 0 : index
    %180 = vector.load %arg22[%c0_75, %c0_76] : memref<2x32xf32, #tpu.memory_space<vmem>>, vector<2x32xf32>
    %181 = vector.extract_strided_slice %179 {offsets = [0, 0], sizes = [2, 32], strides = [1, 1]} : vector<2x128xf32> to vector<2x32xf32>
    %182 = arith.negf %181 : vector<2x32xf32>
    %183 = math.exp %182 : vector<2x32xf32>
    %cst_77 = arith.constant 1.000000e+00 : f32
    %184 = vector.broadcast %cst_77 : f32 to vector<2x32xf32>
    %185 = arith.addf %184, %183 : vector<2x32xf32>
    %186 = arith.divf %184, %185 : vector<2x32xf32>
    %187 = vector.extract_strided_slice %179 {offsets = [0, 32], sizes = [2, 32], strides = [1, 1]} : vector<2x128xf32> to vector<2x32xf32>
    %188 = arith.negf %187 : vector<2x32xf32>
    %189 = math.exp %188 : vector<2x32xf32>
    %cst_78 = arith.constant 1.000000e+00 : f32
    %190 = vector.broadcast %cst_78 : f32 to vector<2x32xf32>
    %191 = arith.addf %190, %189 : vector<2x32xf32>
    %192 = arith.divf %190, %191 : vector<2x32xf32>
    %193 = vector.extract_strided_slice %179 {offsets = [0, 64], sizes = [2, 32], strides = [1, 1]} : vector<2x128xf32> to vector<2x32xf32>
    %194 = math.tanh %193 : vector<2x32xf32>
    %195 = vector.extract_strided_slice %179 {offsets = [0, 96], sizes = [2, 32], strides = [1, 1]} : vector<2x128xf32> to vector<2x32xf32>
    %196 = arith.negf %195 : vector<2x32xf32>
    %197 = math.exp %196 : vector<2x32xf32>
    %cst_79 = arith.constant 1.000000e+00 : f32
    %198 = vector.broadcast %cst_79 : f32 to vector<2x32xf32>
    %199 = arith.addf %198, %197 : vector<2x32xf32>
    %200 = arith.divf %198, %199 : vector<2x32xf32>
    %201 = arith.mulf %192, %180 : vector<2x32xf32>
    %202 = arith.mulf %186, %194 : vector<2x32xf32>
    %203 = arith.addf %201, %202 : vector<2x32xf32>
    %204 = math.tanh %203 : vector<2x32xf32>
    %205 = arith.mulf %200, %204 : vector<2x32xf32>
    %c0_80 = arith.constant 0 : index
    %c0_81 = arith.constant 0 : index
    %206 = vector.load %arg21[%c0_80, %c0_81] : memref<2x32xf32, #tpu.memory_space<vmem>>, vector<2x32xf32>
    tpu.vector_store %arg21[%c0_80, %c0_81], %205 {strides = array<i32>} : memref<2x32xf32, #tpu.memory_space<vmem>>, vector<2x32xf32>,
    %c0_82 = arith.constant 0 : index
    %c0_83 = arith.constant 0 : index
    %207 = vector.load %arg22[%c0_82, %c0_83] : memref<2x32xf32, #tpu.memory_space<vmem>>, vector<2x32xf32>
    tpu.vector_store %arg22[%c0_82, %c0_83], %203 {strides = array<i32>} : memref<2x32xf32, #tpu.memory_space<vmem>>, vector<2x32xf32>,
    %c0_84 = arith.constant 0 : index
    %c0_85 = arith.constant 0 : index
    %c0_86 = arith.constant 0 : index
    %208 = vector.load %arg16[%c0_84, %c0_85, %c0_86] : memref<1x2x32xf32, #tpu.memory_space<vmem>>, vector<1x2x32xf32>
    %209 = vector.shape_cast %208 : vector<1x2x32xf32> to vector<2x32xf32>
    %210 = vector.shape_cast %205 : vector<2x32xf32> to vector<1x2x32xf32>
    tpu.vector_store %arg16[%c0_84, %c0_85, %c0_86], %210 {strides = array<i32>} : memref<1x2x32xf32, #tpu.memory_space<vmem>>, vector<1x2x32xf32>,
    return
  }
  func.func @transform_0(%arg0: i32) -> (i32, i32, i32) {
    %c0_i32 = arith.constant 0 : i32
    %c0_i32_0 = arith.constant 0 : i32
    %c0_i32_1 = arith.constant 0 : i32
    return %arg0, %c0_i32, %c0_i32_0 : i32, i32, i32
  }
  func.func @transform_1(%arg0: i32) -> (i32, i32, i32) {
    %c0_i32 = arith.constant 0 : i32
    %c0_i32_0 = arith.constant 0 : i32
    %c0_i32_1 = arith.constant 0 : i32
    %c0_i32_2 = arith.constant 0 : i32
    return %c0_i32, %c0_i32_0, %c0_i32_1 : i32, i32, i32
  }
  func.func @transform_2(%arg0: i32) -> (i32, i32, i32) {
    %c0_i32 = arith.constant 0 : i32
    %c0_i32_0 = arith.constant 0 : i32
    %c0_i32_1 = arith.constant 0 : i32
    %c0_i32_2 = arith.constant 0 : i32
    return %c0_i32, %c0_i32_0, %c0_i32_1 : i32, i32, i32
  }
  func.func @transform_3(%arg0: i32) -> (i32, i32) {
    %c0_i32 = arith.constant 0 : i32
    %c0_i32_0 = arith.constant 0 : i32
    %c0_i32_1 = arith.constant 0 : i32
    return %c0_i32, %c0_i32_0 : i32, i32
  }
  func.func @transform_4(%arg0: i32) -> (i32, i32, i32) {
    %c0_i32 = arith.constant 0 : i32
    %c0_i32_0 = arith.constant 0 : i32
    %c0_i32_1 = arith.constant 0 : i32
    %c0_i32_2 = arith.constant 0 : i32
    return %c0_i32, %c0_i32_0, %c0_i32_1 : i32, i32, i32
  }
  func.func @transform_5(%arg0: i32) -> (i32, i32) {
    %c0_i32 = arith.constant 0 : i32
    %c0_i32_0 = arith.constant 0 : i32
    %c0_i32_1 = arith.constant 0 : i32
    return %c0_i32, %c0_i32_0 : i32, i32
  }
  func.func @transform_6(%arg0: i32) -> (i32, i32) {
    %c0_i32 = arith.constant 0 : i32
    %c0_i32_0 = arith.constant 0 : i32
    %c0_i32_1 = arith.constant 0 : i32
    return %c0_i32, %c0_i32_0 : i32, i32
  }
  func.func @transform_7(%arg0: i32) -> (i32, i32) {
    %c0_i32 = arith.constant 0 : i32
    %c0_i32_0 = arith.constant 0 : i32
    %c0_i32_1 = arith.constant 0 : i32
    return %c0_i32, %c0_i32_0 : i32, i32
  }
  func.func @transform_8(%arg0: i32) -> (i32, i32) {
    %c0_i32 = arith.constant 0 : i32
    %c0_i32_0 = arith.constant 0 : i32
    %c0_i32_1 = arith.constant 0 : i32
    return %c0_i32, %c0_i32_0 : i32, i32
  }
  func.func @transform_9(%arg0: i32) -> (i32, i32) {
    %c0_i32 = arith.constant 0 : i32
    %c0_i32_0 = arith.constant 0 : i32
    %c0_i32_1 = arith.constant 0 : i32
    return %c0_i32, %c0_i32_0 : i32, i32
  }
  func.func @transform_10(%arg0: i32) -> (i32, i32) {
    %c0_i32 = arith.constant 0 : i32
    %c0_i32_0 = arith.constant 0 : i32
    %c0_i32_1 = arith.constant 0 : i32
    return %c0_i32, %c0_i32_0 : i32, i32
  }
  func.func @transform_11(%arg0: i32) -> (i32, i32) {
    %c0_i32 = arith.constant 0 : i32
    %c0_i32_0 = arith.constant 0 : i32
    %c0_i32_1 = arith.constant 0 : i32
    return %c0_i32, %c0_i32_0 : i32, i32
  }
  func.func @transform_12(%arg0: i32) -> (i32, i32) {
    %c0_i32 = arith.constant 0 : i32
    %c0_i32_0 = arith.constant 0 : i32
    %c0_i32_1 = arith.constant 0 : i32
    return %c0_i32, %c0_i32_0 : i32, i32
  }
  func.func @transform_13(%arg0: i32) -> (i32, i32) {
    %c0_i32 = arith.constant 0 : i32
    %c0_i32_0 = arith.constant 0 : i32
    %c0_i32_1 = arith.constant 0 : i32
    return %c0_i32, %c0_i32_0 : i32, i32
  }
  func.func @transform_14(%arg0: i32) -> (i32, i32) {
    %c0_i32 = arith.constant 0 : i32
    %c0_i32_0 = arith.constant 0 : i32
    %c0_i32_1 = arith.constant 0 : i32
    return %c0_i32, %c0_i32_0 : i32, i32
  }
  func.func @transform_15(%arg0: i32) -> (i32, i32, i32) {
    %c0_i32 = arith.constant 0 : i32
    %c0_i32_0 = arith.constant 0 : i32
    %c0_i32_1 = arith.constant 0 : i32
    return %arg0, %c0_i32, %c0_i32_0 : i32, i32, i32
  }
  func.func @transform_16(%arg0: i32) -> (i32, i32, i32) {
    %c0_i32 = arith.constant 0 : i32
    %c0_i32_0 = arith.constant 0 : i32
    %c0_i32_1 = arith.constant 0 : i32
    return %arg0, %c0_i32, %c0_i32_0 : i32, i32, i32
  }
  func.func @transform_17(%arg0: i32) -> (i32, i32, i32) {
    %c0_i32 = arith.constant 0 : i32
    %c0_i32_0 = arith.constant 0 : i32
    %c0_i32_1 = arith.constant 0 : i32
    return %arg0, %c0_i32, %c0_i32_0 : i32, i32, i32
  }
}

module attributes {stable_mosaic.version = 11 : i64} {
  func.func @_linear_kernel(%arg0: memref<12x64xf32, #tpu.memory_space<vmem>>, %arg1: memref<64x9xf32, #tpu.memory_space<vmem>>, %arg2: memref<1x9xf32, #tpu.memory_space<vmem>>, %arg3: memref<12x9xf32, #tpu.memory_space<vmem>>) attributes {dimension_semantics = [], scalar_prefetch = 0 : i64, scratch_operands = 0 : i64, tpu.core_type = #tpu.core_type<tc>} {
    %c0 = arith.constant 0 : index
    %c0_0 = arith.constant 0 : index
    %0 = vector.load %arg0[%c0, %c0_0] : memref<12x64xf32, #tpu.memory_space<vmem>>, vector<12x64xf32>
    %c0_1 = arith.constant 0 : index
    %c0_2 = arith.constant 0 : index
    %1 = vector.load %arg1[%c0_1, %c0_2] : memref<64x9xf32, #tpu.memory_space<vmem>>, vector<64x9xf32>
    %cst = arith.constant dense<0.000000e+00> : vector<12x9xf32>
    %2 = tpu.matmul %0, %1, %cst {dimension_numbers = #tpu.dot_dimension_numbers<[1], [0], [0], [1], [0, 0, 1, 1], [], []>} : vector<12x64xf32>, vector<64x9xf32>, vector<12x9xf32> -> vector<12x9xf32>
    %c0_3 = arith.constant 0 : index
    %c0_4 = arith.constant 0 : index
    %3 = vector.load %arg2[%c0_3, %c0_4] : memref<1x9xf32, #tpu.memory_space<vmem>>, vector<1x9xf32>
    %4 = vector.broadcast %3 : vector<1x9xf32> to vector<12x9xf32>
    %5 = arith.addf %2, %4 : vector<12x9xf32>
    %c0_5 = arith.constant 0 : index
    %c0_6 = arith.constant 0 : index
    %6 = vector.load %arg3[%c0_5, %c0_6] : memref<12x9xf32, #tpu.memory_space<vmem>>, vector<12x9xf32>
    tpu.vector_store %arg3[%c0_5, %c0_6], %5 {strides = array<i32>} : memref<12x9xf32, #tpu.memory_space<vmem>>, vector<12x9xf32>,
    return
  }
}

module attributes {stable_mosaic.version = 11 : i64} {
  func.func @_conv_stack_kernel(%arg0: memref<2x6x8xf32, #tpu.memory_space<vmem>>, %arg1: memref<5x8x32xf32, #tpu.memory_space<vmem>>, %arg2: memref<1x32xf32, #tpu.memory_space<vmem>>, %arg3: memref<1x32xf32, #tpu.memory_space<vmem>>, %arg4: memref<1x32xf32, #tpu.memory_space<vmem>>, %arg5: memref<5x32x32xf32, #tpu.memory_space<vmem>>, %arg6: memref<1x32xf32, #tpu.memory_space<vmem>>, %arg7: memref<1x32xf32, #tpu.memory_space<vmem>>, %arg8: memref<1x32xf32, #tpu.memory_space<vmem>>, %arg9: memref<5x32x32xf32, #tpu.memory_space<vmem>>, %arg10: memref<1x32xf32, #tpu.memory_space<vmem>>, %arg11: memref<1x32xf32, #tpu.memory_space<vmem>>, %arg12: memref<1x32xf32, #tpu.memory_space<vmem>>, %arg13: memref<5x32x32xf32, #tpu.memory_space<vmem>>, %arg14: memref<1x32xf32, #tpu.memory_space<vmem>>, %arg15: memref<1x32xf32, #tpu.memory_space<vmem>>, %arg16: memref<1x32xf32, #tpu.memory_space<vmem>>, %arg17: memref<5x32x8xf32, #tpu.memory_space<vmem>>, %arg18: memref<1x8xf32, #tpu.memory_space<vmem>>, %arg19: memref<1x8xf32, #tpu.memory_space<vmem>>, %arg20: memref<1x8xf32, #tpu.memory_space<vmem>>, %arg21: memref<2x6x8xf32, #tpu.memory_space<vmem>>) attributes {dimension_semantics = [], scalar_prefetch = 0 : i64, scratch_operands = 0 : i64, tpu.core_type = #tpu.core_type<tc>} {
    %c0 = arith.constant 0 : index
    %c0_0 = arith.constant 0 : index
    %c0_1 = arith.constant 0 : index
    %0 = vector.load %arg0[%c0, %c0_0, %c0_1] : memref<2x6x8xf32, #tpu.memory_space<vmem>>, vector<2x6x8xf32>
    %cst = arith.constant 0.000000e+00 : f32
    %1 = vector.broadcast %cst : f32 to vector<2x2x8xf32>
    %cst_2 = arith.constant 0.000000e+00 : f32
    %2 = vector.broadcast %cst_2 : f32 to vector<2x2x8xf32>
    %3 = tpu.concatenate %1, %0, %2 in 1 : vector<2x2x8xf32>, vector<2x6x8xf32>, vector<2x2x8xf32> -> vector<2x10x8xf32>
    %cst_3 = arith.constant 0.000000e+00 : f32
    %4 = vector.broadcast %cst_3 : f32 to vector<12x32xf32>
    %5 = vector.extract_strided_slice %3 {offsets = [0, 0, 0], sizes = [2, 6, 8], strides = [1, 1, 1]} : vector<2x10x8xf32> to vector<2x6x8xf32>
    %6 = vector.shape_cast %5 : vector<2x6x8xf32> to vector<12x8xf32>
    %c0_4 = arith.constant 0 : index
    %c0_5 = arith.constant 0 : index
    %c0_6 = arith.constant 0 : index
    %7 = vector.load %arg1[%c0_4, %c0_5, %c0_6] : memref<5x8x32xf32, #tpu.memory_space<vmem>>, vector<1x8x32xf32>
    %8 = vector.shape_cast %7 : vector<1x8x32xf32> to vector<8x32xf32>
    %cst_7 = arith.constant dense<0.000000e+00> : vector<12x32xf32>
    %9 = tpu.matmul %6, %8, %cst_7 {dimension_numbers = #tpu.dot_dimension_numbers<[1], [0], [0], [1], [0, 0, 1, 1], [], []>} : vector<12x8xf32>, vector<8x32xf32>, vector<12x32xf32> -> vector<12x32xf32>
    %10 = arith.addf %4, %9 : vector<12x32xf32>
    %11 = vector.extract_strided_slice %3 {offsets = [0, 1, 0], sizes = [2, 6, 8], strides = [1, 1, 1]} : vector<2x10x8xf32> to vector<2x6x8xf32>
    %12 = vector.shape_cast %11 : vector<2x6x8xf32> to vector<12x8xf32>
    %c1 = arith.constant 1 : index
    %c0_8 = arith.constant 0 : index
    %c0_9 = arith.constant 0 : index
    %13 = vector.load %arg1[%c1, %c0_8, %c0_9] : memref<5x8x32xf32, #tpu.memory_space<vmem>>, vector<1x8x32xf32>
    %14 = vector.shape_cast %13 : vector<1x8x32xf32> to vector<8x32xf32>
    %cst_10 = arith.constant dense<0.000000e+00> : vector<12x32xf32>
    %15 = tpu.matmul %12, %14, %cst_10 {dimension_numbers = #tpu.dot_dimension_numbers<[1], [0], [0], [1], [0, 0, 1, 1], [], []>} : vector<12x8xf32>, vector<8x32xf32>, vector<12x32xf32> -> vector<12x32xf32>
    %16 = arith.addf %10, %15 : vector<12x32xf32>
    %17 = vector.extract_strided_slice %3 {offsets = [0, 2, 0], sizes = [2, 6, 8], strides = [1, 1, 1]} : vector<2x10x8xf32> to vector<2x6x8xf32>
    %18 = vector.shape_cast %17 : vector<2x6x8xf32> to vector<12x8xf32>
    %c2 = arith.constant 2 : index
    %c0_11 = arith.constant 0 : index
    %c0_12 = arith.constant 0 : index
    %19 = vector.load %arg1[%c2, %c0_11, %c0_12] : memref<5x8x32xf32, #tpu.memory_space<vmem>>, vector<1x8x32xf32>
    %20 = vector.shape_cast %19 : vector<1x8x32xf32> to vector<8x32xf32>
    %cst_13 = arith.constant dense<0.000000e+00> : vector<12x32xf32>
    %21 = tpu.matmul %18, %20, %cst_13 {dimension_numbers = #tpu.dot_dimension_numbers<[1], [0], [0], [1], [0, 0, 1, 1], [], []>} : vector<12x8xf32>, vector<8x32xf32>, vector<12x32xf32> -> vector<12x32xf32>
    %22 = arith.addf %16, %21 : vector<12x32xf32>
    %23 = vector.extract_strided_slice %3 {offsets = [0, 3, 0], sizes = [2, 6, 8], strides = [1, 1, 1]} : vector<2x10x8xf32> to vector<2x6x8xf32>
    %24 = vector.shape_cast %23 : vector<2x6x8xf32> to vector<12x8xf32>
    %c3 = arith.constant 3 : index
    %c0_14 = arith.constant 0 : index
    %c0_15 = arith.constant 0 : index
    %25 = vector.load %arg1[%c3, %c0_14, %c0_15] : memref<5x8x32xf32, #tpu.memory_space<vmem>>, vector<1x8x32xf32>
    %26 = vector.shape_cast %25 : vector<1x8x32xf32> to vector<8x32xf32>
    %cst_16 = arith.constant dense<0.000000e+00> : vector<12x32xf32>
    %27 = tpu.matmul %24, %26, %cst_16 {dimension_numbers = #tpu.dot_dimension_numbers<[1], [0], [0], [1], [0, 0, 1, 1], [], []>} : vector<12x8xf32>, vector<8x32xf32>, vector<12x32xf32> -> vector<12x32xf32>
    %28 = arith.addf %22, %27 : vector<12x32xf32>
    %29 = vector.extract_strided_slice %3 {offsets = [0, 4, 0], sizes = [2, 6, 8], strides = [1, 1, 1]} : vector<2x10x8xf32> to vector<2x6x8xf32>
    %30 = vector.shape_cast %29 : vector<2x6x8xf32> to vector<12x8xf32>
    %c4 = arith.constant 4 : index
    %c0_17 = arith.constant 0 : index
    %c0_18 = arith.constant 0 : index
    %31 = vector.load %arg1[%c4, %c0_17, %c0_18] : memref<5x8x32xf32, #tpu.memory_space<vmem>>, vector<1x8x32xf32>
    %32 = vector.shape_cast %31 : vector<1x8x32xf32> to vector<8x32xf32>
    %cst_19 = arith.constant dense<0.000000e+00> : vector<12x32xf32>
    %33 = tpu.matmul %30, %32, %cst_19 {dimension_numbers = #tpu.dot_dimension_numbers<[1], [0], [0], [1], [0, 0, 1, 1], [], []>} : vector<12x8xf32>, vector<8x32xf32>, vector<12x32xf32> -> vector<12x32xf32>
    %34 = arith.addf %28, %33 : vector<12x32xf32>
    %c0_20 = arith.constant 0 : index
    %c0_21 = arith.constant 0 : index
    %35 = vector.load %arg2[%c0_20, %c0_21] : memref<1x32xf32, #tpu.memory_space<vmem>>, vector<1x32xf32>
    %36 = vector.broadcast %35 : vector<1x32xf32> to vector<12x32xf32>
    %37 = arith.addf %34, %36 : vector<12x32xf32>
    %cst_22 = arith.constant dense<0.000000e+00> : vector<32xf32>
    %38 = vector.multi_reduction <add>, %37, %cst_22 [0] : vector<12x32xf32> to vector<32xf32>
    %39 = vector.shape_cast %38 : vector<32xf32> to vector<1x32xf32>
    %cst_23 = arith.constant 1.200000e+01 : f32
    %40 = vector.broadcast %cst_23 : f32 to vector<1x32xf32>
    %41 = arith.divf %39, %40 : vector<1x32xf32>
    %42 = vector.broadcast %41 : vector<1x32xf32> to vector<12x32xf32>
    %43 = arith.subf %37, %42 : vector<12x32xf32>
    %44 = arith.mulf %43, %43 : vector<12x32xf32>
    %cst_24 = arith.constant dense<0.000000e+00> : vector<32xf32>
    %45 = vector.multi_reduction <add>, %44, %cst_24 [0] : vector<12x32xf32> to vector<32xf32>
    %46 = vector.shape_cast %45 : vector<32xf32> to vector<1x32xf32>
    %cst_25 = arith.constant 1.200000e+01 : f32
    %47 = vector.broadcast %cst_25 : f32 to vector<1x32xf32>
    %48 = arith.divf %46, %47 : vector<1x32xf32>
    %49 = vector.broadcast %41 : vector<1x32xf32> to vector<12x32xf32>
    %50 = arith.subf %37, %49 : vector<12x32xf32>
    %cst_26 = arith.constant 9.99999974E-6 : f32
    %51 = vector.broadcast %cst_26 : f32 to vector<1x32xf32>
    %52 = arith.addf %48, %51 : vector<1x32xf32>
    %53 = math.rsqrt %52 : vector<1x32xf32>
    %54 = vector.broadcast %53 : vector<1x32xf32> to vector<12x32xf32>
    %55 = arith.mulf %50, %54 : vector<12x32xf32>
    %c0_27 = arith.constant 0 : index
    %c0_28 = arith.constant 0 : index
    %56 = vector.load %arg3[%c0_27, %c0_28] : memref<1x32xf32, #tpu.memory_space<vmem>>, vector<1x32xf32>
    %57 = vector.broadcast %56 : vector<1x32xf32> to vector<12x32xf32>
    %58 = arith.mulf %57, %55 : vector<12x32xf32>
    %c0_29 = arith.constant 0 : index
    %c0_30 = arith.constant 0 : index
    %59 = vector.load %arg4[%c0_29, %c0_30] : memref<1x32xf32, #tpu.memory_space<vmem>>, vector<1x32xf32>
    %60 = vector.broadcast %59 : vector<1x32xf32> to vector<12x32xf32>
    %61 = arith.addf %58, %60 : vector<12x32xf32>
    %62 = math.tanh %61 : vector<12x32xf32>
    %63 = vector.shape_cast %62 : vector<12x32xf32> to vector<2x6x32xf32>
    %cst_31 = arith.constant 0.000000e+00 : f32
    %64 = vector.broadcast %cst_31 : f32 to vector<2x2x32xf32>
    %cst_32 = arith.constant 0.000000e+00 : f32
    %65 = vector.broadcast %cst_32 : f32 to vector<2x2x32xf32>
    %66 = tpu.concatenate %64, %63, %65 in 1 : vector<2x2x32xf32>, vector<2x6x32xf32>, vector<2x2x32xf32> -> vector<2x10x32xf32>
    %cst_33 = arith.constant 0.000000e+00 : f32
    %67 = vector.broadcast %cst_33 : f32 to vector<12x32xf32>
    %68 = vector.extract_strided_slice %66 {offsets = [0, 0, 0], sizes = [2, 6, 32], strides = [1, 1, 1]} : vector<2x10x32xf32> to vector<2x6x32xf32>
    %69 = vector.shape_cast %68 : vector<2x6x32xf32> to vector<12x32xf32>
    %c0_34 = arith.constant 0 : index
    %c0_35 = arith.constant 0 : index
    %c0_36 = arith.constant 0 : index
    %70 = vector.load %arg5[%c0_34, %c0_35, %c0_36] : memref<5x32x32xf32, #tpu.memory_space<vmem>>, vector<1x32x32xf32>
    %71 = vector.shape_cast %70 : vector<1x32x32xf32> to vector<32x32xf32>
    %cst_37 = arith.constant dense<0.000000e+00> : vector<12x32xf32>
    %72 = tpu.matmul %69, %71, %cst_37 {dimension_numbers = #tpu.dot_dimension_numbers<[1], [0], [0], [1], [0, 0, 1, 1], [], []>} : vector<12x32xf32>, vector<32x32xf32>, vector<12x32xf32> -> vector<12x32xf32>
    %73 = arith.addf %67, %72 : vector<12x32xf32>
    %74 = vector.extract_strided_slice %66 {offsets = [0, 1, 0], sizes = [2, 6, 32], strides = [1, 1, 1]} : vector<2x10x32xf32> to vector<2x6x32xf32>
    %75 = vector.shape_cast %74 : vector<2x6x32xf32> to vector<12x32xf32>
    %c1_38 = arith.constant 1 : index
    %c0_39 = arith.constant 0 : index
    %c0_40 = arith.constant 0 : index
    %76 = vector.load %arg5[%c1_38, %c0_39, %c0_40] : memref<5x32x32xf32, #tpu.memory_space<vmem>>, vector<1x32x32xf32>
    %77 = vector.shape_cast %76 : vector<1x32x32xf32> to vector<32x32xf32>
    %cst_41 = arith.constant dense<0.000000e+00> : vector<12x32xf32>
    %78 = tpu.matmul %75, %77, %cst_41 {dimension_numbers = #tpu.dot_dimension_numbers<[1], [0], [0], [1], [0, 0, 1, 1], [], []>} : vector<12x32xf32>, vector<32x32xf32>, vector<12x32xf32> -> vector<12x32xf32>
    %79 = arith.addf %73, %78 : vector<12x32xf32>
    %80 = vector.extract_strided_slice %66 {offsets = [0, 2, 0], sizes = [2, 6, 32], strides = [1, 1, 1]} : vector<2x10x32xf32> to vector<2x6x32xf32>
    %81 = vector.shape_cast %80 : vector<2x6x32xf32> to vector<12x32xf32>
    %c2_42 = arith.constant 2 : index
    %c0_43 = arith.constant 0 : index
    %c0_44 = arith.constant 0 : index
    %82 = vector.load %arg5[%c2_42, %c0_43, %c0_44] : memref<5x32x32xf32, #tpu.memory_space<vmem>>, vector<1x32x32xf32>
    %83 = vector.shape_cast %82 : vector<1x32x32xf32> to vector<32x32xf32>
    %cst_45 = arith.constant dense<0.000000e+00> : vector<12x32xf32>
    %84 = tpu.matmul %81, %83, %cst_45 {dimension_numbers = #tpu.dot_dimension_numbers<[1], [0], [0], [1], [0, 0, 1, 1], [], []>} : vector<12x32xf32>, vector<32x32xf32>, vector<12x32xf32> -> vector<12x32xf32>
    %85 = arith.addf %79, %84 : vector<12x32xf32>
    %86 = vector.extract_strided_slice %66 {offsets = [0, 3, 0], sizes = [2, 6, 32], strides = [1, 1, 1]} : vector<2x10x32xf32> to vector<2x6x32xf32>
    %87 = vector.shape_cast %86 : vector<2x6x32xf32> to vector<12x32xf32>
    %c3_46 = arith.constant 3 : index
    %c0_47 = arith.constant 0 : index
    %c0_48 = arith.constant 0 : index
    %88 = vector.load %arg5[%c3_46, %c0_47, %c0_48] : memref<5x32x32xf32, #tpu.memory_space<vmem>>, vector<1x32x32xf32>
    %89 = vector.shape_cast %88 : vector<1x32x32xf32> to vector<32x32xf32>
    %cst_49 = arith.constant dense<0.000000e+00> : vector<12x32xf32>
    %90 = tpu.matmul %87, %89, %cst_49 {dimension_numbers = #tpu.dot_dimension_numbers<[1], [0], [0], [1], [0, 0, 1, 1], [], []>} : vector<12x32xf32>, vector<32x32xf32>, vector<12x32xf32> -> vector<12x32xf32>
    %91 = arith.addf %85, %90 : vector<12x32xf32>
    %92 = vector.extract_strided_slice %66 {offsets = [0, 4, 0], sizes = [2, 6, 32], strides = [1, 1, 1]} : vector<2x10x32xf32> to vector<2x6x32xf32>
    %93 = vector.shape_cast %92 : vector<2x6x32xf32> to vector<12x32xf32>
    %c4_50 = arith.constant 4 : index
    %c0_51 = arith.constant 0 : index
    %c0_52 = arith.constant 0 : index
    %94 = vector.load %arg5[%c4_50, %c0_51, %c0_52] : memref<5x32x32xf32, #tpu.memory_space<vmem>>, vector<1x32x32xf32>
    %95 = vector.shape_cast %94 : vector<1x32x32xf32> to vector<32x32xf32>
    %cst_53 = arith.constant dense<0.000000e+00> : vector<12x32xf32>
    %96 = tpu.matmul %93, %95, %cst_53 {dimension_numbers = #tpu.dot_dimension_numbers<[1], [0], [0], [1], [0, 0, 1, 1], [], []>} : vector<12x32xf32>, vector<32x32xf32>, vector<12x32xf32> -> vector<12x32xf32>
    %97 = arith.addf %91, %96 : vector<12x32xf32>
    %c0_54 = arith.constant 0 : index
    %c0_55 = arith.constant 0 : index
    %98 = vector.load %arg6[%c0_54, %c0_55] : memref<1x32xf32, #tpu.memory_space<vmem>>, vector<1x32xf32>
    %99 = vector.broadcast %98 : vector<1x32xf32> to vector<12x32xf32>
    %100 = arith.addf %97, %99 : vector<12x32xf32>
    %cst_56 = arith.constant dense<0.000000e+00> : vector<32xf32>
    %101 = vector.multi_reduction <add>, %100, %cst_56 [0] : vector<12x32xf32> to vector<32xf32>
    %102 = vector.shape_cast %101 : vector<32xf32> to vector<1x32xf32>
    %cst_57 = arith.constant 1.200000e+01 : f32
    %103 = vector.broadcast %cst_57 : f32 to vector<1x32xf32>
    %104 = arith.divf %102, %103 : vector<1x32xf32>
    %105 = vector.broadcast %104 : vector<1x32xf32> to vector<12x32xf32>
    %106 = arith.subf %100, %105 : vector<12x32xf32>
    %107 = arith.mulf %106, %106 : vector<12x32xf32>
    %cst_58 = arith.constant dense<0.000000e+00> : vector<32xf32>
    %108 = vector.multi_reduction <add>, %107, %cst_58 [0] : vector<12x32xf32> to vector<32xf32>
    %109 = vector.shape_cast %108 : vector<32xf32> to vector<1x32xf32>
    %cst_59 = arith.constant 1.200000e+01 : f32
    %110 = vector.broadcast %cst_59 : f32 to vector<1x32xf32>
    %111 = arith.divf %109, %110 : vector<1x32xf32>
    %112 = vector.broadcast %104 : vector<1x32xf32> to vector<12x32xf32>
    %113 = arith.subf %100, %112 : vector<12x32xf32>
    %cst_60 = arith.constant 9.99999974E-6 : f32
    %114 = vector.broadcast %cst_60 : f32 to vector<1x32xf32>
    %115 = arith.addf %111, %114 : vector<1x32xf32>
    %116 = math.rsqrt %115 : vector<1x32xf32>
    %117 = vector.broadcast %116 : vector<1x32xf32> to vector<12x32xf32>
    %118 = arith.mulf %113, %117 : vector<12x32xf32>
    %c0_61 = arith.constant 0 : index
    %c0_62 = arith.constant 0 : index
    %119 = vector.load %arg7[%c0_61, %c0_62] : memref<1x32xf32, #tpu.memory_space<vmem>>, vector<1x32xf32>
    %120 = vector.broadcast %119 : vector<1x32xf32> to vector<12x32xf32>
    %121 = arith.mulf %120, %118 : vector<12x32xf32>
    %c0_63 = arith.constant 0 : index
    %c0_64 = arith.constant 0 : index
    %122 = vector.load %arg8[%c0_63, %c0_64] : memref<1x32xf32, #tpu.memory_space<vmem>>, vector<1x32xf32>
    %123 = vector.broadcast %122 : vector<1x32xf32> to vector<12x32xf32>
    %124 = arith.addf %121, %123 : vector<12x32xf32>
    %125 = math.tanh %124 : vector<12x32xf32>
    %126 = vector.shape_cast %125 : vector<12x32xf32> to vector<2x6x32xf32>
    %cst_65 = arith.constant 0.000000e+00 : f32
    %127 = vector.broadcast %cst_65 : f32 to vector<2x2x32xf32>
    %cst_66 = arith.constant 0.000000e+00 : f32
    %128 = vector.broadcast %cst_66 : f32 to vector<2x2x32xf32>
    %129 = tpu.concatenate %127, %126, %128 in 1 : vector<2x2x32xf32>, vector<2x6x32xf32>, vector<2x2x32xf32> -> vector<2x10x32xf32>
    %cst_67 = arith.constant 0.000000e+00 : f32
    %130 = vector.broadcast %cst_67 : f32 to vector<12x32xf32>
    %131 = vector.extract_strided_slice %129 {offsets = [0, 0, 0], sizes = [2, 6, 32], strides = [1, 1, 1]} : vector<2x10x32xf32> to vector<2x6x32xf32>
    %132 = vector.shape_cast %131 : vector<2x6x32xf32> to vector<12x32xf32>
    %c0_68 = arith.constant 0 : index
    %c0_69 = arith.constant 0 : index
    %c0_70 = arith.constant 0 : index
    %133 = vector.load %arg9[%c0_68, %c0_69, %c0_70] : memref<5x32x32xf32, #tpu.memory_space<vmem>>, vector<1x32x32xf32>
    %134 = vector.shape_cast %133 : vector<1x32x32xf32> to vector<32x32xf32>
    %cst_71 = arith.constant dense<0.000000e+00> : vector<12x32xf32>
    %135 = tpu.matmul %132, %134, %cst_71 {dimension_numbers = #tpu.dot_dimension_numbers<[1], [0], [0], [1], [0, 0, 1, 1], [], []>} : vector<12x32xf32>, vector<32x32xf32>, vector<12x32xf32> -> vector<12x32xf32>
    %136 = arith.addf %130, %135 : vector<12x32xf32>
    %137 = vector.extract_strided_slice %129 {offsets = [0, 1, 0], sizes = [2, 6, 32], strides = [1, 1, 1]} : vector<2x10x32xf32> to vector<2x6x32xf32>
    %138 = vector.shape_cast %137 : vector<2x6x32xf32> to vector<12x32xf32>
    %c1_72 = arith.constant 1 : index
    %c0_73 = arith.constant 0 : index
    %c0_74 = arith.constant 0 : index
    %139 = vector.load %arg9[%c1_72, %c0_73, %c0_74] : memref<5x32x32xf32, #tpu.memory_space<vmem>>, vector<1x32x32xf32>
    %140 = vector.shape_cast %139 : vector<1x32x32xf32> to vector<32x32xf32>
    %cst_75 = arith.constant dense<0.000000e+00> : vector<12x32xf32>
    %141 = tpu.matmul %138, %140, %cst_75 {dimension_numbers = #tpu.dot_dimension_numbers<[1], [0], [0], [1], [0, 0, 1, 1], [], []>} : vector<12x32xf32>, vector<32x32xf32>, vector<12x32xf32> -> vector<12x32xf32>
    %142 = arith.addf %136, %141 : vector<12x32xf32>
    %143 = vector.extract_strided_slice %129 {offsets = [0, 2, 0], sizes = [2, 6, 32], strides = [1, 1, 1]} : vector<2x10x32xf32> to vector<2x6x32xf32>
    %144 = vector.shape_cast %143 : vector<2x6x32xf32> to vector<12x32xf32>
    %c2_76 = arith.constant 2 : index
    %c0_77 = arith.constant 0 : index
    %c0_78 = arith.constant 0 : index
    %145 = vector.load %arg9[%c2_76, %c0_77, %c0_78] : memref<5x32x32xf32, #tpu.memory_space<vmem>>, vector<1x32x32xf32>
    %146 = vector.shape_cast %145 : vector<1x32x32xf32> to vector<32x32xf32>
    %cst_79 = arith.constant dense<0.000000e+00> : vector<12x32xf32>
    %147 = tpu.matmul %144, %146, %cst_79 {dimension_numbers = #tpu.dot_dimension_numbers<[1], [0], [0], [1], [0, 0, 1, 1], [], []>} : vector<12x32xf32>, vector<32x32xf32>, vector<12x32xf32> -> vector<12x32xf32>
    %148 = arith.addf %142, %147 : vector<12x32xf32>
    %149 = vector.extract_strided_slice %129 {offsets = [0, 3, 0], sizes = [2, 6, 32], strides = [1, 1, 1]} : vector<2x10x32xf32> to vector<2x6x32xf32>
    %150 = vector.shape_cast %149 : vector<2x6x32xf32> to vector<12x32xf32>
    %c3_80 = arith.constant 3 : index
    %c0_81 = arith.constant 0 : index
    %c0_82 = arith.constant 0 : index
    %151 = vector.load %arg9[%c3_80, %c0_81, %c0_82] : memref<5x32x32xf32, #tpu.memory_space<vmem>>, vector<1x32x32xf32>
    %152 = vector.shape_cast %151 : vector<1x32x32xf32> to vector<32x32xf32>
    %cst_83 = arith.constant dense<0.000000e+00> : vector<12x32xf32>
    %153 = tpu.matmul %150, %152, %cst_83 {dimension_numbers = #tpu.dot_dimension_numbers<[1], [0], [0], [1], [0, 0, 1, 1], [], []>} : vector<12x32xf32>, vector<32x32xf32>, vector<12x32xf32> -> vector<12x32xf32>
    %154 = arith.addf %148, %153 : vector<12x32xf32>
    %155 = vector.extract_strided_slice %129 {offsets = [0, 4, 0], sizes = [2, 6, 32], strides = [1, 1, 1]} : vector<2x10x32xf32> to vector<2x6x32xf32>
    %156 = vector.shape_cast %155 : vector<2x6x32xf32> to vector<12x32xf32>
    %c4_84 = arith.constant 4 : index
    %c0_85 = arith.constant 0 : index
    %c0_86 = arith.constant 0 : index
    %157 = vector.load %arg9[%c4_84, %c0_85, %c0_86] : memref<5x32x32xf32, #tpu.memory_space<vmem>>, vector<1x32x32xf32>
    %158 = vector.shape_cast %157 : vector<1x32x32xf32> to vector<32x32xf32>
    %cst_87 = arith.constant dense<0.000000e+00> : vector<12x32xf32>
    %159 = tpu.matmul %156, %158, %cst_87 {dimension_numbers = #tpu.dot_dimension_numbers<[1], [0], [0], [1], [0, 0, 1, 1], [], []>} : vector<12x32xf32>, vector<32x32xf32>, vector<12x32xf32> -> vector<12x32xf32>
    %160 = arith.addf %154, %159 : vector<12x32xf32>
    %c0_88 = arith.constant 0 : index
    %c0_89 = arith.constant 0 : index
    %161 = vector.load %arg10[%c0_88, %c0_89] : memref<1x32xf32, #tpu.memory_space<vmem>>, vector<1x32xf32>
    %162 = vector.broadcast %161 : vector<1x32xf32> to vector<12x32xf32>
    %163 = arith.addf %160, %162 : vector<12x32xf32>
    %cst_90 = arith.constant dense<0.000000e+00> : vector<32xf32>
    %164 = vector.multi_reduction <add>, %163, %cst_90 [0] : vector<12x32xf32> to vector<32xf32>
    %165 = vector.shape_cast %164 : vector<32xf32> to vector<1x32xf32>
    %cst_91 = arith.constant 1.200000e+01 : f32
    %166 = vector.broadcast %cst_91 : f32 to vector<1x32xf32>
    %167 = arith.divf %165, %166 : vector<1x32xf32>
    %168 = vector.broadcast %167 : vector<1x32xf32> to vector<12x32xf32>
    %169 = arith.subf %163, %168 : vector<12x32xf32>
    %170 = arith.mulf %169, %169 : vector<12x32xf32>
    %cst_92 = arith.constant dense<0.000000e+00> : vector<32xf32>
    %171 = vector.multi_reduction <add>, %170, %cst_92 [0] : vector<12x32xf32> to vector<32xf32>
    %172 = vector.shape_cast %171 : vector<32xf32> to vector<1x32xf32>
    %cst_93 = arith.constant 1.200000e+01 : f32
    %173 = vector.broadcast %cst_93 : f32 to vector<1x32xf32>
    %174 = arith.divf %172, %173 : vector<1x32xf32>
    %175 = vector.broadcast %167 : vector<1x32xf32> to vector<12x32xf32>
    %176 = arith.subf %163, %175 : vector<12x32xf32>
    %cst_94 = arith.constant 9.99999974E-6 : f32
    %177 = vector.broadcast %cst_94 : f32 to vector<1x32xf32>
    %178 = arith.addf %174, %177 : vector<1x32xf32>
    %179 = math.rsqrt %178 : vector<1x32xf32>
    %180 = vector.broadcast %179 : vector<1x32xf32> to vector<12x32xf32>
    %181 = arith.mulf %176, %180 : vector<12x32xf32>
    %c0_95 = arith.constant 0 : index
    %c0_96 = arith.constant 0 : index
    %182 = vector.load %arg11[%c0_95, %c0_96] : memref<1x32xf32, #tpu.memory_space<vmem>>, vector<1x32xf32>
    %183 = vector.broadcast %182 : vector<1x32xf32> to vector<12x32xf32>
    %184 = arith.mulf %183, %181 : vector<12x32xf32>
    %c0_97 = arith.constant 0 : index
    %c0_98 = arith.constant 0 : index
    %185 = vector.load %arg12[%c0_97, %c0_98] : memref<1x32xf32, #tpu.memory_space<vmem>>, vector<1x32xf32>
    %186 = vector.broadcast %185 : vector<1x32xf32> to vector<12x32xf32>
    %187 = arith.addf %184, %186 : vector<12x32xf32>
    %188 = math.tanh %187 : vector<12x32xf32>
    %189 = vector.shape_cast %188 : vector<12x32xf32> to vector<2x6x32xf32>
    %cst_99 = arith.constant 0.000000e+00 : f32
    %190 = vector.broadcast %cst_99 : f32 to vector<2x2x32xf32>
    %cst_100 = arith.constant 0.000000e+00 : f32
    %191 = vector.broadcast %cst_100 : f32 to vector<2x2x32xf32>
    %192 = tpu.concatenate %190, %189, %191 in 1 : vector<2x2x32xf32>, vector<2x6x32xf32>, vector<2x2x32xf32> -> vector<2x10x32xf32>
    %cst_101 = arith.constant 0.000000e+00 : f32
    %193 = vector.broadcast %cst_101 : f32 to vector<12x32xf32>
    %194 = vector.extract_strided_slice %192 {offsets = [0, 0, 0], sizes = [2, 6, 32], strides = [1, 1, 1]} : vector<2x10x32xf32> to vector<2x6x32xf32>
    %195 = vector.shape_cast %194 : vector<2x6x32xf32> to vector<12x32xf32>
    %c0_102 = arith.constant 0 : index
    %c0_103 = arith.constant 0 : index
    %c0_104 = arith.constant 0 : index
    %196 = vector.load %arg13[%c0_102, %c0_103, %c0_104] : memref<5x32x32xf32, #tpu.memory_space<vmem>>, vector<1x32x32xf32>
    %197 = vector.shape_cast %196 : vector<1x32x32xf32> to vector<32x32xf32>
    %cst_105 = arith.constant dense<0.000000e+00> : vector<12x32xf32>
    %198 = tpu.matmul %195, %197, %cst_105 {dimension_numbers = #tpu.dot_dimension_numbers<[1], [0], [0], [1], [0, 0, 1, 1], [], []>} : vector<12x32xf32>, vector<32x32xf32>, vector<12x32xf32> -> vector<12x32xf32>
    %199 = arith.addf %193, %198 : vector<12x32xf32>
    %200 = vector.extract_strided_slice %192 {offsets = [0, 1, 0], sizes = [2, 6, 32], strides = [1, 1, 1]} : vector<2x10x32xf32> to vector<2x6x32xf32>
    %201 = vector.shape_cast %200 : vector<2x6x32xf32> to vector<12x32xf32>
    %c1_106 = arith.constant 1 : index
    %c0_107 = arith.constant 0 : index
    %c0_108 = arith.constant 0 : index
    %202 = vector.load %arg13[%c1_106, %c0_107, %c0_108] : memref<5x32x32xf32, #tpu.memory_space<vmem>>, vector<1x32x32xf32>
    %203 = vector.shape_cast %202 : vector<1x32x32xf32> to vector<32x32xf32>
    %cst_109 = arith.constant dense<0.000000e+00> : vector<12x32xf32>
    %204 = tpu.matmul %201, %203, %cst_109 {dimension_numbers = #tpu.dot_dimension_numbers<[1], [0], [0], [1], [0, 0, 1, 1], [], []>} : vector<12x32xf32>, vector<32x32xf32>, vector<12x32xf32> -> vector<12x32xf32>
    %205 = arith.addf %199, %204 : vector<12x32xf32>
    %206 = vector.extract_strided_slice %192 {offsets = [0, 2, 0], sizes = [2, 6, 32], strides = [1, 1, 1]} : vector<2x10x32xf32> to vector<2x6x32xf32>
    %207 = vector.shape_cast %206 : vector<2x6x32xf32> to vector<12x32xf32>
    %c2_110 = arith.constant 2 : index
    %c0_111 = arith.constant 0 : index
    %c0_112 = arith.constant 0 : index
    %208 = vector.load %arg13[%c2_110, %c0_111, %c0_112] : memref<5x32x32xf32, #tpu.memory_space<vmem>>, vector<1x32x32xf32>
    %209 = vector.shape_cast %208 : vector<1x32x32xf32> to vector<32x32xf32>
    %cst_113 = arith.constant dense<0.000000e+00> : vector<12x32xf32>
    %210 = tpu.matmul %207, %209, %cst_113 {dimension_numbers = #tpu.dot_dimension_numbers<[1], [0], [0], [1], [0, 0, 1, 1], [], []>} : vector<12x32xf32>, vector<32x32xf32>, vector<12x32xf32> -> vector<12x32xf32>
    %211 = arith.addf %205, %210 : vector<12x32xf32>
    %212 = vector.extract_strided_slice %192 {offsets = [0, 3, 0], sizes = [2, 6, 32], strides = [1, 1, 1]} : vector<2x10x32xf32> to vector<2x6x32xf32>
    %213 = vector.shape_cast %212 : vector<2x6x32xf32> to vector<12x32xf32>
    %c3_114 = arith.constant 3 : index
    %c0_115 = arith.constant 0 : index
    %c0_116 = arith.constant 0 : index
    %214 = vector.load %arg13[%c3_114, %c0_115, %c0_116] : memref<5x32x32xf32, #tpu.memory_space<vmem>>, vector<1x32x32xf32>
    %215 = vector.shape_cast %214 : vector<1x32x32xf32> to vector<32x32xf32>
    %cst_117 = arith.constant dense<0.000000e+00> : vector<12x32xf32>
    %216 = tpu.matmul %213, %215, %cst_117 {dimension_numbers = #tpu.dot_dimension_numbers<[1], [0], [0], [1], [0, 0, 1, 1], [], []>} : vector<12x32xf32>, vector<32x32xf32>, vector<12x32xf32> -> vector<12x32xf32>
    %217 = arith.addf %211, %216 : vector<12x32xf32>
    %218 = vector.extract_strided_slice %192 {offsets = [0, 4, 0], sizes = [2, 6, 32], strides = [1, 1, 1]} : vector<2x10x32xf32> to vector<2x6x32xf32>
    %219 = vector.shape_cast %218 : vector<2x6x32xf32> to vector<12x32xf32>
    %c4_118 = arith.constant 4 : index
    %c0_119 = arith.constant 0 : index
    %c0_120 = arith.constant 0 : index
    %220 = vector.load %arg13[%c4_118, %c0_119, %c0_120] : memref<5x32x32xf32, #tpu.memory_space<vmem>>, vector<1x32x32xf32>
    %221 = vector.shape_cast %220 : vector<1x32x32xf32> to vector<32x32xf32>
    %cst_121 = arith.constant dense<0.000000e+00> : vector<12x32xf32>
    %222 = tpu.matmul %219, %221, %cst_121 {dimension_numbers = #tpu.dot_dimension_numbers<[1], [0], [0], [1], [0, 0, 1, 1], [], []>} : vector<12x32xf32>, vector<32x32xf32>, vector<12x32xf32> -> vector<12x32xf32>
    %223 = arith.addf %217, %222 : vector<12x32xf32>
    %c0_122 = arith.constant 0 : index
    %c0_123 = arith.constant 0 : index
    %224 = vector.load %arg14[%c0_122, %c0_123] : memref<1x32xf32, #tpu.memory_space<vmem>>, vector<1x32xf32>
    %225 = vector.broadcast %224 : vector<1x32xf32> to vector<12x32xf32>
    %226 = arith.addf %223, %225 : vector<12x32xf32>
    %cst_124 = arith.constant dense<0.000000e+00> : vector<32xf32>
    %227 = vector.multi_reduction <add>, %226, %cst_124 [0] : vector<12x32xf32> to vector<32xf32>
    %228 = vector.shape_cast %227 : vector<32xf32> to vector<1x32xf32>
    %cst_125 = arith.constant 1.200000e+01 : f32
    %229 = vector.broadcast %cst_125 : f32 to vector<1x32xf32>
    %230 = arith.divf %228, %229 : vector<1x32xf32>
    %231 = vector.broadcast %230 : vector<1x32xf32> to vector<12x32xf32>
    %232 = arith.subf %226, %231 : vector<12x32xf32>
    %233 = arith.mulf %232, %232 : vector<12x32xf32>
    %cst_126 = arith.constant dense<0.000000e+00> : vector<32xf32>
    %234 = vector.multi_reduction <add>, %233, %cst_126 [0] : vector<12x32xf32> to vector<32xf32>
    %235 = vector.shape_cast %234 : vector<32xf32> to vector<1x32xf32>
    %cst_127 = arith.constant 1.200000e+01 : f32
    %236 = vector.broadcast %cst_127 : f32 to vector<1x32xf32>
    %237 = arith.divf %235, %236 : vector<1x32xf32>
    %238 = vector.broadcast %230 : vector<1x32xf32> to vector<12x32xf32>
    %239 = arith.subf %226, %238 : vector<12x32xf32>
    %cst_128 = arith.constant 9.99999974E-6 : f32
    %240 = vector.broadcast %cst_128 : f32 to vector<1x32xf32>
    %241 = arith.addf %237, %240 : vector<1x32xf32>
    %242 = math.rsqrt %241 : vector<1x32xf32>
    %243 = vector.broadcast %242 : vector<1x32xf32> to vector<12x32xf32>
    %244 = arith.mulf %239, %243 : vector<12x32xf32>
    %c0_129 = arith.constant 0 : index
    %c0_130 = arith.constant 0 : index
    %245 = vector.load %arg15[%c0_129, %c0_130] : memref<1x32xf32, #tpu.memory_space<vmem>>, vector<1x32xf32>
    %246 = vector.broadcast %245 : vector<1x32xf32> to vector<12x32xf32>
    %247 = arith.mulf %246, %244 : vector<12x32xf32>
    %c0_131 = arith.constant 0 : index
    %c0_132 = arith.constant 0 : index
    %248 = vector.load %arg16[%c0_131, %c0_132] : memref<1x32xf32, #tpu.memory_space<vmem>>, vector<1x32xf32>
    %249 = vector.broadcast %248 : vector<1x32xf32> to vector<12x32xf32>
    %250 = arith.addf %247, %249 : vector<12x32xf32>
    %251 = math.tanh %250 : vector<12x32xf32>
    %252 = vector.shape_cast %251 : vector<12x32xf32> to vector<2x6x32xf32>
    %cst_133 = arith.constant 0.000000e+00 : f32
    %253 = vector.broadcast %cst_133 : f32 to vector<2x2x32xf32>
    %cst_134 = arith.constant 0.000000e+00 : f32
    %254 = vector.broadcast %cst_134 : f32 to vector<2x2x32xf32>
    %255 = tpu.concatenate %253, %252, %254 in 1 : vector<2x2x32xf32>, vector<2x6x32xf32>, vector<2x2x32xf32> -> vector<2x10x32xf32>
    %cst_135 = arith.constant 0.000000e+00 : f32
    %256 = vector.broadcast %cst_135 : f32 to vector<12x8xf32>
    %257 = vector.extract_strided_slice %255 {offsets = [0, 0, 0], sizes = [2, 6, 32], strides = [1, 1, 1]} : vector<2x10x32xf32> to vector<2x6x32xf32>
    %258 = vector.shape_cast %257 : vector<2x6x32xf32> to vector<12x32xf32>
    %c0_136 = arith.constant 0 : index
    %c0_137 = arith.constant 0 : index
    %c0_138 = arith.constant 0 : index
    %259 = vector.load %arg17[%c0_136, %c0_137, %c0_138] : memref<5x32x8xf32, #tpu.memory_space<vmem>>, vector<1x32x8xf32>
    %260 = vector.shape_cast %259 : vector<1x32x8xf32> to vector<32x8xf32>
    %cst_139 = arith.constant dense<0.000000e+00> : vector<12x8xf32>
    %261 = tpu.matmul %258, %260, %cst_139 {dimension_numbers = #tpu.dot_dimension_numbers<[1], [0], [0], [1], [0, 0, 1, 1], [], []>} : vector<12x32xf32>, vector<32x8xf32>, vector<12x8xf32> -> vector<12x8xf32>
    %262 = arith.addf %256, %261 : vector<12x8xf32>
    %263 = vector.extract_strided_slice %255 {offsets = [0, 1, 0], sizes = [2, 6, 32], strides = [1, 1, 1]} : vector<2x10x32xf32> to vector<2x6x32xf32>
    %264 = vector.shape_cast %263 : vector<2x6x32xf32> to vector<12x32xf32>
    %c1_140 = arith.constant 1 : index
    %c0_141 = arith.constant 0 : index
    %c0_142 = arith.constant 0 : index
    %265 = vector.load %arg17[%c1_140, %c0_141, %c0_142] : memref<5x32x8xf32, #tpu.memory_space<vmem>>, vector<1x32x8xf32>
    %266 = vector.shape_cast %265 : vector<1x32x8xf32> to vector<32x8xf32>
    %cst_143 = arith.constant dense<0.000000e+00> : vector<12x8xf32>
    %267 = tpu.matmul %264, %266, %cst_143 {dimension_numbers = #tpu.dot_dimension_numbers<[1], [0], [0], [1], [0, 0, 1, 1], [], []>} : vector<12x32xf32>, vector<32x8xf32>, vector<12x8xf32> -> vector<12x8xf32>
    %268 = arith.addf %262, %267 : vector<12x8xf32>
    %269 = vector.extract_strided_slice %255 {offsets = [0, 2, 0], sizes = [2, 6, 32], strides = [1, 1, 1]} : vector<2x10x32xf32> to vector<2x6x32xf32>
    %270 = vector.shape_cast %269 : vector<2x6x32xf32> to vector<12x32xf32>
    %c2_144 = arith.constant 2 : index
    %c0_145 = arith.constant 0 : index
    %c0_146 = arith.constant 0 : index
    %271 = vector.load %arg17[%c2_144, %c0_145, %c0_146] : memref<5x32x8xf32, #tpu.memory_space<vmem>>, vector<1x32x8xf32>
    %272 = vector.shape_cast %271 : vector<1x32x8xf32> to vector<32x8xf32>
    %cst_147 = arith.constant dense<0.000000e+00> : vector<12x8xf32>
    %273 = tpu.matmul %270, %272, %cst_147 {dimension_numbers = #tpu.dot_dimension_numbers<[1], [0], [0], [1], [0, 0, 1, 1], [], []>} : vector<12x32xf32>, vector<32x8xf32>, vector<12x8xf32> -> vector<12x8xf32>
    %274 = arith.addf %268, %273 : vector<12x8xf32>
    %275 = vector.extract_strided_slice %255 {offsets = [0, 3, 0], sizes = [2, 6, 32], strides = [1, 1, 1]} : vector<2x10x32xf32> to vector<2x6x32xf32>
    %276 = vector.shape_cast %275 : vector<2x6x32xf32> to vector<12x32xf32>
    %c3_148 = arith.constant 3 : index
    %c0_149 = arith.constant 0 : index
    %c0_150 = arith.constant 0 : index
    %277 = vector.load %arg17[%c3_148, %c0_149, %c0_150] : memref<5x32x8xf32, #tpu.memory_space<vmem>>, vector<1x32x8xf32>
    %278 = vector.shape_cast %277 : vector<1x32x8xf32> to vector<32x8xf32>
    %cst_151 = arith.constant dense<0.000000e+00> : vector<12x8xf32>
    %279 = tpu.matmul %276, %278, %cst_151 {dimension_numbers = #tpu.dot_dimension_numbers<[1], [0], [0], [1], [0, 0, 1, 1], [], []>} : vector<12x32xf32>, vector<32x8xf32>, vector<12x8xf32> -> vector<12x8xf32>
    %280 = arith.addf %274, %279 : vector<12x8xf32>
    %281 = vector.extract_strided_slice %255 {offsets = [0, 4, 0], sizes = [2, 6, 32], strides = [1, 1, 1]} : vector<2x10x32xf32> to vector<2x6x32xf32>
    %282 = vector.shape_cast %281 : vector<2x6x32xf32> to vector<12x32xf32>
    %c4_152 = arith.constant 4 : index
    %c0_153 = arith.constant 0 : index
    %c0_154 = arith.constant 0 : index
    %283 = vector.load %arg17[%c4_152, %c0_153, %c0_154] : memref<5x32x8xf32, #tpu.memory_space<vmem>>, vector<1x32x8xf32>
    %284 = vector.shape_cast %283 : vector<1x32x8xf32> to vector<32x8xf32>
    %cst_155 = arith.constant dense<0.000000e+00> : vector<12x8xf32>
    %285 = tpu.matmul %282, %284, %cst_155 {dimension_numbers = #tpu.dot_dimension_numbers<[1], [0], [0], [1], [0, 0, 1, 1], [], []>} : vector<12x32xf32>, vector<32x8xf32>, vector<12x8xf32> -> vector<12x8xf32>
    %286 = arith.addf %280, %285 : vector<12x8xf32>
    %c0_156 = arith.constant 0 : index
    %c0_157 = arith.constant 0 : index
    %287 = vector.load %arg18[%c0_156, %c0_157] : memref<1x8xf32, #tpu.memory_space<vmem>>, vector<1x8xf32>
    %288 = vector.broadcast %287 : vector<1x8xf32> to vector<12x8xf32>
    %289 = arith.addf %286, %288 : vector<12x8xf32>
    %cst_158 = arith.constant dense<0.000000e+00> : vector<8xf32>
    %290 = vector.multi_reduction <add>, %289, %cst_158 [0] : vector<12x8xf32> to vector<8xf32>
    %291 = vector.shape_cast %290 : vector<8xf32> to vector<1x8xf32>
    %cst_159 = arith.constant 1.200000e+01 : f32
    %292 = vector.broadcast %cst_159 : f32 to vector<1x8xf32>
    %293 = arith.divf %291, %292 : vector<1x8xf32>
    %294 = vector.broadcast %293 : vector<1x8xf32> to vector<12x8xf32>
    %295 = arith.subf %289, %294 : vector<12x8xf32>
    %296 = arith.mulf %295, %295 : vector<12x8xf32>
    %cst_160 = arith.constant dense<0.000000e+00> : vector<8xf32>
    %297 = vector.multi_reduction <add>, %296, %cst_160 [0] : vector<12x8xf32> to vector<8xf32>
    %298 = vector.shape_cast %297 : vector<8xf32> to vector<1x8xf32>
    %cst_161 = arith.constant 1.200000e+01 : f32
    %299 = vector.broadcast %cst_161 : f32 to vector<1x8xf32>
    %300 = arith.divf %298, %299 : vector<1x8xf32>
    %301 = vector.broadcast %293 : vector<1x8xf32> to vector<12x8xf32>
    %302 = arith.subf %289, %301 : vector<12x8xf32>
    %cst_162 = arith.constant 9.99999974E-6 : f32
    %303 = vector.broadcast %cst_162 : f32 to vector<1x8xf32>
    %304 = arith.addf %300, %303 : vector<1x8xf32>
    %305 = math.rsqrt %304 : vector<1x8xf32>
    %306 = vector.broadcast %305 : vector<1x8xf32> to vector<12x8xf32>
    %307 = arith.mulf %302, %306 : vector<12x8xf32>
    %c0_163 = arith.constant 0 : index
    %c0_164 = arith.constant 0 : index
    %308 = vector.load %arg19[%c0_163, %c0_164] : memref<1x8xf32, #tpu.memory_space<vmem>>, vector<1x8xf32>
    %309 = vector.broadcast %308 : vector<1x8xf32> to vector<12x8xf32>
    %310 = arith.mulf %309, %307 : vector<12x8xf32>
    %c0_165 = arith.constant 0 : index
    %c0_166 = arith.constant 0 : index
    %311 = vector.load %arg20[%c0_165, %c0_166] : memref<1x8xf32, #tpu.memory_space<vmem>>, vector<1x8xf32>
    %312 = vector.broadcast %311 : vector<1x8xf32> to vector<12x8xf32>
    %313 = arith.addf %310, %312 : vector<12x8xf32>
    %314 = vector.shape_cast %313 : vector<12x8xf32> to vector<2x6x8xf32>
    %c0_167 = arith.constant 0 : index
    %c0_168 = arith.constant 0 : index
    %c0_169 = arith.constant 0 : index
    %315 = vector.load %arg21[%c0_167, %c0_168, %c0_169] : memref<2x6x8xf32, #tpu.memory_space<vmem>>, vector<2x6x8xf32>
    tpu.vector_store %arg21[%c0_167, %c0_168, %c0_169], %314 {strides = array<i32>} : memref<2x6x8xf32, #tpu.memory_space<vmem>>, vector<2x6x8xf32>,
    return
  }
}

</mosaic_0001>

<llo_original>
// kernel: tacotron2_forward.10
$region0: #{tacotron2_forward.10}
  #allocation0 [shape = 'u32[]', space=smem, size = 0x4, offset = 0x4, fixed_abs, tag = 'smem constant byte address 0x4 - core index']
  #allocation1 [shape = 'u32[144,128]{1,0:T(1,128)}', space=vmem, size = 0x12000, scoped, tag = 'internal scratch']
  %s0 = inlined_call_operand.vmem [shape: f32[16,32], index: 0, kind: input, shape index: {}]
  %s1 = inlined_call_operand.vmem [shape: f32[32,16], index: 1, kind: input, shape index: {}]
  %s2 = inlined_call_operand.vmem [shape: f32[1,16], index: 2, kind: input, shape index: {}]
  %s3 = inlined_call_operand.vmem [shape: f32[16,16], index: 3, kind: output, shape index: {}]
  %s4 = sld [smem:[#allocation0]]
  $region22: #{tacotron2_forward.10} parent=0
    _
  %s6 = ssub.s32 1, %s4
  %s7 = scalar_select 0, %s6, %s4
  // Predicated region
  $region2: #{tacotron2_forward.10} parent=0 // pred_check
    _
  $region3: #{tacotron2_forward.10} parent=0 // pred_check_branch
    %9 = sbr.rel (0) target = $region5
  $region4: #{tacotron2_forward.10} parent=0 // pred_region
    _
  $region5: #{tacotron2_forward.10} parent=0 // pred_fallthru
    _
  // Predicated region
  $region6: #{tacotron2_forward.10} parent=0 // pred_check
    _
  $region7: #{tacotron2_forward.10} parent=0 // pred_check_branch
    %11 = sbr.rel (0) target = $region9
  $region8: #{tacotron2_forward.10} parent=0 // pred_region
    _
  $region9: #{tacotron2_forward.10} parent=0 // pred_fallthru
    _
  // Predicated region
  $region10: #{tacotron2_forward.10} parent=0 // pred_check
    _
  $region11: #{tacotron2_forward.10} parent=0 // pred_check_branch
    %13 = sbr.rel (0) target = $region13
  $region12: #{tacotron2_forward.10} parent=0 // pred_region
    _
  $region13: #{tacotron2_forward.10} parent=0 // pred_fallthru
    _
  %v14 = vld [vmem:[%s0] sm:$0xff]
  %v15 = vld [vmem:[%s0 + $0x8] sm:$0xff]
  %v16 = vld [vmem:[%s1] sm:$0xff]
  %v17 = vld [vmem:[%s1 + $0x8] sm:$0xff]
  %v18 = vld [vmem:[%s1 + $0x10] sm:$0xff]
  %v19 = vld [vmem:[%s1 + $0x18] sm:$0xff]
  %v20 = vld [vmem:[%s2] sm:$0x1]
  %v22 = vlaneseq
  %v23 = vshrl.u32 %v22, 7
  %v24 = vsub.s32 0, %v23
  %v25 = vrot.slane %v20, %v24
  %vm27 = vcmask 261120
  %v29 = vsel %vm27, %v14, 0
  %v32 = vsel %vm27, %v15, 0
  %34 = vmatprep.subr.mxu0 0.0
  %35 = vmatpush1.msra.mxu0 %v16
  %36 = vmatprep.subr.mxu0 0.0
  %37 = vmatpush1.msra.mxu0 %v17
  %38 = vmatprep.subr.mxu0 0.0
  %39 = vmatpush1.msra.mxu0 %v18
  %40 = vmatprep.subr.mxu0 0.0
  %41 = vmatpush1.msra.mxu0 %v19
  %42 = vmatprep.subr.mxu0 0.0
  %43 = vmatpush1.msra.mxu0 0.0
  %44 = vmatprep.subr.mxu0 0.0
  %45 = vmatpush1.msra.mxu0 0.0
  %46 = vmatprep.subr.mxu0 0.0
  %47 = vmatpush1.msra.mxu0 0.0
  %48 = vmatprep.subr.mxu0 0.0
  %49 = vmatpush1.msra.mxu0 0.0
  %50 = vmatprep.subr.mxu0 0.0
  %51 = vmatpush1.msra.mxu0 0.0
  %52 = vmatprep.subr.mxu0 0.0
  %53 = vmatpush1.msra.mxu0 0.0
  %54 = vmatprep.subr.mxu0 0.0
  %55 = vmatpush1.msra.mxu0 0.0
  %56 = vmatprep.subr.mxu0 0.0
  %57 = vmatpush1.msra.mxu0 0.0
  %58 = vmatprep.subr.mxu0 0.0
  %59 = vmatpush1.msra.mxu0 0.0
  %60 = vmatprep.subr.mxu0 0.0
  %61 = vmatpush1.msra.mxu0 0.0
  %62 = vmatprep.subr.mxu0 0.0
  %63 = vmatpush1.msra.mxu0 0.0
  %64 = vmatprep.subr.mxu0 0.0
  %65 = vmatpush1.msra.mxu0 0.0
  %66 = vmatprep.subr.mxu0 0.0
  %67 = vmatpush1.msra.mxu0 0.0
  %68 = vmatprep.subr.mxu0 0.0
  %69 = vmatpush1.msra.mxu0 0.0
  %70 = vmatprep.subr.mxu0 0.0
  %71 = vmatpush1.msra.mxu0 0.0
  %72 = vmatprep.subr.mxu0 0.0
  %73 = vmatpush1.msra.mxu0 0.0
  %74 = vmatprep.subr.mxu0 0.0
  %75 = vmatpush1.msra.mxu0 0.0
  %76 = vmatprep.subr.mxu0 0.0
  %77 = vmatpush1.msra.mxu0 0.0
  %78 = vmatprep.subr.mxu0 0.0
  %79 = vmatpush1.msra.mxu0 0.0
  %80 = vmatprep.subr.mxu0 0.0
  %81 = vmatpush1.msra.mxu0 0.0
  %82 = vmatprep.subr.mxu0 0.0
  %83 = vmatpush1.msra.mxu0 0.0
  %84 = vmatprep.subr.mxu0 0.0
  %85 = vmatpush1.msra.mxu0 0.0
  %86 = vmatprep.subr.mxu0 0.0
  %87 = vmatpush1.msra.mxu0 0.0
  %88 = vmatprep.subr.mxu0 0.0
  %89 = vmatpush1.msra.mxu0 0.0
  %90 = vmatprep.subr.mxu0 0.0
  %91 = vmatpush1.msra.mxu0 0.0
  %92 = vmatprep.subr.mxu0 0.0
  %93 = vmatpush1.msra.mxu0 0.0
  %94 = vmatprep.subr.mxu0 0.0
  %95 = vmatpush1.msra.mxu0 0.0
  %96 = vmatprep.subr.mxu0 0.0
  %97 = vmatpush1.msra.mxu0 0.0
  %98 = vmatprep.mubr.f32.mxu0 0.0
  %99 = vmatmul.mubr.f32.gmra.mrb[0].mxu0 %v29
  %v100 = vpop.f32.mrb[0].mxu0
  %v101 = vadd.f32 %v25, %v100
  %v102 = vpop.f32.mrb[0].mxu0
  %103 = vmatprep.mubr.f32.mxu0 0.0
  %104 = vmatmul.mubr.f32.gmra.mrb[0].mxu0 %v32
  %v105 = vpop.f32.mrb[0].mxu0
  %v106 = vadd.f32 %v25, %v105
  %v107 = vpop.f32.mrb[0].mxu0
  %108 = vdwg.mxu0
  %vm109 = vcmask 130048
  %110 = vst.msk [vmem:[%s3] sm:$0xff] %vm109, %v101
  %111 = vst.msk [vmem:[%s3 + $0x8] sm:$0xff] %vm109, %v106
  // Predicated region
  $region14: #{tacotron2_forward.10} parent=0 // pred_check
    _
  $region15: #{tacotron2_forward.10} parent=0 // pred_check_branch
    %113 = sbr.rel (0) target = $region17
  $region16: #{tacotron2_forward.10} parent=0 // pred_region
    _
  $region17: #{tacotron2_forward.10} parent=0 // pred_fallthru
    _
  // Predicated region
  $region18: #{tacotron2_forward.10} parent=0 // pred_check
    _
  $region19: #{tacotron2_forward.10} parent=0 // pred_check_branch
    %115 = sbr.rel (0) target = $region21
  $region20: #{tacotron2_forward.10} parent=0 // pred_region
    _
  $region21: #{tacotron2_forward.10} parent=0 // pred_fallthru
    _

// kernel: tacotron2_forward.9
$region0: #{tacotron2_forward.9}
  #allocation0 [shape = 'u32[]', space=smem, size = 0x4, offset = 0x4, fixed_abs, tag = 'smem constant byte address 0x4 - core index']
  #allocation1 [shape = 'u32[144,128]{1,0:T(1,128)}', space=vmem, size = 0x12000, scoped, tag = 'internal scratch']
  %s0 = inlined_call_operand.vmem [shape: f32[14,8], index: 0, kind: input, shape index: {}]
  %s1 = inlined_call_operand.vmem [shape: f32[8,16], index: 1, kind: input, shape index: {}]
  %s2 = inlined_call_operand.vmem [shape: f32[16,16], index: 2, kind: input, shape index: {}]
  %s3 = inlined_call_operand.vmem [shape: f32[14,16], index: 3, kind: output, shape index: {}]
  %s4 = sld [smem:[#allocation0]]
  $region22: #{tacotron2_forward.9} parent=0
    _
  %s6 = ssub.s32 1, %s4
  %s7 = scalar_select 0, %s6, %s4
  // Predicated region
  $region2: #{tacotron2_forward.9} parent=0 // pred_check
    _
  $region3: #{tacotron2_forward.9} parent=0 // pred_check_branch
    %9 = sbr.rel (0) target = $region5
  $region4: #{tacotron2_forward.9} parent=0 // pred_region
    _
  $region5: #{tacotron2_forward.9} parent=0 // pred_fallthru
    _
  // Predicated region
  $region6: #{tacotron2_forward.9} parent=0 // pred_check
    _
  $region7: #{tacotron2_forward.9} parent=0 // pred_check_branch
    %11 = sbr.rel (0) target = $region9
  $region8: #{tacotron2_forward.9} parent=0 // pred_region
    _
  $region9: #{tacotron2_forward.9} parent=0 // pred_fallthru
    _
  // Predicated region
  $region10: #{tacotron2_forward.9} parent=0 // pred_check
    _
  $region11: #{tacotron2_forward.9} parent=0 // pred_check_branch
    %13 = sbr.rel (0) target = $region13
  $region12: #{tacotron2_forward.9} parent=0 // pred_region
    _
  $region13: #{tacotron2_forward.9} parent=0 // pred_fallthru
    _
  %v14 = vld [vmem:[%s0] sm:$0xff]
  %v15 = vld [vmem:[%s0 + $0x8] sm:$0x3f]
  %v16 = vld [vmem:[%s1] sm:$0xff]
  %vm17 = vcmask 64512
  %v19 = vsel %vm17, %v14, 0
  %v22 = vsel %vm17, %v15, 0
  %24 = vmatprep.subr.mxu0 0.0
  %25 = vmatpush1.msra.mxu0 %v16
  %26 = vmatprep.subr.mxu0 0.0
  %27 = vmatpush1.msra.mxu0 0.0
  %28 = vmatprep.subr.mxu0 0.0
  %29 = vmatpush1.msra.mxu0 0.0
  %30 = vmatprep.subr.mxu0 0.0
  %31 = vmatpush1.msra.mxu0 0.0
  %32 = vmatprep.subr.mxu0 0.0
  %33 = vmatpush1.msra.mxu0 0.0
  %34 = vmatprep.subr.mxu0 0.0
  %35 = vmatpush1.msra.mxu0 0.0
  %36 = vmatprep.subr.mxu0 0.0
  %37 = vmatpush1.msra.mxu0 0.0
  %38 = vmatprep.subr.mxu0 0.0
  %39 = vmatpush1.msra.mxu0 0.0
  %40 = vmatprep.subr.mxu0 0.0
  %41 = vmatpush1.msra.mxu0 0.0
  %42 = vmatprep.subr.mxu0 0.0
  %43 = vmatpush1.msra.mxu0 0.0
  %44 = vmatprep.subr.mxu0 0.0
  %45 = vmatpush1.msra.mxu0 0.0
  %46 = vmatprep.subr.mxu0 0.0
  %47 = vmatpush1.msra.mxu0 0.0
  %48 = vmatprep.subr.mxu0 0.0
  %49 = vmatpush1.msra.mxu0 0.0
  %50 = vmatprep.subr.mxu0 0.0
  %51 = vmatpush1.msra.mxu0 0.0
  %52 = vmatprep.subr.mxu0 0.0
  %53 = vmatpush1.msra.mxu0 0.0
  %54 = vmatprep.subr.mxu0 0.0
  %55 = vmatpush1.msra.mxu0 0.0
  %56 = vmatprep.subr.mxu0 0.0
  %57 = vmatpush1.msra.mxu0 0.0
  %58 = vmatprep.subr.mxu0 0.0
  %59 = vmatpush1.msra.mxu0 0.0
  %60 = vmatprep.subr.mxu0 0.0
  %61 = vmatpush1.msra.mxu0 0.0
  %62 = vmatprep.subr.mxu0 0.0
  %63 = vmatpush1.msra.mxu0 0.0
  %64 = vmatprep.subr.mxu0 0.0
  %65 = vmatpush1.msra.mxu0 0.0
  %66 = vmatprep.subr.mxu0 0.0
  %67 = vmatpush1.msra.mxu0 0.0
  %68 = vmatprep.subr.mxu0 0.0
  %69 = vmatpush1.msra.mxu0 0.0
  %70 = vmatprep.subr.mxu0 0.0
  %71 = vmatpush1.msra.mxu0 0.0
  %72 = vmatprep.subr.mxu0 0.0
  %73 = vmatpush1.msra.mxu0 0.0
  %74 = vmatprep.subr.mxu0 0.0
  %75 = vmatpush1.msra.mxu0 0.0
  %76 = vmatprep.subr.mxu0 0.0
  %77 = vmatpush1.msra.mxu0 0.0
  %78 = vmatprep.subr.mxu0 0.0
  %79 = vmatpush1.msra.mxu0 0.0
  %80 = vmatprep.subr.mxu0 0.0
  %81 = vmatpush1.msra.mxu0 0.0
  %82 = vmatprep.subr.mxu0 0.0
  %83 = vmatpush1.msra.mxu0 0.0
  %84 = vmatprep.subr.mxu0 0.0
  %85 = vmatpush1.msra.mxu0 0.0
  %86 = vmatprep.subr.mxu0 0.0
  %87 = vmatpush1.msra.mxu0 0.0
  %88 = vmatprep.mubr.f32.mxu0 0.0
  %89 = vmatmul.mubr.f32.gmra.mrb[0].mxu0 %v19
  %v90 = vpop.f32.mrb[0].mxu0
  %v91 = vadd.f32 0.0, %v90
  %v92 = vpop.f32.mrb[0].mxu0
  %93 = vmatprep.mubr.f32.mxu0 0.0
  %94 = vmatmul.mubr.f32.gmra.mrb[0].mxu0 %v22
  %v95 = vpop.f32.mrb[0].mxu0
  %v96 = vadd.f32 0.0, %v95
  %v97 = vpop.f32.mrb[0].mxu0
  %98 = vdwg.mxu0
  %v99 = vmax.f32 %v91, 0.0
  %v100 = vmax.f32 %v96, 0.0
  %v101 = vld [vmem:[%s2] sm:$0xff]
  %v102 = vld [vmem:[%s2 + $0x8] sm:$0xff]
  %vm103 = vcmask 130048
  %v105 = vsel %vm103, %v99, 0
  %v108 = vsel %vm103, %v100, 0
  %110 = vmatprep.subr.mxu0 0.0
  %111 = vmatpush1.msra.mxu0 %v101
  %112 = vmatprep.subr.mxu0 0.0
  %113 = vmatpush1.msra.mxu0 %v102
  %114 = vmatprep.subr.mxu0 0.0
  %115 = vmatpush1.msra.mxu0 0.0
  %116 = vmatprep.subr.mxu0 0.0
  %117 = vmatpush1.msra.mxu0 0.0
  %118 = vmatprep.subr.mxu0 0.0
  %119 = vmatpush1.msra.mxu0 0.0
  %120 = vmatprep.subr.mxu0 0.0
  %121 = vmatpush1.msra.mxu0 0.0
  %122 = vmatprep.subr.mxu0 0.0
  %123 = vmatpush1.msra.mxu0 0.0
  %124 = vmatprep.subr.mxu0 0.0
  %125 = vmatpush1.msra.mxu0 0.0
  %126 = vmatprep.subr.mxu0 0.0
  %127 = vmatpush1.msra.mxu0 0.0
  %128 = vmatprep.subr.mxu0 0.0
  %129 = vmatpush1.msra.mxu0 0.0
  %130 = vmatprep.subr.mxu0 0.0
  %131 = vmatpush1.msra.mxu0 0.0
  %132 = vmatprep.subr.mxu0 0.0
  %133 = vmatpush1.msra.mxu0 0.0
  %134 = vmatprep.subr.mxu0 0.0
  %135 = vmatpush1.msra.mxu0 0.0
  %136 = vmatprep.subr.mxu0 0.0
  %137 = vmatpush1.msra.mxu0 0.0
  %138 = vmatprep.subr.mxu0 0.0
  %139 = vmatpush1.msra.mxu0 0.0
  %140 = vmatprep.subr.mxu0 0.0
  %141 = vmatpush1.msra.mxu0 0.0
  %142 = vmatprep.subr.mxu0 0.0
  %143 = vmatpush1.msra.mxu0 0.0
  %144 = vmatprep.subr.mxu0 0.0
  %145 = vmatpush1.msra.mxu0 0.0
  %146 = vmatprep.subr.mxu0 0.0
  %147 = vmatpush1.msra.mxu0 0.0
  %148 = vmatprep.subr.mxu0 0.0
  %149 = vmatpush1.msra.mxu0 0.0
  %150 = vmatprep.subr.mxu0 0.0
  %151 = vmatpush1.msra.mxu0 0.0
  %152 = vmatprep.subr.mxu0 0.0
  %153 = vmatpush1.msra.mxu0 0.0
  %154 = vmatprep.subr.mxu0 0.0
  %155 = vmatpush1.msra.mxu0 0.0
  %156 = vmatprep.subr.mxu0 0.0
  %157 = vmatpush1.msra.mxu0 0.0
  %158 = vmatprep.subr.mxu0 0.0
  %159 = vmatpush1.msra.mxu0 0.0
  %160 = vmatprep.subr.mxu0 0.0
  %161 = vmatpush1.msra.mxu0 0.0
  %162 = vmatprep.subr.mxu0 0.0
  %163 = vmatpush1.msra.mxu0 0.0
  %164 = vmatprep.subr.mxu0 0.0
  %165 = vmatpush1.msra.mxu0 0.0
  %166 = vmatprep.subr.mxu0 0.0
  %167 = vmatpush1.msra.mxu0 0.0
  %168 = vmatprep.subr.mxu0 0.0
  %169 = vmatpush1.msra.mxu0 0.0
  %170 = vmatprep.subr.mxu0 0.0
  %171 = vmatpush1.msra.mxu0 0.0
  %172 = vmatprep.subr.mxu0 0.0
  %173 = vmatpush1.msra.mxu0 0.0
  %174 = vmatprep.mubr.f32.mxu0 0.0
  %175 = vmatmul.mubr.f32.gmra.mrb[0].mxu0 %v105
  %v176 = vpop.f32.mrb[0].mxu0
  %v177 = vadd.f32 0.0, %v176
  %v178 = vpop.f32.mrb[0].mxu0
  %179 = vmatprep.mubr.f32.mxu0 0.0
  %180 = vmatmul.mubr.f32.gmra.mrb[0].mxu0 %v108
  %v181 = vpop.f32.mrb[0].mxu0
  %v182 = vadd.f32 0.0, %v181
  %v183 = vpop.f32.mrb[0].mxu0
  %184 = vdwg.mxu0
  %v185 = vmax.f32 %v177, 0.0
  %v186 = vmax.f32 %v182, 0.0
  %187 = vst.msk [vmem:[%s3] sm:$0xff] %vm103, %v185
  %vm188 = vcmask 128000
  %189 = vst.msk [vmem:[%s3 + $0x8] sm:$0x3f] %vm188, %v186
  // Predicated region
  $region14: #{tacotron2_forward.9} parent=0 // pred_check
    _
  $region15: #{tacotron2_forward.9} parent=0 // pred_check_branch
    %191 = sbr.rel (0) target = $region17
  $region16: #{tacotron2_forward.9} parent=0 // pred_region
    _
  $region17: #{tacotron2_forward.9} parent=0 // pred_fallthru
    _
  // Predicated region
  $region18: #{tacotron2_forward.9} parent=0 // pred_check
    _
  $region19: #{tacotron2_forward.9} parent=0 // pred_check_branch
    %193 = sbr.rel (0) target = $region21
  $region20: #{tacotron2_forward.9} parent=0 // pred_region
    _
  $region21: #{tacotron2_forward.9} parent=0 // pred_fallthru
    _

// kernel: tacotron2_forward.7
$region0: #{tacotron2_forward.7}
  #allocation0 [shape = 'u32[]', space=smem, size = 0x4, offset = 0x4, fixed_abs, tag = 'smem constant byte address 0x4 - core index']
  #allocation1 [shape = 'u32[144,128]{1,0:T(1,128)}', space=vmem, size = 0x12000, scoped, tag = 'internal scratch']
  %s0 = inlined_call_operand.vmem [shape: f32[2,8,32], index: 0, kind: input, shape index: {}]
  %s1 = inlined_call_operand.vmem [shape: f32[5,32,32], index: 1, kind: input, shape index: {}]
  %s2 = inlined_call_operand.vmem [shape: f32[1,32], index: 2, kind: input, shape index: {}]
  %s3 = inlined_call_operand.vmem [shape: f32[1,32], index: 3, kind: input, shape index: {}]
  %s4 = inlined_call_operand.vmem [shape: f32[1,32], index: 4, kind: input, shape index: {}]
  %s5 = inlined_call_operand.vmem [shape: f32[5,32,32], index: 5, kind: input, shape index: {}]
  %s6 = inlined_call_operand.vmem [shape: f32[1,32], index: 6, kind: input, shape index: {}]
  %s7 = inlined_call_operand.vmem [shape: f32[1,32], index: 7, kind: input, shape index: {}]
  %s8 = inlined_call_operand.vmem [shape: f32[1,32], index: 8, kind: input, shape index: {}]
  %s9 = inlined_call_operand.vmem [shape: f32[2,8,32], index: 9, kind: output, shape index: {}]
  %s10 = sld [smem:[#allocation0]]
  $region46: #{tacotron2_forward.7} parent=0
    _
  %s12 = ssub.s32 1, %s10
  %s13 = scalar_select 0, %s12, %s10
  // Predicated region
  $region2: #{tacotron2_forward.7} parent=0 // pred_check
    _
  $region3: #{tacotron2_forward.7} parent=0 // pred_check_branch
    %15 = sbr.rel (0) target = $region5
  $region4: #{tacotron2_forward.7} parent=0 // pred_region
    _
  $region5: #{tacotron2_forward.7} parent=0 // pred_fallthru
    _
  // Predicated region
  $region6: #{tacotron2_forward.7} parent=0 // pred_check
    _
  $region7: #{tacotron2_forward.7} parent=0 // pred_check_branch
    %17 = sbr.rel (0) target = $region9
  $region8: #{tacotron2_forward.7} parent=0 // pred_region
    _
  $region9: #{tacotron2_forward.7} parent=0 // pred_fallthru
    _
  // Predicated region
  $region10: #{tacotron2_forward.7} parent=0 // pred_check
    _
  $region11: #{tacotron2_forward.7} parent=0 // pred_check_branch
    %19 = sbr.rel (0) target = $region13
  $region12: #{tacotron2_forward.7} parent=0 // pred_region
    _
  $region13: #{tacotron2_forward.7} parent=0 // pred_fallthru
    _
  // Predicated region
  $region14: #{tacotron2_forward.7} parent=0 // pred_check
    _
  $region15: #{tacotron2_forward.7} parent=0 // pred_check_branch
    %21 = sbr.rel (0) target = $region17
  $region16: #{tacotron2_forward.7} parent=0 // pred_region
    _
  $region17: #{tacotron2_forward.7} parent=0 // pred_fallthru
    _
  // Predicated region
  $region18: #{tacotron2_forward.7} parent=0 // pred_check
    _
  $region19: #{tacotron2_forward.7} parent=0 // pred_check_branch
    %23 = sbr.rel (0) target = $region21
  $region20: #{tacotron2_forward.7} parent=0 // pred_region
    _
  $region21: #{tacotron2_forward.7} parent=0 // pred_fallthru
    _
  // Predicated region
  $region22: #{tacotron2_forward.7} parent=0 // pred_check
    _
  $region23: #{tacotron2_forward.7} parent=0 // pred_check_branch
    %25 = sbr.rel (0) target = $region25
  $region24: #{tacotron2_forward.7} parent=0 // pred_region
    _
  $region25: #{tacotron2_forward.7} parent=0 // pred_fallthru
    _
  // Predicated region
  $region26: #{tacotron2_forward.7} parent=0 // pred_check
    _
  $region27: #{tacotron2_forward.7} parent=0 // pred_check_branch
    %27 = sbr.rel (0) target = $region29
  $region28: #{tacotron2_forward.7} parent=0 // pred_region
    _
  $region29: #{tacotron2_forward.7} parent=0 // pred_fallthru
    _
  // Predicated region
  $region30: #{tacotron2_forward.7} parent=0 // pred_check
    _
  $region31: #{tacotron2_forward.7} parent=0 // pred_check_branch
    %29 = sbr.rel (0) target = $region33
  $region32: #{tacotron2_forward.7} parent=0 // pred_region
    _
  $region33: #{tacotron2_forward.7} parent=0 // pred_fallthru
    _
  // Predicated region
  $region34: #{tacotron2_forward.7} parent=0 // pred_check
    _
  $region35: #{tacotron2_forward.7} parent=0 // pred_check_branch
    %31 = sbr.rel (0) target = $region37
  $region36: #{tacotron2_forward.7} parent=0 // pred_region
    _
  $region37: #{tacotron2_forward.7} parent=0 // pred_fallthru
    _
  %v32 = vld [vmem:[%s0] sm:$0xff]
  %v33 = vld [vmem:[%s0 + $0x8] sm:$0xff]
  %v36 = vrot.slane %v32, 6
  %v37 = vrot.slane %v33, 6
  %vm40 = vcmask 1041408
  %v41 = vsel %vm40, 0.0, %v36
  %v42 = vsel %vm40, 0.0, %v37
  %v43 = vsel %vm40, %v36, 0.0
  %v44 = vsel %vm40, %v37, 0.0
  %v45 = vld [vmem:[%s1] sm:$0xff]
  %v46 = vld [vmem:[%s1 + $0x8] sm:$0xff]
  %v47 = vld [vmem:[%s1 + $0x10] sm:$0xff]
  %v48 = vld [vmem:[%s1 + $0x18] sm:$0xff]
  %vm53 = vcmask 1046528
  %v54 = vrot.slane %v41, 1
  %v55 = vrot.slane %v43, 1
  %v56 = vsel %vm53, %v54, %v55
  %v57 = vrot.slane %v42, 1
  %v58 = vrot.slane %v44, 1
  %v59 = vsel %vm53, %v57, %v58
  %s60 = scalar_lea.vmem %s1, 32
  %v61 = vld [vmem:[%s60] sm:$0xff]
  %v62 = vld [vmem:[%s60 + $0x8] sm:$0xff]
  %v63 = vld [vmem:[%s60 + $0x10] sm:$0xff]
  %v64 = vld [vmem:[%s60 + $0x18] sm:$0xff]
  %vm65 = vcmask 261120
  %v66 = vsel %vm65, %v56, 0
  %v68 = vsel %vm65, %v59, 0
  %70 = vmatprep.subr.mxu0 0.0
  %71 = vmatpush1.msra.mxu0 %v61
  %72 = vmatprep.subr.mxu0 0.0
  %73 = vmatpush1.msra.mxu0 %v62
  %74 = vmatprep.subr.mxu0 0.0
  %75 = vmatpush1.msra.mxu0 %v63
  %76 = vmatprep.subr.mxu0 0.0
  %77 = vmatpush1.msra.mxu0 %v64
  %78 = vmatprep.subr.mxu0 0.0
  %79 = vmatpush1.msra.mxu0 0.0
  %80 = vmatprep.subr.mxu0 0.0
  %81 = vmatpush1.msra.mxu0 0.0
  %82 = vmatprep.subr.mxu0 0.0
  %83 = vmatpush1.msra.mxu0 0.0
  %84 = vmatprep.subr.mxu0 0.0
  %85 = vmatpush1.msra.mxu0 0.0
  %86 = vmatprep.subr.mxu0 0.0
  %87 = vmatpush1.msra.mxu0 0.0
  %88 = vmatprep.subr.mxu0 0.0
  %89 = vmatpush1.msra.mxu0 0.0
  %90 = vmatprep.subr.mxu0 0.0
  %91 = vmatpush1.msra.mxu0 0.0
  %92 = vmatprep.subr.mxu0 0.0
  %93 = vmatpush1.msra.mxu0 0.0
  %94 = vmatprep.subr.mxu0 0.0
  %95 = vmatpush1.msra.mxu0 0.0
  %96 = vmatprep.subr.mxu0 0.0
  %97 = vmatpush1.msra.mxu0 0.0
  %98 = vmatprep.subr.mxu0 0.0
  %99 = vmatpush1.msra.mxu0 0.0
  %100 = vmatprep.subr.mxu0 0.0
  %101 = vmatpush1.msra.mxu0 0.0
  %102 = vmatprep.subr.mxu0 0.0
  %103 = vmatpush1.msra.mxu0 0.0
  %104 = vmatprep.subr.mxu0 0.0
  %105 = vmatpush1.msra.mxu0 0.0
  %106 = vmatprep.subr.mxu0 0.0
  %107 = vmatpush1.msra.mxu0 0.0
  %108 = vmatprep.subr.mxu0 0.0
  %109 = vmatpush1.msra.mxu0 0.0
  %110 = vmatprep.subr.mxu0 0.0
  %111 = vmatpush1.msra.mxu0 0.0
  %112 = vmatprep.subr.mxu0 0.0
  %113 = vmatpush1.msra.mxu0 0.0
  %114 = vmatprep.subr.mxu0 0.0
  %115 = vmatpush1.msra.mxu0 0.0
  %116 = vmatprep.subr.mxu0 0.0
  %117 = vmatpush1.msra.mxu0 0.0
  %118 = vmatprep.subr.mxu0 0.0
  %119 = vmatpush1.msra.mxu0 0.0
  %120 = vmatprep.subr.mxu0 0.0
  %121 = vmatpush1.msra.mxu0 0.0
  %122 = vmatprep.subr.mxu0 0.0
  %123 = vmatpush1.msra.mxu0 0.0
  %124 = vmatprep.subr.mxu0 0.0
  %125 = vmatpush1.msra.mxu0 0.0
  %126 = vmatprep.subr.mxu0 0.0
  %127 = vmatpush1.msra.mxu0 0.0
  %128 = vmatprep.subr.mxu0 0.0
  %129 = vmatpush1.msra.mxu0 0.0
  %130 = vmatprep.subr.mxu0 0.0
  %131 = vmatpush1.msra.mxu0 0.0
  %132 = vmatprep.subr.mxu0 0.0
  %133 = vmatpush1.msra.mxu0 0.0
  %134 = vmatprep.mubr.f32.mxu0 0.0
  %135 = vmatmul.mubr.f32.gmra.mrb[0].mxu0 %v66
  %v136 = vpop.f32.mrb[0].mxu0
  %v137 = vadd.f32 0.0, %v136
  %v138 = vpop.f32.mrb[0].mxu0
  %139 = vmatprep.mubr.f32.mxu0 0.0
  %140 = vmatmul.mubr.f32.gmra.mrb[0].mxu0 %v68
  %v141 = vpop.f32.mrb[0].mxu0
  %v142 = vadd.f32 0.0, %v141
  %v143 = vpop.f32.mrb[0].mxu0
  %144 = vdwg.mxu0
  %v145 = vsel %vm65, %v41, 0
  %v147 = vsel %vm65, %v42, 0
  %149 = vmatprep.subr.mxu0 0.0
  %150 = vmatpush1.msra.mxu0 %v45
  %151 = vmatprep.subr.mxu0 0.0
  %152 = vmatpush1.msra.mxu0 %v46
  %153 = vmatprep.subr.mxu0 0.0
  %154 = vmatpush1.msra.mxu0 %v47
  %155 = vmatprep.subr.mxu0 0.0
  %156 = vmatpush1.msra.mxu0 %v48
  %157 = vmatprep.subr.mxu0 0.0
  %158 = vmatpush1.msra.mxu0 0.0
  %159 = vmatprep.subr.mxu0 0.0
  %160 = vmatpush1.msra.mxu0 0.0
  %161 = vmatprep.subr.mxu0 0.0
  %162 = vmatpush1.msra.mxu0 0.0
  %163 = vmatprep.subr.mxu0 0.0
  %164 = vmatpush1.msra.mxu0 0.0
  %165 = vmatprep.subr.mxu0 0.0
  %166 = vmatpush1.msra.mxu0 0.0
  %167 = vmatprep.subr.mxu0 0.0
  %168 = vmatpush1.msra.mxu0 0.0
  %169 = vmatprep.subr.mxu0 0.0
  %170 = vmatpush1.msra.mxu0 0.0
  %171 = vmatprep.subr.mxu0 0.0
  %172 = vmatpush1.msra.mxu0 0.0
  %173 = vmatprep.subr.mxu0 0.0
  %174 = vmatpush1.msra.mxu0 0.0
  %175 = vmatprep.subr.mxu0 0.0
  %176 = vmatpush1.msra.mxu0 0.0
  %177 = vmatprep.subr.mxu0 0.0
  %178 = vmatpush1.msra.mxu0 0.0
  %179 = vmatprep.subr.mxu0 0.0
  %180 = vmatpush1.msra.mxu0 0.0
  %181 = vmatprep.subr.mxu0 0.0
  %182 = vmatpush1.msra.mxu0 0.0
  %183 = vmatprep.subr.mxu0 0.0
  %184 = vmatpush1.msra.mxu0 0.0
  %185 = vmatprep.subr.mxu0 0.0
  %186 = vmatpush1.msra.mxu0 0.0
  %187 = vmatprep.subr.mxu0 0.0
  %188 = vmatpush1.msra.mxu0 0.0
  %189 = vmatprep.subr.mxu0 0.0
  %190 = vmatpush1.msra.mxu0 0.0
  %191 = vmatprep.subr.mxu0 0.0
  %192 = vmatpush1.msra.mxu0 0.0
  %193 = vmatprep.subr.mxu0 0.0
  %194 = vmatpush1.msra.mxu0 0.0
  %195 = vmatprep.subr.mxu0 0.0
  %196 = vmatpush1.msra.mxu0 0.0
  %197 = vmatprep.subr.mxu0 0.0
  %198 = vmatpush1.msra.mxu0 0.0
  %199 = vmatprep.subr.mxu0 0.0
  %200 = vmatpush1.msra.mxu0 0.0
  %201 = vmatprep.subr.mxu0 0.0
  %202 = vmatpush1.msra.mxu0 0.0
  %203 = vmatprep.subr.mxu0 0.0
  %204 = vmatpush1.msra.mxu0 0.0
  %205 = vmatprep.subr.mxu0 0.0
  %206 = vmatpush1.msra.mxu0 0.0
  %207 = vmatprep.subr.mxu0 0.0
  %208 = vmatpush1.msra.mxu0 0.0
  %209 = vmatprep.subr.mxu0 0.0
  %210 = vmatpush1.msra.mxu0 0.0
  %211 = vmatprep.subr.mxu0 0.0
  %212 = vmatpush1.msra.mxu0 0.0
  %213 = vmatprep.mubr.f32.mxu0 0.0
  %214 = vmatmul.mubr.f32.gmra.mrb[0].mxu0 %v145
  %v215 = vpop.f32.mrb[0].mxu0
  %v216 = vadd.f32 %v137, %v215
  %v217 = vpop.f32.mrb[0].mxu0
  %218 = vmatprep.mubr.f32.mxu0 0.0
  %219 = vmatmul.mubr.f32.gmra.mrb[0].mxu0 %v147
  %v220 = vpop.f32.mrb[0].mxu0
  %v221 = vadd.f32 %v142, %v220
  %v222 = vpop.f32.mrb[0].mxu0
  %223 = vdwg.mxu0
  %vm224 = vcmask 1045504
  %v225 = vrot.slane %v41, 2
  %v226 = vrot.slane %v43, 2
  %v227 = vsel %vm224, %v225, %v226
  %v228 = vrot.slane %v42, 2
  %v229 = vrot.slane %v44, 2
  %v230 = vsel %vm224, %v228, %v229
  %s231 = scalar_lea.vmem %s1, 64
  %v232 = vld [vmem:[%s231] sm:$0xff]
  %v233 = vld [vmem:[%s231 + $0x8] sm:$0xff]
  %v234 = vld [vmem:[%s231 + $0x10] sm:$0xff]
  %v235 = vld [vmem:[%s231 + $0x18] sm:$0xff]
  %v236 = vsel %vm65, %v227, 0
  %v238 = vsel %vm65, %v230, 0
  %240 = vmatprep.subr.mxu0 0.0
  %241 = vmatpush1.msra.mxu0 %v232
  %242 = vmatprep.subr.mxu0 0.0
  %243 = vmatpush1.msra.mxu0 %v233
  %244 = vmatprep.subr.mxu0 0.0
  %245 = vmatpush1.msra.mxu0 %v234
  %246 = vmatprep.subr.mxu0 0.0
  %247 = vmatpush1.msra.mxu0 %v235
  %248 = vmatprep.subr.mxu0 0.0
  %249 = vmatpush1.msra.mxu0 0.0
  %250 = vmatprep.subr.mxu0 0.0
  %251 = vmatpush1.msra.mxu0 0.0
  %252 = vmatprep.subr.mxu0 0.0
  %253 = vmatpush1.msra.mxu0 0.0
  %254 = vmatprep.subr.mxu0 0.0
  %255 = vmatpush1.msra.mxu0 0.0
  %256 = vmatprep.subr.mxu0 0.0
  %257 = vmatpush1.msra.mxu0 0.0
  %258 = vmatprep.subr.mxu0 0.0
  %259 = vmatpush1.msra.mxu0 0.0
  %260 = vmatprep.subr.mxu0 0.0
  %261 = vmatpush1.msra.mxu0 0.0
  %262 = vmatprep.subr.mxu0 0.0
  %263 = vmatpush1.msra.mxu0 0.0
  %264 = vmatprep.subr.mxu0 0.0
  %265 = vmatpush1.msra.mxu0 0.0
  %266 = vmatprep.subr.mxu0 0.0
  %267 = vmatpush1.msra.mxu0 0.0
  %268 = vmatprep.subr.mxu0 0.0
  %269 = vmatpush1.msra.mxu0 0.0
  %270 = vmatprep.subr.mxu0 0.0
  %271 = vmatpush1.msra.mxu0 0.0
  %272 = vmatprep.subr.mxu0 0.0
  %273 = vmatpush1.msra.mxu0 0.0
  %274 = vmatprep.subr.mxu0 0.0
  %275 = vmatpush1.msra.mxu0 0.0
  %276 = vmatprep.subr.mxu0 0.0
  %277 = vmatpush1.msra.mxu0 0.0
  %278 = vmatprep.subr.mxu0 0.0
  %279 = vmatpush1.msra.mxu0 0.0
  %280 = vmatprep.subr.mxu0 0.0
  %281 = vmatpush1.msra.mxu0 0.0
  %282 = vmatprep.subr.mxu0 0.0
  %283 = vmatpush1.msra.mxu0 0.0
  %284 = vmatprep.subr.mxu0 0.0
  %285 = vmatpush1.msra.mxu0 0.0
  %286 = vmatprep.subr.mxu0 0.0
  %287 = vmatpush1.msra.mxu0 0.0
  %288 = vmatprep.subr.mxu0 0.0
  %289 = vmatpush1.msra.mxu0 0.0
  %290 = vmatprep.subr.mxu0 0.0
  %291 = vmatpush1.msra.mxu0 0.0
  %292 = vmatprep.subr.mxu0 0.0
  %293 = vmatpush1.msra.mxu0 0.0
  %294 = vmatprep.subr.mxu0 0.0
  %295 = vmatpush1.msra.mxu0 0.0
  %296 = vmatprep.subr.mxu0 0.0
  %297 = vmatpush1.msra.mxu0 0.0
  %298 = vmatprep.subr.mxu0 0.0
  %299 = vmatpush1.msra.mxu0 0.0
  %300 = vmatprep.subr.mxu0 0.0
  %301 = vmatpush1.msra.mxu0 0.0
  %302 = vmatprep.subr.mxu0 0.0
  %303 = vmatpush1.msra.mxu0 0.0
  %304 = vmatprep.mubr.f32.mxu0 0.0
  %305 = vmatmul.mubr.f32.gmra.mrb[0].mxu0 %v236
  %v306 = vpop.f32.mrb[0].mxu0
  %v307 = vadd.f32 0.0, %v306
  %v308 = vpop.f32.mrb[0].mxu0
  %309 = vmatprep.mubr.f32.mxu0 0.0
  %310 = vmatmul.mubr.f32.gmra.mrb[0].mxu0 %v238
  %v311 = vpop.f32.mrb[0].mxu0
  %v312 = vadd.f32 0.0, %v311
  %v313 = vpop.f32.mrb[0].mxu0
  %314 = vdwg.mxu0
  %v315 = vadd.f32 %v216, %v307
  %v316 = vadd.f32 %v221, %v312
  %vm317 = vcmask 1044480
  %v318 = vrot.slane %v41, 3
  %v319 = vrot.slane %v43, 3
  %v320 = vsel %vm317, %v318, %v319
  %v321 = vrot.slane %v42, 3
  %v322 = vrot.slane %v44, 3
  %v323 = vsel %vm317, %v321, %v322
  %s324 = scalar_lea.vmem %s1, 96
  %v325 = vld [vmem:[%s324] sm:$0xff]
  %v326 = vld [vmem:[%s324 + $0x8] sm:$0xff]
  %v327 = vld [vmem:[%s324 + $0x10] sm:$0xff]
  %v328 = vld [vmem:[%s324 + $0x18] sm:$0xff]
  %v329 = vsel %vm65, %v320, 0
  %v331 = vsel %vm65, %v323, 0
  %333 = vmatprep.subr.mxu0 0.0
  %334 = vmatpush1.msra.mxu0 %v325
  %335 = vmatprep.subr.mxu0 0.0
  %336 = vmatpush1.msra.mxu0 %v326
  %337 = vmatprep.subr.mxu0 0.0
  %338 = vmatpush1.msra.mxu0 %v327
  %339 = vmatprep.subr.mxu0 0.0
  %340 = vmatpush1.msra.mxu0 %v328
  %341 = vmatprep.subr.mxu0 0.0
  %342 = vmatpush1.msra.mxu0 0.0
  %343 = vmatprep.subr.mxu0 0.0
  %344 = vmatpush1.msra.mxu0 0.0
  %345 = vmatprep.subr.mxu0 0.0
  %346 = vmatpush1.msra.mxu0 0.0
  %347 = vmatprep.subr.mxu0 0.0
  %348 = vmatpush1.msra.mxu0 0.0
  %349 = vmatprep.subr.mxu0 0.0
  %350 = vmatpush1.msra.mxu0 0.0
  %351 = vmatprep.subr.mxu0 0.0
  %352 = vmatpush1.msra.mxu0 0.0
  %353 = vmatprep.subr.mxu0 0.0
  %354 = vmatpush1.msra.mxu0 0.0
  %355 = vmatprep.subr.mxu0 0.0
  %356 = vmatpush1.msra.mxu0 0.0
  %357 = vmatprep.subr.mxu0 0.0
  %358 = vmatpush1.msra.mxu0 0.0
  %359 = vmatprep.subr.mxu0 0.0
  %360 = vmatpush1.msra.mxu0 0.0
  %361 = vmatprep.subr.mxu0 0.0
  %362 = vmatpush1.msra.mxu0 0.0
  %363 = vmatprep.subr.mxu0 0.0
  %364 = vmatpush1.msra.mxu0 0.0
  %365 = vmatprep.subr.mxu0 0.0
  %366 = vmatpush1.msra.mxu0 0.0
  %367 = vmatprep.subr.mxu0 0.0
  %368 = vmatpush1.msra.mxu0 0.0
  %369 = vmatprep.subr.mxu0 0.0
  %370 = vmatpush1.msra.mxu0 0.0
  %371 = vmatprep.subr.mxu0 0.0
  %372 = vmatpush1.msra.mxu0 0.0
  %373 = vmatprep.subr.mxu0 0.0
  %374 = vmatpush1.msra.mxu0 0.0
  %375 = vmatprep.subr.mxu0 0.0
  %376 = vmatpush1.msra.mxu0 0.0
  %377 = vmatprep.subr.mxu0 0.0
  %378 = vmatpush1.msra.mxu0 0.0
  %379 = vmatprep.subr.mxu0 0.0
  %380 = vmatpush1.msra.mxu0 0.0
  %381 = vmatprep.subr.mxu0 0.0
  %382 = vmatpush1.msra.mxu0 0.0
  %383 = vmatprep.subr.mxu0 0.0
  %384 = vmatpush1.msra.mxu0 0.0
  %385 = vmatprep.subr.mxu0 0.0
  %386 = vmatpush1.msra.mxu0 0.0
  %387 = vmatprep.subr.mxu0 0.0
  %388 = vmatpush1.msra.mxu0 0.0
  %389 = vmatprep.subr.mxu0 0.0
  %390 = vmatpush1.msra.mxu0 0.0
  %391 = vmatprep.subr.mxu0 0.0
  %392 = vmatpush1.msra.mxu0 0.0
  %393 = vmatprep.subr.mxu0 0.0
  %394 = vmatpush1.msra.mxu0 0.0
  %395 = vmatprep.subr.mxu0 0.0
  %396 = vmatpush1.msra.mxu0 0.0
  %397 = vmatprep.mubr.f32.mxu0 0.0
  %398 = vmatmul.mubr.f32.gmra.mrb[0].mxu0 %v329
  %v399 = vpop.f32.mrb[0].mxu0
  %v400 = vadd.f32 0.0, %v399
  %v401 = vpop.f32.mrb[0].mxu0
  %402 = vmatprep.mubr.f32.mxu0 0.0
  %403 = vmatmul.mubr.f32.gmra.mrb[0].mxu0 %v331
  %v404 = vpop.f32.mrb[0].mxu0
  %v405 = vadd.f32 0.0, %v404
  %v406 = vpop.f32.mrb[0].mxu0
  %407 = vdwg.mxu0
  %v408 = vadd.f32 %v315, %v400
  %v409 = vadd.f32 %v316, %v405
  %vm410 = vcmask 1043456
  %v411 = vrot.slane %v41, 4
  %v412 = vrot.slane %v43, 4
  %v413 = vsel %vm410, %v411, %v412
  %v414 = vrot.slane %v42, 4
  %v415 = vrot.slane %v44, 4
  %v416 = vsel %vm410, %v414, %v415
  %s417 = scalar_lea.vmem %s1, 128
  %v418 = vld [vmem:[%s417] sm:$0xff]
  %v419 = vld [vmem:[%s417 + $0x8] sm:$0xff]
  %v420 = vld [vmem:[%s417 + $0x10] sm:$0xff]
  %v421 = vld [vmem:[%s417 + $0x18] sm:$0xff]
  %v422 = vsel %vm65, %v413, 0
  %v424 = vsel %vm65, %v416, 0
  %426 = vmatprep.subr.mxu0 0.0
  %427 = vmatpush1.msra.mxu0 %v418
  %428 = vmatprep.subr.mxu0 0.0
  %429 = vmatpush1.msra.mxu0 %v419
  %430 = vmatprep.subr.mxu0 0.0
  %431 = vmatpush1.msra.mxu0 %v420
  %432 = vmatprep.subr.mxu0 0.0
  %433 = vmatpush1.msra.mxu0 %v421
  %434 = vmatprep.subr.mxu0 0.0
  %435 = vmatpush1.msra.mxu0 0.0
  %436 = vmatprep.subr.mxu0 0.0
  %437 = vmatpush1.msra.mxu0 0.0
  %438 = vmatprep.subr.mxu0 0.0
  %439 = vmatpush1.msra.mxu0 0.0
  %440 = vmatprep.subr.mxu0 0.0
  %441 = vmatpush1.msra.mxu0 0.0
  %442 = vmatprep.subr.mxu0 0.0
  %443 = vmatpush1.msra.mxu0 0.0
  %444 = vmatprep.subr.mxu0 0.0
  %445 = vmatpush1.msra.mxu0 0.0
  %446 = vmatprep.subr.mxu0 0.0
  %447 = vmatpush1.msra.mxu0 0.0
  %448 = vmatprep.subr.mxu0 0.0
  %449 = vmatpush1.msra.mxu0 0.0
  %450 = vmatprep.subr.mxu0 0.0
  %451 = vmatpush1.msra.mxu0 0.0
  %452 = vmatprep.subr.mxu0 0.0
  %453 = vmatpush1.msra.mxu0 0.0
  %454 = vmatprep.subr.mxu0 0.0
  %455 = vmatpush1.msra.mxu0 0.0
  %456 = vmatprep.subr.mxu0 0.0
  %457 = vmatpush1.msra.mxu0 0.0
  %458 = vmatprep.subr.mxu0 0.0
  %459 = vmatpush1.msra.mxu0 0.0
  %460 = vmatprep.subr.mxu0 0.0
  %461 = vmatpush1.msra.mxu0 0.0
  %462 = vmatprep.subr.mxu0 0.0
  %463 = vmatpush1.msra.mxu0 0.0
  %464 = vmatprep.subr.mxu0 0.0
  %465 = vmatpush1.msra.mxu0 0.0
  %466 = vmatprep.subr.mxu0 0.0
  %467 = vmatpush1.msra.mxu0 0.0
  %468 = vmatprep.subr.mxu0 0.0
  %469 = vmatpush1.msra.mxu0 0.0
  %470 = vmatprep.subr.mxu0 0.0
  %471 = vmatpush1.msra.mxu0 0.0
  %472 = vmatprep.subr.mxu0 0.0
  %473 = vmatpush1.msra.mxu0 0.0
  %474 = vmatprep.subr.mxu0 0.0
  %475 = vmatpush1.msra.mxu0 0.0
  %476 = vmatprep.subr.mxu0 0.0
  %477 = vmatpush1.msra.mxu0 0.0
  %478 = vmatprep.subr.mxu0 0.0
  %479 = vmatpush1.msra.mxu0 0.0
  %480 = vmatprep.subr.mxu0 0.0
  %481 = vmatpush1.msra.mxu0 0.0
  %482 = vmatprep.subr.mxu0 0.0
  %483 = vmatpush1.msra.mxu0 0.0
  %484 = vmatprep.subr.mxu0 0.0
  %485 = vmatpush1.msra.mxu0 0.0
  %486 = vmatprep.subr.mxu0 0.0
  %487 = vmatpush1.msra.mxu0 0.0
  %488 = vmatprep.subr.mxu0 0.0
  %489 = vmatpush1.msra.mxu0 0.0
  %490 = vmatprep.mubr.f32.mxu0 0.0
  %491 = vmatmul.mubr.f32.gmra.mrb[0].mxu0 %v422
  %v492 = vpop.f32.mrb[0].mxu0
  %v493 = vadd.f32 0.0, %v492
  %v494 = vpop.f32.mrb[0].mxu0
  %495 = vmatprep.mubr.f32.mxu0 0.0
  %496 = vmatmul.mubr.f32.gmra.mrb[0].mxu0 %v424
  %v497 = vpop.f32.mrb[0].mxu0
  %v498 = vadd.f32 0.0, %v497
  %v499 = vpop.f32.mrb[0].mxu0
  %500 = vdwg.mxu0
  %v501 = vadd.f32 %v408, %v493
  %v502 = vadd.f32 %v409, %v498
  %v503 = vld [vmem:[%s2] sm:$0x1]
  %v505 = vlaneseq
  %v506 = vshrl.u32 %v505, 7
  %v507 = vsub.s32 0, %v506
  %v508 = vrot.slane %v503, %v507
  %v510 = vadd.f32 %v501, %v508
  %v511 = vadd.f32 %v502, %v508
  %v512 = vsel %vm65, %v510, 0.0
  %v513 = vsel %vm65, %v511, 0.0
  %v514 = vadd.f32 %v512, %v513
  %v515 = vrot.slane %v514, 4
  %v516 = vadd.f32 %v514, %v515
  %v517 = vrot.slane %v516, 2
  %v518 = vadd.f32 %v516, %v517
  %v519 = vrot.slane %v518, 1
  %v520 = vadd.f32 %v518, %v519
  %v521 = vrcp.pop 16.0
  %v522 = vmul.f32 %v520, %v521
  %v523 = vsub.f32 %v510, %v522
  %v524 = vsub.f32 %v511, %v522
  %v525 = vmul.f32 %v523, %v523
  %v526 = vmul.f32 %v524, %v524
  %v527 = vsel %vm65, %v525, 0.0
  %v528 = vsel %vm65, %v526, 0.0
  %v529 = vadd.f32 %v527, %v528
  %v530 = vrot.slane %v529, 4
  %v531 = vadd.f32 %v529, %v530
  %v532 = vrot.slane %v531, 2
  %v533 = vadd.f32 %v531, %v532
  %v534 = vrot.slane %v533, 1
  %v535 = vadd.f32 %v533, %v534
  %v536 = vmul.f32 %v535, %v521
  %v537 = vadd.f32 %v536, 1e-05
  %v538 = vrsqrt.pop %v537
  %v539 = vmul.f32 %v523, %v538
  %v540 = vmul.f32 %v524, %v538
  %v541 = vld [vmem:[%s3] sm:$0x1]
  %v543 = vlaneseq
  %v544 = vshrl.u32 %v543, 7
  %v545 = vsub.s32 0, %v544
  %v546 = vrot.slane %v541, %v545
  %v548 = vmul.f32 %v546, %v539
  %v549 = vmul.f32 %v546, %v540
  %v550 = vld [vmem:[%s4] sm:$0x1]
  %v552 = vlaneseq
  %v553 = vshrl.u32 %v552, 7
  %v554 = vsub.s32 0, %v553
  %v555 = vrot.slane %v550, %v554
  %v557 = vadd.f32 %v548, %v555
  %v558 = vadd.f32 %v549, %v555
  %v559 = vmax.f32 %v557, 0.0
  %v560 = vmax.f32 %v558, 0.0
  %v563 = vrot.slane %v559, 6
  %v564 = vrot.slane %v560, 6
  %v567 = vsel %vm40, 0.0, %v563
  %v568 = vsel %vm40, 0.0, %v564
  %v569 = vsel %vm40, %v563, 0.0
  %v570 = vsel %vm40, %v564, 0.0
  %v571 = vld [vmem:[%s5] sm:$0xff]
  %v572 = vld [vmem:[%s5 + $0x8] sm:$0xff]
  %v573 = vld [vmem:[%s5 + $0x10] sm:$0xff]
  %v574 = vld [vmem:[%s5 + $0x18] sm:$0xff]
  %v579 = vrot.slane %v567, 1
  %v580 = vrot.slane %v569, 1
  %v581 = vsel %vm53, %v579, %v580
  %v582 = vrot.slane %v568, 1
  %v583 = vrot.slane %v570, 1
  %v584 = vsel %vm53, %v582, %v583
  %s585 = scalar_lea.vmem %s5, 32
  %v586 = vld [vmem:[%s585] sm:$0xff]
  %v587 = vld [vmem:[%s585 + $0x8] sm:$0xff]
  %v588 = vld [vmem:[%s585 + $0x10] sm:$0xff]
  %v589 = vld [vmem:[%s585 + $0x18] sm:$0xff]
  %v590 = vsel %vm65, %v581, 0
  %v592 = vsel %vm65, %v584, 0
  %594 = vmatprep.subr.mxu0 0.0
  %595 = vmatpush1.msra.mxu0 %v586
  %596 = vmatprep.subr.mxu0 0.0
  %597 = vmatpush1.msra.mxu0 %v587
  %598 = vmatprep.subr.mxu0 0.0
  %599 = vmatpush1.msra.mxu0 %v588
  %600 = vmatprep.subr.mxu0 0.0
  %601 = vmatpush1.msra.mxu0 %v589
  %602 = vmatprep.subr.mxu0 0.0
  %603 = vmatpush1.msra.mxu0 0.0
  %604 = vmatprep.subr.mxu0 0.0
  %605 = vmatpush1.msra.mxu0 0.0
  %606 = vmatprep.subr.mxu0 0.0
  %607 = vmatpush1.msra.mxu0 0.0
  %608 = vmatprep.subr.mxu0 0.0
  %609 = vmatpush1.msra.mxu0 0.0
  %610 = vmatprep.subr.mxu0 0.0
  %611 = vmatpush1.msra.mxu0 0.0
  %612 = vmatprep.subr.mxu0 0.0
  %613 = vmatpush1.msra.mxu0 0.0
  %614 = vmatprep.subr.mxu0 0.0
  %615 = vmatpush1.msra.mxu0 0.0
  %616 = vmatprep.subr.mxu0 0.0
  %617 = vmatpush1.msra.mxu0 0.0
  %618 = vmatprep.subr.mxu0 0.0
  %619 = vmatpush1.msra.mxu0 0.0
  %620 = vmatprep.subr.mxu0 0.0
  %621 = vmatpush1.msra.mxu0 0.0
  %622 = vmatprep.subr.mxu0 0.0
  %623 = vmatpush1.msra.mxu0 0.0
  %624 = vmatprep.subr.mxu0 0.0
  %625 = vmatpush1.msra.mxu0 0.0
  %626 = vmatprep.subr.mxu0 0.0
  %627 = vmatpush1.msra.mxu0 0.0
  %628 = vmatprep.subr.mxu0 0.0
  %629 = vmatpush1.msra.mxu0 0.0
  %630 = vmatprep.subr.mxu0 0.0
  %631 = vmatpush1.msra.mxu0 0.0
  %632 = vmatprep.subr.mxu0 0.0
  %633 = vmatpush1.msra.mxu0 0.0
  %634 = vmatprep.subr.mxu0 0.0
  %635 = vmatpush1.msra.mxu0 0.0
  %636 = vmatprep.subr.mxu0 0.0
  %637 = vmatpush1.msra.mxu0 0.0
  %638 = vmatprep.subr.mxu0 0.0
  %639 = vmatpush1.msra.mxu0 0.0
  %640 = vmatprep.subr.mxu0 0.0
  %641 = vmatpush1.msra.mxu0 0.0
  %642 = vmatprep.subr.mxu0 0.0
  %643 = vmatpush1.msra.mxu0 0.0
  %644 = vmatprep.subr.mxu0 0.0
  %645 = vmatpush1.msra.mxu0 0.0
  %646 = vmatprep.subr.mxu0 0.0
  %647 = vmatpush1.msra.mxu0 0.0
  %648 = vmatprep.subr.mxu0 0.0
  %649 = vmatpush1.msra.mxu0 0.0
  %650 = vmatprep.subr.mxu0 0.0
  %651 = vmatpush1.msra.mxu0 0.0
  %652 = vmatprep.subr.mxu0 0.0
  %653 = vmatpush1.msra.mxu0 0.0
  %654 = vmatprep.subr.mxu0 0.0
  %655 = vmatpush1.msra.mxu0 0.0
  %656 = vmatprep.subr.mxu0 0.0
  %657 = vmatpush1.msra.mxu0 0.0
  %658 = vmatprep.mubr.f32.mxu0 0.0
  %659 = vmatmul.mubr.f32.gmra.mrb[0].mxu0 %v590
  %v660 = vpop.f32.mrb[0].mxu0
  %v661 = vadd.f32 0.0, %v660
  %v662 = vpop.f32.mrb[0].mxu0
  %663 = vmatprep.mubr.f32.mxu0 0.0
  %664 = vmatmul.mubr.f32.gmra.mrb[0].mxu0 %v592
  %v665 = vpop.f32.mrb[0].mxu0
  %v666 = vadd.f32 0.0, %v665
  %v667 = vpop.f32.mrb[0].mxu0
  %668 = vdwg.mxu0
  %v669 = vsel %vm65, %v567, 0
  %v671 = vsel %vm65, %v568, 0
  %673 = vmatprep.subr.mxu0 0.0
  %674 = vmatpush1.msra.mxu0 %v571
  %675 = vmatprep.subr.mxu0 0.0
  %676 = vmatpush1.msra.mxu0 %v572
  %677 = vmatprep.subr.mxu0 0.0
  %678 = vmatpush1.msra.mxu0 %v573
  %679 = vmatprep.subr.mxu0 0.0
  %680 = vmatpush1.msra.mxu0 %v574
  %681 = vmatprep.subr.mxu0 0.0
  %682 = vmatpush1.msra.mxu0 0.0
  %683 = vmatprep.subr.mxu0 0.0
  %684 = vmatpush1.msra.mxu0 0.0
  %685 = vmatprep.subr.mxu0 0.0
  %686 = vmatpush1.msra.mxu0 0.0
  %687 = vmatprep.subr.mxu0 0.0
  %688 = vmatpush1.msra.mxu0 0.0
  %689 = vmatprep.subr.mxu0 0.0
  %690 = vmatpush1.msra.mxu0 0.0
  %691 = vmatprep.subr.mxu0 0.0
  %692 = vmatpush1.msra.mxu0 0.0
  %693 = vmatprep.subr.mxu0 0.0
  %694 = vmatpush1.msra.mxu0 0.0
  %695 = vmatprep.subr.mxu0 0.0
  %696 = vmatpush1.msra.mxu0 0.0
  %697 = vmatprep.subr.mxu0 0.0
  %698 = vmatpush1.msra.mxu0 0.0
  %699 = vmatprep.subr.mxu0 0.0
  %700 = vmatpush1.msra.mxu0 0.0
  %701 = vmatprep.subr.mxu0 0.0
  %702 = vmatpush1.msra.mxu0 0.0
  %703 = vmatprep.subr.mxu0 0.0
  %704 = vmatpush1.msra.mxu0 0.0
  %705 = vmatprep.subr.mxu0 0.0
  %706 = vmatpush1.msra.mxu0 0.0
  %707 = vmatprep.subr.mxu0 0.0
  %708 = vmatpush1.msra.mxu0 0.0
  %709 = vmatprep.subr.mxu0 0.0
  %710 = vmatpush1.msra.mxu0 0.0
  %711 = vmatprep.subr.mxu0 0.0
  %712 = vmatpush1.msra.mxu0 0.0
  %713 = vmatprep.subr.mxu0 0.0
  %714 = vmatpush1.msra.mxu0 0.0
  %715 = vmatprep.subr.mxu0 0.0
  %716 = vmatpush1.msra.mxu0 0.0
  %717 = vmatprep.subr.mxu0 0.0
  %718 = vmatpush1.msra.mxu0 0.0
  %719 = vmatprep.subr.mxu0 0.0
  %720 = vmatpush1.msra.mxu0 0.0
  %721 = vmatprep.subr.mxu0 0.0
  %722 = vmatpush1.msra.mxu0 0.0
  %723 = vmatprep.subr.mxu0 0.0
  %724 = vmatpush1.msra.mxu0 0.0
  %725 = vmatprep.subr.mxu0 0.0
  %726 = vmatpush1.msra.mxu0 0.0
  %727 = vmatprep.subr.mxu0 0.0
  %728 = vmatpush1.msra.mxu0 0.0
  %729 = vmatprep.subr.mxu0 0.0
  %730 = vmatpush1.msra.mxu0 0.0
  %731 = vmatprep.subr.mxu0 0.0
  %732 = vmatpush1.msra.mxu0 0.0
  %733 = vmatprep.subr.mxu0 0.0
  %734 = vmatpush1.msra.mxu0 0.0
  %735 = vmatprep.subr.mxu0 0.0
  %736 = vmatpush1.msra.mxu0 0.0
  %737 = vmatprep.mubr.f32.mxu0 0.0
  %738 = vmatmul.mubr.f32.gmra.mrb[0].mxu0 %v669
  %v739 = vpop.f32.mrb[0].mxu0
  %v740 = vadd.f32 %v661, %v739
  %v741 = vpop.f32.mrb[0].mxu0
  %742 = vmatprep.mubr.f32.mxu0 0.0
  %743 = vmatmul.mubr.f32.gmra.mrb[0].mxu0 %v671
  %v744 = vpop.f32.mrb[0].mxu0
  %v745 = vadd.f32 %v666, %v744
  %v746 = vpop.f32.mrb[0].mxu0
  %747 = vdwg.mxu0
  %v748 = vrot.slane %v567, 2
  %v749 = vrot.slane %v569, 2
  %v750 = vsel %vm224, %v748, %v749
  %v751 = vrot.slane %v568, 2
  %v752 = vrot.slane %v570, 2
  %v753 = vsel %vm224, %v751, %v752
  %s754 = scalar_lea.vmem %s5, 64
  %v755 = vld [vmem:[%s754] sm:$0xff]
  %v756 = vld [vmem:[%s754 + $0x8] sm:$0xff]
  %v757 = vld [vmem:[%s754 + $0x10] sm:$0xff]
  %v758 = vld [vmem:[%s754 + $0x18] sm:$0xff]
  %v759 = vsel %vm65, %v750, 0
  %v761 = vsel %vm65, %v753, 0
  %763 = vmatprep.subr.mxu0 0.0
  %764 = vmatpush1.msra.mxu0 %v755
  %765 = vmatprep.subr.mxu0 0.0
  %766 = vmatpush1.msra.mxu0 %v756
  %767 = vmatprep.subr.mxu0 0.0
  %768 = vmatpush1.msra.mxu0 %v757
  %769 = vmatprep.subr.mxu0 0.0
  %770 = vmatpush1.msra.mxu0 %v758
  %771 = vmatprep.subr.mxu0 0.0
  %772 = vmatpush1.msra.mxu0 0.0
  %773 = vmatprep.subr.mxu0 0.0
  %774 = vmatpush1.msra.mxu0 0.0
  %775 = vmatprep.subr.mxu0 0.0
  %776 = vmatpush1.msra.mxu0 0.0
  %777 = vmatprep.subr.mxu0 0.0
  %778 = vmatpush1.msra.mxu0 0.0
  %779 = vmatprep.subr.mxu0 0.0
  %780 = vmatpush1.msra.mxu0 0.0
  %781 = vmatprep.subr.mxu0 0.0
  %782 = vmatpush1.msra.mxu0 0.0
  %783 = vmatprep.subr.mxu0 0.0
  %784 = vmatpush1.msra.mxu0 0.0
  %785 = vmatprep.subr.mxu0 0.0
  %786 = vmatpush1.msra.mxu0 0.0
  %787 = vmatprep.subr.mxu0 0.0
  %788 = vmatpush1.msra.mxu0 0.0
  %789 = vmatprep.subr.mxu0 0.0
  %790 = vmatpush1.msra.mxu0 0.0
  %791 = vmatprep.subr.mxu0 0.0
  %792 = vmatpush1.msra.mxu0 0.0
  %793 = vmatprep.subr.mxu0 0.0
  %794 = vmatpush1.msra.mxu0 0.0
  %795 = vmatprep.subr.mxu0 0.0
  %796 = vmatpush1.msra.mxu0 0.0
  %797 = vmatprep.subr.mxu0 0.0
  %798 = vmatpush1.msra.mxu0 0.0
  %799 = vmatprep.subr.mxu0 0.0
  %800 = vmatpush1.msra.mxu0 0.0
  %801 = vmatprep.subr.mxu0 0.0
  %802 = vmatpush1.msra.mxu0 0.0
  %803 = vmatprep.subr.mxu0 0.0
  %804 = vmatpush1.msra.mxu0 0.0
  %805 = vmatprep.subr.mxu0 0.0
  %806 = vmatpush1.msra.mxu0 0.0
  %807 = vmatprep.subr.mxu0 0.0
  %808 = vmatpush1.msra.mxu0 0.0
  %809 = vmatprep.subr.mxu0 0.0
  %810 = vmatpush1.msra.mxu0 0.0
  %811 = vmatprep.subr.mxu0 0.0
  %812 = vmatpush1.msra.mxu0 0.0
  %813 = vmatprep.subr.mxu0 0.0
  %814 = vmatpush1.msra.mxu0 0.0
  %815 = vmatprep.subr.mxu0 0.0
  %816 = vmatpush1.msra.mxu0 0.0
  %817 = vmatprep.subr.mxu0 0.0
  %818 = vmatpush1.msra.mxu0 0.0
  %819 = vmatprep.subr.mxu0 0.0
  %820 = vmatpush1.msra.mxu0 0.0
  %821 = vmatprep.subr.mxu0 0.0
  %822 = vmatpush1.msra.mxu0 0.0
  %823 = vmatprep.subr.mxu0 0.0
  %824 = vmatpush1.msra.mxu0 0.0
  %825 = vmatprep.subr.mxu0 0.0
  %826 = vmatpush1.msra.mxu0 0.0
  %827 = vmatprep.mubr.f32.mxu0 0.0
  %828 = vmatmul.mubr.f32.gmra.mrb[0].mxu0 %v759
  %v829 = vpop.f32.mrb[0].mxu0
  %v830 = vadd.f32 0.0, %v829
  %v831 = vpop.f32.mrb[0].mxu0
  %832 = vmatprep.mubr.f32.mxu0 0.0
  %833 = vmatmul.mubr.f32.gmra.mrb[0].mxu0 %v761
  %v834 = vpop.f32.mrb[0].mxu0
  %v835 = vadd.f32 0.0, %v834
  %v836 = vpop.f32.mrb[0].mxu0
  %837 = vdwg.mxu0
  %v838 = vadd.f32 %v740, %v830
  %v839 = vadd.f32 %v745, %v835
  %v840 = vrot.slane %v567, 3
  %v841 = vrot.slane %v569, 3
  %v842 = vsel %vm317, %v840, %v841
  %v843 = vrot.slane %v568, 3
  %v844 = vrot.slane %v570, 3
  %v845 = vsel %vm317, %v843, %v844
  %s846 = scalar_lea.vmem %s5, 96
  %v847 = vld [vmem:[%s846] sm:$0xff]
  %v848 = vld [vmem:[%s846 + $0x8] sm:$0xff]
  %v849 = vld [vmem:[%s846 + $0x10] sm:$0xff]
  %v850 = vld [vmem:[%s846 + $0x18] sm:$0xff]
  %v851 = vsel %vm65, %v842, 0
  %v853 = vsel %vm65, %v845, 0
  %855 = vmatprep.subr.mxu0 0.0
  %856 = vmatpush1.msra.mxu0 %v847
  %857 = vmatprep.subr.mxu0 0.0
  %858 = vmatpush1.msra.mxu0 %v848
  %859 = vmatprep.subr.mxu0 0.0
  %860 = vmatpush1.msra.mxu0 %v849
  %861 = vmatprep.subr.mxu0 0.0
  %862 = vmatpush1.msra.mxu0 %v850
  %863 = vmatprep.subr.mxu0 0.0
  %864 = vmatpush1.msra.mxu0 0.0
  %865 = vmatprep.subr.mxu0 0.0
  %866 = vmatpush1.msra.mxu0 0.0
  %867 = vmatprep.subr.mxu0 0.0
  %868 = vmatpush1.msra.mxu0 0.0
  %869 = vmatprep.subr.mxu0 0.0
  %870 = vmatpush1.msra.mxu0 0.0
  %871 = vmatprep.subr.mxu0 0.0
  %872 = vmatpush1.msra.mxu0 0.0
  %873 = vmatprep.subr.mxu0 0.0
  %874 = vmatpush1.msra.mxu0 0.0
  %875 = vmatprep.subr.mxu0 0.0
  %876 = vmatpush1.msra.mxu0 0.0
  %877 = vmatprep.subr.mxu0 0.0
  %878 = vmatpush1.msra.mxu0 0.0
  %879 = vmatprep.subr.mxu0 0.0
  %880 = vmatpush1.msra.mxu0 0.0
  %881 = vmatprep.subr.mxu0 0.0
  %882 = vmatpush1.msra.mxu0 0.0
  %883 = vmatprep.subr.mxu0 0.0
  %884 = vmatpush1.msra.mxu0 0.0
  %885 = vmatprep.subr.mxu0 0.0
  %886 = vmatpush1.msra.mxu0 0.0
  %887 = vmatprep.subr.mxu0 0.0
  %888 = vmatpush1.msra.mxu0 0.0
  %889 = vmatprep.subr.mxu0 0.0
  %890 = vmatpush1.msra.mxu0 0.0
  %891 = vmatprep.subr.mxu0 0.0
  %892 = vmatpush1.msra.mxu0 0.0
  %893 = vmatprep.subr.mxu0 0.0
  %894 = vmatpush1.msra.mxu0 0.0
  %895 = vmatprep.subr.mxu0 0.0
  %896 = vmatpush1.msra.mxu0 0.0
  %897 = vmatprep.subr.mxu0 0.0
  %898 = vmatpush1.msra.mxu0 0.0
  %899 = vmatprep.subr.mxu0 0.0
  %900 = vmatpush1.msra.mxu0 0.0
  %901 = vmatprep.subr.mxu0 0.0
  %902 = vmatpush1.msra.mxu0 0.0
  %903 = vmatprep.subr.mxu0 0.0
  %904 = vmatpush1.msra.mxu0 0.0
  %905 = vmatprep.subr.mxu0 0.0
  %906 = vmatpush1.msra.mxu0 0.0
  %907 = vmatprep.subr.mxu0 0.0
  %908 = vmatpush1.msra.mxu0 0.0
  %909 = vmatprep.subr.mxu0 0.0
  %910 = vmatpush1.msra.mxu0 0.0
  %911 = vmatprep.subr.mxu0 0.0
  %912 = vmatpush1.msra.mxu0 0.0
  %913 = vmatprep.subr.mxu0 0.0
  %914 = vmatpush1.msra.mxu0 0.0
  %915 = vmatprep.subr.mxu0 0.0
  %916 = vmatpush1.msra.mxu0 0.0
  %917 = vmatprep.subr.mxu0 0.0
  %918 = vmatpush1.msra.mxu0 0.0
  %919 = vmatprep.mubr.f32.mxu0 0.0
  %920 = vmatmul.mubr.f32.gmra.mrb[0].mxu0 %v851
  %v921 = vpop.f32.mrb[0].mxu0
  %v922 = vadd.f32 0.0, %v921
  %v923 = vpop.f32.mrb[0].mxu0
  %924 = vmatprep.mubr.f32.mxu0 0.0
  %925 = vmatmul.mubr.f32.gmra.mrb[0].mxu0 %v853
  %v926 = vpop.f32.mrb[0].mxu0
  %v927 = vadd.f32 0.0, %v926
  %v928 = vpop.f32.mrb[0].mxu0
  %929 = vdwg.mxu0
  %v930 = vadd.f32 %v838, %v922
  %v931 = vadd.f32 %v839, %v927
  %v932 = vrot.slane %v567, 4
  %v933 = vrot.slane %v569, 4
  %v934 = vsel %vm410, %v932, %v933
  %v935 = vrot.slane %v568, 4
  %v936 = vrot.slane %v570, 4
  %v937 = vsel %vm410, %v935, %v936
  %s938 = scalar_lea.vmem %s5, 128
  %v939 = vld [vmem:[%s938] sm:$0xff]
  %v940 = vld [vmem:[%s938 + $0x8] sm:$0xff]
  %v941 = vld [vmem:[%s938 + $0x10] sm:$0xff]
  %v942 = vld [vmem:[%s938 + $0x18] sm:$0xff]
  %v943 = vsel %vm65, %v934, 0
  %v945 = vsel %vm65, %v937, 0
  %947 = vmatprep.subr.mxu0 0.0
  %948 = vmatpush1.msra.mxu0 %v939
  %949 = vmatprep.subr.mxu0 0.0
  %950 = vmatpush1.msra.mxu0 %v940
  %951 = vmatprep.subr.mxu0 0.0
  %952 = vmatpush1.msra.mxu0 %v941
  %953 = vmatprep.subr.mxu0 0.0
  %954 = vmatpush1.msra.mxu0 %v942
  %955 = vmatprep.subr.mxu0 0.0
  %956 = vmatpush1.msra.mxu0 0.0
  %957 = vmatprep.subr.mxu0 0.0
  %958 = vmatpush1.msra.mxu0 0.0
  %959 = vmatprep.subr.mxu0 0.0
  %960 = vmatpush1.msra.mxu0 0.0
  %961 = vmatprep.subr.mxu0 0.0
  %962 = vmatpush1.msra.mxu0 0.0
  %963 = vmatprep.subr.mxu0 0.0
  %964 = vmatpush1.msra.mxu0 0.0
  %965 = vmatprep.subr.mxu0 0.0
  %966 = vmatpush1.msra.mxu0 0.0
  %967 = vmatprep.subr.mxu0 0.0
  %968 = vmatpush1.msra.mxu0 0.0
  %969 = vmatprep.subr.mxu0 0.0
  %970 = vmatpush1.msra.mxu0 0.0
  %971 = vmatprep.subr.mxu0 0.0
  %972 = vmatpush1.msra.mxu0 0.0
  %973 = vmatprep.subr.mxu0 0.0
  %974 = vmatpush1.msra.mxu0 0.0
  %975 = vmatprep.subr.mxu0 0.0
  %976 = vmatpush1.msra.mxu0 0.0
  %977 = vmatprep.subr.mxu0 0.0
  %978 = vmatpush1.msra.mxu0 0.0
  %979 = vmatprep.subr.mxu0 0.0
  %980 = vmatpush1.msra.mxu0 0.0
  %981 = vmatprep.subr.mxu0 0.0
  %982 = vmatpush1.msra.mxu0 0.0
  %983 = vmatprep.subr.mxu0 0.0
  %984 = vmatpush1.msra.mxu0 0.0
  %985 = vmatprep.subr.mxu0 0.0
  %986 = vmatpush1.msra.mxu0 0.0
  %987 = vmatprep.subr.mxu0 0.0
  %988 = vmatpush1.msra.mxu0 0.0
  %989 = vmatprep.subr.mxu0 0.0
  %990 = vmatpush1.msra.mxu0 0.0
  %991 = vmatprep.subr.mxu0 0.0
  %992 = vmatpush1.msra.mxu0 0.0
  %993 = vmatprep.subr.mxu0 0.0
  %994 = vmatpush1.msra.mxu0 0.0
  %995 = vmatprep.subr.mxu0 0.0
  %996 = vmatpush1.msra.mxu0 0.0
  %997 = vmatprep.subr.mxu0 0.0
  %998 = vmatpush1.msra.mxu0 0.0
  %999 = vmatprep.subr.mxu0 0.0
  %1000 = vmatpush1.msra.mxu0 0.0
  %1001 = vmatprep.subr.mxu0 0.0
  %1002 = vmatpush1.msra.mxu0 0.0
  %1003 = vmatprep.subr.mxu0 0.0
  %1004 = vmatpush1.msra.mxu0 0.0
  %1005 = vmatprep.subr.mxu0 0.0
  %1006 = vmatpush1.msra.mxu0 0.0
  %1007 = vmatprep.subr.mxu0 0.0
  %1008 = vmatpush1.msra.mxu0 0.0
  %1009 = vmatprep.subr.mxu0 0.0
  %1010 = vmatpush1.msra.mxu0 0.0
  %1011 = vmatprep.mubr.f32.mxu0 0.0
  %1012 = vmatmul.mubr.f32.gmra.mrb[0].mxu0 %v943
  %v1013 = vpop.f32.mrb[0].mxu0
  %v1014 = vadd.f32 0.0, %v1013
  %v1015 = vpop.f32.mrb[0].mxu0
  %1016 = vmatprep.mubr.f32.mxu0 0.0
  %1017 = vmatmul.mubr.f32.gmra.mrb[0].mxu0 %v945
  %v1018 = vpop.f32.mrb[0].mxu0
  %v1019 = vadd.f32 0.0, %v1018
  %v1020 = vpop.f32.mrb[0].mxu0
  %1021 = vdwg.mxu0
  %v1022 = vadd.f32 %v930, %v1014
  %v1023 = vadd.f32 %v931, %v1019
  %v1024 = vld [vmem:[%s6] sm:$0x1]
  %v1026 = vlaneseq
  %v1027 = vshrl.u32 %v1026, 7
  %v1028 = vsub.s32 0, %v1027
  %v1029 = vrot.slane %v1024, %v1028
  %v1031 = vadd.f32 %v1022, %v1029
  %v1032 = vadd.f32 %v1023, %v1029
  %v1033 = vsel %vm65, %v1031, 0.0
  %v1034 = vsel %vm65, %v1032, 0.0
  %v1035 = vadd.f32 %v1033, %v1034
  %v1036 = vrot.slane %v1035, 4
  %v1037 = vadd.f32 %v1035, %v1036
  %v1038 = vrot.slane %v1037, 2
  %v1039 = vadd.f32 %v1037, %v1038
  %v1040 = vrot.slane %v1039, 1
  %v1041 = vadd.f32 %v1039, %v1040
  %v1042 = vmul.f32 %v1041, %v521
  %v1043 = vsub.f32 %v1031, %v1042
  %v1044 = vsub.f32 %v1032, %v1042
  %v1045 = vmul.f32 %v1043, %v1043
  %v1046 = vmul.f32 %v1044, %v1044
  %v1047 = vsel %vm65, %v1045, 0.0
  %v1048 = vsel %vm65, %v1046, 0.0
  %v1049 = vadd.f32 %v1047, %v1048
  %v1050 = vrot.slane %v1049, 4
  %v1051 = vadd.f32 %v1049, %v1050
  %v1052 = vrot.slane %v1051, 2
  %v1053 = vadd.f32 %v1051, %v1052
  %v1054 = vrot.slane %v1053, 1
  %v1055 = vadd.f32 %v1053, %v1054
  %v1056 = vmul.f32 %v1055, %v521
  %v1057 = vadd.f32 %v1056, 1e-05
  %v1058 = vrsqrt.pop %v1057
  %v1059 = vmul.f32 %v1043, %v1058
  %v1060 = vmul.f32 %v1044, %v1058
  %v1061 = vld [vmem:[%s7] sm:$0x1]
  %v1063 = vlaneseq
  %v1064 = vshrl.u32 %v1063, 7
  %v1065 = vsub.s32 0, %v1064
  %v1066 = vrot.slane %v1061, %v1065
  %v1068 = vmul.f32 %v1066, %v1059
  %v1069 = vmul.f32 %v1066, %v1060
  %v1070 = vld [vmem:[%s8] sm:$0x1]
  %v1072 = vlaneseq
  %v1073 = vshrl.u32 %v1072, 7
  %v1074 = vsub.s32 0, %v1073
  %v1075 = vrot.slane %v1070, %v1074
  %v1077 = vadd.f32 %v1068, %v1075
  %v1078 = vadd.f32 %v1069, %v1075
  %v1079 = vmax.f32 %v1077, 0.0
  %v1080 = vmax.f32 %v1078, 0.0
  %1081 = vst.msk [vmem:[%s9] sm:$0xff] %vm65, %v1079
  %1082 = vst.msk [vmem:[%s9 + $0x8] sm:$0xff] %vm65, %v1080
  // Predicated region
  $region38: #{tacotron2_forward.7} parent=0 // pred_check
    _
  $region39: #{tacotron2_forward.7} parent=0 // pred_check_branch
    %1084 = sbr.rel (0) target = $region41
  $region40: #{tacotron2_forward.7} parent=0 // pred_region
    _
  $region41: #{tacotron2_forward.7} parent=0 // pred_fallthru
    _
  // Predicated region
  $region42: #{tacotron2_forward.7} parent=0 // pred_check
    _
  $region43: #{tacotron2_forward.7} parent=0 // pred_check_branch
    %1086 = sbr.rel (0) target = $region45
  $region44: #{tacotron2_forward.7} parent=0 // pred_region
    _
  $region45: #{tacotron2_forward.7} parent=0 // pred_fallthru
    _

// kernel: tacotron2_forward.8
$region0: #{tacotron2_forward.8}
  #allocation0 [shape = 'u32[]', space=smem, size = 0x4, offset = 0x4, fixed_abs, tag = 'smem constant byte address 0x4 - core index']
  #allocation1 [shape = 'u32[144,128]{1,0:T(1,128)}', space=vmem, size = 0x12000, scoped, tag = 'internal scratch']
  #allocation2 [shape = 'f32[2,16]{1,0:T(2,128)}', space=vmem, size = 0x400, scoped, tag = 'scratch operand']
  #allocation3 [shape = 'f32[2,16]{1,0:T(2,128)}', space=vmem, size = 0x400, scoped, tag = 'scratch operand']
  #allocation4 [shape = 'f32[2,16]{1,0:T(2,128)}', space=vmem, size = 0x400, scoped, tag = 'scratch operand']
  #allocation5 [shape = 'f32[2,16]{1,0:T(2,128)}', space=vmem, size = 0x400, scoped, tag = 'scratch operand']
  %s0 = inlined_call_operand.vmem [shape: f32[8,2,32], index: 0, kind: input, shape index: {}, may-alias: {0,1}]
  %s1 = inlined_call_operand.vmem [shape: f32[8,2,32], index: 1, kind: input, shape index: {}, may-alias: {0,1}]
  %s2 = inlined_call_operand.vmem [shape: f32[8,2,1], index: 2, kind: input, shape index: {}]
  %s3 = inlined_call_operand.vmem [shape: f32[32,64], index: 3, kind: input, shape index: {}]
  %s4 = inlined_call_operand.vmem [shape: f32[16,64], index: 4, kind: input, shape index: {}]
  %s5 = inlined_call_operand.vmem [shape: f32[1,64], index: 5, kind: input, shape index: {}]
  %s6 = inlined_call_operand.vmem [shape: f32[32,64], index: 6, kind: input, shape index: {}]
  %s7 = inlined_call_operand.vmem [shape: f32[16,64], index: 7, kind: input, shape index: {}]
  %s8 = inlined_call_operand.vmem [shape: f32[1,64], index: 8, kind: input, shape index: {}]
  %s9 = inlined_call_operand.vmem [shape: f32[8,2,16], index: 9, kind: output, shape index: {0}]
  %s10 = inlined_call_operand.vmem [shape: f32[8,2,16], index: 10, kind: output, shape index: {1}]
  %11 = xla_tuple %s9, %s10
  %s12 = sld [smem:[#allocation0]]
  $region81: #{tacotron2_forward.8} parent=0
    _
  %s14 = ssub.s32 1, %s12
  %s15 = scalar_select 0, %s14, %s12
  loop: start=0, step=1, limit=10
  $region2: #{tacotron2_forward.8} parent=0 // loop_pre_header
    _
  $region3: #{tacotron2_forward.8} parent=0 // loop_header
    %s17 = sphi 0, %s21
    %p18 = scmp.ge.s32.totalorder %s17, 10
    %s27 = sphi 0, %s29
    %s30 = sphi 0, %s27
    %s31 = sphi 0, %s30
    %s47 = sphi 0, %s31
    %s55 = sphi 0, %s57
    %s58 = sphi 0, %s55
    %s59 = sphi 0, %s58
    %s75 = sphi 0, %s59
    %s83 = sphi 0, %s85
    %s86 = sphi 0, %s83
    %s87 = sphi 0, %s86
    %s103 = sphi 0, %s87
    %s107 = sphi 0, %s107
    %s109 = sphi 0, %s107
    %s110 = sphi 0, %s109
    %s124 = sphi 0, %s110
    %s128 = sphi 0, %s128
    %s130 = sphi 0, %s128
    %s131 = sphi 0, %s130
    %s145 = sphi 0, %s131
    %s149 = sphi 0, %s149
    %s151 = sphi 0, %s149
    %s152 = sphi 0, %s151
    %s166 = sphi 0, %s152
    %s170 = sphi 0, %s170
    %s172 = sphi 0, %s170
    %s173 = sphi 0, %s172
    %s187 = sphi 0, %s173
    %s191 = sphi 0, %s191
    %s193 = sphi 0, %s191
    %s194 = sphi 0, %s193
    %s208 = sphi 0, %s194
    %s212 = sphi 0, %s212
    %s214 = sphi 0, %s212
    %s215 = sphi 0, %s214
    %s229 = sphi 0, %s215
    %s235 = sphi 0, %s237
    %s238 = sphi 0, %s235
    %s239 = sphi 0, %s238
    %s255 = sphi 0, %s239
    %s263 = sphi 0, %s265
    %s266 = sphi 0, %s263
    %s267 = sphi 0, %s266
    %s283 = sphi 0, %s267
  $region4: #{tacotron2_forward.8} parent=0 // loop_header_branch
    %20 = sbr.rel (%p18) target = $region8
  $region5: #{tacotron2_forward.8} parent=0 // loop_body
    %s22 = ssub.s32 %s17, 1
    %s23 = ssub.s32 %s17, 2
    %s24 = sadd.s32 %s17, 1
    %s25 = ssub.s32 %s17, %s24
    %p26 = scmp.eq.s32.totalorder %s25, 0
    %s28 = sadd.s32 %s27, 1
    %s29 = scalar_select %p26, %s27, %s28
    %p32 = pneg %p26
    %p33 = scmp.eq.s32.totalorder %s17, 7
    %p34 = por %p32, %p33
    %p35 = scmp.ne.s32.totalorder %s27, %s30
    %p36 = scmp.eq.s32.totalorder %s17, 0
    %p37 = por %p35, %p36
    %p38 = scmp.ne.s32.totalorder %s27, %s30
    %p39 = scmp.eq.s32.totalorder %s22, 7
    %p40 = por %p38, %p39
    %p41 = scmp.ne.s32.totalorder %s30, %s31
    %p42 = scmp.eq.s32.totalorder %s22, 0
    %p43 = por %p41, %p42
    %p44 = scmp.ne.s32.totalorder %s30, %s31
    %p45 = scmp.eq.s32.totalorder %s23, 7
    %p46 = por %p44, %p45
    %p48 = scmp.ne.s32.totalorder %s31, %s47
    %p49 = scmp.eq.s32.totalorder %s23, 0
    %p50 = por %p48, %p49
    %s51 = ssub.s32 7, %s17
    %s52 = ssub.s32 7, %s24
    %s53 = ssub.s32 %s51, %s52
    %p54 = scmp.eq.s32.totalorder %s53, 0
    %s56 = sadd.s32 %s55, 1
    %s57 = scalar_select %p54, %s55, %s56
    %p60 = pneg %p54
    %p61 = scmp.eq.s32.totalorder %s17, 7
    %p62 = por %p60, %p61
    %p63 = scmp.ne.s32.totalorder %s55, %s58
    %p64 = scmp.eq.s32.totalorder %s17, 0
    %p65 = por %p63, %p64
    %p66 = scmp.ne.s32.totalorder %s55, %s58
    %p67 = scmp.eq.s32.totalorder %s22, 7
    %p68 = por %p66, %p67
    %p69 = scmp.ne.s32.totalorder %s58, %s59
    %p70 = scmp.eq.s32.totalorder %s22, 0
    %p71 = por %p69, %p70
    %p72 = scmp.ne.s32.totalorder %s58, %s59
    %p73 = scmp.eq.s32.totalorder %s23, 7
    %p74 = por %p72, %p73
    %p76 = scmp.ne.s32.totalorder %s59, %s75
    %p77 = scmp.eq.s32.totalorder %s23, 0
    %p78 = por %p76, %p77
    %s79 = ssub.s32 7, %s17
    %s80 = ssub.s32 7, %s24
    %s81 = ssub.s32 %s79, %s80
    %p82 = scmp.eq.s32.totalorder %s81, 0
    %s84 = sadd.s32 %s83, 1
    %s85 = scalar_select %p82, %s83, %s84
    %p88 = pneg %p82
    %p89 = scmp.eq.s32.totalorder %s17, 7
    %p90 = por %p88, %p89
    %p91 = scmp.ne.s32.totalorder %s83, %s86
    %p92 = scmp.eq.s32.totalorder %s17, 0
    %p93 = por %p91, %p92
    %p94 = scmp.ne.s32.totalorder %s83, %s86
    %p95 = scmp.eq.s32.totalorder %s22, 7
    %p96 = por %p94, %p95
    %p97 = scmp.ne.s32.totalorder %s86, %s87
    %p98 = scmp.eq.s32.totalorder %s22, 0
    %p99 = por %p97, %p98
    %p100 = scmp.ne.s32.totalorder %s86, %s87
    %p101 = scmp.eq.s32.totalorder %s23, 7
    %p102 = por %p100, %p101
    %p104 = scmp.ne.s32.totalorder %s87, %s103
    %p105 = scmp.eq.s32.totalorder %s23, 0
    %p106 = por %p104, %p105
    %s108 = sadd.s32 %s107, 1
    %p111 = scmp.eq.s32.totalorder %s17, 7
    %p112 = scmp.ne.s32.totalorder %s107, %s109
    %p113 = scmp.eq.s32.totalorder %s17, 0
    %p114 = por %p112, %p113
    %p115 = scmp.ne.s32.totalorder %s107, %s109
    %p116 = scmp.eq.s32.totalorder %s22, 7
    %p117 = por %p115, %p116
    %p118 = scmp.ne.s32.totalorder %s109, %s110
    %p119 = scmp.eq.s32.totalorder %s22, 0
    %p120 = por %p118, %p119
    %p121 = scmp.ne.s32.totalorder %s109, %s110
    %p122 = scmp.eq.s32.totalorder %s23, 7
    %p123 = por %p121, %p122
    %p125 = scmp.ne.s32.totalorder %s110, %s124
    %p126 = scmp.eq.s32.totalorder %s23, 0
    %p127 = por %p125, %p126
    %s129 = sadd.s32 %s128, 1
    %p132 = scmp.eq.s32.totalorder %s17, 7
    %p133 = scmp.ne.s32.totalorder %s128, %s130
    %p134 = scmp.eq.s32.totalorder %s17, 0
    %p135 = por %p133, %p134
    %p136 = scmp.ne.s32.totalorder %s128, %s130
    %p137 = scmp.eq.s32.totalorder %s22, 7
    %p138 = por %p136, %p137
    %p139 = scmp.ne.s32.totalorder %s130, %s131
    %p140 = scmp.eq.s32.totalorder %s22, 0
    %p141 = por %p139, %p140
    %p142 = scmp.ne.s32.totalorder %s130, %s131
    %p143 = scmp.eq.s32.totalorder %s23, 7
    %p144 = por %p142, %p143
    %p146 = scmp.ne.s32.totalorder %s131, %s145
    %p147 = scmp.eq.s32.totalorder %s23, 0
    %p148 = por %p146, %p147
    %s150 = sadd.s32 %s149, 1
    %p153 = scmp.eq.s32.totalorder %s17, 7
    %p154 = scmp.ne.s32.totalorder %s149, %s151
    %p155 = scmp.eq.s32.totalorder %s17, 0
    %p156 = por %p154, %p155
    %p157 = scmp.ne.s32.totalorder %s149, %s151
    %p158 = scmp.eq.s32.totalorder %s22, 7
    %p159 = por %p157, %p158
    %p160 = scmp.ne.s32.totalorder %s151, %s152
    %p161 = scmp.eq.s32.totalorder %s22, 0
    %p162 = por %p160, %p161
    %p163 = scmp.ne.s32.totalorder %s151, %s152
    %p164 = scmp.eq.s32.totalorder %s23, 7
    %p165 = por %p163, %p164
    %p167 = scmp.ne.s32.totalorder %s152, %s166
    %p168 = scmp.eq.s32.totalorder %s23, 0
    %p169 = por %p167, %p168
    %s171 = sadd.s32 %s170, 1
    %p174 = scmp.eq.s32.totalorder %s17, 7
    %p175 = scmp.ne.s32.totalorder %s170, %s172
    %p176 = scmp.eq.s32.totalorder %s17, 0
    %p177 = por %p175, %p176
    %p178 = scmp.ne.s32.totalorder %s170, %s172
    %p179 = scmp.eq.s32.totalorder %s22, 7
    %p180 = por %p178, %p179
    %p181 = scmp.ne.s32.totalorder %s172, %s173
    %p182 = scmp.eq.s32.totalorder %s22, 0
    %p183 = por %p181, %p182
    %p184 = scmp.ne.s32.totalorder %s172, %s173
    %p185 = scmp.eq.s32.totalorder %s23, 7
    %p186 = por %p184, %p185
    %p188 = scmp.ne.s32.totalorder %s173, %s187
    %p189 = scmp.eq.s32.totalorder %s23, 0
    %p190 = por %p188, %p189
    %s192 = sadd.s32 %s191, 1
    %p195 = scmp.eq.s32.totalorder %s17, 7
    %p196 = scmp.ne.s32.totalorder %s191, %s193
    %p197 = scmp.eq.s32.totalorder %s17, 0
    %p198 = por %p196, %p197
    %p199 = scmp.ne.s32.totalorder %s191, %s193
    %p200 = scmp.eq.s32.totalorder %s22, 7
    %p201 = por %p199, %p200
    %p202 = scmp.ne.s32.totalorder %s193, %s194
    %p203 = scmp.eq.s32.totalorder %s22, 0
    %p204 = por %p202, %p203
    %p205 = scmp.ne.s32.totalorder %s193, %s194
    %p206 = scmp.eq.s32.totalorder %s23, 7
    %p207 = por %p205, %p206
    %p209 = scmp.ne.s32.totalorder %s194, %s208
    %p210 = scmp.eq.s32.totalorder %s23, 0
    %p211 = por %p209, %p210
    %s213 = sadd.s32 %s212, 1
    %p216 = scmp.eq.s32.totalorder %s17, 7
    %p217 = scmp.ne.s32.totalorder %s212, %s214
    %p218 = scmp.eq.s32.totalorder %s17, 0
    %p219 = por %p217, %p218
    %p220 = scmp.ne.s32.totalorder %s212, %s214
    %p221 = scmp.eq.s32.totalorder %s22, 7
    %p222 = por %p220, %p221
    %p223 = scmp.ne.s32.totalorder %s214, %s215
    %p224 = scmp.eq.s32.totalorder %s22, 0
    %p225 = por %p223, %p224
    %p226 = scmp.ne.s32.totalorder %s214, %s215
    %p227 = scmp.eq.s32.totalorder %s23, 7
    %p228 = por %p226, %p227
    %p230 = scmp.ne.s32.totalorder %s215, %s229
    %p231 = scmp.eq.s32.totalorder %s23, 0
    %p232 = por %p230, %p231
    %s233 = ssub.s32 %s17, %s24
    %p234 = scmp.eq.s32.totalorder %s233, 0
    %s236 = sadd.s32 %s235, 1
    %s237 = scalar_select %p234, %s235, %s236
    %p240 = pneg %p234
    %p241 = scmp.eq.s32.totalorder %s17, 7
    %p242 = por %p240, %p241
    %p243 = scmp.ne.s32.totalorder %s235, %s238
    %p244 = scmp.eq.s32.totalorder %s17, 0
    %p245 = por %p243, %p244
    %p246 = scmp.ne.s32.totalorder %s235, %s238
    %p247 = scmp.eq.s32.totalorder %s22, 7
    %p248 = por %p246, %p247
    %p249 = scmp.ne.s32.totalorder %s238, %s239
    %p250 = scmp.eq.s32.totalorder %s22, 0
    %p251 = por %p249, %p250
    %p252 = scmp.ne.s32.totalorder %s238, %s239
    %p253 = scmp.eq.s32.totalorder %s23, 7
    %p254 = por %p252, %p253
    %p256 = scmp.ne.s32.totalorder %s239, %s255
    %p257 = scmp.eq.s32.totalorder %s23, 0
    %p258 = por %p256, %p257
    %s259 = ssub.s32 7, %s17
    %s260 = ssub.s32 7, %s24
    %s261 = ssub.s32 %s259, %s260
    %p262 = scmp.eq.s32.totalorder %s261, 0
    %s264 = sadd.s32 %s263, 1
    %s265 = scalar_select %p262, %s263, %s264
    %p268 = pneg %p262
    %p269 = scmp.eq.s32.totalorder %s17, 7
    %p270 = por %p268, %p269
    %p271 = scmp.ne.s32.totalorder %s263, %s266
    %p272 = scmp.eq.s32.totalorder %s17, 0
    %p273 = por %p271, %p272
    %p274 = scmp.ne.s32.totalorder %s263, %s266
    %p275 = scmp.eq.s32.totalorder %s22, 7
    %p276 = por %p274, %p275
    %p277 = scmp.ne.s32.totalorder %s266, %s267
    %p278 = scmp.eq.s32.totalorder %s22, 0
    %p279 = por %p277, %p278
    %p280 = scmp.ne.s32.totalorder %s266, %s267
    %p281 = scmp.eq.s32.totalorder %s23, 7
    %p282 = por %p280, %p281
    %p284 = scmp.ne.s32.totalorder %s267, %s283
    %p285 = scmp.eq.s32.totalorder %s23, 0
    %p286 = por %p284, %p285
    %p287 = scmp.le.s32.totalorder 1, %s17
    %p288 = scmp.lt.s32.totalorder %s17, 9
    %p289 = pnand %p287, %p288
    %p290 = pneg %p289
    // Predicated region
    $region9: #{tacotron2_forward.8} parent=5 // pred_check
      _
    $region10: #{tacotron2_forward.8} parent=5 // pred_check_branch
      %292 = sbr.rel (%p289) target = $region12
    $region11: #{tacotron2_forward.8} parent=5 // pred_region
      %s293 = ssub.s32 %s17, 1
      // Predicated region
      $region13: #{tacotron2_forward.8} parent=11 // pred_check
        %p294 = pneg %p120
      $region14: #{tacotron2_forward.8} parent=11 // pred_check_branch
        %296 = sbr.rel (%p294) target = $region16
      $region15: #{tacotron2_forward.8} parent=11 // pred_region
        _
      $region16: #{tacotron2_forward.8} parent=11 // pred_fallthru
        _
      // Predicated region
      $region17: #{tacotron2_forward.8} parent=11 // pred_check
        %p297 = pneg %p141
      $region18: #{tacotron2_forward.8} parent=11 // pred_check_branch
        %299 = sbr.rel (%p297) target = $region20
      $region19: #{tacotron2_forward.8} parent=11 // pred_region
        _
      $region20: #{tacotron2_forward.8} parent=11 // pred_fallthru
        _
      // Predicated region
      $region21: #{tacotron2_forward.8} parent=11 // pred_check
        %p300 = pneg %p162
      $region22: #{tacotron2_forward.8} parent=11 // pred_check_branch
        %302 = sbr.rel (%p300) target = $region24
      $region23: #{tacotron2_forward.8} parent=11 // pred_region
        _
      $region24: #{tacotron2_forward.8} parent=11 // pred_fallthru
        _
      // Predicated region
      $region25: #{tacotron2_forward.8} parent=11 // pred_check
        %p303 = pneg %p183
      $region26: #{tacotron2_forward.8} parent=11 // pred_check_branch
        %305 = sbr.rel (%p303) target = $region28
      $region27: #{tacotron2_forward.8} parent=11 // pred_region
        _
      $region28: #{tacotron2_forward.8} parent=11 // pred_fallthru
        _
      // Predicated region
      $region29: #{tacotron2_forward.8} parent=11 // pred_check
        %p306 = pneg %p204
      $region30: #{tacotron2_forward.8} parent=11 // pred_check_branch
        %308 = sbr.rel (%p306) target = $region32
      $region31: #{tacotron2_forward.8} parent=11 // pred_region
        _
      $region32: #{tacotron2_forward.8} parent=11 // pred_fallthru
        _
      // Predicated region
      $region33: #{tacotron2_forward.8} parent=11 // pred_check
        %p309 = pneg %p225
      $region34: #{tacotron2_forward.8} parent=11 // pred_check_branch
        %311 = sbr.rel (%p309) target = $region36
      $region35: #{tacotron2_forward.8} parent=11 // pred_region
        _
      $region36: #{tacotron2_forward.8} parent=11 // pred_fallthru
        _
    $region12: #{tacotron2_forward.8} parent=5 // pred_fallthru
      _
    %p312 = scmp.lt.s32.totalorder %s17, 8
    // Predicated region
    $region37: #{tacotron2_forward.8} parent=5 // pred_check
      %p313 = pneg %p312
    $region38: #{tacotron2_forward.8} parent=5 // pred_check_branch
      %315 = sbr.rel (%p313) target = $region40
    $region39: #{tacotron2_forward.8} parent=5 // pred_region
      // Predicated region
      $region41: #{tacotron2_forward.8} parent=39 // pred_check
        %p316 = pneg %p37
      $region42: #{tacotron2_forward.8} parent=39 // pred_check_branch
        %318 = sbr.rel (%p316) target = $region44
      $region43: #{tacotron2_forward.8} parent=39 // pred_region
        %p319 = scmp.lt.s32.totalorder %s17, 7
        %s320 = scalar_select %p319, %s17, 7
        %s321 = smul.addr %s320, 2
        %s322 = scalar_lea.vmem %s0, %s321
      $region44: #{tacotron2_forward.8} parent=39 // pred_fallthru
        _
      // Predicated region
      $region45: #{tacotron2_forward.8} parent=39 // pred_check
        %p323 = pneg %p65
      $region46: #{tacotron2_forward.8} parent=39 // pred_check_branch
        %325 = sbr.rel (%p323) target = $region48
      $region47: #{tacotron2_forward.8} parent=39 // pred_region
        %s326 = ssub.s32 7, %s17
        %p327 = scmp.lt.s32.totalorder %s326, 7
        %s328 = scalar_select %p327, %s326, 7
        %s329 = smul.addr %s328, 2
        %s330 = scalar_lea.vmem %s1, %s329
        %s331 = ssub.s32 7, %s17
      $region48: #{tacotron2_forward.8} parent=39 // pred_fallthru
        _
      // Predicated region
      $region49: #{tacotron2_forward.8} parent=39 // pred_check
        %p332 = pneg %p93
      $region50: #{tacotron2_forward.8} parent=39 // pred_check_branch
        %334 = sbr.rel (%p332) target = $region52
      $region51: #{tacotron2_forward.8} parent=39 // pred_region
        %s335 = ssub.s32 7, %s17
        %p336 = scmp.lt.s32.totalorder %s335, 7
        %s337 = scalar_select %p336, %s335, 7
        %s338 = smul.addr %s337, 2
        %s339 = scalar_lea.vmem %s2, %s338
        %s340 = ssub.s32 7, %s17
      $region52: #{tacotron2_forward.8} parent=39 // pred_fallthru
        _
    $region40: #{tacotron2_forward.8} parent=5 // pred_fallthru
      _
    %p341 = scmp.le.s32.totalorder 1, %s17
    %p342 = scmp.lt.s32.totalorder %s17, 9
    %p343 = pnand %p341, %p342
    %p344 = pneg %p343
    // Predicated region
    $region53: #{tacotron2_forward.8} parent=5 // pred_check
      _
    $region54: #{tacotron2_forward.8} parent=5 // pred_check_branch
      %346 = sbr.rel (%p343) target = $region56
    $region55: #{tacotron2_forward.8} parent=5 // pred_region
      %s347 = ssub.s32 %s17, 1
      %p348 = scmp.lt.s32.totalorder %s22, 7
      %s349 = scalar_select %p348, %s22, 7
      %s350 = smul.addr %s349, 2
      %s351 = scalar_lea.vmem %s0, %s350
      %p352 = pneg %p43
      %p353 = pneg %p40
      %s354 = ssub.s32 7, %s22
      %p355 = scmp.lt.s32.totalorder %s354, 7
      %s356 = scalar_select %p355, %s354, 7
      %s357 = smul.addr %s356, 2
      %s358 = scalar_lea.vmem %s1, %s357
      %p359 = pneg %p71
      %p360 = pneg %p68
      %s361 = ssub.s32 7, %s22
      %p362 = scmp.lt.s32.totalorder %s361, 7
      %s363 = scalar_select %p362, %s361, 7
      %s364 = smul.addr %s363, 2
      %s365 = scalar_lea.vmem %s2, %s364
      %p366 = pneg %p99
      %p367 = pneg %p96
      %p368 = pneg %p120
      %p369 = pneg %p117
      %p370 = pneg %p141
      %p371 = pneg %p138
      %p372 = pneg %p162
      %p373 = pneg %p159
      %p374 = pneg %p183
      %p375 = pneg %p180
      %p376 = pneg %p204
      %p377 = pneg %p201
      %p378 = pneg %p225
      %p379 = pneg %p222
      %p380 = pneg %p251
      %p381 = pneg %p248
      %p382 = scmp.lt.s32.totalorder %s22, 7
      %s383 = scalar_select %p382, %s22, 7
      %s384 = smul.addr %s383, 2
      %s385 = scalar_lea.vmem %s9, %s384
      %p386 = pneg %p279
      %p387 = pneg %p276
      %s388 = ssub.s32 7, %s22
      %p389 = scmp.lt.s32.totalorder %s388, 7
      %s390 = scalar_select %p389, %s388, 7
      %s391 = smul.addr %s390, 2
      %s392 = scalar_lea.vmem %s10, %s391
      %p393 = scmp.lt.s32.totalorder %s22, 7
      %s394 = scalar_select %p393, %s22, 7
      %s395 = smul.addr %s394, 2
      %s396 = scalar_lea.vmem %s0, %s395
      %s397 = ssub.s32 7, %s22
      %p398 = scmp.lt.s32.totalorder %s397, 7
      %s399 = scalar_select %p398, %s397, 7
      %s400 = smul.addr %s399, 2
      %s401 = scalar_lea.vmem %s1, %s400
      %s402 = ssub.s32 7, %s22
      %s403 = ssub.s32 7, %s22
      %p404 = scmp.lt.s32.totalorder %s403, 7
      %s405 = scalar_select %p404, %s403, 7
      %s406 = smul.addr %s405, 2
      %s407 = scalar_lea.vmem %s2, %s406
      %s408 = ssub.s32 7, %s22
      %p409 = scmp.lt.s32.totalorder %s22, 7
      %s410 = scalar_select %p409, %s22, 7
      %s411 = smul.addr %s410, 2
      %s412 = scalar_lea.vmem %s9, %s411
      %s413 = ssub.s32 7, %s22
      %p414 = scmp.lt.s32.totalorder %s413, 7
      %s415 = scalar_select %p414, %s413, 7
      %s416 = smul.addr %s415, 2
      %s417 = scalar_lea.vmem %s10, %s416
      %s418 = ssub.s32 7, %s22
      %p419 = scmp.eq.s32.totalorder %s22, 0
      // Predicated region
      $region57: #{tacotron2_forward.8} parent=55 // pred_check
        %p420 = pneg %p419
      $region58: #{tacotron2_forward.8} parent=55 // pred_check_branch
        %422 = sbr.rel (%p420) target = $region60
      $region59: #{tacotron2_forward.8} parent=55 // pred_region
        %vm423 = vcmask 123904
        %424 = vst.msk [vmem:[#allocation2] sm:$0x3] %vm423, 0.0
        %425 = vst.msk [vmem:[#allocation3] sm:$0x3] %vm423, 0.0
        %426 = vst.msk [vmem:[#allocation4] sm:$0x3] %vm423, 0.0
        %427 = vst.msk [vmem:[#allocation5] sm:$0x3] %vm423, 0.0
      $region60: #{tacotron2_forward.8} parent=55 // pred_fallthru
        _
      %v428 = vld [vmem:[%s396] sm:$0x3]
      %v429 = vld [vmem:[%s3] sm:$0xff]
      %v430 = vld [vmem:[%s3 + $0x8] sm:$0xff]
      %v431 = vld [vmem:[%s3 + $0x10] sm:$0xff]
      %v432 = vld [vmem:[%s3 + $0x18] sm:$0xff]
      %v433 = vld [vmem:[#allocation2] sm:$0x3]
      %v434 = vld [vmem:[%s4] sm:$0xff]
      %v435 = vld [vmem:[%s4 + $0x8] sm:$0xff]
      %vm436 = vcmask 130048
      %v438 = vsel %vm436, %v433, 0
      %440 = vmatprep.subr.mxu0 0.0
      %441 = vmatpush1.msra.mxu0 %v434
      %442 = vmatprep.subr.mxu0 0.0
      %443 = vmatpush1.msra.mxu0 %v435
      %444 = vmatprep.subr.mxu0 0.0
      %445 = vmatpush1.msra.mxu0 0.0
      %446 = vmatprep.subr.mxu0 0.0
      %447 = vmatpush1.msra.mxu0 0.0
      %448 = vmatprep.subr.mxu0 0.0
      %449 = vmatpush1.msra.mxu0 0.0
      %450 = vmatprep.subr.mxu0 0.0
      %451 = vmatpush1.msra.mxu0 0.0
      %452 = vmatprep.subr.mxu0 0.0
      %453 = vmatpush1.msra.mxu0 0.0
      %454 = vmatprep.subr.mxu0 0.0
      %455 = vmatpush1.msra.mxu0 0.0
      %456 = vmatprep.subr.mxu0 0.0
      %457 = vmatpush1.msra.mxu0 0.0
      %458 = vmatprep.subr.mxu0 0.0
      %459 = vmatpush1.msra.mxu0 0.0
      %460 = vmatprep.subr.mxu0 0.0
      %461 = vmatpush1.msra.mxu0 0.0
      %462 = vmatprep.subr.mxu0 0.0
      %463 = vmatpush1.msra.mxu0 0.0
      %464 = vmatprep.subr.mxu0 0.0
      %465 = vmatpush1.msra.mxu0 0.0
      %466 = vmatprep.subr.mxu0 0.0
      %467 = vmatpush1.msra.mxu0 0.0
      %468 = vmatprep.subr.mxu0 0.0
      %469 = vmatpush1.msra.mxu0 0.0
      %470 = vmatprep.subr.mxu0 0.0
      %471 = vmatpush1.msra.mxu0 0.0
      %472 = vmatprep.subr.mxu0 0.0
      %473 = vmatpush1.msra.mxu0 0.0
      %474 = vmatprep.subr.mxu0 0.0
      %475 = vmatpush1.msra.mxu0 0.0
      %476 = vmatprep.subr.mxu0 0.0
      %477 = vmatpush1.msra.mxu0 0.0
      %478 = vmatprep.subr.mxu0 0.0
      %479 = vmatpush1.msra.mxu0 0.0
      %480 = vmatprep.subr.mxu0 0.0
      %481 = vmatpush1.msra.mxu0 0.0
      %482 = vmatprep.subr.mxu0 0.0
      %483 = vmatpush1.msra.mxu0 0.0
      %484 = vmatprep.subr.mxu0 0.0
      %485 = vmatpush1.msra.mxu0 0.0
      %486 = vmatprep.subr.mxu0 0.0
      %487 = vmatpush1.msra.mxu0 0.0
      %488 = vmatprep.subr.mxu0 0.0
      %489 = vmatpush1.msra.mxu0 0.0
      %490 = vmatprep.subr.mxu0 0.0
      %491 = vmatpush1.msra.mxu0 0.0
      %492 = vmatprep.subr.mxu0 0.0
      %493 = vmatpush1.msra.mxu0 0.0
      %494 = vmatprep.subr.mxu0 0.0
      %495 = vmatpush1.msra.mxu0 0.0
      %496 = vmatprep.subr.mxu0 0.0
      %497 = vmatpush1.msra.mxu0 0.0
      %498 = vmatprep.subr.mxu0 0.0
      %499 = vmatpush1.msra.mxu0 0.0
      %500 = vmatprep.subr.mxu0 0.0
      %501 = vmatpush1.msra.mxu0 0.0
      %502 = vmatprep.subr.mxu0 0.0
      %503 = vmatpush1.msra.mxu0 0.0
      %504 = vmatprep.mubr.f32.mxu0 0.0
      %505 = vmatmul.mubr.f32.gmra.mrb[0].mxu0 %v438
      %v506 = vpop.f32.mrb[0].mxu0
      %v507 = vadd.f32 0.0, %v506
      %v508 = vpop.f32.mrb[0].mxu0
      %509 = vdwg.mxu0
      %vm510 = vcmask 261120
      %v512 = vsel %vm510, %v428, 0
      %514 = vmatprep.subr.mxu0 0.0
      %515 = vmatpush1.msra.mxu0 %v429
      %516 = vmatprep.subr.mxu0 0.0
      %517 = vmatpush1.msra.mxu0 %v430
      %518 = vmatprep.subr.mxu0 0.0
      %519 = vmatpush1.msra.mxu0 %v431
      %520 = vmatprep.subr.mxu0 0.0
      %521 = vmatpush1.msra.mxu0 %v432
      %522 = vmatprep.subr.mxu0 0.0
      %523 = vmatpush1.msra.mxu0 0.0
      %524 = vmatprep.subr.mxu0 0.0
      %525 = vmatpush1.msra.mxu0 0.0
      %526 = vmatprep.subr.mxu0 0.0
      %527 = vmatpush1.msra.mxu0 0.0
      %528 = vmatprep.subr.mxu0 0.0
      %529 = vmatpush1.msra.mxu0 0.0
      %530 = vmatprep.subr.mxu0 0.0
      %531 = vmatpush1.msra.mxu0 0.0
      %532 = vmatprep.subr.mxu0 0.0
      %533 = vmatpush1.msra.mxu0 0.0
      %534 = vmatprep.subr.mxu0 0.0
      %535 = vmatpush1.msra.mxu0 0.0
      %536 = vmatprep.subr.mxu0 0.0
      %537 = vmatpush1.msra.mxu0 0.0
      %538 = vmatprep.subr.mxu0 0.0
      %539 = vmatpush1.msra.mxu0 0.0
      %540 = vmatprep.subr.mxu0 0.0
      %541 = vmatpush1.msra.mxu0 0.0
      %542 = vmatprep.subr.mxu0 0.0
      %543 = vmatpush1.msra.mxu0 0.0
      %544 = vmatprep.subr.mxu0 0.0
      %545 = vmatpush1.msra.mxu0 0.0
      %546 = vmatprep.subr.mxu0 0.0
      %547 = vmatpush1.msra.mxu0 0.0
      %548 = vmatprep.subr.mxu0 0.0
      %549 = vmatpush1.msra.mxu0 0.0
      %550 = vmatprep.subr.mxu0 0.0
      %551 = vmatpush1.msra.mxu0 0.0
      %552 = vmatprep.subr.mxu0 0.0
      %553 = vmatpush1.msra.mxu0 0.0
      %554 = vmatprep.subr.mxu0 0.0
      %555 = vmatpush1.msra.mxu0 0.0
      %556 = vmatprep.subr.mxu0 0.0
      %557 = vmatpush1.msra.mxu0 0.0
      %558 = vmatprep.subr.mxu0 0.0
      %559 = vmatpush1.msra.mxu0 0.0
      %560 = vmatprep.subr.mxu0 0.0
      %561 = vmatpush1.msra.mxu0 0.0
      %562 = vmatprep.subr.mxu0 0.0
      %563 = vmatpush1.msra.mxu0 0.0
      %564 = vmatprep.subr.mxu0 0.0
      %565 = vmatpush1.msra.mxu0 0.0
      %566 = vmatprep.subr.mxu0 0.0
      %567 = vmatpush1.msra.mxu0 0.0
      %568 = vmatprep.subr.mxu0 0.0
      %569 = vmatpush1.msra.mxu0 0.0
      %570 = vmatprep.subr.mxu0 0.0
      %571 = vmatpush1.msra.mxu0 0.0
      %572 = vmatprep.subr.mxu0 0.0
      %573 = vmatpush1.msra.mxu0 0.0
      %574 = vmatprep.subr.mxu0 0.0
      %575 = vmatpush1.msra.mxu0 0.0
      %576 = vmatprep.subr.mxu0 0.0
      %577 = vmatpush1.msra.mxu0 0.0
      %578 = vmatprep.mubr.f32.mxu0 0.0
      %579 = vmatmul.mubr.f32.gmra.mrb[0].mxu0 %v512
      %v580 = vpop.f32.mrb[0].mxu0
      %v581 = vadd.f32 %v507, %v580
      %v582 = vpop.f32.mrb[0].mxu0
      %583 = vdwg.mxu0
      %v584 = vld [vmem:[%s5] sm:$0x1]
      %v586 = vlaneseq
      %v587 = vshrl.u32 %v586, 7
      %v588 = vsub.s32 0, %v587
      %v589 = vrot.slane %v584, %v588
      %v591 = vadd.f32 %v581, %v589
      %v592 = vld [vmem:[#allocation3] sm:$0x3]
      %v593 = vxor.u32 %v591, 2147483648
      %v594 = vmul.f32 %v593, 1.442695
      %v595 = vpow.pop %v594
      %v596 = vadd.f32 %v595, 1.0
      %v597 = vrcp.pop %v596
      %v598 = vmul.f32 1.0, %v597
      %v599 = vtanh.pop %v591
      %601 = vrot.lane.b32.xlu0 %v592, 16
      %v602 = vpop.permute.xlu0 %601
      %v604 = vmul.f32 %v598, %v602
      %606 = vrot.lane.b32.xlu0 %v599, 96
      %v607 = vpop.permute.xlu0 %606
      %v609 = vmul.f32 %v598, %v607
      %611 = vrot.lane.b32.xlu0 %v609, 16
      %v612 = vpop.permute.xlu0 %611
      %v614 = vadd.f32 %v604, %v612
      %v615 = vtanh.pop %v614
      %617 = vrot.lane.b32.xlu0 %v615, 32
      %v618 = vpop.permute.xlu0 %617
      %v620 = vmul.f32 %v598, %v618
      %622 = vrot.lane.b32.xlu0 %v620, 80
      %v623 = vpop.permute.xlu0 %622
      %vm625 = vcmask 123904
      %626 = vst.msk [vmem:[#allocation2] sm:$0x3] %vm625, %v623
      %628 = vrot.lane.b32.xlu0 %v614, 112
      %v629 = vpop.permute.xlu0 %628
      %631 = vst.msk [vmem:[#allocation3] sm:$0x3] %vm625, %v629
      %632 = vst.msk [vmem:[%s412] sm:$0x3] %vm625, %v623
      %v633 = vld [vmem:[%s401] sm:$0x3]
      %v634 = vld [vmem:[%s6] sm:$0xff]
      %v635 = vld [vmem:[%s6 + $0x8] sm:$0xff]
      %v636 = vld [vmem:[%s6 + $0x10] sm:$0xff]
      %v637 = vld [vmem:[%s6 + $0x18] sm:$0xff]
      %v638 = vld [vmem:[#allocation4] sm:$0x3]
      %v639 = vld [vmem:[%s7] sm:$0xff]
      %v640 = vld [vmem:[%s7 + $0x8] sm:$0xff]
      %v642 = vsel %vm436, %v638, 0
      %644 = vmatprep.subr.mxu0 0.0
      %645 = vmatpush1.msra.mxu0 %v639
      %646 = vmatprep.subr.mxu0 0.0
      %647 = vmatpush1.msra.mxu0 %v640
      %648 = vmatprep.subr.mxu0 0.0
      %649 = vmatpush1.msra.mxu0 0.0
      %650 = vmatprep.subr.mxu0 0.0
      %651 = vmatpush1.msra.mxu0 0.0
      %652 = vmatprep.subr.mxu0 0.0
      %653 = vmatpush1.msra.mxu0 0.0
      %654 = vmatprep.subr.mxu0 0.0
      %655 = vmatpush1.msra.mxu0 0.0
      %656 = vmatprep.subr.mxu0 0.0
      %657 = vmatpush1.msra.mxu0 0.0
      %658 = vmatprep.subr.mxu0 0.0
      %659 = vmatpush1.msra.mxu0 0.0
      %660 = vmatprep.subr.mxu0 0.0
      %661 = vmatpush1.msra.mxu0 0.0
      %662 = vmatprep.subr.mxu0 0.0
      %663 = vmatpush1.msra.mxu0 0.0
      %664 = vmatprep.subr.mxu0 0.0
      %665 = vmatpush1.msra.mxu0 0.0
      %666 = vmatprep.subr.mxu0 0.0
      %667 = vmatpush1.msra.mxu0 0.0
      %668 = vmatprep.subr.mxu0 0.0
      %669 = vmatpush1.msra.mxu0 0.0
      %670 = vmatprep.subr.mxu0 0.0
      %671 = vmatpush1.msra.mxu0 0.0
      %672 = vmatprep.subr.mxu0 0.0
      %673 = vmatpush1.msra.mxu0 0.0
      %674 = vmatprep.subr.mxu0 0.0
      %675 = vmatpush1.msra.mxu0 0.0
      %676 = vmatprep.subr.mxu0 0.0
      %677 = vmatpush1.msra.mxu0 0.0
      %678 = vmatprep.subr.mxu0 0.0
      %679 = vmatpush1.msra.mxu0 0.0
      %680 = vmatprep.subr.mxu0 0.0
      %681 = vmatpush1.msra.mxu0 0.0
      %682 = vmatprep.subr.mxu0 0.0
      %683 = vmatpush1.msra.mxu0 0.0
      %684 = vmatprep.subr.mxu0 0.0
      %685 = vmatpush1.msra.mxu0 0.0
      %686 = vmatprep.subr.mxu0 0.0
      %687 = vmatpush1.msra.mxu0 0.0
      %688 = vmatprep.subr.mxu0 0.0
      %689 = vmatpush1.msra.mxu0 0.0
      %690 = vmatprep.subr.mxu0 0.0
      %691 = vmatpush1.msra.mxu0 0.0
      %692 = vmatprep.subr.mxu0 0.0
      %693 = vmatpush1.msra.mxu0 0.0
      %694 = vmatprep.subr.mxu0 0.0
      %695 = vmatpush1.msra.mxu0 0.0
      %696 = vmatprep.subr.mxu0 0.0
      %697 = vmatpush1.msra.mxu0 0.0
      %698 = vmatprep.subr.mxu0 0.0
      %699 = vmatpush1.msra.mxu0 0.0
      %700 = vmatprep.subr.mxu0 0.0
      %701 = vmatpush1.msra.mxu0 0.0
      %702 = vmatprep.subr.mxu0 0.0
      %703 = vmatpush1.msra.mxu0 0.0
      %704 = vmatprep.subr.mxu0 0.0
      %705 = vmatpush1.msra.mxu0 0.0
      %706 = vmatprep.subr.mxu0 0.0
      %707 = vmatpush1.msra.mxu0 0.0
      %708 = vmatprep.mubr.f32.mxu0 0.0
      %709 = vmatmul.mubr.f32.gmra.mrb[0].mxu0 %v642
      %v710 = vpop.f32.mrb[0].mxu0
      %v711 = vadd.f32 0.0, %v710
      %v712 = vpop.f32.mrb[0].mxu0
      %713 = vdwg.mxu0
      %v715 = vsel %vm510, %v633, 0
      %717 = vmatprep.subr.mxu0 0.0
      %718 = vmatpush1.msra.mxu0 %v634
      %719 = vmatprep.subr.mxu0 0.0
      %720 = vmatpush1.msra.mxu0 %v635
      %721 = vmatprep.subr.mxu0 0.0
      %722 = vmatpush1.msra.mxu0 %v636
      %723 = vmatprep.subr.mxu0 0.0
      %724 = vmatpush1.msra.mxu0 %v637
      %725 = vmatprep.subr.mxu0 0.0
      %726 = vmatpush1.msra.mxu0 0.0
      %727 = vmatprep.subr.mxu0 0.0
      %728 = vmatpush1.msra.mxu0 0.0
      %729 = vmatprep.subr.mxu0 0.0
      %730 = vmatpush1.msra.mxu0 0.0
      %731 = vmatprep.subr.mxu0 0.0
      %732 = vmatpush1.msra.mxu0 0.0
      %733 = vmatprep.subr.mxu0 0.0
      %734 = vmatpush1.msra.mxu0 0.0
      %735 = vmatprep.subr.mxu0 0.0
      %736 = vmatpush1.msra.mxu0 0.0
      %737 = vmatprep.subr.mxu0 0.0
      %738 = vmatpush1.msra.mxu0 0.0
      %739 = vmatprep.subr.mxu0 0.0
      %740 = vmatpush1.msra.mxu0 0.0
      %741 = vmatprep.subr.mxu0 0.0
      %742 = vmatpush1.msra.mxu0 0.0
      %743 = vmatprep.subr.mxu0 0.0
      %744 = vmatpush1.msra.mxu0 0.0
      %745 = vmatprep.subr.mxu0 0.0
      %746 = vmatpush1.msra.mxu0 0.0
      %747 = vmatprep.subr.mxu0 0.0
      %748 = vmatpush1.msra.mxu0 0.0
      %749 = vmatprep.subr.mxu0 0.0
      %750 = vmatpush1.msra.mxu0 0.0
      %751 = vmatprep.subr.mxu0 0.0
      %752 = vmatpush1.msra.mxu0 0.0
      %753 = vmatprep.subr.mxu0 0.0
      %754 = vmatpush1.msra.mxu0 0.0
      %755 = vmatprep.subr.mxu0 0.0
      %756 = vmatpush1.msra.mxu0 0.0
      %757 = vmatprep.subr.mxu0 0.0
      %758 = vmatpush1.msra.mxu0 0.0
      %759 = vmatprep.subr.mxu0 0.0
      %760 = vmatpush1.msra.mxu0 0.0
      %761 = vmatprep.subr.mxu0 0.0
      %762 = vmatpush1.msra.mxu0 0.0
      %763 = vmatprep.subr.mxu0 0.0
      %764 = vmatpush1.msra.mxu0 0.0
      %765 = vmatprep.subr.mxu0 0.0
      %766 = vmatpush1.msra.mxu0 0.0
      %767 = vmatprep.subr.mxu0 0.0
      %768 = vmatpush1.msra.mxu0 0.0
      %769 = vmatprep.subr.mxu0 0.0
      %770 = vmatpush1.msra.mxu0 0.0
      %771 = vmatprep.subr.mxu0 0.0
      %772 = vmatpush1.msra.mxu0 0.0
      %773 = vmatprep.subr.mxu0 0.0
      %774 = vmatpush1.msra.mxu0 0.0
      %775 = vmatprep.subr.mxu0 0.0
      %776 = vmatpush1.msra.mxu0 0.0
      %777 = vmatprep.subr.mxu0 0.0
      %778 = vmatpush1.msra.mxu0 0.0
      %779 = vmatprep.subr.mxu0 0.0
      %780 = vmatpush1.msra.mxu0 0.0
      %781 = vmatprep.mubr.f32.mxu0 0.0
      %782 = vmatmul.mubr.f32.gmra.mrb[0].mxu0 %v715
      %v783 = vpop.f32.mrb[0].mxu0
      %v784 = vadd.f32 %v711, %v783
      %v785 = vpop.f32.mrb[0].mxu0
      %786 = vdwg.mxu0
      %v787 = vld [vmem:[%s8] sm:$0x1]
      %v789 = vlaneseq
      %v790 = vshrl.u32 %v789, 7
      %v791 = vsub.s32 0, %v790
      %v792 = vrot.slane %v787, %v791
      %v794 = vadd.f32 %v784, %v792
      %v795 = vld [vmem:[#allocation5] sm:$0x3]
      %v796 = vxor.u32 %v794, 2147483648
      %v797 = vmul.f32 %v796, 1.442695
      %v798 = vpow.pop %v797
      %v799 = vadd.f32 %v798, 1.0
      %v800 = vrcp.pop %v799
      %v801 = vmul.f32 1.0, %v800
      %v802 = vtanh.pop %v794
      %804 = vrot.lane.b32.xlu0 %v795, 16
      %v805 = vpop.permute.xlu0 %804
      %v807 = vmul.f32 %v801, %v805
      %809 = vrot.lane.b32.xlu0 %v802, 96
      %v810 = vpop.permute.xlu0 %809
      %v812 = vmul.f32 %v801, %v810
      %814 = vrot.lane.b32.xlu0 %v812, 16
      %v815 = vpop.permute.xlu0 %814
      %v817 = vadd.f32 %v807, %v815
      %v818 = vtanh.pop %v817
      %820 = vrot.lane.b32.xlu0 %v818, 32
      %v821 = vpop.permute.xlu0 %820
      %v823 = vmul.f32 %v801, %v821
      %v824 = vld [vmem:[%s407] sm:$0x3]
      %826 = vset.pattern.permute.xlu0 0
      %827 = vperm.xlu0 %826, %v824
      %v828 = vpop.permute.xlu0 %827
      %v830 = vmul.f32 %v828, %v823
      %v831 = vsub.f32 1.0, %v824
      %833 = vset.pattern.permute.xlu0 0
      %834 = vperm.xlu0 %833, %v831
      %v835 = vpop.permute.xlu0 %834
      %v837 = vmul.f32 %v835, %v638
      %839 = vrot.lane.b32.xlu0 %v837, 48
      %v840 = vpop.permute.xlu0 %839
      %v842 = vadd.f32 %v830, %v840
      %v843 = vmul.f32 %v828, %v817
      %v844 = vmul.f32 %v835, %v795
      %846 = vrot.lane.b32.xlu0 %v844, 16
      %v847 = vpop.permute.xlu0 %846
      %v849 = vadd.f32 %v843, %v847
      %851 = vrot.lane.b32.xlu0 %v842, 80
      %v852 = vpop.permute.xlu0 %851
      %854 = vst.msk [vmem:[#allocation4] sm:$0x3] %vm625, %v852
      %856 = vrot.lane.b32.xlu0 %v849, 112
      %v857 = vpop.permute.xlu0 %856
      %859 = vst.msk [vmem:[#allocation5] sm:$0x3] %vm625, %v857
      %860 = vst.msk [vmem:[%s417] sm:$0x3] %vm625, %v852
      %p861 = scmp.lt.s32.totalorder %s22, 7
      %s862 = scalar_select %p861, %s22, 7
      %s863 = smul.addr %s862, 2
      %s864 = scalar_lea.vmem %s9, %s863
      %s865 = ssub.s32 7, %s22
      %p866 = scmp.lt.s32.totalorder %s865, 7
      %s867 = scalar_select %p866, %s865, 7
      %s868 = smul.addr %s867, 2
      %s869 = scalar_lea.vmem %s10, %s868
      // Predicated region
      $region61: #{tacotron2_forward.8} parent=55 // pred_check
        %p870 = pneg %p248
      $region62: #{tacotron2_forward.8} parent=55 // pred_check_branch
        %872 = sbr.rel (%p870) target = $region64
      $region63: #{tacotron2_forward.8} parent=55 // pred_region
        _
      $region64: #{tacotron2_forward.8} parent=55 // pred_fallthru
        _
      // Predicated region
      $region65: #{tacotron2_forward.8} parent=55 // pred_check
        %p873 = pneg %p276
      $region66: #{tacotron2_forward.8} parent=55 // pred_check_branch
        %875 = sbr.rel (%p873) target = $region68
      $region67: #{tacotron2_forward.8} parent=55 // pred_region
        %s876 = ssub.s32 7, %s22
      $region68: #{tacotron2_forward.8} parent=55 // pred_fallthru
        _
    $region56: #{tacotron2_forward.8} parent=5 // pred_fallthru
      _
    %p877 = scmp.le.s32.totalorder 2, %s17
    // Predicated region
    $region69: #{tacotron2_forward.8} parent=5 // pred_check
      %p878 = pneg %p877
    $region70: #{tacotron2_forward.8} parent=5 // pred_check_branch
      %880 = sbr.rel (%p878) target = $region72
    $region71: #{tacotron2_forward.8} parent=5 // pred_region
      %s881 = ssub.s32 %s17, 2
      // Predicated region
      $region73: #{tacotron2_forward.8} parent=71 // pred_check
        %p882 = pneg %p254
      $region74: #{tacotron2_forward.8} parent=71 // pred_check_branch
        %884 = sbr.rel (%p882) target = $region76
      $region75: #{tacotron2_forward.8} parent=71 // pred_region
        %p885 = scmp.lt.s32.totalorder %s23, 7
        %s886 = scalar_select %p885, %s23, 7
        %s887 = smul.addr %s886, 2
        %s888 = scalar_lea.vmem %s9, %s887
      $region76: #{tacotron2_forward.8} parent=71 // pred_fallthru
        _
      // Predicated region
      $region77: #{tacotron2_forward.8} parent=71 // pred_check
        %p889 = pneg %p282
      $region78: #{tacotron2_forward.8} parent=71 // pred_check_branch
        %891 = sbr.rel (%p889) target = $region80
      $region79: #{tacotron2_forward.8} parent=71 // pred_region
        %s892 = ssub.s32 7, %s23
        %p893 = scmp.lt.s32.totalorder %s892, 7
        %s894 = scalar_select %p893, %s892, 7
        %s895 = smul.addr %s894, 2
        %s896 = scalar_lea.vmem %s10, %s895
      $region80: #{tacotron2_forward.8} parent=71 // pred_fallthru
        _
    $region72: #{tacotron2_forward.8} parent=5 // pred_fallthru
      _
  $region6: #{tacotron2_forward.8} parent=0 // loop_footer
    %s21 = sadd.s32 1, %s17
  $region7: #{tacotron2_forward.8} parent=0 // loop_footer_branch
    %16 = sbr.rel target = $region3
  $region8: #{tacotron2_forward.8} parent=0 // loop_exit
    _

// kernel: tacotron2_forward.12
$region0: #{tacotron2_forward.12}
  #allocation0 [shape = 'u32[]', space=smem, size = 0x4, offset = 0x4, fixed_abs, tag = 'smem constant byte address 0x4 - core index']
  #allocation1 [shape = 'u32[144,128]{1,0:T(1,128)}', space=vmem, size = 0x12000, scoped, tag = 'internal scratch']
  %s0 = inlined_call_operand.vmem [shape: f32[12,64], index: 0, kind: input, shape index: {}]
  %s1 = inlined_call_operand.vmem [shape: f32[64,9], index: 1, kind: input, shape index: {}]
  %s2 = inlined_call_operand.vmem [shape: f32[1,9], index: 2, kind: input, shape index: {}]
  %s3 = inlined_call_operand.vmem [shape: f32[12,9], index: 3, kind: output, shape index: {}]
  %s4 = sld [smem:[#allocation0]]
  $region22: #{tacotron2_forward.12} parent=0
    _
  %s6 = ssub.s32 1, %s4
  %s7 = scalar_select 0, %s6, %s4
  // Predicated region
  $region2: #{tacotron2_forward.12} parent=0 // pred_check
    _
  $region3: #{tacotron2_forward.12} parent=0 // pred_check_branch
    %9 = sbr.rel (0) target = $region5
  $region4: #{tacotron2_forward.12} parent=0 // pred_region
    _
  $region5: #{tacotron2_forward.12} parent=0 // pred_fallthru
    _
  // Predicated region
  $region6: #{tacotron2_forward.12} parent=0 // pred_check
    _
  $region7: #{tacotron2_forward.12} parent=0 // pred_check_branch
    %11 = sbr.rel (0) target = $region9
  $region8: #{tacotron2_forward.12} parent=0 // pred_region
    _
  $region9: #{tacotron2_forward.12} parent=0 // pred_fallthru
    _
  // Predicated region
  $region10: #{tacotron2_forward.12} parent=0 // pred_check
    _
  $region11: #{tacotron2_forward.12} parent=0 // pred_check_branch
    %13 = sbr.rel (0) target = $region13
  $region12: #{tacotron2_forward.12} parent=0 // pred_region
    _
  $region13: #{tacotron2_forward.12} parent=0 // pred_fallthru
    _
  %v14 = vld [vmem:[%s0] sm:$0xff]
  %v15 = vld [vmem:[%s0 + $0x8] sm:$0xf]
  %v16 = vld [vmem:[%s1] sm:$0xff]
  %v17 = vld [vmem:[%s1 + $0x8] sm:$0xff]
  %v18 = vld [vmem:[%s1 + $0x10] sm:$0xff]
  %v19 = vld [vmem:[%s1 + $0x18] sm:$0xff]
  %v20 = vld [vmem:[%s1 + $0x20] sm:$0xff]
  %v21 = vld [vmem:[%s1 + $0x28] sm:$0xff]
  %v22 = vld [vmem:[%s1 + $0x30] sm:$0xff]
  %v23 = vld [vmem:[%s1 + $0x38] sm:$0xff]
  %v24 = vld [vmem:[%s2] sm:$0x1]
  %v26 = vlaneseq
  %v27 = vshrl.u32 %v26, 7
  %v28 = vsub.s32 0, %v27
  %v29 = vrot.slane %v24, %v28
  %vm31 = vcmask 523264
  %v33 = vsel %vm31, %v14, 0
  %v36 = vsel %vm31, %v15, 0
  %38 = vmatprep.subr.mxu0 0.0
  %39 = vmatpush1.msra.mxu0 %v16
  %40 = vmatprep.subr.mxu0 0.0
  %41 = vmatpush1.msra.mxu0 %v17
  %42 = vmatprep.subr.mxu0 0.0
  %43 = vmatpush1.msra.mxu0 %v18
  %44 = vmatprep.subr.mxu0 0.0
  %45 = vmatpush1.msra.mxu0 %v19
  %46 = vmatprep.subr.mxu0 0.0
  %47 = vmatpush1.msra.mxu0 %v20
  %48 = vmatprep.subr.mxu0 0.0
  %49 = vmatpush1.msra.mxu0 %v21
  %50 = vmatprep.subr.mxu0 0.0
  %51 = vmatpush1.msra.mxu0 %v22
  %52 = vmatprep.subr.mxu0 0.0
  %53 = vmatpush1.msra.mxu0 %v23
  %54 = vmatprep.subr.mxu0 0.0
  %55 = vmatpush1.msra.mxu0 0.0
  %56 = vmatprep.subr.mxu0 0.0
  %57 = vmatpush1.msra.mxu0 0.0
  %58 = vmatprep.subr.mxu0 0.0
  %59 = vmatpush1.msra.mxu0 0.0
  %60 = vmatprep.subr.mxu0 0.0
  %61 = vmatpush1.msra.mxu0 0.0
  %62 = vmatprep.subr.mxu0 0.0
  %63 = vmatpush1.msra.mxu0 0.0
  %64 = vmatprep.subr.mxu0 0.0
  %65 = vmatpush1.msra.mxu0 0.0
  %66 = vmatprep.subr.mxu0 0.0
  %67 = vmatpush1.msra.mxu0 0.0
  %68 = vmatprep.subr.mxu0 0.0
  %69 = vmatpush1.msra.mxu0 0.0
  %70 = vmatprep.subr.mxu0 0.0
  %71 = vmatpush1.msra.mxu0 0.0
  %72 = vmatprep.subr.mxu0 0.0
  %73 = vmatpush1.msra.mxu0 0.0
  %74 = vmatprep.subr.mxu0 0.0
  %75 = vmatpush1.msra.mxu0 0.0
  %76 = vmatprep.subr.mxu0 0.0
  %77 = vmatpush1.msra.mxu0 0.0
  %78 = vmatprep.subr.mxu0 0.0
  %79 = vmatpush1.msra.mxu0 0.0
  %80 = vmatprep.subr.mxu0 0.0
  %81 = vmatpush1.msra.mxu0 0.0
  %82 = vmatprep.subr.mxu0 0.0
  %83 = vmatpush1.msra.mxu0 0.0
  %84 = vmatprep.subr.mxu0 0.0
  %85 = vmatpush1.msra.mxu0 0.0
  %86 = vmatprep.subr.mxu0 0.0
  %87 = vmatpush1.msra.mxu0 0.0
  %88 = vmatprep.subr.mxu0 0.0
  %89 = vmatpush1.msra.mxu0 0.0
  %90 = vmatprep.subr.mxu0 0.0
  %91 = vmatpush1.msra.mxu0 0.0
  %92 = vmatprep.subr.mxu0 0.0
  %93 = vmatpush1.msra.mxu0 0.0
  %94 = vmatprep.subr.mxu0 0.0
  %95 = vmatpush1.msra.mxu0 0.0
  %96 = vmatprep.subr.mxu0 0.0
  %97 = vmatpush1.msra.mxu0 0.0
  %98 = vmatprep.subr.mxu0 0.0
  %99 = vmatpush1.msra.mxu0 0.0
  %100 = vmatprep.subr.mxu0 0.0
  %101 = vmatpush1.msra.mxu0 0.0
  %102 = vmatprep.mubr.f32.mxu0 0.0
  %103 = vmatmul.mubr.f32.gmra.mrb[0].mxu0 %v33
  %v104 = vpop.f32.mrb[0].mxu0
  %v105 = vadd.f32 %v29, %v104
  %v106 = vpop.f32.mrb[0].mxu0
  %107 = vmatprep.mubr.f32.mxu0 0.0
  %108 = vmatmul.mubr.f32.gmra.mrb[0].mxu0 %v36
  %v109 = vpop.f32.mrb[0].mxu0
  %v110 = vadd.f32 %v29, %v109
  %v111 = vpop.f32.mrb[0].mxu0
  %112 = vdwg.mxu0
  %vm113 = vcmask 72704
  %114 = vst.msk [vmem:[%s3] sm:$0xff] %vm113, %v105
  %vm115 = vcmask 68608
  %116 = vst.msk [vmem:[%s3 + $0x8] sm:$0xf] %vm115, %v110
  // Predicated region
  $region14: #{tacotron2_forward.12} parent=0 // pred_check
    _
  $region15: #{tacotron2_forward.12} parent=0 // pred_check_branch
    %118 = sbr.rel (0) target = $region17
  $region16: #{tacotron2_forward.12} parent=0 // pred_region
    _
  $region17: #{tacotron2_forward.12} parent=0 // pred_fallthru
    _
  // Predicated region
  $region18: #{tacotron2_forward.12} parent=0 // pred_check
    _
  $region19: #{tacotron2_forward.12} parent=0 // pred_check_branch
    %120 = sbr.rel (0) target = $region21
  $region20: #{tacotron2_forward.12} parent=0 // pred_region
    _
  $region21: #{tacotron2_forward.12} parent=0 // pred_fallthru
    _

// kernel: tacotron2_forward.11
$region0: #{tacotron2_forward.11}
  #allocation0 [shape = 'u32[]', space=smem, size = 0x4, offset = 0x4, fixed_abs, tag = 'smem constant byte address 0x4 - core index']
  #allocation1 [shape = 'u32[144,128]{1,0:T(1,128)}', space=vmem, size = 0x12000, scoped, tag = 'internal scratch']
  #allocation2 [shape = 'f32[2,32]{1,0:T(2,128)}', space=vmem, size = 0x400, scoped, tag = 'scratch operand']
  #allocation3 [shape = 'f32[2,32]{1,0:T(2,128)}', space=vmem, size = 0x400, scoped, tag = 'scratch operand']
  #allocation4 [shape = 'f32[2,32]{1,0:T(2,128)}', space=vmem, size = 0x400, scoped, tag = 'scratch operand']
  #allocation5 [shape = 'f32[2,32]{1,0:T(2,128)}', space=vmem, size = 0x400, scoped, tag = 'scratch operand']
  #allocation6 [shape = 'f32[2,12]{1,0:T(2,128)}', space=vmem, size = 0x400, scoped, tag = 'scratch operand']
  #allocation7 [shape = 'f32[2,12]{1,0:T(2,128)}', space=vmem, size = 0x400, scoped, tag = 'scratch operand']
  #allocation8 [shape = 'f32[2,32]{1,0:T(2,128)}', space=vmem, size = 0x400, scoped, tag = 'scratch operand']
  %s0 = inlined_call_operand.vmem [shape: f32[6,2,16], index: 0, kind: input, shape index: {}]
  %s1 = inlined_call_operand.vmem [shape: f32[2,8,32], index: 1, kind: input, shape index: {}]
  %s2 = inlined_call_operand.vmem [shape: f32[2,8,16], index: 2, kind: input, shape index: {}]
  %s3 = inlined_call_operand.vmem [shape: f32[2,8], index: 3, kind: input, shape index: {}]
  %s4 = inlined_call_operand.vmem [shape: f32[1,1,16], index: 4, kind: input, shape index: {}]
  %s5 = inlined_call_operand.vmem [shape: f32[10,16], index: 5, kind: input, shape index: {}]
  %s6 = inlined_call_operand.vmem [shape: f32[16,128], index: 6, kind: input, shape index: {}]
  %s7 = inlined_call_operand.vmem [shape: f32[32,128], index: 7, kind: input, shape index: {}]
  %s8 = inlined_call_operand.vmem [shape: f32[32,128], index: 8, kind: input, shape index: {}]
  %s9 = inlined_call_operand.vmem [shape: f32[1,128], index: 9, kind: input, shape index: {}]
  %s10 = inlined_call_operand.vmem [shape: f32[32,16], index: 10, kind: input, shape index: {}]
  %s11 = inlined_call_operand.vmem [shape: f32[32,128], index: 11, kind: input, shape index: {}]
  %s12 = inlined_call_operand.vmem [shape: f32[32,128], index: 12, kind: input, shape index: {}]
  %s13 = inlined_call_operand.vmem [shape: f32[32,128], index: 13, kind: input, shape index: {}]
  %s14 = inlined_call_operand.vmem [shape: f32[1,128], index: 14, kind: input, shape index: {}]
  %s15 = inlined_call_operand.vmem [shape: f32[6,2,32], index: 15, kind: output, shape index: {0}]
  %s16 = inlined_call_operand.vmem [shape: f32[6,2,32], index: 16, kind: output, shape index: {1}]
  %s17 = inlined_call_operand.hbm [shape: f32[6,2,8], index: 17, kind: output, shape index: {2}]
  %18 = xla_tuple %s15, %s16, %s17
  %s19 = sld [smem:[#allocation0]]
  $region113: #{tacotron2_forward.11} parent=0
    _
  %s21 = ssub.s32 1, %s19
  %s22 = scalar_select 0, %s21, %s19
  $region1: #{tacotron2_forward.11} parent=0
    #allocation9 [shape = 'u8[2048]{0}', space=vmem, size = 0x800, scoped, tag = 'output window, operand 2']
    #allocation10 [shape = 's32[2]{0}', space=sflag, size = 0x8, scoped, tag = 'scoped memory for tacotron2_forward.11']
    %23 = vsyncpa [#allocation10], 0
    %s24 = scalar_lea.sflag [#allocation10], 1
    %25 = vsyncpa %s24, 0
    loop: start=0, step=1, limit=8
    $region2: #{tacotron2_forward.11} parent=1 // loop_pre_header
      _
    $region3: #{tacotron2_forward.11} parent=1 // loop_header
      %s27 = sphi 0, %s31
      %p28 = scmp.ge.s32.totalorder %s27, 8
      %s37 = sphi 0, %s39
      %s40 = sphi 0, %s37
      %s41 = sphi 0, %s40
      %s57 = sphi 0, %s41
      %s61 = sphi 0, %s61
      %s63 = sphi 0, %s61
      %s64 = sphi 0, %s63
      %s78 = sphi 0, %s64
      %s82 = sphi 0, %s82
      %s84 = sphi 0, %s82
      %s85 = sphi 0, %s84
      %s99 = sphi 0, %s85
      %s103 = sphi 0, %s103
      %s105 = sphi 0, %s103
      %s106 = sphi 0, %s105
      %s120 = sphi 0, %s106
      %s124 = sphi 0, %s124
      %s126 = sphi 0, %s124
      %s127 = sphi 0, %s126
      %s141 = sphi 0, %s127
      %s145 = sphi 0, %s145
      %s147 = sphi 0, %s145
      %s148 = sphi 0, %s147
      %s162 = sphi 0, %s148
      %s166 = sphi 0, %s166
      %s168 = sphi 0, %s166
      %s169 = sphi 0, %s168
      %s183 = sphi 0, %s169
      %s187 = sphi 0, %s187
      %s189 = sphi 0, %s187
      %s190 = sphi 0, %s189
      %s204 = sphi 0, %s190
      %s208 = sphi 0, %s208
      %s210 = sphi 0, %s208
      %s211 = sphi 0, %s210
      %s225 = sphi 0, %s211
      %s229 = sphi 0, %s229
      %s231 = sphi 0, %s229
      %s232 = sphi 0, %s231
      %s246 = sphi 0, %s232
      %s250 = sphi 0, %s250
      %s252 = sphi 0, %s250
      %s253 = sphi 0, %s252
      %s267 = sphi 0, %s253
      %s271 = sphi 0, %s271
      %s273 = sphi 0, %s271
      %s274 = sphi 0, %s273
      %s288 = sphi 0, %s274
      %s292 = sphi 0, %s292
      %s294 = sphi 0, %s292
      %s295 = sphi 0, %s294
      %s309 = sphi 0, %s295
      %s313 = sphi 0, %s313
      %s315 = sphi 0, %s313
      %s316 = sphi 0, %s315
      %s330 = sphi 0, %s316
      %s334 = sphi 0, %s334
      %s336 = sphi 0, %s334
      %s337 = sphi 0, %s336
      %s351 = sphi 0, %s337
      %s357 = sphi 0, %s359
      %s360 = sphi 0, %s357
      %s361 = sphi 0, %s360
      %s377 = sphi 0, %s361
      %s383 = sphi 0, %s385
      %s386 = sphi 0, %s383
      %s387 = sphi 0, %s386
      %s403 = sphi 0, %s387
      %s409 = sphi 0, %s411
      %s412 = sphi 0, %s409
      %s413 = sphi 0, %s412
      %s429 = sphi 0, %s413
    $region4: #{tacotron2_forward.11} parent=1 // loop_header_branch
      %30 = sbr.rel (%p28) target = $region8
    $region5: #{tacotron2_forward.11} parent=1 // loop_body
      %s32 = ssub.s32 %s27, 1
      %s33 = ssub.s32 %s27, 2
      %s34 = sadd.s32 %s27, 1
      %s35 = ssub.s32 %s27, %s34
      %p36 = scmp.eq.s32.totalorder %s35, 0
      %s38 = sadd.s32 %s37, 1
      %s39 = scalar_select %p36, %s37, %s38
      %p42 = pneg %p36
      %p43 = scmp.eq.s32.totalorder %s27, 5
      %p44 = por %p42, %p43
      %p45 = scmp.ne.s32.totalorder %s37, %s40
      %p46 = scmp.eq.s32.totalorder %s27, 0
      %p47 = por %p45, %p46
      %p48 = scmp.ne.s32.totalorder %s37, %s40
      %p49 = scmp.eq.s32.totalorder %s32, 5
      %p50 = por %p48, %p49
      %p51 = scmp.ne.s32.totalorder %s40, %s41
      %p52 = scmp.eq.s32.totalorder %s32, 0
      %p53 = por %p51, %p52
      %p54 = scmp.ne.s32.totalorder %s40, %s41
      %p55 = scmp.eq.s32.totalorder %s33, 5
      %p56 = por %p54, %p55
      %p58 = scmp.ne.s32.totalorder %s41, %s57
      %p59 = scmp.eq.s32.totalorder %s33, 0
      %p60 = por %p58, %p59
      %s62 = sadd.s32 %s61, 1
      %p65 = scmp.eq.s32.totalorder %s27, 5
      %p66 = scmp.ne.s32.totalorder %s61, %s63
      %p67 = scmp.eq.s32.totalorder %s27, 0
      %p68 = por %p66, %p67
      %p69 = scmp.ne.s32.totalorder %s61, %s63
      %p70 = scmp.eq.s32.totalorder %s32, 5
      %p71 = por %p69, %p70
      %p72 = scmp.ne.s32.totalorder %s63, %s64
      %p73 = scmp.eq.s32.totalorder %s32, 0
      %p74 = por %p72, %p73
      %p75 = scmp.ne.s32.totalorder %s63, %s64
      %p76 = scmp.eq.s32.totalorder %s33, 5
      %p77 = por %p75, %p76
      %p79 = scmp.ne.s32.totalorder %s64, %s78
      %p80 = scmp.eq.s32.totalorder %s33, 0
      %p81 = por %p79, %p80
      %s83 = sadd.s32 %s82, 1
      %p86 = scmp.eq.s32.totalorder %s27, 5
      %p87 = scmp.ne.s32.totalorder %s82, %s84
      %p88 = scmp.eq.s32.totalorder %s27, 0
      %p89 = por %p87, %p88
      %p90 = scmp.ne.s32.totalorder %s82, %s84
      %p91 = scmp.eq.s32.totalorder %s32, 5
      %p92 = por %p90, %p91
      %p93 = scmp.ne.s32.totalorder %s84, %s85
      %p94 = scmp.eq.s32.totalorder %s32, 0
      %p95 = por %p93, %p94
      %p96 = scmp.ne.s32.totalorder %s84, %s85
      %p97 = scmp.eq.s32.totalorder %s33, 5
      %p98 = por %p96, %p97
      %p100 = scmp.ne.s32.totalorder %s85, %s99
      %p101 = scmp.eq.s32.totalorder %s33, 0
      %p102 = por %p100, %p101
      %s104 = sadd.s32 %s103, 1
      %p107 = scmp.eq.s32.totalorder %s27, 5
      %p108 = scmp.ne.s32.totalorder %s103, %s105
      %p109 = scmp.eq.s32.totalorder %s27, 0
      %p110 = por %p108, %p109
      %p111 = scmp.ne.s32.totalorder %s103, %s105
      %p112 = scmp.eq.s32.totalorder %s32, 5
      %p113 = por %p111, %p112
      %p114 = scmp.ne.s32.totalorder %s105, %s106
      %p115 = scmp.eq.s32.totalorder %s32, 0
      %p116 = por %p114, %p115
      %p117 = scmp.ne.s32.totalorder %s105, %s106
      %p118 = scmp.eq.s32.totalorder %s33, 5
      %p119 = por %p117, %p118
      %p121 = scmp.ne.s32.totalorder %s106, %s120
      %p122 = scmp.eq.s32.totalorder %s33, 0
      %p123 = por %p121, %p122
      %s125 = sadd.s32 %s124, 1
      %p128 = scmp.eq.s32.totalorder %s27, 5
      %p129 = scmp.ne.s32.totalorder %s124, %s126
      %p130 = scmp.eq.s32.totalorder %s27, 0
      %p131 = por %p129, %p130
      %p132 = scmp.ne.s32.totalorder %s124, %s126
      %p133 = scmp.eq.s32.totalorder %s32, 5
      %p134 = por %p132, %p133
      %p135 = scmp.ne.s32.totalorder %s126, %s127
      %p136 = scmp.eq.s32.totalorder %s32, 0
      %p137 = por %p135, %p136
      %p138 = scmp.ne.s32.totalorder %s126, %s127
      %p139 = scmp.eq.s32.totalorder %s33, 5
      %p140 = por %p138, %p139
      %p142 = scmp.ne.s32.totalorder %s127, %s141
      %p143 = scmp.eq.s32.totalorder %s33, 0
      %p144 = por %p142, %p143
      %s146 = sadd.s32 %s145, 1
      %p149 = scmp.eq.s32.totalorder %s27, 5
      %p150 = scmp.ne.s32.totalorder %s145, %s147
      %p151 = scmp.eq.s32.totalorder %s27, 0
      %p152 = por %p150, %p151
      %p153 = scmp.ne.s32.totalorder %s145, %s147
      %p154 = scmp.eq.s32.totalorder %s32, 5
      %p155 = por %p153, %p154
      %p156 = scmp.ne.s32.totalorder %s147, %s148
      %p157 = scmp.eq.s32.totalorder %s32, 0
      %p158 = por %p156, %p157
      %p159 = scmp.ne.s32.totalorder %s147, %s148
      %p160 = scmp.eq.s32.totalorder %s33, 5
      %p161 = por %p159, %p160
      %p163 = scmp.ne.s32.totalorder %s148, %s162
      %p164 = scmp.eq.s32.totalorder %s33, 0
      %p165 = por %p163, %p164
      %s167 = sadd.s32 %s166, 1
      %p170 = scmp.eq.s32.totalorder %s27, 5
      %p171 = scmp.ne.s32.totalorder %s166, %s168
      %p172 = scmp.eq.s32.totalorder %s27, 0
      %p173 = por %p171, %p172
      %p174 = scmp.ne.s32.totalorder %s166, %s168
      %p175 = scmp.eq.s32.totalorder %s32, 5
      %p176 = por %p174, %p175
      %p177 = scmp.ne.s32.totalorder %s168, %s169
      %p178 = scmp.eq.s32.totalorder %s32, 0
      %p179 = por %p177, %p178
      %p180 = scmp.ne.s32.totalorder %s168, %s169
      %p181 = scmp.eq.s32.totalorder %s33, 5
      %p182 = por %p180, %p181
      %p184 = scmp.ne.s32.totalorder %s169, %s183
      %p185 = scmp.eq.s32.totalorder %s33, 0
      %p186 = por %p184, %p185
      %s188 = sadd.s32 %s187, 1
      %p191 = scmp.eq.s32.totalorder %s27, 5
      %p192 = scmp.ne.s32.totalorder %s187, %s189
      %p193 = scmp.eq.s32.totalorder %s27, 0
      %p194 = por %p192, %p193
      %p195 = scmp.ne.s32.totalorder %s187, %s189
      %p196 = scmp.eq.s32.totalorder %s32, 5
      %p197 = por %p195, %p196
      %p198 = scmp.ne.s32.totalorder %s189, %s190
      %p199 = scmp.eq.s32.totalorder %s32, 0
      %p200 = por %p198, %p199
      %p201 = scmp.ne.s32.totalorder %s189, %s190
      %p202 = scmp.eq.s32.totalorder %s33, 5
      %p203 = por %p201, %p202
      %p205 = scmp.ne.s32.totalorder %s190, %s204
      %p206 = scmp.eq.s32.totalorder %s33, 0
      %p207 = por %p205, %p206
      %s209 = sadd.s32 %s208, 1
      %p212 = scmp.eq.s32.totalorder %s27, 5
      %p213 = scmp.ne.s32.totalorder %s208, %s210
      %p214 = scmp.eq.s32.totalorder %s27, 0
      %p215 = por %p213, %p214
      %p216 = scmp.ne.s32.totalorder %s208, %s210
      %p217 = scmp.eq.s32.totalorder %s32, 5
      %p218 = por %p216, %p217
      %p219 = scmp.ne.s32.totalorder %s210, %s211
      %p220 = scmp.eq.s32.totalorder %s32, 0
      %p221 = por %p219, %p220
      %p222 = scmp.ne.s32.totalorder %s210, %s211
      %p223 = scmp.eq.s32.totalorder %s33, 5
      %p224 = por %p222, %p223
      %p226 = scmp.ne.s32.totalorder %s211, %s225
      %p227 = scmp.eq.s32.totalorder %s33, 0
      %p228 = por %p226, %p227
      %s230 = sadd.s32 %s229, 1
      %p233 = scmp.eq.s32.totalorder %s27, 5
      %p234 = scmp.ne.s32.totalorder %s229, %s231
      %p235 = scmp.eq.s32.totalorder %s27, 0
      %p236 = por %p234, %p235
      %p237 = scmp.ne.s32.totalorder %s229, %s231
      %p238 = scmp.eq.s32.totalorder %s32, 5
      %p239 = por %p237, %p238
      %p240 = scmp.ne.s32.totalorder %s231, %s232
      %p241 = scmp.eq.s32.totalorder %s32, 0
      %p242 = por %p240, %p241
      %p243 = scmp.ne.s32.totalorder %s231, %s232
      %p244 = scmp.eq.s32.totalorder %s33, 5
      %p245 = por %p243, %p244
      %p247 = scmp.ne.s32.totalorder %s232, %s246
      %p248 = scmp.eq.s32.totalorder %s33, 0
      %p249 = por %p247, %p248
      %s251 = sadd.s32 %s250, 1
      %p254 = scmp.eq.s32.totalorder %s27, 5
      %p255 = scmp.ne.s32.totalorder %s250, %s252
      %p256 = scmp.eq.s32.totalorder %s27, 0
      %p257 = por %p255, %p256
      %p258 = scmp.ne.s32.totalorder %s250, %s252
      %p259 = scmp.eq.s32.totalorder %s32, 5
      %p260 = por %p258, %p259
      %p261 = scmp.ne.s32.totalorder %s252, %s253
      %p262 = scmp.eq.s32.totalorder %s32, 0
      %p263 = por %p261, %p262
      %p264 = scmp.ne.s32.totalorder %s252, %s253
      %p265 = scmp.eq.s32.totalorder %s33, 5
      %p266 = por %p264, %p265
      %p268 = scmp.ne.s32.totalorder %s253, %s267
      %p269 = scmp.eq.s32.totalorder %s33, 0
      %p270 = por %p268, %p269
      %s272 = sadd.s32 %s271, 1
      %p275 = scmp.eq.s32.totalorder %s27, 5
      %p276 = scmp.ne.s32.totalorder %s271, %s273
      %p277 = scmp.eq.s32.totalorder %s27, 0
      %p278 = por %p276, %p277
      %p279 = scmp.ne.s32.totalorder %s271, %s273
      %p280 = scmp.eq.s32.totalorder %s32, 5
      %p281 = por %p279, %p280
      %p282 = scmp.ne.s32.totalorder %s273, %s274
      %p283 = scmp.eq.s32.totalorder %s32, 0
      %p284 = por %p282, %p283
      %p285 = scmp.ne.s32.totalorder %s273, %s274
      %p286 = scmp.eq.s32.totalorder %s33, 5
      %p287 = por %p285, %p286
      %p289 = scmp.ne.s32.totalorder %s274, %s288
      %p290 = scmp.eq.s32.totalorder %s33, 0
      %p291 = por %p289, %p290
      %s293 = sadd.s32 %s292, 1
      %p296 = scmp.eq.s32.totalorder %s27, 5
      %p297 = scmp.ne.s32.totalorder %s292, %s294
      %p298 = scmp.eq.s32.totalorder %s27, 0
      %p299 = por %p297, %p298
      %p300 = scmp.ne.s32.totalorder %s292, %s294
      %p301 = scmp.eq.s32.totalorder %s32, 5
      %p302 = por %p300, %p301
      %p303 = scmp.ne.s32.totalorder %s294, %s295
      %p304 = scmp.eq.s32.totalorder %s32, 0
      %p305 = por %p303, %p304
      %p306 = scmp.ne.s32.totalorder %s294, %s295
      %p307 = scmp.eq.s32.totalorder %s33, 5
      %p308 = por %p306, %p307
      %p310 = scmp.ne.s32.totalorder %s295, %s309
      %p311 = scmp.eq.s32.totalorder %s33, 0
      %p312 = por %p310, %p311
      %s314 = sadd.s32 %s313, 1
      %p317 = scmp.eq.s32.totalorder %s27, 5
      %p318 = scmp.ne.s32.totalorder %s313, %s315
      %p319 = scmp.eq.s32.totalorder %s27, 0
      %p320 = por %p318, %p319
      %p321 = scmp.ne.s32.totalorder %s313, %s315
      %p322 = scmp.eq.s32.totalorder %s32, 5
      %p323 = por %p321, %p322
      %p324 = scmp.ne.s32.totalorder %s315, %s316
      %p325 = scmp.eq.s32.totalorder %s32, 0
      %p326 = por %p324, %p325
      %p327 = scmp.ne.s32.totalorder %s315, %s316
      %p328 = scmp.eq.s32.totalorder %s33, 5
      %p329 = por %p327, %p328
      %p331 = scmp.ne.s32.totalorder %s316, %s330
      %p332 = scmp.eq.s32.totalorder %s33, 0
      %p333 = por %p331, %p332
      %s335 = sadd.s32 %s334, 1
      %p338 = scmp.eq.s32.totalorder %s27, 5
      %p339 = scmp.ne.s32.totalorder %s334, %s336
      %p340 = scmp.eq.s32.totalorder %s27, 0
      %p341 = por %p339, %p340
      %p342 = scmp.ne.s32.totalorder %s334, %s336
      %p343 = scmp.eq.s32.totalorder %s32, 5
      %p344 = por %p342, %p343
      %p345 = scmp.ne.s32.totalorder %s336, %s337
      %p346 = scmp.eq.s32.totalorder %s32, 0
      %p347 = por %p345, %p346
      %p348 = scmp.ne.s32.totalorder %s336, %s337
      %p349 = scmp.eq.s32.totalorder %s33, 5
      %p350 = por %p348, %p349
      %p352 = scmp.ne.s32.totalorder %s337, %s351
      %p353 = scmp.eq.s32.totalorder %s33, 0
      %p354 = por %p352, %p353
      %s355 = ssub.s32 %s27, %s34
      %p356 = scmp.eq.s32.totalorder %s355, 0
      %s358 = sadd.s32 %s357, 1
      %s359 = scalar_select %p356, %s357, %s358
      %p362 = pneg %p356
      %p363 = scmp.eq.s32.totalorder %s27, 5
      %p364 = por %p362, %p363
      %p365 = scmp.ne.s32.totalorder %s357, %s360
      %p366 = scmp.eq.s32.totalorder %s27, 0
      %p367 = por %p365, %p366
      %p368 = scmp.ne.s32.totalorder %s357, %s360
      %p369 = scmp.eq.s32.totalorder %s32, 5
      %p370 = por %p368, %p369
      %p371 = scmp.ne.s32.totalorder %s360, %s361
      %p372 = scmp.eq.s32.totalorder %s32, 0
      %p373 = por %p371, %p372
      %p374 = scmp.ne.s32.totalorder %s360, %s361
      %p375 = scmp.eq.s32.totalorder %s33, 5
      %p376 = por %p374, %p375
      %p378 = scmp.ne.s32.totalorder %s361, %s377
      %p379 = scmp.eq.s32.totalorder %s33, 0
      %p380 = por %p378, %p379
      %s381 = ssub.s32 %s27, %s34
      %p382 = scmp.eq.s32.totalorder %s381, 0
      %s384 = sadd.s32 %s383, 1
      %s385 = scalar_select %p382, %s383, %s384
      %p388 = pneg %p382
      %p389 = scmp.eq.s32.totalorder %s27, 5
      %p390 = por %p388, %p389
      %p391 = scmp.ne.s32.totalorder %s383, %s386
      %p392 = scmp.eq.s32.totalorder %s27, 0
      %p393 = por %p391, %p392
      %p394 = scmp.ne.s32.totalorder %s383, %s386
      %p395 = scmp.eq.s32.totalorder %s32, 5
      %p396 = por %p394, %p395
      %p397 = scmp.ne.s32.totalorder %s386, %s387
      %p398 = scmp.eq.s32.totalorder %s32, 0
      %p399 = por %p397, %p398
      %p400 = scmp.ne.s32.totalorder %s386, %s387
      %p401 = scmp.eq.s32.totalorder %s33, 5
      %p402 = por %p400, %p401
      %p404 = scmp.ne.s32.totalorder %s387, %s403
      %p405 = scmp.eq.s32.totalorder %s33, 0
      %p406 = por %p404, %p405
      %s407 = ssub.s32 %s27, %s34
      %p408 = scmp.eq.s32.totalorder %s407, 0
      %s410 = sadd.s32 %s409, 1
      %s411 = scalar_select %p408, %s409, %s410
      %p414 = pneg %p408
      %p415 = scmp.eq.s32.totalorder %s27, 5
      %p416 = por %p414, %p415
      %p417 = scmp.ne.s32.totalorder %s409, %s412
      %p418 = scmp.eq.s32.totalorder %s27, 0
      %p419 = por %p417, %p418
      %p420 = scmp.ne.s32.totalorder %s409, %s412
      %p421 = scmp.eq.s32.totalorder %s32, 5
      %p422 = por %p420, %p421
      %p423 = scmp.ne.s32.totalorder %s412, %s413
      %p424 = scmp.eq.s32.totalorder %s32, 0
      %p425 = por %p423, %p424
      %p426 = scmp.ne.s32.totalorder %s412, %s413
      %p427 = scmp.eq.s32.totalorder %s33, 5
      %p428 = por %p426, %p427
      %p430 = scmp.ne.s32.totalorder %s413, %s429
      %p431 = scmp.eq.s32.totalorder %s33, 0
      %p432 = por %p430, %p431
      %p433 = scmp.le.s32.totalorder 1, %s27
      %p434 = scmp.lt.s32.totalorder %s27, 7
      %p435 = pnand %p433, %p434
      %p436 = pneg %p435
      // Predicated region
      $region9: #{tacotron2_forward.11} parent=5 // pred_check
        _
      $region10: #{tacotron2_forward.11} parent=5 // pred_check_branch
        %438 = sbr.rel (%p435) target = $region12
      $region11: #{tacotron2_forward.11} parent=5 // pred_region
        %s439 = ssub.s32 %s27, 1
        // Predicated region
        $region13: #{tacotron2_forward.11} parent=11 // pred_check
          %p440 = pneg %p74
        $region14: #{tacotron2_forward.11} parent=11 // pred_check_branch
          %442 = sbr.rel (%p440) target = $region16
        $region15: #{tacotron2_forward.11} parent=11 // pred_region
          _
        $region16: #{tacotron2_forward.11} parent=11 // pred_fallthru
          _
        // Predicated region
        $region17: #{tacotron2_forward.11} parent=11 // pred_check
          %p443 = pneg %p95
        $region18: #{tacotron2_forward.11} parent=11 // pred_check_branch
          %445 = sbr.rel (%p443) target = $region20
        $region19: #{tacotron2_forward.11} parent=11 // pred_region
          _
        $region20: #{tacotron2_forward.11} parent=11 // pred_fallthru
          _
        // Predicated region
        $region21: #{tacotron2_forward.11} parent=11 // pred_check
          %p446 = pneg %p116
        $region22: #{tacotron2_forward.11} parent=11 // pred_check_branch
          %448 = sbr.rel (%p446) target = $region24
        $region23: #{tacotron2_forward.11} parent=11 // pred_region
          _
        $region24: #{tacotron2_forward.11} parent=11 // pred_fallthru
          _
        // Predicated region
        $region25: #{tacotron2_forward.11} parent=11 // pred_check
          %p449 = pneg %p137
        $region26: #{tacotron2_forward.11} parent=11 // pred_check_branch
          %451 = sbr.rel (%p449) target = $region28
        $region27: #{tacotron2_forward.11} parent=11 // pred_region
          _
        $region28: #{tacotron2_forward.11} parent=11 // pred_fallthru
          _
        // Predicated region
        $region29: #{tacotron2_forward.11} parent=11 // pred_check
          %p452 = pneg %p158
        $region30: #{tacotron2_forward.11} parent=11 // pred_check_branch
          %454 = sbr.rel (%p452) target = $region32
        $region31: #{tacotron2_forward.11} parent=11 // pred_region
          _
        $region32: #{tacotron2_forward.11} parent=11 // pred_fallthru
          _
        // Predicated region
        $region33: #{tacotron2_forward.11} parent=11 // pred_check
          %p455 = pneg %p179
        $region34: #{tacotron2_forward.11} parent=11 // pred_check_branch
          %457 = sbr.rel (%p455) target = $region36
        $region35: #{tacotron2_forward.11} parent=11 // pred_region
          _
        $region36: #{tacotron2_forward.11} parent=11 // pred_fallthru
          _
        // Predicated region
        $region37: #{tacotron2_forward.11} parent=11 // pred_check
          %p458 = pneg %p200
        $region38: #{tacotron2_forward.11} parent=11 // pred_check_branch
          %460 = sbr.rel (%p458) target = $region40
        $region39: #{tacotron2_forward.11} parent=11 // pred_region
          _
        $region40: #{tacotron2_forward.11} parent=11 // pred_fallthru
          _
        // Predicated region
        $region41: #{tacotron2_forward.11} parent=11 // pred_check
          %p461 = pneg %p221
        $region42: #{tacotron2_forward.11} parent=11 // pred_check_branch
          %463 = sbr.rel (%p461) target = $region44
        $region43: #{tacotron2_forward.11} parent=11 // pred_region
          _
        $region44: #{tacotron2_forward.11} parent=11 // pred_fallthru
          _
        // Predicated region
        $region45: #{tacotron2_forward.11} parent=11 // pred_check
          %p464 = pneg %p242
        $region46: #{tacotron2_forward.11} parent=11 // pred_check_branch
          %466 = sbr.rel (%p464) target = $region48
        $region47: #{tacotron2_forward.11} parent=11 // pred_region
          _
        $region48: #{tacotron2_forward.11} parent=11 // pred_fallthru
          _
        // Predicated region
        $region49: #{tacotron2_forward.11} parent=11 // pred_check
          %p467 = pneg %p263
        $region50: #{tacotron2_forward.11} parent=11 // pred_check_branch
          %469 = sbr.rel (%p467) target = $region52
        $region51: #{tacotron2_forward.11} parent=11 // pred_region
          _
        $region52: #{tacotron2_forward.11} parent=11 // pred_fallthru
          _
        // Predicated region
        $region53: #{tacotron2_forward.11} parent=11 // pred_check
          %p470 = pneg %p284
        $region54: #{tacotron2_forward.11} parent=11 // pred_check_branch
          %472 = sbr.rel (%p470) target = $region56
        $region55: #{tacotron2_forward.11} parent=11 // pred_region
          _
        $region56: #{tacotron2_forward.11} parent=11 // pred_fallthru
          _
        // Predicated region
        $region57: #{tacotron2_forward.11} parent=11 // pred_check
          %p473 = pneg %p305
        $region58: #{tacotron2_forward.11} parent=11 // pred_check_branch
          %475 = sbr.rel (%p473) target = $region60
        $region59: #{tacotron2_forward.11} parent=11 // pred_region
          _
        $region60: #{tacotron2_forward.11} parent=11 // pred_fallthru
          _
        // Predicated region
        $region61: #{tacotron2_forward.11} parent=11 // pred_check
          %p476 = pneg %p326
        $region62: #{tacotron2_forward.11} parent=11 // pred_check_branch
          %478 = sbr.rel (%p476) target = $region64
        $region63: #{tacotron2_forward.11} parent=11 // pred_region
          _
        $region64: #{tacotron2_forward.11} parent=11 // pred_fallthru
          _
        // Predicated region
        $region65: #{tacotron2_forward.11} parent=11 // pred_check
          %p479 = pneg %p347
        $region66: #{tacotron2_forward.11} parent=11 // pred_check_branch
          %481 = sbr.rel (%p479) target = $region68
        $region67: #{tacotron2_forward.11} parent=11 // pred_region
          _
        $region68: #{tacotron2_forward.11} parent=11 // pred_fallthru
          _
      $region12: #{tacotron2_forward.11} parent=5 // pred_fallthru
        _
      %p482 = scmp.lt.s32.totalorder %s27, 6
      // Predicated region
      $region69: #{tacotron2_forward.11} parent=5 // pred_check
        %p483 = pneg %p482
      $region70: #{tacotron2_forward.11} parent=5 // pred_check_branch
        %485 = sbr.rel (%p483) target = $region72
      $region71: #{tacotron2_forward.11} parent=5 // pred_region
        // Predicated region
        $region73: #{tacotron2_forward.11} parent=71 // pred_check
          %p486 = pneg %p47
        $region74: #{tacotron2_forward.11} parent=71 // pred_check_branch
          %488 = sbr.rel (%p486) target = $region76
        $region75: #{tacotron2_forward.11} parent=71 // pred_region
          %p489 = scmp.lt.s32.totalorder %s27, 5
          %s490 = scalar_select %p489, %s27, 5
          %s491 = smul.addr %s490, 2
          %s492 = scalar_lea.vmem %s0, %s491
        $region76: #{tacotron2_forward.11} parent=71 // pred_fallthru
          _
      $region72: #{tacotron2_forward.11} parent=5 // pred_fallthru
        _
      %p493 = scmp.le.s32.totalorder 1, %s27
      %p494 = scmp.lt.s32.totalorder %s27, 7
      %p495 = pnand %p493, %p494
      %p496 = pneg %p495
      // Predicated region
      $region77: #{tacotron2_forward.11} parent=5 // pred_check
        _
      $region78: #{tacotron2_forward.11} parent=5 // pred_check_branch
        %498 = sbr.rel (%p495) target = $region80
      $region79: #{tacotron2_forward.11} parent=5 // pred_region
        %s499 = ssub.s32 %s27, 1
        %p500 = scmp.lt.s32.totalorder %s32, 5
        %s501 = scalar_select %p500, %s32, 5
        %s502 = smul.addr %s501, 2
        %s503 = scalar_lea.vmem %s0, %s502
        %p504 = pneg %p53
        %p505 = pneg %p50
        %p506 = pneg %p74
        %p507 = pneg %p71
        %p508 = pneg %p95
        %p509 = pneg %p92
        %p510 = pneg %p116
        %p511 = pneg %p113
        %p512 = pneg %p137
        %p513 = pneg %p134
        %p514 = pneg %p158
        %p515 = pneg %p155
        %p516 = pneg %p179
        %p517 = pneg %p176
        %p518 = pneg %p200
        %p519 = pneg %p197
        %p520 = pneg %p221
        %p521 = pneg %p218
        %p522 = pneg %p242
        %p523 = pneg %p239
        %p524 = pneg %p263
        %p525 = pneg %p260
        %p526 = pneg %p284
        %p527 = pneg %p281
        %p528 = pneg %p305
        %p529 = pneg %p302
        %p530 = pneg %p326
        %p531 = pneg %p323
        %p532 = pneg %p347
        %p533 = pneg %p344
        %p534 = pneg %p373
        %p535 = pneg %p370
        %p536 = scmp.lt.s32.totalorder %s32, 5
        %s537 = scalar_select %p536, %s32, 5
        %s538 = smul.addr %s537, 2
        %s539 = scalar_lea.vmem %s15, %s538
        %p540 = pneg %p399
        %p541 = pneg %p396
        %p542 = scmp.lt.s32.totalorder %s32, 5
        %s543 = scalar_select %p542, %s32, 5
        %s544 = smul.addr %s543, 2
        %s545 = scalar_lea.vmem %s16, %s544
        %p546 = pneg %p425
        %p547 = pneg %p422
        %s548 = sand.u32 %s412, 1
        %s549 = scalar_lea.sflag [#allocation10], %s548
        %s550 = sand.u32 %s412, 1
        %s551 = smul.addr %s550, 2
        %s552 = scalar_lea.vmem [#allocation9], %s551
        %p553 = scmp.lt.s32.totalorder %s32, 5
        %s554 = scalar_select %p553, %s32, 5
        %s555 = smul.addr %s554, 2
        %s556 = scalar_lea.vmem %s0, %s555
        %p557 = scmp.lt.s32.totalorder %s32, 5
        %s558 = scalar_select %p557, %s32, 5
        %s559 = smul.addr %s558, 2
        %s560 = scalar_lea.vmem %s15, %s559
        %p561 = scmp.lt.s32.totalorder %s32, 5
        %s562 = scalar_select %p561, %s32, 5
        %s563 = smul.addr %s562, 2
        %s564 = scalar_lea.vmem %s16, %s563
        %p565 = scmp.eq.s32.totalorder %s32, 0
        // Predicated region
        $region81: #{tacotron2_forward.11} parent=79 // pred_check
          %p566 = pneg %p565
        $region82: #{tacotron2_forward.11} parent=79 // pred_check_branch
          %568 = sbr.rel (%p566) target = $region84
        $region83: #{tacotron2_forward.11} parent=79 // pred_region
          %vm569 = vcmask 254976
          %570 = vst.msk [vmem:[#allocation2] sm:$0x3] %vm569, 0.0
          %571 = vst.msk [vmem:[#allocation3] sm:$0x3] %vm569, 0.0
          %572 = vst.msk [vmem:[#allocation4] sm:$0x3] %vm569, 0.0
          %573 = vst.msk [vmem:[#allocation5] sm:$0x3] %vm569, 0.0
          %vm574 = vcmask 91136
          %575 = vst.msk [vmem:[#allocation6] sm:$0x3] %vm574, 0.0
          %576 = vst.msk [vmem:[#allocation7] sm:$0x3] %vm574, 0.0
          %577 = vst.msk [vmem:[#allocation8] sm:$0x3] %vm569, 0.0
        $region84: #{tacotron2_forward.11} parent=79 // pred_fallthru
          _
        %v578 = vld [vmem:[%s556] sm:$0x3]
        %v579 = vld [vmem:[#allocation8] sm:$0x3]
        %v580 = vld [vmem:[%s6] sm:$0xff]
        %v581 = vld [vmem:[%s6 + $0x8] sm:$0xff]
        %v582 = vld [vmem:[%s7] sm:$0xff]
        %v583 = vld [vmem:[%s7 + $0x8] sm:$0xff]
        %v584 = vld [vmem:[%s7 + $0x10] sm:$0xff]
        %v585 = vld [vmem:[%s7 + $0x18] sm:$0xff]
        %vm586 = vcmask 261120
        %v588 = vsel %vm586, %v579, 0
        %590 = vmatprep.subr.mxu0 0.0
        %591 = vmatpush1.msra.mxu0 %v582
        %592 = vmatprep.subr.mxu0 0.0
        %593 = vmatpush1.msra.mxu0 %v583
        %594 = vmatprep.subr.mxu0 0.0
        %595 = vmatpush1.msra.mxu0 %v584
        %596 = vmatprep.subr.mxu0 0.0
        %597 = vmatpush1.msra.mxu0 %v585
        %598 = vmatprep.subr.mxu0 0.0
        %599 = vmatpush1.msra.mxu0 0.0
        %600 = vmatprep.subr.mxu0 0.0
        %601 = vmatpush1.msra.mxu0 0.0
        %602 = vmatprep.subr.mxu0 0.0
        %603 = vmatpush1.msra.mxu0 0.0
        %604 = vmatprep.subr.mxu0 0.0
        %605 = vmatpush1.msra.mxu0 0.0
        %606 = vmatprep.subr.mxu0 0.0
        %607 = vmatpush1.msra.mxu0 0.0
        %608 = vmatprep.subr.mxu0 0.0
        %609 = vmatpush1.msra.mxu0 0.0
        %610 = vmatprep.subr.mxu0 0.0
        %611 = vmatpush1.msra.mxu0 0.0
        %612 = vmatprep.subr.mxu0 0.0
        %613 = vmatpush1.msra.mxu0 0.0
        %614 = vmatprep.subr.mxu0 0.0
        %615 = vmatpush1.msra.mxu0 0.0
        %616 = vmatprep.subr.mxu0 0.0
        %617 = vmatpush1.msra.mxu0 0.0
        %618 = vmatprep.subr.mxu0 0.0
        %619 = vmatpush1.msra.mxu0 0.0
        %620 = vmatprep.subr.mxu0 0.0
        %621 = vmatpush1.msra.mxu0 0.0
        %622 = vmatprep.subr.mxu0 0.0
        %623 = vmatpush1.msra.mxu0 0.0
        %624 = vmatprep.subr.mxu0 0.0
        %625 = vmatpush1.msra.mxu0 0.0
        %626 = vmatprep.subr.mxu0 0.0
        %627 = vmatpush1.msra.mxu0 0.0
        %628 = vmatprep.subr.mxu0 0.0
        %629 = vmatpush1.msra.mxu0 0.0
        %630 = vmatprep.subr.mxu0 0.0
        %631 = vmatpush1.msra.mxu0 0.0
        %632 = vmatprep.subr.mxu0 0.0
        %633 = vmatpush1.msra.mxu0 0.0
        %634 = vmatprep.subr.mxu0 0.0
        %635 = vmatpush1.msra.mxu0 0.0
        %636 = vmatprep.subr.mxu0 0.0
        %637 = vmatpush1.msra.mxu0 0.0
        %638 = vmatprep.subr.mxu0 0.0
        %639 = vmatpush1.msra.mxu0 0.0
        %640 = vmatprep.subr.mxu0 0.0
        %641 = vmatpush1.msra.mxu0 0.0
        %642 = vmatprep.subr.mxu0 0.0
        %643 = vmatpush1.msra.mxu0 0.0
        %644 = vmatprep.subr.mxu0 0.0
        %645 = vmatpush1.msra.mxu0 0.0
        %646 = vmatprep.subr.mxu0 0.0
        %647 = vmatpush1.msra.mxu0 0.0
        %648 = vmatprep.subr.mxu0 0.0
        %649 = vmatpush1.msra.mxu0 0.0
        %650 = vmatprep.subr.mxu0 0.0
        %651 = vmatpush1.msra.mxu0 0.0
        %652 = vmatprep.subr.mxu0 0.0
        %653 = vmatpush1.msra.mxu0 0.0
        %654 = vmatprep.mubr.f32.mxu0 0.0
        %655 = vmatmul.mubr.f32.gmra.mrb[0].mxu0 %v588
        %v656 = vpop.f32.mrb[0].mxu0
        %v657 = vadd.f32 0.0, %v656
        %v658 = vpop.f32.mrb[0].mxu0
        %659 = vdwg.mxu0
        %vm660 = vcmask 130048
        %v662 = vsel %vm660, %v578, 0
        %664 = vmatprep.subr.mxu0 0.0
        %665 = vmatpush1.msra.mxu0 %v580
        %666 = vmatprep.subr.mxu0 0.0
        %667 = vmatpush1.msra.mxu0 %v581
        %668 = vmatprep.subr.mxu0 0.0
        %669 = vmatpush1.msra.mxu0 0.0
        %670 = vmatprep.subr.mxu0 0.0
        %671 = vmatpush1.msra.mxu0 0.0
        %672 = vmatprep.subr.mxu0 0.0
        %673 = vmatpush1.msra.mxu0 0.0
        %674 = vmatprep.subr.mxu0 0.0
        %675 = vmatpush1.msra.mxu0 0.0
        %676 = vmatprep.subr.mxu0 0.0
        %677 = vmatpush1.msra.mxu0 0.0
        %678 = vmatprep.subr.mxu0 0.0
        %679 = vmatpush1.msra.mxu0 0.0
        %680 = vmatprep.subr.mxu0 0.0
        %681 = vmatpush1.msra.mxu0 0.0
        %682 = vmatprep.subr.mxu0 0.0
        %683 = vmatpush1.msra.mxu0 0.0
        %684 = vmatprep.subr.mxu0 0.0
        %685 = vmatpush1.msra.mxu0 0.0
        %686 = vmatprep.subr.mxu0 0.0
        %687 = vmatpush1.msra.mxu0 0.0
        %688 = vmatprep.subr.mxu0 0.0
        %689 = vmatpush1.msra.mxu0 0.0
        %690 = vmatprep.subr.mxu0 0.0
        %691 = vmatpush1.msra.mxu0 0.0
        %692 = vmatprep.subr.mxu0 0.0
        %693 = vmatpush1.msra.mxu0 0.0
        %694 = vmatprep.subr.mxu0 0.0
        %695 = vmatpush1.msra.mxu0 0.0
        %696 = vmatprep.subr.mxu0 0.0
        %697 = vmatpush1.msra.mxu0 0.0
        %698 = vmatprep.subr.mxu0 0.0
        %699 = vmatpush1.msra.mxu0 0.0
        %700 = vmatprep.subr.mxu0 0.0
        %701 = vmatpush1.msra.mxu0 0.0
        %702 = vmatprep.subr.mxu0 0.0
        %703 = vmatpush1.msra.mxu0 0.0
        %704 = vmatprep.subr.mxu0 0.0
        %705 = vmatpush1.msra.mxu0 0.0
        %706 = vmatprep.subr.mxu0 0.0
        %707 = vmatpush1.msra.mxu0 0.0
        %708 = vmatprep.subr.mxu0 0.0
        %709 = vmatpush1.msra.mxu0 0.0
        %710 = vmatprep.subr.mxu0 0.0
        %711 = vmatpush1.msra.mxu0 0.0
        %712 = vmatprep.subr.mxu0 0.0
        %713 = vmatpush1.msra.mxu0 0.0
        %714 = vmatprep.subr.mxu0 0.0
        %715 = vmatpush1.msra.mxu0 0.0
        %716 = vmatprep.subr.mxu0 0.0
        %717 = vmatpush1.msra.mxu0 0.0
        %718 = vmatprep.subr.mxu0 0.0
        %719 = vmatpush1.msra.mxu0 0.0
        %720 = vmatprep.subr.mxu0 0.0
        %721 = vmatpush1.msra.mxu0 0.0
        %722 = vmatprep.subr.mxu0 0.0
        %723 = vmatpush1.msra.mxu0 0.0
        %724 = vmatprep.subr.mxu0 0.0
        %725 = vmatpush1.msra.mxu0 0.0
        %726 = vmatprep.subr.mxu0 0.0
        %727 = vmatpush1.msra.mxu0 0.0
        %728 = vmatprep.mubr.f32.mxu0 0.0
        %729 = vmatmul.mubr.f32.gmra.mrb[0].mxu0 %v662
        %v730 = vpop.f32.mrb[0].mxu0
        %v731 = vadd.f32 %v657, %v730
        %v732 = vpop.f32.mrb[0].mxu0
        %733 = vdwg.mxu0
        %v734 = vld [vmem:[#allocation2] sm:$0x3]
        %v735 = vld [vmem:[%s8] sm:$0xff]
        %v736 = vld [vmem:[%s8 + $0x8] sm:$0xff]
        %v737 = vld [vmem:[%s8 + $0x10] sm:$0xff]
        %v738 = vld [vmem:[%s8 + $0x18] sm:$0xff]
        %v740 = vsel %vm586, %v734, 0
        %742 = vmatprep.subr.mxu0 0.0
        %743 = vmatpush1.msra.mxu0 %v735
        %744 = vmatprep.subr.mxu0 0.0
        %745 = vmatpush1.msra.mxu0 %v736
        %746 = vmatprep.subr.mxu0 0.0
        %747 = vmatpush1.msra.mxu0 %v737
        %748 = vmatprep.subr.mxu0 0.0
        %749 = vmatpush1.msra.mxu0 %v738
        %750 = vmatprep.subr.mxu0 0.0
        %751 = vmatpush1.msra.mxu0 0.0
        %752 = vmatprep.subr.mxu0 0.0
        %753 = vmatpush1.msra.mxu0 0.0
        %754 = vmatprep.subr.mxu0 0.0
        %755 = vmatpush1.msra.mxu0 0.0
        %756 = vmatprep.subr.mxu0 0.0
        %757 = vmatpush1.msra.mxu0 0.0
        %758 = vmatprep.subr.mxu0 0.0
        %759 = vmatpush1.msra.mxu0 0.0
        %760 = vmatprep.subr.mxu0 0.0
        %761 = vmatpush1.msra.mxu0 0.0
        %762 = vmatprep.subr.mxu0 0.0
        %763 = vmatpush1.msra.mxu0 0.0
        %764 = vmatprep.subr.mxu0 0.0
        %765 = vmatpush1.msra.mxu0 0.0
        %766 = vmatprep.subr.mxu0 0.0
        %767 = vmatpush1.msra.mxu0 0.0
        %768 = vmatprep.subr.mxu0 0.0
        %769 = vmatpush1.msra.mxu0 0.0
        %770 = vmatprep.subr.mxu0 0.0
        %771 = vmatpush1.msra.mxu0 0.0
        %772 = vmatprep.subr.mxu0 0.0
        %773 = vmatpush1.msra.mxu0 0.0
        %774 = vmatprep.subr.mxu0 0.0
        %775 = vmatpush1.msra.mxu0 0.0
        %776 = vmatprep.subr.mxu0 0.0
        %777 = vmatpush1.msra.mxu0 0.0
        %778 = vmatprep.subr.mxu0 0.0
        %779 = vmatpush1.msra.mxu0 0.0
        %780 = vmatprep.subr.mxu0 0.0
        %781 = vmatpush1.msra.mxu0 0.0
        %782 = vmatprep.subr.mxu0 0.0
        %783 = vmatpush1.msra.mxu0 0.0
        %784 = vmatprep.subr.mxu0 0.0
        %785 = vmatpush1.msra.mxu0 0.0
        %786 = vmatprep.subr.mxu0 0.0
        %787 = vmatpush1.msra.mxu0 0.0
        %788 = vmatprep.subr.mxu0 0.0
        %789 = vmatpush1.msra.mxu0 0.0
        %790 = vmatprep.subr.mxu0 0.0
        %791 = vmatpush1.msra.mxu0 0.0
        %792 = vmatprep.subr.mxu0 0.0
        %793 = vmatpush1.msra.mxu0 0.0
        %794 = vmatprep.subr.mxu0 0.0
        %795 = vmatpush1.msra.mxu0 0.0
        %796 = vmatprep.subr.mxu0 0.0
        %797 = vmatpush1.msra.mxu0 0.0
        %798 = vmatprep.subr.mxu0 0.0
        %799 = vmatpush1.msra.mxu0 0.0
        %800 = vmatprep.subr.mxu0 0.0
        %801 = vmatpush1.msra.mxu0 0.0
        %802 = vmatprep.subr.mxu0 0.0
        %803 = vmatpush1.msra.mxu0 0.0
        %804 = vmatprep.subr.mxu0 0.0
        %805 = vmatpush1.msra.mxu0 0.0
        %806 = vmatprep.mubr.f32.mxu0 0.0
        %807 = vmatmul.mubr.f32.gmra.mrb[0].mxu0 %v740
        %v808 = vpop.f32.mrb[0].mxu0
        %v809 = vadd.f32 0.0, %v808
        %v810 = vpop.f32.mrb[0].mxu0
        %811 = vdwg.mxu0
        %v812 = vadd.f32 %v731, %v809
        %v813 = vld [vmem:[%s9] sm:$0x1]
        %v815 = vlaneseq
        %v816 = vshrl.u32 %v815, 7
        %v817 = vsub.s32 0, %v816
        %v818 = vrot.slane %v813, %v817
        %v820 = vadd.f32 %v812, %v818
        %v821 = vld [vmem:[#allocation3] sm:$0x3]
        %v822 = vxor.u32 %v820, 2147483648
        %v823 = vmul.f32 %v822, 1.442695
        %v824 = vpow.pop %v823
        %v825 = vadd.f32 %v824, 1.0
        %v826 = vrcp.pop %v825
        %v827 = vmul.f32 1.0, %v826
        %v828 = vtanh.pop %v820
        %830 = vrot.lane.b32.xlu0 %v821, 32
        %v831 = vpop.permute.xlu0 %830
        %v833 = vmul.f32 %v827, %v831
        %835 = vrot.lane.b32.xlu0 %v828, 64
        %v836 = vpop.permute.xlu0 %835
        %v838 = vmul.f32 %v827, %v836
        %840 = vrot.lane.b32.xlu0 %v838, 32
        %v841 = vpop.permute.xlu0 %840
        %v843 = vadd.f32 %v833, %v841
        %v844 = vtanh.pop %v843
        %846 = vrot.lane.b32.xlu0 %v844, 64
        %v847 = vpop.permute.xlu0 %846
        %v849 = vmul.f32 %v827, %v847
        %851 = vrot.lane.b32.xlu0 %v849, 32
        %v852 = vpop.permute.xlu0 %851
        %vm854 = vcmask 254976
        %855 = vst.msk [vmem:[#allocation2] sm:$0x3] %vm854, %v852
        %857 = vrot.lane.b32.xlu0 %v843, 96
        %v858 = vpop.permute.xlu0 %857
        %860 = vst.msk [vmem:[#allocation3] sm:$0x3] %vm854, %v858
        %v861 = vld [vmem:[%s5] sm:$0xff]
        %v862 = vld [vmem:[%s5 + $0x8] sm:$0x3]
        %v863 = vld [vmem:[#allocation6] sm:$0x3]
        %v864 = vld [vmem:[#allocation7] sm:$0x3]
        %v865 = vlaneseq
        %v866 = vshrl.u32 %v865, 7
        %v867 = vsub.s32 0, %v866
        %v868 = vrot.slane %v863, %v867
        %870 = vbcast.lane.b32.xlu0 %v868, 256
        %v871 = vpop.permute.xlu0 %870
        %v872 = vlaneseq
        %v873 = vshrl.u32 %v872, 7
        %v874 = vsub.s32 1, %v873
        %v875 = vrot.slane %v863, %v874
        %877 = vbcast.lane.b32.xlu0 %v875, 256
        %v878 = vpop.permute.xlu0 %877
        %v879 = vlaneseq
        %v880 = vshrl.u32 %v879, 7
        %v881 = vsub.s32 0, %v880
        %v882 = vrot.slane %v861, %v881
        %v883 = vmul.f32 %v871, %v882
        %v884 = vmul.f32 %v878, %v882
        %v885 = vadd.f32 %v883, 0.0
        %v886 = vadd.f32 %v884, 0.0
        %s888 = sor.u32 256, 1
        %889 = vbcast.lane.b32.xlu0 %v868, %s888
        %v890 = vpop.permute.xlu0 %889
        %s892 = sor.u32 256, 1
        %893 = vbcast.lane.b32.xlu0 %v875, %s892
        %v894 = vpop.permute.xlu0 %893
        %v895 = vlaneseq
        %v896 = vshrl.u32 %v895, 7
        %v897 = vsub.s32 1, %v896
        %v898 = vrot.slane %v861, %v897
        %v899 = vmul.f32 %v890, %v898
        %v900 = vmul.f32 %v894, %v898
        %v901 = vadd.f32 %v885, %v899
        %v902 = vadd.f32 %v886, %v900
        %s904 = sor.u32 256, 2
        %905 = vbcast.lane.b32.xlu0 %v868, %s904
        %v906 = vpop.permute.xlu0 %905
        %s908 = sor.u32 256, 2
        %909 = vbcast.lane.b32.xlu0 %v875, %s908
        %v910 = vpop.permute.xlu0 %909
        %v911 = vlaneseq
        %v912 = vshrl.u32 %v911, 7
        %v913 = vsub.s32 2, %v912
        %v914 = vrot.slane %v861, %v913
        %v915 = vmul.f32 %v906, %v914
        %v916 = vmul.f32 %v910, %v914
        %v917 = vadd.f32 %v901, %v915
        %v918 = vadd.f32 %v902, %v916
        %s920 = sor.u32 256, 3
        %921 = vbcast.lane.b32.xlu0 %v868, %s920
        %v922 = vpop.permute.xlu0 %921
        %s924 = sor.u32 256, 3
        %925 = vbcast.lane.b32.xlu0 %v875, %s924
        %v926 = vpop.permute.xlu0 %925
        %v927 = vlaneseq
        %v928 = vshrl.u32 %v927, 7
        %v929 = vsub.s32 3, %v928
        %v930 = vrot.slane %v861, %v929
        %v931 = vmul.f32 %v922, %v930
        %v932 = vmul.f32 %v926, %v930
        %v933 = vadd.f32 %v917, %v931
        %v934 = vadd.f32 %v918, %v932
        %s936 = sor.u32 256, 4
        %937 = vbcast.lane.b32.xlu0 %v868, %s936
        %v938 = vpop.permute.xlu0 %937
        %s940 = sor.u32 256, 4
        %941 = vbcast.lane.b32.xlu0 %v875, %s940
        %v942 = vpop.permute.xlu0 %941
        %v943 = vlaneseq
        %v944 = vshrl.u32 %v943, 7
        %v945 = vsub.s32 4, %v944
        %v946 = vrot.slane %v861, %v945
        %v947 = vmul.f32 %v938, %v946
        %v948 = vmul.f32 %v942, %v946
        %v949 = vadd.f32 %v933, %v947
        %v950 = vadd.f32 %v934, %v948
        %v951 = vlaneseq
        %v952 = vshrl.u32 %v951, 7
        %v953 = vsub.s32 0, %v952
        %v954 = vrot.slane %v864, %v953
        %956 = vbcast.lane.b32.xlu0 %v954, 256
        %v957 = vpop.permute.xlu0 %956
        %v958 = vlaneseq
        %v959 = vshrl.u32 %v958, 7
        %v960 = vsub.s32 1, %v959
        %v961 = vrot.slane %v864, %v960
        %963 = vbcast.lane.b32.xlu0 %v961, 256
        %v964 = vpop.permute.xlu0 %963
        %v965 = vlaneseq
        %v966 = vshrl.u32 %v965, 7
        %v967 = vsub.s32 5, %v966
        %v968 = vrot.slane %v861, %v967
        %v969 = vmul.f32 %v957, %v968
        %v970 = vmul.f32 %v964, %v968
        %v971 = vadd.f32 %v949, %v969
        %v972 = vadd.f32 %v950, %v970
        %s974 = sor.u32 256, 1
        %975 = vbcast.lane.b32.xlu0 %v954, %s974
        %v976 = vpop.permute.xlu0 %975
        %s978 = sor.u32 256, 1
        %979 = vbcast.lane.b32.xlu0 %v961, %s978
        %v980 = vpop.permute.xlu0 %979
        %v981 = vlaneseq
        %v982 = vshrl.u32 %v981, 7
        %v983 = vsub.s32 6, %v982
        %v984 = vrot.slane %v861, %v983
        %v985 = vmul.f32 %v976, %v984
        %v986 = vmul.f32 %v980, %v984
        %v987 = vadd.f32 %v971, %v985
        %v988 = vadd.f32 %v972, %v986
        %s990 = sor.u32 256, 2
        %991 = vbcast.lane.b32.xlu0 %v954, %s990
        %v992 = vpop.permute.xlu0 %991
        %s994 = sor.u32 256, 2
        %995 = vbcast.lane.b32.xlu0 %v961, %s994
        %v996 = vpop.permute.xlu0 %995
        %v997 = vlaneseq
        %v998 = vshrl.u32 %v997, 7
        %v999 = vsub.s32 7, %v998
        %v1000 = vrot.slane %v861, %v999
        %v1001 = vmul.f32 %v992, %v1000
        %v1002 = vmul.f32 %v996, %v1000
        %v1003 = vadd.f32 %v987, %v1001
        %v1004 = vadd.f32 %v988, %v1002
        %s1006 = sor.u32 256, 3
        %1007 = vbcast.lane.b32.xlu0 %v954, %s1006
        %v1008 = vpop.permute.xlu0 %1007
        %s1010 = sor.u32 256, 3
        %1011 = vbcast.lane.b32.xlu0 %v961, %s1010
        %v1012 = vpop.permute.xlu0 %1011
        %v1013 = vlaneseq
        %v1014 = vshrl.u32 %v1013, 7
        %v1015 = vsub.s32 0, %v1014
        %v1016 = vrot.slane %v862, %v1015
        %v1017 = vmul.f32 %v1008, %v1016
        %v1018 = vmul.f32 %v1012, %v1016
        %v1019 = vadd.f32 %v1003, %v1017
        %v1020 = vadd.f32 %v1004, %v1018
        %s1022 = sor.u32 256, 4
        %1023 = vbcast.lane.b32.xlu0 %v954, %s1022
        %v1024 = vpop.permute.xlu0 %1023
        %s1026 = sor.u32 256, 4
        %1027 = vbcast.lane.b32.xlu0 %v961, %s1026
        %v1028 = vpop.permute.xlu0 %1027
        %v1029 = vlaneseq
        %v1030 = vshrl.u32 %v1029, 7
        %v1031 = vsub.s32 1, %v1030
        %v1032 = vrot.slane %v862, %v1031
        %v1033 = vmul.f32 %v1024, %v1032
        %v1034 = vmul.f32 %v1028, %v1032
        %v1035 = vadd.f32 %v1019, %v1033
        %v1036 = vadd.f32 %v1020, %v1034
        %v1037 = vld [vmem:[%s10] sm:$0xff]
        %v1038 = vld [vmem:[%s10 + $0x8] sm:$0xff]
        %v1039 = vld [vmem:[%s10 + $0x10] sm:$0xff]
        %v1040 = vld [vmem:[%s10 + $0x18] sm:$0xff]
        %v1041 = vsel %vm586, %v852, 0
        %1043 = vmatprep.subr.mxu0 0.0
        %1044 = vmatpush1.msra.mxu0 %v1037
        %1045 = vmatprep.subr.mxu0 0.0
        %1046 = vmatpush1.msra.mxu0 %v1038
        %1047 = vmatprep.subr.mxu0 0.0
        %1048 = vmatpush1.msra.mxu0 %v1039
        %1049 = vmatprep.subr.mxu0 0.0
        %1050 = vmatpush1.msra.mxu0 %v1040
        %1051 = vmatprep.subr.mxu0 0.0
        %1052 = vmatpush1.msra.mxu0 0.0
        %1053 = vmatprep.subr.mxu0 0.0
        %1054 = vmatpush1.msra.mxu0 0.0
        %1055 = vmatprep.subr.mxu0 0.0
        %1056 = vmatpush1.msra.mxu0 0.0
        %1057 = vmatprep.subr.mxu0 0.0
        %1058 = vmatpush1.msra.mxu0 0.0
        %1059 = vmatprep.subr.mxu0 0.0
        %1060 = vmatpush1.msra.mxu0 0.0
        %1061 = vmatprep.subr.mxu0 0.0
        %1062 = vmatpush1.msra.mxu0 0.0
        %1063 = vmatprep.subr.mxu0 0.0
        %1064 = vmatpush1.msra.mxu0 0.0
        %1065 = vmatprep.subr.mxu0 0.0
        %1066 = vmatpush1.msra.mxu0 0.0
        %1067 = vmatprep.subr.mxu0 0.0
        %1068 = vmatpush1.msra.mxu0 0.0
        %1069 = vmatprep.subr.mxu0 0.0
        %1070 = vmatpush1.msra.mxu0 0.0
        %1071 = vmatprep.subr.mxu0 0.0
        %1072 = vmatpush1.msra.mxu0 0.0
        %1073 = vmatprep.subr.mxu0 0.0
        %1074 = vmatpush1.msra.mxu0 0.0
        %1075 = vmatprep.subr.mxu0 0.0
        %1076 = vmatpush1.msra.mxu0 0.0
        %1077 = vmatprep.subr.mxu0 0.0
        %1078 = vmatpush1.msra.mxu0 0.0
        %1079 = vmatprep.subr.mxu0 0.0
        %1080 = vmatpush1.msra.mxu0 0.0
        %1081 = vmatprep.subr.mxu0 0.0
        %1082 = vmatpush1.msra.mxu0 0.0
        %1083 = vmatprep.subr.mxu0 0.0
        %1084 = vmatpush1.msra.mxu0 0.0
        %1085 = vmatprep.subr.mxu0 0.0
        %1086 = vmatpush1.msra.mxu0 0.0
        %1087 = vmatprep.subr.mxu0 0.0
        %1088 = vmatpush1.msra.mxu0 0.0
        %1089 = vmatprep.subr.mxu0 0.0
        %1090 = vmatpush1.msra.mxu0 0.0
        %1091 = vmatprep.subr.mxu0 0.0
        %1092 = vmatpush1.msra.mxu0 0.0
        %1093 = vmatprep.subr.mxu0 0.0
        %1094 = vmatpush1.msra.mxu0 0.0
        %1095 = vmatprep.subr.mxu0 0.0
        %1096 = vmatpush1.msra.mxu0 0.0
        %1097 = vmatprep.subr.mxu0 0.0
        %1098 = vmatpush1.msra.mxu0 0.0
        %1099 = vmatprep.subr.mxu0 0.0
        %1100 = vmatpush1.msra.mxu0 0.0
        %1101 = vmatprep.subr.mxu0 0.0
        %1102 = vmatpush1.msra.mxu0 0.0
        %1103 = vmatprep.subr.mxu0 0.0
        %1104 = vmatpush1.msra.mxu0 0.0
        %1105 = vmatprep.subr.mxu0 0.0
        %1106 = vmatpush1.msra.mxu0 0.0
        %1107 = vmatprep.mubr.f32.mxu0 0.0
        %1108 = vmatmul.mubr.f32.gmra.mrb[0].mxu0 %v1041
        %v1109 = vpop.f32.mrb[0].mxu0
        %v1110 = vadd.f32 0.0, %v1109
        %v1111 = vpop.f32.mrb[0].mxu0
        %1112 = vdwg.mxu0
        %v1115 = vunpack.c.l.s4 1966171168
        %v1116 = vunpack.c.0.s8 %v1115
        %v1117 = vlaneseq
        %v1118 = vshrl.u32 %v1117, 7
        %v1119 = vsub.s32 %v1116, %v1118
        %v1120 = vrot.slane %v1110, %v1119
        %v1121 = vcombine.high %v1120, %v1120
        %v1123 = vunpack.c.l.s4 1966171168
        %v1124 = vunpack.c.0.s8 %v1123
        %v1125 = vlaneseq
        %v1126 = vshrl.u32 %v1125, 7
        %v1127 = vsub.s32 %v1124, %v1126
        %v1128 = vrot.slane %v1120, %v1127
        %v1130 = vunpack.c.l.s4 1966171168
        %v1131 = vunpack.c.0.s8 %v1130
        %v1132 = vlaneseq
        %v1133 = vshrl.u32 %v1132, 7
        %v1134 = vsub.s32 %v1131, %v1133
        %v1135 = vrot.slane %v1121, %v1134
        %v1136 = vlaneseq
        %v1137 = vshrl.u32 %v1136, 7
        %v1138 = vsub.s32 0, %v1137
        %v1139 = vrot.slane %v1128, %v1138
        %v1140 = vlaneseq
        %v1141 = vshrl.u32 %v1140, 7
        %v1142 = vsub.s32 0, %v1141
        %v1143 = vrot.slane %v1135, %v1142
        %v1146 = vadd.f32 %v1139, %v1035
        %v1147 = vadd.f32 %v1143, %v1036
        %v1148 = vld [vmem:[%s2] sm:$0xff]
        %v1149 = vld [vmem:[%s2 + $0x8] sm:$0xff]
        %v1150 = vadd.f32 %v1146, %v1148
        %v1151 = vadd.f32 %v1147, %v1149
        %v1152 = vtanh.pop %v1150
        %v1153 = vtanh.pop %v1151
        %v1154 = vld [vmem:[%s4] sm:$0x1]
        %v1156 = vlaneseq
        %v1157 = vshrl.u32 %v1156, 7
        %v1158 = vsub.s32 0, %v1157
        %v1159 = vrot.slane %v1154, %v1158
        %v1161 = vmul.f32 %v1152, %v1159
        %v1162 = vmul.f32 %v1153, %v1159
        %v1163 = vsel %vm660, %v1161, 0.0
        %1164 = vadd.xlane.f32.xlu0 %v1163
        %v1165 = vpop.xlane.xlu0 %1164
        %v1166 = vsel %vm660, %v1162, 0.0
        %1167 = vadd.xlane.f32.xlu0 %v1166
        %v1168 = vpop.xlane.xlu0 %1167
        %v1169 = vld [vmem:[%s3] sm:$0x3]
        %v1171 = vlaneseq
        %v1172 = vshrl.u32 %v1171, 7
        %v1173 = vsub.s32 0, %v1172
        %v1174 = vrot.slane %v1169, %v1173
        %1176 = vbcast.lane.b32.xlu0 %v1174, 256
        %v1177 = vpop.permute.xlu0 %1176
        %v1178 = vlaneseq
        %v1179 = vshrl.u32 %v1178, 7
        %v1180 = vsub.s32 1, %v1179
        %v1181 = vrot.slane %v1169, %v1180
        %1183 = vbcast.lane.b32.xlu0 %v1181, 256
        %v1184 = vpop.permute.xlu0 %1183
        %v1187 = vadd.f32 %v1165, %v1177
        %v1188 = vadd.f32 %v1168, %v1184
        %1191 = vset.pattern.permute.xlu0 0
        %1192 = vperm.xlu0 %1191, %v1187
        %v1193 = vpop.permute.xlu0 %1192
        %1194 = vset.pattern.permute.xlu0 0
        %1195 = vperm.xlu0 %1194, %v1188
        %v1196 = vpop.permute.xlu0 %1195
        %v1197 = vlaneseq
        %v1198 = vand.u32 %v1197, 127
        %v1199 = vlaneseq
        %v1200 = vshrl.u32 %v1199, 7
        %v1201 = vsub.s32 %v1198, %v1200
        %v1202 = vrot.slane %v1193, %v1201
        %v1203 = vlaneseq
        %v1204 = vshrl.u32 %v1203, 7
        %v1205 = vsub.s32 %v1198, %v1204
        %v1206 = vrot.slane %v1196, %v1205
        %vm1207 = vcmask 1041409
        %v1208 = vsel %vm1207, %v1206, %v1202
        %vm1210 = vcmask 58368
        %v1211 = vsel %vm1210, %v1208, -inf
        %1212 = vmax.xlane.f32.xlu0 %v1211
        %v1213 = vpop.xlane.xlu0 %1212
        %v1215 = vlaneseq
        %v1216 = vshrl.u32 %v1215, 7
        %v1217 = vsub.s32 0, %v1216
        %v1218 = vrot.slane %v1213, %v1217
        %v1219 = vlaneseq
        %v1220 = vshrl.u32 %v1219, 7
        %v1221 = vsub.s32 1, %v1220
        %v1222 = vrot.slane %v1213, %v1221
        %v1225 = vsub.f32 %v1187, %v1218
        %v1226 = vsub.f32 %v1188, %v1222
        %v1227 = vmul.f32 %v1225, 1.442695
        %v1228 = vpow.pop %v1227
        %v1229 = vmul.f32 %v1226, 1.442695
        %v1230 = vpow.pop %v1229
        %1233 = vset.pattern.permute.xlu0 0
        %1234 = vperm.xlu0 %1233, %v1228
        %v1235 = vpop.permute.xlu0 %1234
        %1236 = vset.pattern.permute.xlu0 0
        %1237 = vperm.xlu0 %1236, %v1230
        %v1238 = vpop.permute.xlu0 %1237
        %v1239 = vlaneseq
        %v1240 = vshrl.u32 %v1239, 7
        %v1241 = vsub.s32 %v1198, %v1240
        %v1242 = vrot.slane %v1235, %v1241
        %v1243 = vlaneseq
        %v1244 = vshrl.u32 %v1243, 7
        %v1245 = vsub.s32 %v1198, %v1244
        %v1246 = vrot.slane %v1238, %v1245
        %v1247 = vsel %vm1207, %v1246, %v1242
        %v1249 = vsel %vm1210, %v1247, 0.0
        %1250 = vadd.xlane.f32.xlu0 %v1249
        %v1251 = vpop.xlane.xlu0 %1250
        %v1253 = vlaneseq
        %v1254 = vshrl.u32 %v1253, 7
        %v1255 = vsub.s32 0, %v1254
        %v1256 = vrot.slane %v1251, %v1255
        %v1257 = vlaneseq
        %v1258 = vshrl.u32 %v1257, 7
        %v1259 = vsub.s32 1, %v1258
        %v1260 = vrot.slane %v1251, %v1259
        %v1263 = vrcp.pop %v1256
        %v1264 = vmul.f32 %v1228, %v1263
        %v1265 = vrcp.pop %v1260
        %v1266 = vmul.f32 %v1230, %v1265
        %1269 = vset.pattern.permute.xlu0 0
        %1270 = vperm.xlu0 %1269, %v1264
        %v1271 = vpop.permute.xlu0 %1270
        %1272 = vset.pattern.permute.xlu0 0
        %1273 = vperm.xlu0 %1272, %v1266
        %v1274 = vpop.permute.xlu0 %1273
        %v1275 = vlaneseq
        %v1276 = vshrl.u32 %v1275, 7
        %v1277 = vsub.s32 %v1198, %v1276
        %v1278 = vrot.slane %v1271, %v1277
        %v1279 = vlaneseq
        %v1280 = vshrl.u32 %v1279, 7
        %v1281 = vsub.s32 %v1198, %v1280
        %v1282 = vrot.slane %v1274, %v1281
        %v1283 = vsel %vm1207, %v1282, %v1278
        %1285 = vst.msk [vmem:[%s552] sm:$0x3] %vm1210, %v1283
        %v1286 = vadd.s32 %v1198, 4294967294
        %v1287 = vlaneseq
        %v1288 = vshrl.u32 %v1287, 7
        %v1289 = vsub.s32 %v1286, %v1288
        %v1290 = vrot.slane %v1271, %v1289
        %v1291 = vlaneseq
        %v1292 = vshrl.u32 %v1291, 7
        %v1293 = vsub.s32 %v1286, %v1292
        %v1294 = vrot.slane %v1274, %v1293
        %v1295 = vsel %vm1207, %v1294, %v1290
        %vm1297 = vcmask 74768
        %1298 = vst.msk [vmem:[#allocation6] sm:$0x3] %vm1297, %v1295
        %v1299 = vadd.f32 %v864, %v1295
        %1300 = vst.msk [vmem:[#allocation7] sm:$0x3] %vm1297, %v1299
        %v1301 = vld [vmem:[%s1] sm:$0xff]
        %v1302 = vld [vmem:[%s1 + $0x8] sm:$0xff]
        %vm1303 = vcmask 64512
        %v1304 = vsel %vm1303, %v1278, 0
        %1306 = vmatprep.subr.mxu0 0.0
        %1307 = vmatpush1.msra.mxu0 %v1301
        %1308 = vmatprep.subr.mxu0 0.0
        %1309 = vmatpush1.msra.mxu0 0.0
        %1310 = vmatprep.subr.mxu0 0.0
        %1311 = vmatpush1.msra.mxu0 0.0
        %1312 = vmatprep.subr.mxu0 0.0
        %1313 = vmatpush1.msra.mxu0 0.0
        %1314 = vmatprep.subr.mxu0 0.0
        %1315 = vmatpush1.msra.mxu0 0.0
        %1316 = vmatprep.subr.mxu0 0.0
        %1317 = vmatpush1.msra.mxu0 0.0
        %1318 = vmatprep.subr.mxu0 0.0
        %1319 = vmatpush1.msra.mxu0 0.0
        %1320 = vmatprep.subr.mxu0 0.0
        %1321 = vmatpush1.msra.mxu0 0.0
        %1322 = vmatprep.subr.mxu0 0.0
        %1323 = vmatpush1.msra.mxu0 0.0
        %1324 = vmatprep.subr.mxu0 0.0
        %1325 = vmatpush1.msra.mxu0 0.0
        %1326 = vmatprep.subr.mxu0 0.0
        %1327 = vmatpush1.msra.mxu0 0.0
        %1328 = vmatprep.subr.mxu0 0.0
        %1329 = vmatpush1.msra.mxu0 0.0
        %1330 = vmatprep.subr.mxu0 0.0
        %1331 = vmatpush1.msra.mxu0 0.0
        %1332 = vmatprep.subr.mxu0 0.0
        %1333 = vmatpush1.msra.mxu0 0.0
        %1334 = vmatprep.subr.mxu0 0.0
        %1335 = vmatpush1.msra.mxu0 0.0
        %1336 = vmatprep.subr.mxu0 0.0
        %1337 = vmatpush1.msra.mxu0 0.0
        %1338 = vmatprep.subr.mxu0 0.0
        %1339 = vmatpush1.msra.mxu0 0.0
        %1340 = vmatprep.subr.mxu0 0.0
        %1341 = vmatpush1.msra.mxu0 0.0
        %1342 = vmatprep.subr.mxu0 0.0
        %1343 = vmatpush1.msra.mxu0 0.0
        %1344 = vmatprep.subr.mxu0 0.0
        %1345 = vmatpush1.msra.mxu0 0.0
        %1346 = vmatprep.subr.mxu0 0.0
        %1347 = vmatpush1.msra.mxu0 0.0
        %1348 = vmatprep.subr.mxu0 0.0
        %1349 = vmatpush1.msra.mxu0 0.0
        %1350 = vmatprep.subr.mxu0 0.0
        %1351 = vmatpush1.msra.mxu0 0.0
        %1352 = vmatprep.subr.mxu0 0.0
        %1353 = vmatpush1.msra.mxu0 0.0
        %1354 = vmatprep.subr.mxu0 0.0
        %1355 = vmatpush1.msra.mxu0 0.0
        %1356 = vmatprep.subr.mxu0 0.0
        %1357 = vmatpush1.msra.mxu0 0.0
        %1358 = vmatprep.subr.mxu0 0.0
        %1359 = vmatpush1.msra.mxu0 0.0
        %1360 = vmatprep.subr.mxu0 0.0
        %1361 = vmatpush1.msra.mxu0 0.0
        %1362 = vmatprep.subr.mxu0 0.0
        %1363 = vmatpush1.msra.mxu0 0.0
        %1364 = vmatprep.subr.mxu0 0.0
        %1365 = vmatpush1.msra.mxu0 0.0
        %1366 = vmatprep.subr.mxu0 0.0
        %1367 = vmatpush1.msra.mxu0 0.0
        %1368 = vmatprep.subr.mxu0 0.0
        %1369 = vmatpush1.msra.mxu0 0.0
        %1370 = vmatprep.mubr.f32.mxu0 0.0
        %1371 = vmatmul.mubr.f32.gmra.mrb[0].mxu0 %v1304
        %v1372 = vpop.f32.mrb[0].mxu0
        %v1373 = vadd.f32 0.0, %v1372
        %v1374 = vpop.f32.mrb[0].mxu0
        %1375 = vdwg.mxu0
        %v1376 = vsel %vm1303, %v1282, 0
        %1378 = vmatprep.subr.mxu0 0.0
        %1379 = vmatpush1.msra.mxu0 %v1302
        %1380 = vmatprep.subr.mxu0 0.0
        %1381 = vmatpush1.msra.mxu0 0.0
        %1382 = vmatprep.subr.mxu0 0.0
        %1383 = vmatpush1.msra.mxu0 0.0
        %1384 = vmatprep.subr.mxu0 0.0
        %1385 = vmatpush1.msra.mxu0 0.0
        %1386 = vmatprep.subr.mxu0 0.0
        %1387 = vmatpush1.msra.mxu0 0.0
        %1388 = vmatprep.subr.mxu0 0.0
        %1389 = vmatpush1.msra.mxu0 0.0
        %1390 = vmatprep.subr.mxu0 0.0
        %1391 = vmatpush1.msra.mxu0 0.0
        %1392 = vmatprep.subr.mxu0 0.0
        %1393 = vmatpush1.msra.mxu0 0.0
        %1394 = vmatprep.subr.mxu0 0.0
        %1395 = vmatpush1.msra.mxu0 0.0
        %1396 = vmatprep.subr.mxu0 0.0
        %1397 = vmatpush1.msra.mxu0 0.0
        %1398 = vmatprep.subr.mxu0 0.0
        %1399 = vmatpush1.msra.mxu0 0.0
        %1400 = vmatprep.subr.mxu0 0.0
        %1401 = vmatpush1.msra.mxu0 0.0
        %1402 = vmatprep.subr.mxu0 0.0
        %1403 = vmatpush1.msra.mxu0 0.0
        %1404 = vmatprep.subr.mxu0 0.0
        %1405 = vmatpush1.msra.mxu0 0.0
        %1406 = vmatprep.subr.mxu0 0.0
        %1407 = vmatpush1.msra.mxu0 0.0
        %1408 = vmatprep.subr.mxu0 0.0
        %1409 = vmatpush1.msra.mxu0 0.0
        %1410 = vmatprep.subr.mxu0 0.0
        %1411 = vmatpush1.msra.mxu0 0.0
        %1412 = vmatprep.subr.mxu0 0.0
        %1413 = vmatpush1.msra.mxu0 0.0
        %1414 = vmatprep.subr.mxu0 0.0
        %1415 = vmatpush1.msra.mxu0 0.0
        %1416 = vmatprep.subr.mxu0 0.0
        %1417 = vmatpush1.msra.mxu0 0.0
        %1418 = vmatprep.subr.mxu0 0.0
        %1419 = vmatpush1.msra.mxu0 0.0
        %1420 = vmatprep.subr.mxu0 0.0
        %1421 = vmatpush1.msra.mxu0 0.0
        %1422 = vmatprep.subr.mxu0 0.0
        %1423 = vmatpush1.msra.mxu0 0.0
        %1424 = vmatprep.subr.mxu0 0.0
        %1425 = vmatpush1.msra.mxu0 0.0
        %1426 = vmatprep.subr.mxu0 0.0
        %1427 = vmatpush1.msra.mxu0 0.0
        %1428 = vmatprep.subr.mxu0 0.0
        %1429 = vmatpush1.msra.mxu0 0.0
        %1430 = vmatprep.subr.mxu0 0.0
        %1431 = vmatpush1.msra.mxu0 0.0
        %1432 = vmatprep.subr.mxu0 0.0
        %1433 = vmatpush1.msra.mxu0 0.0
        %1434 = vmatprep.subr.mxu0 0.0
        %1435 = vmatpush1.msra.mxu0 0.0
        %1436 = vmatprep.subr.mxu0 0.0
        %1437 = vmatpush1.msra.mxu0 0.0
        %1438 = vmatprep.subr.mxu0 0.0
        %1439 = vmatpush1.msra.mxu0 0.0
        %1440 = vmatprep.subr.mxu0 0.0
        %1441 = vmatpush1.msra.mxu0 0.0
        %1442 = vmatprep.mubr.f32.mxu0 0.0
        %1443 = vmatmul.mubr.f32.gmra.mrb[0].mxu0 %v1376
        %v1444 = vpop.f32.mrb[0].mxu0
        %v1445 = vadd.f32 0.0, %v1444
        %v1446 = vpop.f32.mrb[0].mxu0
        %1447 = vdwg.mxu0
        %v1450 = vrot.slane %v1445, 7
        %v1451 = vsel %vm1207, %v1450, %v1373
        %1453 = vst.msk [vmem:[#allocation8] sm:$0x3] %vm854, %v1451
        %1454 = vst.msk [vmem:[%s564] sm:$0x3] %vm854, %v1451
        %v1455 = vld [vmem:[%s11] sm:$0xff]
        %v1456 = vld [vmem:[%s11 + $0x8] sm:$0xff]
        %v1457 = vld [vmem:[%s11 + $0x10] sm:$0xff]
        %v1458 = vld [vmem:[%s11 + $0x18] sm:$0xff]
        %v1459 = vld [vmem:[%s12] sm:$0xff]
        %v1460 = vld [vmem:[%s12 + $0x8] sm:$0xff]
        %v1461 = vld [vmem:[%s12 + $0x10] sm:$0xff]
        %v1462 = vld [vmem:[%s12 + $0x18] sm:$0xff]
        %v1463 = vsel %vm586, %v1451, 0
        %1465 = vmatprep.subr.mxu0 0.0
        %1466 = vmatpush1.msra.mxu0 %v1459
        %1467 = vmatprep.subr.mxu0 0.0
        %1468 = vmatpush1.msra.mxu0 %v1460
        %1469 = vmatprep.subr.mxu0 0.0
        %1470 = vmatpush1.msra.mxu0 %v1461
        %1471 = vmatprep.subr.mxu0 0.0
        %1472 = vmatpush1.msra.mxu0 %v1462
        %1473 = vmatprep.subr.mxu0 0.0
        %1474 = vmatpush1.msra.mxu0 0.0
        %1475 = vmatprep.subr.mxu0 0.0
        %1476 = vmatpush1.msra.mxu0 0.0
        %1477 = vmatprep.subr.mxu0 0.0
        %1478 = vmatpush1.msra.mxu0 0.0
        %1479 = vmatprep.subr.mxu0 0.0
        %1480 = vmatpush1.msra.mxu0 0.0
        %1481 = vmatprep.subr.mxu0 0.0
        %1482 = vmatpush1.msra.mxu0 0.0
        %1483 = vmatprep.subr.mxu0 0.0
        %1484 = vmatpush1.msra.mxu0 0.0
        %1485 = vmatprep.subr.mxu0 0.0
        %1486 = vmatpush1.msra.mxu0 0.0
        %1487 = vmatprep.subr.mxu0 0.0
        %1488 = vmatpush1.msra.mxu0 0.0
        %1489 = vmatprep.subr.mxu0 0.0
        %1490 = vmatpush1.msra.mxu0 0.0
        %1491 = vmatprep.subr.mxu0 0.0
        %1492 = vmatpush1.msra.mxu0 0.0
        %1493 = vmatprep.subr.mxu0 0.0
        %1494 = vmatpush1.msra.mxu0 0.0
        %1495 = vmatprep.subr.mxu0 0.0
        %1496 = vmatpush1.msra.mxu0 0.0
        %1497 = vmatprep.subr.mxu0 0.0
        %1498 = vmatpush1.msra.mxu0 0.0
        %1499 = vmatprep.subr.mxu0 0.0
        %1500 = vmatpush1.msra.mxu0 0.0
        %1501 = vmatprep.subr.mxu0 0.0
        %1502 = vmatpush1.msra.mxu0 0.0
        %1503 = vmatprep.subr.mxu0 0.0
        %1504 = vmatpush1.msra.mxu0 0.0
        %1505 = vmatprep.subr.mxu0 0.0
        %1506 = vmatpush1.msra.mxu0 0.0
        %1507 = vmatprep.subr.mxu0 0.0
        %1508 = vmatpush1.msra.mxu0 0.0
        %1509 = vmatprep.subr.mxu0 0.0
        %1510 = vmatpush1.msra.mxu0 0.0
        %1511 = vmatprep.subr.mxu0 0.0
        %1512 = vmatpush1.msra.mxu0 0.0
        %1513 = vmatprep.subr.mxu0 0.0
        %1514 = vmatpush1.msra.mxu0 0.0
        %1515 = vmatprep.subr.mxu0 0.0
        %1516 = vmatpush1.msra.mxu0 0.0
        %1517 = vmatprep.subr.mxu0 0.0
        %1518 = vmatpush1.msra.mxu0 0.0
        %1519 = vmatprep.subr.mxu0 0.0
        %1520 = vmatpush1.msra.mxu0 0.0
        %1521 = vmatprep.subr.mxu0 0.0
        %1522 = vmatpush1.msra.mxu0 0.0
        %1523 = vmatprep.subr.mxu0 0.0
        %1524 = vmatpush1.msra.mxu0 0.0
        %1525 = vmatprep.subr.mxu0 0.0
        %1526 = vmatpush1.msra.mxu0 0.0
        %1527 = vmatprep.subr.mxu0 0.0
        %1528 = vmatpush1.msra.mxu0 0.0
        %1529 = vmatprep.mubr.f32.mxu0 0.0
        %1530 = vmatmul.mubr.f32.gmra.mrb[0].mxu0 %v1463
        %v1531 = vpop.f32.mrb[0].mxu0
        %v1532 = vadd.f32 0.0, %v1531
        %v1533 = vpop.f32.mrb[0].mxu0
        %1534 = vdwg.mxu0
        %1535 = vmatprep.subr.mxu0 0.0
        %1536 = vmatpush1.msra.mxu0 %v1455
        %1537 = vmatprep.subr.mxu0 0.0
        %1538 = vmatpush1.msra.mxu0 %v1456
        %1539 = vmatprep.subr.mxu0 0.0
        %1540 = vmatpush1.msra.mxu0 %v1457
        %1541 = vmatprep.subr.mxu0 0.0
        %1542 = vmatpush1.msra.mxu0 %v1458
        %1543 = vmatprep.subr.mxu0 0.0
        %1544 = vmatpush1.msra.mxu0 0.0
        %1545 = vmatprep.subr.mxu0 0.0
        %1546 = vmatpush1.msra.mxu0 0.0
        %1547 = vmatprep.subr.mxu0 0.0
        %1548 = vmatpush1.msra.mxu0 0.0
        %1549 = vmatprep.subr.mxu0 0.0
        %1550 = vmatpush1.msra.mxu0 0.0
        %1551 = vmatprep.subr.mxu0 0.0
        %1552 = vmatpush1.msra.mxu0 0.0
        %1553 = vmatprep.subr.mxu0 0.0
        %1554 = vmatpush1.msra.mxu0 0.0
        %1555 = vmatprep.subr.mxu0 0.0
        %1556 = vmatpush1.msra.mxu0 0.0
        %1557 = vmatprep.subr.mxu0 0.0
        %1558 = vmatpush1.msra.mxu0 0.0
        %1559 = vmatprep.subr.mxu0 0.0
        %1560 = vmatpush1.msra.mxu0 0.0
        %1561 = vmatprep.subr.mxu0 0.0
        %1562 = vmatpush1.msra.mxu0 0.0
        %1563 = vmatprep.subr.mxu0 0.0
        %1564 = vmatpush1.msra.mxu0 0.0
        %1565 = vmatprep.subr.mxu0 0.0
        %1566 = vmatpush1.msra.mxu0 0.0
        %1567 = vmatprep.subr.mxu0 0.0
        %1568 = vmatpush1.msra.mxu0 0.0
        %1569 = vmatprep.subr.mxu0 0.0
        %1570 = vmatpush1.msra.mxu0 0.0
        %1571 = vmatprep.subr.mxu0 0.0
        %1572 = vmatpush1.msra.mxu0 0.0
        %1573 = vmatprep.subr.mxu0 0.0
        %1574 = vmatpush1.msra.mxu0 0.0
        %1575 = vmatprep.subr.mxu0 0.0
        %1576 = vmatpush1.msra.mxu0 0.0
        %1577 = vmatprep.subr.mxu0 0.0
        %1578 = vmatpush1.msra.mxu0 0.0
        %1579 = vmatprep.subr.mxu0 0.0
        %1580 = vmatpush1.msra.mxu0 0.0
        %1581 = vmatprep.subr.mxu0 0.0
        %1582 = vmatpush1.msra.mxu0 0.0
        %1583 = vmatprep.subr.mxu0 0.0
        %1584 = vmatpush1.msra.mxu0 0.0
        %1585 = vmatprep.subr.mxu0 0.0
        %1586 = vmatpush1.msra.mxu0 0.0
        %1587 = vmatprep.subr.mxu0 0.0
        %1588 = vmatpush1.msra.mxu0 0.0
        %1589 = vmatprep.subr.mxu0 0.0
        %1590 = vmatpush1.msra.mxu0 0.0
        %1591 = vmatprep.subr.mxu0 0.0
        %1592 = vmatpush1.msra.mxu0 0.0
        %1593 = vmatprep.subr.mxu0 0.0
        %1594 = vmatpush1.msra.mxu0 0.0
        %1595 = vmatprep.subr.mxu0 0.0
        %1596 = vmatpush1.msra.mxu0 0.0
        %1597 = vmatprep.subr.mxu0 0.0
        %1598 = vmatpush1.msra.mxu0 0.0
        %1599 = vmatprep.mubr.f32.mxu0 0.0
        %1600 = vmatmul.mubr.f32.gmra.mrb[0].mxu0 %v1041
        %v1601 = vpop.f32.mrb[0].mxu0
        %v1602 = vadd.f32 %v1532, %v1601
        %v1603 = vpop.f32.mrb[0].mxu0
        %1604 = vdwg.mxu0
        %v1605 = vld [vmem:[#allocation4] sm:$0x3]
        %v1606 = vld [vmem:[%s13] sm:$0xff]
        %v1607 = vld [vmem:[%s13 + $0x8] sm:$0xff]
        %v1608 = vld [vmem:[%s13 + $0x10] sm:$0xff]
        %v1609 = vld [vmem:[%s13 + $0x18] sm:$0xff]
        %v1611 = vsel %vm586, %v1605, 0
        %1613 = vmatprep.subr.mxu0 0.0
        %1614 = vmatpush1.msra.mxu0 %v1606
        %1615 = vmatprep.subr.mxu0 0.0
        %1616 = vmatpush1.msra.mxu0 %v1607
        %1617 = vmatprep.subr.mxu0 0.0
        %1618 = vmatpush1.msra.mxu0 %v1608
        %1619 = vmatprep.subr.mxu0 0.0
        %1620 = vmatpush1.msra.mxu0 %v1609
        %1621 = vmatprep.subr.mxu0 0.0
        %1622 = vmatpush1.msra.mxu0 0.0
        %1623 = vmatprep.subr.mxu0 0.0
        %1624 = vmatpush1.msra.mxu0 0.0
        %1625 = vmatprep.subr.mxu0 0.0
        %1626 = vmatpush1.msra.mxu0 0.0
        %1627 = vmatprep.subr.mxu0 0.0
        %1628 = vmatpush1.msra.mxu0 0.0
        %1629 = vmatprep.subr.mxu0 0.0
        %1630 = vmatpush1.msra.mxu0 0.0
        %1631 = vmatprep.subr.mxu0 0.0
        %1632 = vmatpush1.msra.mxu0 0.0
        %1633 = vmatprep.subr.mxu0 0.0
        %1634 = vmatpush1.msra.mxu0 0.0
        %1635 = vmatprep.subr.mxu0 0.0
        %1636 = vmatpush1.msra.mxu0 0.0
        %1637 = vmatprep.subr.mxu0 0.0
        %1638 = vmatpush1.msra.mxu0 0.0
        %1639 = vmatprep.subr.mxu0 0.0
        %1640 = vmatpush1.msra.mxu0 0.0
        %1641 = vmatprep.subr.mxu0 0.0
        %1642 = vmatpush1.msra.mxu0 0.0
        %1643 = vmatprep.subr.mxu0 0.0
        %1644 = vmatpush1.msra.mxu0 0.0
        %1645 = vmatprep.subr.mxu0 0.0
        %1646 = vmatpush1.msra.mxu0 0.0
        %1647 = vmatprep.subr.mxu0 0.0
        %1648 = vmatpush1.msra.mxu0 0.0
        %1649 = vmatprep.subr.mxu0 0.0
        %1650 = vmatpush1.msra.mxu0 0.0
        %1651 = vmatprep.subr.mxu0 0.0
        %1652 = vmatpush1.msra.mxu0 0.0
        %1653 = vmatprep.subr.mxu0 0.0
        %1654 = vmatpush1.msra.mxu0 0.0
        %1655 = vmatprep.subr.mxu0 0.0
        %1656 = vmatpush1.msra.mxu0 0.0
        %1657 = vmatprep.subr.mxu0 0.0
        %1658 = vmatpush1.msra.mxu0 0.0
        %1659 = vmatprep.subr.mxu0 0.0
        %1660 = vmatpush1.msra.mxu0 0.0
        %1661 = vmatprep.subr.mxu0 0.0
        %1662 = vmatpush1.msra.mxu0 0.0
        %1663 = vmatprep.subr.mxu0 0.0
        %1664 = vmatpush1.msra.mxu0 0.0
        %1665 = vmatprep.subr.mxu0 0.0
        %1666 = vmatpush1.msra.mxu0 0.0
        %1667 = vmatprep.subr.mxu0 0.0
        %1668 = vmatpush1.msra.mxu0 0.0
        %1669 = vmatprep.subr.mxu0 0.0
        %1670 = vmatpush1.msra.mxu0 0.0
        %1671 = vmatprep.subr.mxu0 0.0
        %1672 = vmatpush1.msra.mxu0 0.0
        %1673 = vmatprep.subr.mxu0 0.0
        %1674 = vmatpush1.msra.mxu0 0.0
        %1675 = vmatprep.subr.mxu0 0.0
        %1676 = vmatpush1.msra.mxu0 0.0
        %1677 = vmatprep.mubr.f32.mxu0 0.0
        %1678 = vmatmul.mubr.f32.gmra.mrb[0].mxu0 %v1611
        %v1679 = vpop.f32.mrb[0].mxu0
        %v1680 = vadd.f32 0.0, %v1679
        %v1681 = vpop.f32.mrb[0].mxu0
        %1682 = vdwg.mxu0
        %v1683 = vadd.f32 %v1602, %v1680
        %v1684 = vld [vmem:[%s14] sm:$0x1]
        %v1686 = vlaneseq
        %v1687 = vshrl.u32 %v1686, 7
        %v1688 = vsub.s32 0, %v1687
        %v1689 = vrot.slane %v1684, %v1688
        %v1691 = vadd.f32 %v1683, %v1689
        %v1692 = vld [vmem:[#allocation5] sm:$0x3]
        %v1693 = vxor.u32 %v1691, 2147483648
        %v1694 = vmul.f32 %v1693, 1.442695
        %v1695 = vpow.pop %v1694
        %v1696 = vadd.f32 %v1695, 1.0
        %v1697 = vrcp.pop %v1696
        %v1698 = vmul.f32 1.0, %v1697
        %v1699 = vtanh.pop %v1691
        %1701 = vrot.lane.b32.xlu0 %v1692, 32
        %v1702 = vpop.permute.xlu0 %1701
        %v1704 = vmul.f32 %v1698, %v1702
        %1706 = vrot.lane.b32.xlu0 %v1699, 64
        %v1707 = vpop.permute.xlu0 %1706
        %v1709 = vmul.f32 %v1698, %v1707
        %1711 = vrot.lane.b32.xlu0 %v1709, 32
        %v1712 = vpop.permute.xlu0 %1711
        %v1714 = vadd.f32 %v1704, %v1712
        %v1715 = vtanh.pop %v1714
        %1717 = vrot.lane.b32.xlu0 %v1715, 64
        %v1718 = vpop.permute.xlu0 %1717
        %v1720 = vmul.f32 %v1698, %v1718
        %1722 = vrot.lane.b32.xlu0 %v1720, 32
        %v1723 = vpop.permute.xlu0 %1722
        %1725 = vst.msk [vmem:[#allocation4] sm:$0x3] %vm854, %v1723
        %1727 = vrot.lane.b32.xlu0 %v1714, 96
        %v1728 = vpop.permute.xlu0 %1727
        %1730 = vst.msk [vmem:[#allocation5] sm:$0x3] %vm854, %v1728
        %1731 = vst.msk [vmem:[%s560] sm:$0x3] %vm854, %v1723
        %p1732 = scmp.lt.s32.totalorder %s32, 5
        %s1733 = scalar_select %p1732, %s32, 5
        %s1734 = smul.addr %s1733, 2
        %s1735 = scalar_lea.vmem %s15, %s1734
        %p1736 = scmp.lt.s32.totalorder %s32, 5
        %s1737 = scalar_select %p1736, %s32, 5
        %s1738 = smul.addr %s1737, 2
        %s1739 = scalar_lea.vmem %s16, %s1738
        %s1740 = sand.u32 %s412, 1
        %s1741 = scalar_lea.sflag [#allocation10], %s1740
        %s1742 = sand.u32 %s412, 1
        %s1743 = smul.addr %s1742, 2
        %s1744 = scalar_lea.vmem [#allocation9], %s1743
        // Predicated region
        $region85: #{tacotron2_forward.11} parent=79 // pred_check
          %p1745 = pneg %p370
        $region86: #{tacotron2_forward.11} parent=79 // pred_check_branch
          %1747 = sbr.rel (%p1745) target = $region88
        $region87: #{tacotron2_forward.11} parent=79 // pred_region
          _
        $region88: #{tacotron2_forward.11} parent=79 // pred_fallthru
          _
        // Predicated region
        $region89: #{tacotron2_forward.11} parent=79 // pred_check
          %p1748 = pneg %p396
        $region90: #{tacotron2_forward.11} parent=79 // pred_check_branch
          %1750 = sbr.rel (%p1748) target = $region92
        $region91: #{tacotron2_forward.11} parent=79 // pred_region
          _
        $region92: #{tacotron2_forward.11} parent=79 // pred_fallthru
          _
        // Predicated region
        $region93: #{tacotron2_forward.11} parent=79 // pred_check
          %p1751 = pneg %p422
        $region94: #{tacotron2_forward.11} parent=79 // pred_check_branch
          %1753 = sbr.rel (%p1751) target = $region96
        $region95: #{tacotron2_forward.11} parent=79 // pred_region
          %s1755 = ssub.s32 32, 32
          %1756 = vsyncadd %s1741, %s1755
          %s1757 = smul.addr %s32, 32
          %s1758 = scalar_lea.hbm %s17, %s1757
          %s1760 = sshll.u32 %s1744, 4
          %s1761 = int_to_ptr.vmem [resolvable:$true] %s1760
          %1763 = dma.vmem_to_hbm [thread:$0]  %s1761, 32, %s1758, %s1741
        $region96: #{tacotron2_forward.11} parent=79 // pred_fallthru
          _
      $region80: #{tacotron2_forward.11} parent=5 // pred_fallthru
        _
      %p1764 = scmp.le.s32.totalorder 2, %s27
      // Predicated region
      $region97: #{tacotron2_forward.11} parent=5 // pred_check
        %p1765 = pneg %p1764
      $region98: #{tacotron2_forward.11} parent=5 // pred_check_branch
        %1767 = sbr.rel (%p1765) target = $region100
      $region99: #{tacotron2_forward.11} parent=5 // pred_region
        %s1768 = ssub.s32 %s27, 2
        // Predicated region
        $region101: #{tacotron2_forward.11} parent=99 // pred_check
          %p1769 = pneg %p376
        $region102: #{tacotron2_forward.11} parent=99 // pred_check_branch
          %1771 = sbr.rel (%p1769) target = $region104
        $region103: #{tacotron2_forward.11} parent=99 // pred_region
          %p1772 = scmp.lt.s32.totalorder %s33, 5
          %s1773 = scalar_select %p1772, %s33, 5
          %s1774 = smul.addr %s1773, 2
          %s1775 = scalar_lea.vmem %s15, %s1774
        $region104: #{tacotron2_forward.11} parent=99 // pred_fallthru
          _
        // Predicated region
        $region105: #{tacotron2_forward.11} parent=99 // pred_check
          %p1776 = pneg %p402
        $region106: #{tacotron2_forward.11} parent=99 // pred_check_branch
          %1778 = sbr.rel (%p1776) target = $region108
        $region107: #{tacotron2_forward.11} parent=99 // pred_region
          %p1779 = scmp.lt.s32.totalorder %s33, 5
          %s1780 = scalar_select %p1779, %s33, 5
          %s1781 = smul.addr %s1780, 2
          %s1782 = scalar_lea.vmem %s16, %s1781
        $region108: #{tacotron2_forward.11} parent=99 // pred_fallthru
          _
        // Predicated region
        $region109: #{tacotron2_forward.11} parent=99 // pred_check
          %p1783 = pneg %p428
        $region110: #{tacotron2_forward.11} parent=99 // pred_check_branch
          %1785 = sbr.rel (%p1783) target = $region112
        $region111: #{tacotron2_forward.11} parent=99 // pred_region
          %s1786 = sand.u32 %s413, 1
          %s1787 = scalar_lea.sflag [#allocation10], %s1786
          %s1788 = sand.u32 %s413, 1
          %s1789 = smul.addr %s1788, 2
          %s1790 = scalar_lea.vmem [#allocation9], %s1789
          %1791 = dma.done %s1787, 32
        $region112: #{tacotron2_forward.11} parent=99 // pred_fallthru
          _
      $region100: #{tacotron2_forward.11} parent=5 // pred_fallthru
        _
    $region6: #{tacotron2_forward.11} parent=1 // loop_footer
      %s31 = sadd.s32 1, %s27
    $region7: #{tacotron2_forward.11} parent=1 // loop_footer_branch
      %26 = sbr.rel target = $region3
    $region8: #{tacotron2_forward.11} parent=1 // loop_exit
      _
    %1792 = vsyncpa [#allocation10], 1
    %s1793 = scalar_lea.sflag [#allocation10], 1
    %1794 = vsyncpa %s1793, 1

// kernel: tacotron2_forward.13
$region0: #{tacotron2_forward.13}
  #allocation0 [shape = 'u32[]', space=smem, size = 0x4, offset = 0x4, fixed_abs, tag = 'smem constant byte address 0x4 - core index']
  #allocation1 [shape = 'u32[144,128]{1,0:T(1,128)}', space=vmem, size = 0x12000, scoped, tag = 'internal scratch']
  %s0 = inlined_call_operand.vmem [shape: f32[2,6,8], index: 0, kind: input, shape index: {}]
  %s1 = inlined_call_operand.vmem [shape: f32[5,8,32], index: 1, kind: input, shape index: {}]
  %s2 = inlined_call_operand.vmem [shape: f32[1,32], index: 2, kind: input, shape index: {}]
  %s3 = inlined_call_operand.vmem [shape: f32[1,32], index: 3, kind: input, shape index: {}]
  %s4 = inlined_call_operand.vmem [shape: f32[1,32], index: 4, kind: input, shape index: {}]
  %s5 = inlined_call_operand.vmem [shape: f32[5,32,32], index: 5, kind: input, shape index: {}]
  %s6 = inlined_call_operand.vmem [shape: f32[1,32], index: 6, kind: input, shape index: {}]
  %s7 = inlined_call_operand.vmem [shape: f32[1,32], index: 7, kind: input, shape index: {}]
  %s8 = inlined_call_operand.vmem [shape: f32[1,32], index: 8, kind: input, shape index: {}]
  %s9 = inlined_call_operand.vmem [shape: f32[5,32,32], index: 9, kind: input, shape index: {}]
  %s10 = inlined_call_operand.vmem [shape: f32[1,32], index: 10, kind: input, shape index: {}]
  %s11 = inlined_call_operand.vmem [shape: f32[1,32], index: 11, kind: input, shape index: {}]
  %s12 = inlined_call_operand.vmem [shape: f32[1,32], index: 12, kind: input, shape index: {}]
  %s13 = inlined_call_operand.vmem [shape: f32[5,32,32], index: 13, kind: input, shape index: {}]
  %s14 = inlined_call_operand.vmem [shape: f32[1,32], index: 14, kind: input, shape index: {}]
  %s15 = inlined_call_operand.vmem [shape: f32[1,32], index: 15, kind: input, shape index: {}]
  %s16 = inlined_call_operand.vmem [shape: f32[1,32], index: 16, kind: input, shape index: {}]
  %s17 = inlined_call_operand.vmem [shape: f32[5,32,8], index: 17, kind: input, shape index: {}]
  %s18 = inlined_call_operand.vmem [shape: f32[1,8], index: 18, kind: input, shape index: {}]
  %s19 = inlined_call_operand.vmem [shape: f32[1,8], index: 19, kind: input, shape index: {}]
  %s20 = inlined_call_operand.vmem [shape: f32[1,8], index: 20, kind: input, shape index: {}]
  %s21 = inlined_call_operand.vmem [shape: f32[2,6,8], index: 21, kind: output, shape index: {}]
  %s22 = sld [smem:[#allocation0]]
  $region94: #{tacotron2_forward.13} parent=0
    _
  %s24 = ssub.s32 1, %s22
  %s25 = scalar_select 0, %s24, %s22
  // Predicated region
  $region2: #{tacotron2_forward.13} parent=0 // pred_check
    _
  $region3: #{tacotron2_forward.13} parent=0 // pred_check_branch
    %27 = sbr.rel (0) target = $region5
  $region4: #{tacotron2_forward.13} parent=0 // pred_region
    _
  $region5: #{tacotron2_forward.13} parent=0 // pred_fallthru
    _
  // Predicated region
  $region6: #{tacotron2_forward.13} parent=0 // pred_check
    _
  $region7: #{tacotron2_forward.13} parent=0 // pred_check_branch
    %29 = sbr.rel (0) target = $region9
  $region8: #{tacotron2_forward.13} parent=0 // pred_region
    _
  $region9: #{tacotron2_forward.13} parent=0 // pred_fallthru
    _
  // Predicated region
  $region10: #{tacotron2_forward.13} parent=0 // pred_check
    _
  $region11: #{tacotron2_forward.13} parent=0 // pred_check_branch
    %31 = sbr.rel (0) target = $region13
  $region12: #{tacotron2_forward.13} parent=0 // pred_region
    _
  $region13: #{tacotron2_forward.13} parent=0 // pred_fallthru
    _
  // Predicated region
  $region14: #{tacotron2_forward.13} parent=0 // pred_check
    _
  $region15: #{tacotron2_forward.13} parent=0 // pred_check_branch
    %33 = sbr.rel (0) target = $region17
  $region16: #{tacotron2_forward.13} parent=0 // pred_region
    _
  $region17: #{tacotron2_forward.13} parent=0 // pred_fallthru
    _
  // Predicated region
  $region18: #{tacotron2_forward.13} parent=0 // pred_check
    _
  $region19: #{tacotron2_forward.13} parent=0 // pred_check_branch
    %35 = sbr.rel (0) target = $region21
  $region20: #{tacotron2_forward.13} parent=0 // pred_region
    _
  $region21: #{tacotron2_forward.13} parent=0 // pred_fallthru
    _
  // Predicated region
  $region22: #{tacotron2_forward.13} parent=0 // pred_check
    _
  $region23: #{tacotron2_forward.13} parent=0 // pred_check_branch
    %37 = sbr.rel (0) target = $region25
  $region24: #{tacotron2_forward.13} parent=0 // pred_region
    _
  $region25: #{tacotron2_forward.13} parent=0 // pred_fallthru
    _
  // Predicated region
  $region26: #{tacotron2_forward.13} parent=0 // pred_check
    _
  $region27: #{tacotron2_forward.13} parent=0 // pred_check_branch
    %39 = sbr.rel (0) target = $region29
  $region28: #{tacotron2_forward.13} parent=0 // pred_region
    _
  $region29: #{tacotron2_forward.13} parent=0 // pred_fallthru
    _
  // Predicated region
  $region30: #{tacotron2_forward.13} parent=0 // pred_check
    _
  $region31: #{tacotron2_forward.13} parent=0 // pred_check_branch
    %41 = sbr.rel (0) target = $region33
  $region32: #{tacotron2_forward.13} parent=0 // pred_region
    _
  $region33: #{tacotron2_forward.13} parent=0 // pred_fallthru
    _
  // Predicated region
  $region34: #{tacotron2_forward.13} parent=0 // pred_check
    _
  $region35: #{tacotron2_forward.13} parent=0 // pred_check_branch
    %43 = sbr.rel (0) target = $region37
  $region36: #{tacotron2_forward.13} parent=0 // pred_region
    _
  $region37: #{tacotron2_forward.13} parent=0 // pred_fallthru
    _
  // Predicated region
  $region38: #{tacotron2_forward.13} parent=0 // pred_check
    _
  $region39: #{tacotron2_forward.13} parent=0 // pred_check_branch
    %45 = sbr.rel (0) target = $region41
  $region40: #{tacotron2_forward.13} parent=0 // pred_region
    _
  $region41: #{tacotron2_forward.13} parent=0 // pred_fallthru
    _
  // Predicated region
  $region42: #{tacotron2_forward.13} parent=0 // pred_check
    _
  $region43: #{tacotron2_forward.13} parent=0 // pred_check_branch
    %47 = sbr.rel (0) target = $region45
  $region44: #{tacotron2_forward.13} parent=0 // pred_region
    _
  $region45: #{tacotron2_forward.13} parent=0 // pred_fallthru
    _
  // Predicated region
  $region46: #{tacotron2_forward.13} parent=0 // pred_check
    _
  $region47: #{tacotron2_forward.13} parent=0 // pred_check_branch
    %49 = sbr.rel (0) target = $region49
  $region48: #{tacotron2_forward.13} parent=0 // pred_region
    _
  $region49: #{tacotron2_forward.13} parent=0 // pred_fallthru
    _
  // Predicated region
  $region50: #{tacotron2_forward.13} parent=0 // pred_check
    _
  $region51: #{tacotron2_forward.13} parent=0 // pred_check_branch
    %51 = sbr.rel (0) target = $region53
  $region52: #{tacotron2_forward.13} parent=0 // pred_region
    _
  $region53: #{tacotron2_forward.13} parent=0 // pred_fallthru
    _
  // Predicated region
  $region54: #{tacotron2_forward.13} parent=0 // pred_check
    _
  $region55: #{tacotron2_forward.13} parent=0 // pred_check_branch
    %53 = sbr.rel (0) target = $region57
  $region56: #{tacotron2_forward.13} parent=0 // pred_region
    _
  $region57: #{tacotron2_forward.13} parent=0 // pred_fallthru
    _
  // Predicated region
  $region58: #{tacotron2_forward.13} parent=0 // pred_check
    _
  $region59: #{tacotron2_forward.13} parent=0 // pred_check_branch
    %55 = sbr.rel (0) target = $region61
  $region60: #{tacotron2_forward.13} parent=0 // pred_region
    _
  $region61: #{tacotron2_forward.13} parent=0 // pred_fallthru
    _
  // Predicated region
  $region62: #{tacotron2_forward.13} parent=0 // pred_check
    _
  $region63: #{tacotron2_forward.13} parent=0 // pred_check_branch
    %57 = sbr.rel (0) target = $region65
  $region64: #{tacotron2_forward.13} parent=0 // pred_region
    _
  $region65: #{tacotron2_forward.13} parent=0 // pred_fallthru
    _
  // Predicated region
  $region66: #{tacotron2_forward.13} parent=0 // pred_check
    _
  $region67: #{tacotron2_forward.13} parent=0 // pred_check_branch
    %59 = sbr.rel (0) target = $region69
  $region68: #{tacotron2_forward.13} parent=0 // pred_region
    _
  $region69: #{tacotron2_forward.13} parent=0 // pred_fallthru
    _
  // Predicated region
  $region70: #{tacotron2_forward.13} parent=0 // pred_check
    _
  $region71: #{tacotron2_forward.13} parent=0 // pred_check_branch
    %61 = sbr.rel (0) target = $region73
  $region72: #{tacotron2_forward.13} parent=0 // pred_region
    _
  $region73: #{tacotron2_forward.13} parent=0 // pred_fallthru
    _
  // Predicated region
  $region74: #{tacotron2_forward.13} parent=0 // pred_check
    _
  $region75: #{tacotron2_forward.13} parent=0 // pred_check_branch
    %63 = sbr.rel (0) target = $region77
  $region76: #{tacotron2_forward.13} parent=0 // pred_region
    _
  $region77: #{tacotron2_forward.13} parent=0 // pred_fallthru
    _
  // Predicated region
  $region78: #{tacotron2_forward.13} parent=0 // pred_check
    _
  $region79: #{tacotron2_forward.13} parent=0 // pred_check_branch
    %65 = sbr.rel (0) target = $region81
  $region80: #{tacotron2_forward.13} parent=0 // pred_region
    _
  $region81: #{tacotron2_forward.13} parent=0 // pred_fallthru
    _
  // Predicated region
  $region82: #{tacotron2_forward.13} parent=0 // pred_check
    _
  $region83: #{tacotron2_forward.13} parent=0 // pred_check_branch
    %67 = sbr.rel (0) target = $region85
  $region84: #{tacotron2_forward.13} parent=0 // pred_region
    _
  $region85: #{tacotron2_forward.13} parent=0 // pred_fallthru
    _
  %v68 = vld [vmem:[%s0] sm:$0x3f]
  %v69 = vld [vmem:[%s0 + $0x8] sm:$0x3f]
  %v72 = vrot.slane %v68, 6
  %v73 = vrot.slane %v69, 6
  %vm76 = vcmask 1041408
  %v77 = vsel %vm76, 0.0, %v72
  %v78 = vsel %vm76, 0.0, %v73
  %v81 = vcombine.high %v77, %v77
  %v83 = vunpack.c.l.s4 1983009808
  %v84 = vunpack.c.0.s8 %v83
  %v85 = vlaneseq
  %v86 = vshrl.u32 %v85, 7
  %v87 = vsub.s32 %v84, %v86
  %v88 = vrot.slane %v77, %v87
  %v90 = vunpack.c.l.s4 1983009808
  %v91 = vunpack.c.0.s8 %v90
  %v92 = vlaneseq
  %v93 = vshrl.u32 %v92, 7
  %v94 = vsub.s32 %v91, %v93
  %v95 = vrot.slane %v81, %v94
  %v96 = vcombine.high %v88, %v88
  %v97 = vcombine.high %v78, %v78
  %v99 = vunpack.c.l.s4 1983009808
  %v100 = vunpack.c.0.s8 %v99
  %v101 = vlaneseq
  %v102 = vshrl.u32 %v101, 7
  %v103 = vsub.s32 %v100, %v102
  %v104 = vrot.slane %v78, %v103
  %v106 = vunpack.c.l.s4 1983009808
  %v107 = vunpack.c.0.s8 %v106
  %v108 = vlaneseq
  %v109 = vshrl.u32 %v108, 7
  %v110 = vsub.s32 %v107, %v109
  %v111 = vrot.slane %v97, %v110
  %v112 = vcombine.high %v104, %v104
  %v113 = vld [vmem:[%s1] sm:$0xff]
  %v114 = vcombine.high %v95, %v95
  %v115 = vcombine.high %v111, %v111
  %vm116 = vcmask 1040384
  %vm117 = vcmask 1042434
  %vm118 = vmor %vm116, %vm117
  %vm119 = vcmask 1044484
  %vm120 = vmor %vm118, %vm119
  %vm121 = vcmask 1046534
  %vm122 = vmor %vm120, %vm121
  %v123 = vrot.slane %v88, 7
  %v124 = vrot.slane %v123, 2
  %v125 = vrot.slane %v96, 7
  %v126 = vsel %vm122, %v124, %v125
  %v127 = vrot.slane %v125, 2
  %v128 = vrot.slane %v95, 7
  %v129 = vsel %vm122, %v127, %v128
  %v130 = vrot.slane %v128, 2
  %v131 = vrot.slane %v114, 7
  %v132 = vsel %vm122, %v130, %v131
  %v133 = vrot.slane %v104, 7
  %v134 = vrot.slane %v133, 2
  %v135 = vrot.slane %v112, 7
  %v136 = vsel %vm122, %v134, %v135
  %v137 = vrot.slane %v135, 2
  %v138 = vrot.slane %v111, 7
  %v139 = vsel %vm122, %v137, %v138
  %v140 = vrot.slane %v138, 2
  %v141 = vrot.slane %v115, 7
  %v142 = vsel %vm122, %v140, %v141
  %s143 = scalar_lea.vmem %s1, 8
  %v144 = vld [vmem:[%s143] sm:$0xff]
  %v145 = vcombine.low %v126, %v129
  %v146 = vcombine.low %v132, %v136
  %v148 = vunpack.c.l.s4 1983009808
  %v149 = vunpack.c.0.s8 %v148
  %v150 = vlaneseq
  %v151 = vshrl.u32 %v150, 7
  %v152 = vsub.s32 %v149, %v151
  %v153 = vrot.slane %v145, %v152
  %v155 = vunpack.c.l.s4 1983009808
  %v156 = vunpack.c.0.s8 %v155
  %v157 = vlaneseq
  %v158 = vshrl.u32 %v157, 7
  %v159 = vsub.s32 %v156, %v158
  %v160 = vrot.slane %v146, %v159
  %v161 = vcombine.low %v153, %v160
  %v162 = vcombine.low %v139, %v142
  %v164 = vunpack.c.l.s4 1983009808
  %v165 = vunpack.c.0.s8 %v164
  %v166 = vlaneseq
  %v167 = vshrl.u32 %v166, 7
  %v168 = vsub.s32 %v165, %v167
  %v169 = vrot.slane %v162, %v168
  %vm170 = vcmask 64512
  %v171 = vsel %vm170, %v161, 0
  %v173 = vsel %vm170, %v169, 0
  %175 = vmatprep.subr.mxu0 0.0
  %176 = vmatpush1.msra.mxu0 %v144
  %177 = vmatprep.subr.mxu0 0.0
  %178 = vmatpush1.msra.mxu0 0.0
  %179 = vmatprep.subr.mxu0 0.0
  %180 = vmatpush1.msra.mxu0 0.0
  %181 = vmatprep.subr.mxu0 0.0
  %182 = vmatpush1.msra.mxu0 0.0
  %183 = vmatprep.subr.mxu0 0.0
  %184 = vmatpush1.msra.mxu0 0.0
  %185 = vmatprep.subr.mxu0 0.0
  %186 = vmatpush1.msra.mxu0 0.0
  %187 = vmatprep.subr.mxu0 0.0
  %188 = vmatpush1.msra.mxu0 0.0
  %189 = vmatprep.subr.mxu0 0.0
  %190 = vmatpush1.msra.mxu0 0.0
  %191 = vmatprep.subr.mxu0 0.0
  %192 = vmatpush1.msra.mxu0 0.0
  %193 = vmatprep.subr.mxu0 0.0
  %194 = vmatpush1.msra.mxu0 0.0
  %195 = vmatprep.subr.mxu0 0.0
  %196 = vmatpush1.msra.mxu0 0.0
  %197 = vmatprep.subr.mxu0 0.0
  %198 = vmatpush1.msra.mxu0 0.0
  %199 = vmatprep.subr.mxu0 0.0
  %200 = vmatpush1.msra.mxu0 0.0
  %201 = vmatprep.subr.mxu0 0.0
  %202 = vmatpush1.msra.mxu0 0.0
  %203 = vmatprep.subr.mxu0 0.0
  %204 = vmatpush1.msra.mxu0 0.0
  %205 = vmatprep.subr.mxu0 0.0
  %206 = vmatpush1.msra.mxu0 0.0
  %207 = vmatprep.subr.mxu0 0.0
  %208 = vmatpush1.msra.mxu0 0.0
  %209 = vmatprep.subr.mxu0 0.0
  %210 = vmatpush1.msra.mxu0 0.0
  %211 = vmatprep.subr.mxu0 0.0
  %212 = vmatpush1.msra.mxu0 0.0
  %213 = vmatprep.subr.mxu0 0.0
  %214 = vmatpush1.msra.mxu0 0.0
  %215 = vmatprep.subr.mxu0 0.0
  %216 = vmatpush1.msra.mxu0 0.0
  %217 = vmatprep.subr.mxu0 0.0
  %218 = vmatpush1.msra.mxu0 0.0
  %219 = vmatprep.subr.mxu0 0.0
  %220 = vmatpush1.msra.mxu0 0.0
  %221 = vmatprep.subr.mxu0 0.0
  %222 = vmatpush1.msra.mxu0 0.0
  %223 = vmatprep.subr.mxu0 0.0
  %224 = vmatpush1.msra.mxu0 0.0
  %225 = vmatprep.subr.mxu0 0.0
  %226 = vmatpush1.msra.mxu0 0.0
  %227 = vmatprep.subr.mxu0 0.0
  %228 = vmatpush1.msra.mxu0 0.0
  %229 = vmatprep.subr.mxu0 0.0
  %230 = vmatpush1.msra.mxu0 0.0
  %231 = vmatprep.subr.mxu0 0.0
  %232 = vmatpush1.msra.mxu0 0.0
  %233 = vmatprep.subr.mxu0 0.0
  %234 = vmatpush1.msra.mxu0 0.0
  %235 = vmatprep.subr.mxu0 0.0
  %236 = vmatpush1.msra.mxu0 0.0
  %237 = vmatprep.subr.mxu0 0.0
  %238 = vmatpush1.msra.mxu0 0.0
  %239 = vmatprep.mubr.f32.mxu0 0.0
  %240 = vmatmul.mubr.f32.gmra.mrb[0].mxu0 %v171
  %v241 = vpop.f32.mrb[0].mxu0
  %v242 = vadd.f32 0.0, %v241
  %v243 = vpop.f32.mrb[0].mxu0
  %244 = vmatprep.mubr.f32.mxu0 0.0
  %245 = vmatmul.mubr.f32.gmra.mrb[0].mxu0 %v173
  %v246 = vpop.f32.mrb[0].mxu0
  %v247 = vadd.f32 0.0, %v246
  %v248 = vpop.f32.mrb[0].mxu0
  %249 = vdwg.mxu0
  %v250 = vcombine.low %v88, %v96
  %v251 = vcombine.low %v95, %v104
  %v253 = vunpack.c.l.s4 1983009808
  %v254 = vunpack.c.0.s8 %v253
  %v255 = vlaneseq
  %v256 = vshrl.u32 %v255, 7
  %v257 = vsub.s32 %v254, %v256
  %v258 = vrot.slane %v250, %v257
  %v260 = vunpack.c.l.s4 1983009808
  %v261 = vunpack.c.0.s8 %v260
  %v262 = vlaneseq
  %v263 = vshrl.u32 %v262, 7
  %v264 = vsub.s32 %v261, %v263
  %v265 = vrot.slane %v251, %v264
  %v266 = vcombine.low %v258, %v265
  %v267 = vcombine.low %v112, %v111
  %v269 = vunpack.c.l.s4 1983009808
  %v270 = vunpack.c.0.s8 %v269
  %v271 = vlaneseq
  %v272 = vshrl.u32 %v271, 7
  %v273 = vsub.s32 %v270, %v272
  %v274 = vrot.slane %v267, %v273
  %v275 = vsel %vm170, %v266, 0
  %v277 = vsel %vm170, %v274, 0
  %279 = vmatprep.subr.mxu0 0.0
  %280 = vmatpush1.msra.mxu0 %v113
  %281 = vmatprep.subr.mxu0 0.0
  %282 = vmatpush1.msra.mxu0 0.0
  %283 = vmatprep.subr.mxu0 0.0
  %284 = vmatpush1.msra.mxu0 0.0
  %285 = vmatprep.subr.mxu0 0.0
  %286 = vmatpush1.msra.mxu0 0.0
  %287 = vmatprep.subr.mxu0 0.0
  %288 = vmatpush1.msra.mxu0 0.0
  %289 = vmatprep.subr.mxu0 0.0
  %290 = vmatpush1.msra.mxu0 0.0
  %291 = vmatprep.subr.mxu0 0.0
  %292 = vmatpush1.msra.mxu0 0.0
  %293 = vmatprep.subr.mxu0 0.0
  %294 = vmatpush1.msra.mxu0 0.0
  %295 = vmatprep.subr.mxu0 0.0
  %296 = vmatpush1.msra.mxu0 0.0
  %297 = vmatprep.subr.mxu0 0.0
  %298 = vmatpush1.msra.mxu0 0.0
  %299 = vmatprep.subr.mxu0 0.0
  %300 = vmatpush1.msra.mxu0 0.0
  %301 = vmatprep.subr.mxu0 0.0
  %302 = vmatpush1.msra.mxu0 0.0
  %303 = vmatprep.subr.mxu0 0.0
  %304 = vmatpush1.msra.mxu0 0.0
  %305 = vmatprep.subr.mxu0 0.0
  %306 = vmatpush1.msra.mxu0 0.0
  %307 = vmatprep.subr.mxu0 0.0
  %308 = vmatpush1.msra.mxu0 0.0
  %309 = vmatprep.subr.mxu0 0.0
  %310 = vmatpush1.msra.mxu0 0.0
  %311 = vmatprep.subr.mxu0 0.0
  %312 = vmatpush1.msra.mxu0 0.0
  %313 = vmatprep.subr.mxu0 0.0
  %314 = vmatpush1.msra.mxu0 0.0
  %315 = vmatprep.subr.mxu0 0.0
  %316 = vmatpush1.msra.mxu0 0.0
  %317 = vmatprep.subr.mxu0 0.0
  %318 = vmatpush1.msra.mxu0 0.0
  %319 = vmatprep.subr.mxu0 0.0
  %320 = vmatpush1.msra.mxu0 0.0
  %321 = vmatprep.subr.mxu0 0.0
  %322 = vmatpush1.msra.mxu0 0.0
  %323 = vmatprep.subr.mxu0 0.0
  %324 = vmatpush1.msra.mxu0 0.0
  %325 = vmatprep.subr.mxu0 0.0
  %326 = vmatpush1.msra.mxu0 0.0
  %327 = vmatprep.subr.mxu0 0.0
  %328 = vmatpush1.msra.mxu0 0.0
  %329 = vmatprep.subr.mxu0 0.0
  %330 = vmatpush1.msra.mxu0 0.0
  %331 = vmatprep.subr.mxu0 0.0
  %332 = vmatpush1.msra.mxu0 0.0
  %333 = vmatprep.subr.mxu0 0.0
  %334 = vmatpush1.msra.mxu0 0.0
  %335 = vmatprep.subr.mxu0 0.0
  %336 = vmatpush1.msra.mxu0 0.0
  %337 = vmatprep.subr.mxu0 0.0
  %338 = vmatpush1.msra.mxu0 0.0
  %339 = vmatprep.subr.mxu0 0.0
  %340 = vmatpush1.msra.mxu0 0.0
  %341 = vmatprep.subr.mxu0 0.0
  %342 = vmatpush1.msra.mxu0 0.0
  %343 = vmatprep.mubr.f32.mxu0 0.0
  %344 = vmatmul.mubr.f32.gmra.mrb[0].mxu0 %v275
  %v345 = vpop.f32.mrb[0].mxu0
  %v346 = vadd.f32 %v242, %v345
  %v347 = vpop.f32.mrb[0].mxu0
  %348 = vmatprep.mubr.f32.mxu0 0.0
  %349 = vmatmul.mubr.f32.gmra.mrb[0].mxu0 %v277
  %v350 = vpop.f32.mrb[0].mxu0
  %v351 = vadd.f32 %v247, %v350
  %v352 = vpop.f32.mrb[0].mxu0
  %353 = vdwg.mxu0
  %s354 = scalar_lea.vmem %s1, 16
  %v355 = vld [vmem:[%s354] sm:$0xff]
  %v356 = vcombine.low %v96, %v95
  %v357 = vcombine.low %v114, %v112
  %v359 = vunpack.c.l.s4 1983009808
  %v360 = vunpack.c.0.s8 %v359
  %v361 = vlaneseq
  %v362 = vshrl.u32 %v361, 7
  %v363 = vsub.s32 %v360, %v362
  %v364 = vrot.slane %v356, %v363
  %v366 = vunpack.c.l.s4 1983009808
  %v367 = vunpack.c.0.s8 %v366
  %v368 = vlaneseq
  %v369 = vshrl.u32 %v368, 7
  %v370 = vsub.s32 %v367, %v369
  %v371 = vrot.slane %v357, %v370
  %v372 = vcombine.low %v364, %v371
  %v373 = vcombine.low %v111, %v115
  %v375 = vunpack.c.l.s4 1983009808
  %v376 = vunpack.c.0.s8 %v375
  %v377 = vlaneseq
  %v378 = vshrl.u32 %v377, 7
  %v379 = vsub.s32 %v376, %v378
  %v380 = vrot.slane %v373, %v379
  %v381 = vsel %vm170, %v372, 0
  %v383 = vsel %vm170, %v380, 0
  %385 = vmatprep.subr.mxu0 0.0
  %386 = vmatpush1.msra.mxu0 %v355
  %387 = vmatprep.subr.mxu0 0.0
  %388 = vmatpush1.msra.mxu0 0.0
  %389 = vmatprep.subr.mxu0 0.0
  %390 = vmatpush1.msra.mxu0 0.0
  %391 = vmatprep.subr.mxu0 0.0
  %392 = vmatpush1.msra.mxu0 0.0
  %393 = vmatprep.subr.mxu0 0.0
  %394 = vmatpush1.msra.mxu0 0.0
  %395 = vmatprep.subr.mxu0 0.0
  %396 = vmatpush1.msra.mxu0 0.0
  %397 = vmatprep.subr.mxu0 0.0
  %398 = vmatpush1.msra.mxu0 0.0
  %399 = vmatprep.subr.mxu0 0.0
  %400 = vmatpush1.msra.mxu0 0.0
  %401 = vmatprep.subr.mxu0 0.0
  %402 = vmatpush1.msra.mxu0 0.0
  %403 = vmatprep.subr.mxu0 0.0
  %404 = vmatpush1.msra.mxu0 0.0
  %405 = vmatprep.subr.mxu0 0.0
  %406 = vmatpush1.msra.mxu0 0.0
  %407 = vmatprep.subr.mxu0 0.0
  %408 = vmatpush1.msra.mxu0 0.0
  %409 = vmatprep.subr.mxu0 0.0
  %410 = vmatpush1.msra.mxu0 0.0
  %411 = vmatprep.subr.mxu0 0.0
  %412 = vmatpush1.msra.mxu0 0.0
  %413 = vmatprep.subr.mxu0 0.0
  %414 = vmatpush1.msra.mxu0 0.0
  %415 = vmatprep.subr.mxu0 0.0
  %416 = vmatpush1.msra.mxu0 0.0
  %417 = vmatprep.subr.mxu0 0.0
  %418 = vmatpush1.msra.mxu0 0.0
  %419 = vmatprep.subr.mxu0 0.0
  %420 = vmatpush1.msra.mxu0 0.0
  %421 = vmatprep.subr.mxu0 0.0
  %422 = vmatpush1.msra.mxu0 0.0
  %423 = vmatprep.subr.mxu0 0.0
  %424 = vmatpush1.msra.mxu0 0.0
  %425 = vmatprep.subr.mxu0 0.0
  %426 = vmatpush1.msra.mxu0 0.0
  %427 = vmatprep.subr.mxu0 0.0
  %428 = vmatpush1.msra.mxu0 0.0
  %429 = vmatprep.subr.mxu0 0.0
  %430 = vmatpush1.msra.mxu0 0.0
  %431 = vmatprep.subr.mxu0 0.0
  %432 = vmatpush1.msra.mxu0 0.0
  %433 = vmatprep.subr.mxu0 0.0
  %434 = vmatpush1.msra.mxu0 0.0
  %435 = vmatprep.subr.mxu0 0.0
  %436 = vmatpush1.msra.mxu0 0.0
  %437 = vmatprep.subr.mxu0 0.0
  %438 = vmatpush1.msra.mxu0 0.0
  %439 = vmatprep.subr.mxu0 0.0
  %440 = vmatpush1.msra.mxu0 0.0
  %441 = vmatprep.subr.mxu0 0.0
  %442 = vmatpush1.msra.mxu0 0.0
  %443 = vmatprep.subr.mxu0 0.0
  %444 = vmatpush1.msra.mxu0 0.0
  %445 = vmatprep.subr.mxu0 0.0
  %446 = vmatpush1.msra.mxu0 0.0
  %447 = vmatprep.subr.mxu0 0.0
  %448 = vmatpush1.msra.mxu0 0.0
  %449 = vmatprep.mubr.f32.mxu0 0.0
  %450 = vmatmul.mubr.f32.gmra.mrb[0].mxu0 %v381
  %v451 = vpop.f32.mrb[0].mxu0
  %v452 = vadd.f32 0.0, %v451
  %v453 = vpop.f32.mrb[0].mxu0
  %454 = vmatprep.mubr.f32.mxu0 0.0
  %455 = vmatmul.mubr.f32.gmra.mrb[0].mxu0 %v383
  %v456 = vpop.f32.mrb[0].mxu0
  %v457 = vadd.f32 0.0, %v456
  %v458 = vpop.f32.mrb[0].mxu0
  %459 = vdwg.mxu0
  %v460 = vadd.f32 %v346, %v452
  %v461 = vadd.f32 %v351, %v457
  %v464 = vunpack.c.l.s4 1983009808
  %v465 = vunpack.c.0.s8 %v464
  %v466 = vlaneseq
  %v467 = vshrl.u32 %v466, 7
  %v468 = vsub.s32 %v465, %v467
  %v469 = vrot.slane 0.0, %v468
  %v470 = vrot.slane %v131, 2
  %v471 = vrot.slane %v469, 7
  %v472 = vsel %vm122, %v470, %v471
  %v473 = vrot.slane %v141, 2
  %v474 = vsel %vm122, %v473, %v471
  %s475 = scalar_lea.vmem %s1, 24
  %v476 = vld [vmem:[%s475] sm:$0xff]
  %v477 = vcombine.low %v129, %v132
  %v478 = vcombine.low %v472, %v139
  %v480 = vunpack.c.l.s4 1983009808
  %v481 = vunpack.c.0.s8 %v480
  %v482 = vlaneseq
  %v483 = vshrl.u32 %v482, 7
  %v484 = vsub.s32 %v481, %v483
  %v485 = vrot.slane %v477, %v484
  %v487 = vunpack.c.l.s4 1983009808
  %v488 = vunpack.c.0.s8 %v487
  %v489 = vlaneseq
  %v490 = vshrl.u32 %v489, 7
  %v491 = vsub.s32 %v488, %v490
  %v492 = vrot.slane %v478, %v491
  %v493 = vcombine.low %v485, %v492
  %v494 = vcombine.low %v142, %v474
  %v496 = vunpack.c.l.s4 1983009808
  %v497 = vunpack.c.0.s8 %v496
  %v498 = vlaneseq
  %v499 = vshrl.u32 %v498, 7
  %v500 = vsub.s32 %v497, %v499
  %v501 = vrot.slane %v494, %v500
  %v502 = vsel %vm170, %v493, 0
  %v504 = vsel %vm170, %v501, 0
  %506 = vmatprep.subr.mxu0 0.0
  %507 = vmatpush1.msra.mxu0 %v476
  %508 = vmatprep.subr.mxu0 0.0
  %509 = vmatpush1.msra.mxu0 0.0
  %510 = vmatprep.subr.mxu0 0.0
  %511 = vmatpush1.msra.mxu0 0.0
  %512 = vmatprep.subr.mxu0 0.0
  %513 = vmatpush1.msra.mxu0 0.0
  %514 = vmatprep.subr.mxu0 0.0
  %515 = vmatpush1.msra.mxu0 0.0
  %516 = vmatprep.subr.mxu0 0.0
  %517 = vmatpush1.msra.mxu0 0.0
  %518 = vmatprep.subr.mxu0 0.0
  %519 = vmatpush1.msra.mxu0 0.0
  %520 = vmatprep.subr.mxu0 0.0
  %521 = vmatpush1.msra.mxu0 0.0
  %522 = vmatprep.subr.mxu0 0.0
  %523 = vmatpush1.msra.mxu0 0.0
  %524 = vmatprep.subr.mxu0 0.0
  %525 = vmatpush1.msra.mxu0 0.0
  %526 = vmatprep.subr.mxu0 0.0
  %527 = vmatpush1.msra.mxu0 0.0
  %528 = vmatprep.subr.mxu0 0.0
  %529 = vmatpush1.msra.mxu0 0.0
  %530 = vmatprep.subr.mxu0 0.0
  %531 = vmatpush1.msra.mxu0 0.0
  %532 = vmatprep.subr.mxu0 0.0
  %533 = vmatpush1.msra.mxu0 0.0
  %534 = vmatprep.subr.mxu0 0.0
  %535 = vmatpush1.msra.mxu0 0.0
  %536 = vmatprep.subr.mxu0 0.0
  %537 = vmatpush1.msra.mxu0 0.0
  %538 = vmatprep.subr.mxu0 0.0
  %539 = vmatpush1.msra.mxu0 0.0
  %540 = vmatprep.subr.mxu0 0.0
  %541 = vmatpush1.msra.mxu0 0.0
  %542 = vmatprep.subr.mxu0 0.0
  %543 = vmatpush1.msra.mxu0 0.0
  %544 = vmatprep.subr.mxu0 0.0
  %545 = vmatpush1.msra.mxu0 0.0
  %546 = vmatprep.subr.mxu0 0.0
  %547 = vmatpush1.msra.mxu0 0.0
  %548 = vmatprep.subr.mxu0 0.0
  %549 = vmatpush1.msra.mxu0 0.0
  %550 = vmatprep.subr.mxu0 0.0
  %551 = vmatpush1.msra.mxu0 0.0
  %552 = vmatprep.subr.mxu0 0.0
  %553 = vmatpush1.msra.mxu0 0.0
  %554 = vmatprep.subr.mxu0 0.0
  %555 = vmatpush1.msra.mxu0 0.0
  %556 = vmatprep.subr.mxu0 0.0
  %557 = vmatpush1.msra.mxu0 0.0
  %558 = vmatprep.subr.mxu0 0.0
  %559 = vmatpush1.msra.mxu0 0.0
  %560 = vmatprep.subr.mxu0 0.0
  %561 = vmatpush1.msra.mxu0 0.0
  %562 = vmatprep.subr.mxu0 0.0
  %563 = vmatpush1.msra.mxu0 0.0
  %564 = vmatprep.subr.mxu0 0.0
  %565 = vmatpush1.msra.mxu0 0.0
  %566 = vmatprep.subr.mxu0 0.0
  %567 = vmatpush1.msra.mxu0 0.0
  %568 = vmatprep.subr.mxu0 0.0
  %569 = vmatpush1.msra.mxu0 0.0
  %570 = vmatprep.mubr.f32.mxu0 0.0
  %571 = vmatmul.mubr.f32.gmra.mrb[0].mxu0 %v502
  %v572 = vpop.f32.mrb[0].mxu0
  %v573 = vadd.f32 0.0, %v572
  %v574 = vpop.f32.mrb[0].mxu0
  %575 = vmatprep.mubr.f32.mxu0 0.0
  %576 = vmatmul.mubr.f32.gmra.mrb[0].mxu0 %v504
  %v577 = vpop.f32.mrb[0].mxu0
  %v578 = vadd.f32 0.0, %v577
  %v579 = vpop.f32.mrb[0].mxu0
  %580 = vdwg.mxu0
  %v581 = vadd.f32 %v460, %v573
  %v582 = vadd.f32 %v461, %v578
  %s583 = scalar_lea.vmem %s1, 32
  %v584 = vld [vmem:[%s583] sm:$0xff]
  %v585 = vcombine.low %v95, %v114
  %v586 = vcombine.low %v469, %v111
  %v588 = vunpack.c.l.s4 1983009808
  %v589 = vunpack.c.0.s8 %v588
  %v590 = vlaneseq
  %v591 = vshrl.u32 %v590, 7
  %v592 = vsub.s32 %v589, %v591
  %v593 = vrot.slane %v585, %v592
  %v595 = vunpack.c.l.s4 1983009808
  %v596 = vunpack.c.0.s8 %v595
  %v597 = vlaneseq
  %v598 = vshrl.u32 %v597, 7
  %v599 = vsub.s32 %v596, %v598
  %v600 = vrot.slane %v586, %v599
  %v601 = vcombine.low %v593, %v600
  %v602 = vcombine.low %v115, %v469
  %v604 = vunpack.c.l.s4 1983009808
  %v605 = vunpack.c.0.s8 %v604
  %v606 = vlaneseq
  %v607 = vshrl.u32 %v606, 7
  %v608 = vsub.s32 %v605, %v607
  %v609 = vrot.slane %v602, %v608
  %v610 = vsel %vm170, %v601, 0
  %v612 = vsel %vm170, %v609, 0
  %614 = vmatprep.subr.mxu0 0.0
  %615 = vmatpush1.msra.mxu0 %v584
  %616 = vmatprep.subr.mxu0 0.0
  %617 = vmatpush1.msra.mxu0 0.0
  %618 = vmatprep.subr.mxu0 0.0
  %619 = vmatpush1.msra.mxu0 0.0
  %620 = vmatprep.subr.mxu0 0.0
  %621 = vmatpush1.msra.mxu0 0.0
  %622 = vmatprep.subr.mxu0 0.0
  %623 = vmatpush1.msra.mxu0 0.0
  %624 = vmatprep.subr.mxu0 0.0
  %625 = vmatpush1.msra.mxu0 0.0
  %626 = vmatprep.subr.mxu0 0.0
  %627 = vmatpush1.msra.mxu0 0.0
  %628 = vmatprep.subr.mxu0 0.0
  %629 = vmatpush1.msra.mxu0 0.0
  %630 = vmatprep.subr.mxu0 0.0
  %631 = vmatpush1.msra.mxu0 0.0
  %632 = vmatprep.subr.mxu0 0.0
  %633 = vmatpush1.msra.mxu0 0.0
  %634 = vmatprep.subr.mxu0 0.0
  %635 = vmatpush1.msra.mxu0 0.0
  %636 = vmatprep.subr.mxu0 0.0
  %637 = vmatpush1.msra.mxu0 0.0
  %638 = vmatprep.subr.mxu0 0.0
  %639 = vmatpush1.msra.mxu0 0.0
  %640 = vmatprep.subr.mxu0 0.0
  %641 = vmatpush1.msra.mxu0 0.0
  %642 = vmatprep.subr.mxu0 0.0
  %643 = vmatpush1.msra.mxu0 0.0
  %644 = vmatprep.subr.mxu0 0.0
  %645 = vmatpush1.msra.mxu0 0.0
  %646 = vmatprep.subr.mxu0 0.0
  %647 = vmatpush1.msra.mxu0 0.0
  %648 = vmatprep.subr.mxu0 0.0
  %649 = vmatpush1.msra.mxu0 0.0
  %650 = vmatprep.subr.mxu0 0.0
  %651 = vmatpush1.msra.mxu0 0.0
  %652 = vmatprep.subr.mxu0 0.0
  %653 = vmatpush1.msra.mxu0 0.0
  %654 = vmatprep.subr.mxu0 0.0
  %655 = vmatpush1.msra.mxu0 0.0
  %656 = vmatprep.subr.mxu0 0.0
  %657 = vmatpush1.msra.mxu0 0.0
  %658 = vmatprep.subr.mxu0 0.0
  %659 = vmatpush1.msra.mxu0 0.0
  %660 = vmatprep.subr.mxu0 0.0
  %661 = vmatpush1.msra.mxu0 0.0
  %662 = vmatprep.subr.mxu0 0.0
  %663 = vmatpush1.msra.mxu0 0.0
  %664 = vmatprep.subr.mxu0 0.0
  %665 = vmatpush1.msra.mxu0 0.0
  %666 = vmatprep.subr.mxu0 0.0
  %667 = vmatpush1.msra.mxu0 0.0
  %668 = vmatprep.subr.mxu0 0.0
  %669 = vmatpush1.msra.mxu0 0.0
  %670 = vmatprep.subr.mxu0 0.0
  %671 = vmatpush1.msra.mxu0 0.0
  %672 = vmatprep.subr.mxu0 0.0
  %673 = vmatpush1.msra.mxu0 0.0
  %674 = vmatprep.subr.mxu0 0.0
  %675 = vmatpush1.msra.mxu0 0.0
  %676 = vmatprep.subr.mxu0 0.0
  %677 = vmatpush1.msra.mxu0 0.0
  %678 = vmatprep.mubr.f32.mxu0 0.0
  %679 = vmatmul.mubr.f32.gmra.mrb[0].mxu0 %v610
  %v680 = vpop.f32.mrb[0].mxu0
  %v681 = vadd.f32 0.0, %v680
  %v682 = vpop.f32.mrb[0].mxu0
  %683 = vmatprep.mubr.f32.mxu0 0.0
  %684 = vmatmul.mubr.f32.gmra.mrb[0].mxu0 %v612
  %v685 = vpop.f32.mrb[0].mxu0
  %v686 = vadd.f32 0.0, %v685
  %v687 = vpop.f32.mrb[0].mxu0
  %688 = vdwg.mxu0
  %v689 = vadd.f32 %v581, %v681
  %v690 = vadd.f32 %v582, %v686
  %v691 = vld [vmem:[%s2] sm:$0x1]
  %v693 = vlaneseq
  %v694 = vshrl.u32 %v693, 7
  %v695 = vsub.s32 0, %v694
  %v696 = vrot.slane %v691, %v695
  %v698 = vadd.f32 %v689, %v696
  %v699 = vadd.f32 %v690, %v696
  %vm700 = vcmask 261120
  %v701 = vsel %vm700, %v698, 0.0
  %vm702 = vcmask 257024
  %v703 = vsel %vm702, %v699, 0.0
  %v704 = vadd.f32 %v701, %v703
  %v705 = vrot.slane %v704, 4
  %v706 = vadd.f32 %v704, %v705
  %v707 = vrot.slane %v706, 2
  %v708 = vadd.f32 %v706, %v707
  %v709 = vrot.slane %v708, 1
  %v710 = vadd.f32 %v708, %v709
  %v711 = vrcp.pop 12.0
  %v712 = vmul.f32 %v710, %v711
  %v713 = vsub.f32 %v698, %v712
  %v714 = vsub.f32 %v699, %v712
  %v715 = vmul.f32 %v713, %v713
  %v716 = vmul.f32 %v714, %v714
  %v717 = vsel %vm700, %v715, 0.0
  %v718 = vsel %vm702, %v716, 0.0
  %v719 = vadd.f32 %v717, %v718
  %v720 = vrot.slane %v719, 4
  %v721 = vadd.f32 %v719, %v720
  %v722 = vrot.slane %v721, 2
  %v723 = vadd.f32 %v721, %v722
  %v724 = vrot.slane %v723, 1
  %v725 = vadd.f32 %v723, %v724
  %v726 = vmul.f32 %v725, %v711
  %v727 = vadd.f32 %v726, 1e-05
  %v728 = vrsqrt.pop %v727
  %v729 = vmul.f32 %v713, %v728
  %v730 = vmul.f32 %v714, %v728
  %v731 = vld [vmem:[%s3] sm:$0x1]
  %v733 = vlaneseq
  %v734 = vshrl.u32 %v733, 7
  %v735 = vsub.s32 0, %v734
  %v736 = vrot.slane %v731, %v735
  %v738 = vmul.f32 %v736, %v729
  %v739 = vmul.f32 %v736, %v730
  %v740 = vld [vmem:[%s4] sm:$0x1]
  %v742 = vlaneseq
  %v743 = vshrl.u32 %v742, 7
  %v744 = vsub.s32 0, %v743
  %v745 = vrot.slane %v740, %v744
  %v747 = vadd.f32 %v738, %v745
  %v748 = vadd.f32 %v739, %v745
  %v749 = vtanh.pop %v747
  %v750 = vtanh.pop %v748
  %v753 = vcombine.high %v749, %v749
  %v755 = vunpack.c.l.s4 1983009808
  %v756 = vunpack.c.0.s8 %v755
  %v757 = vlaneseq
  %v758 = vshrl.u32 %v757, 7
  %v759 = vsub.s32 %v756, %v758
  %v760 = vrot.slane %v749, %v759
  %v762 = vunpack.c.l.s4 1983009808
  %v763 = vunpack.c.0.s8 %v762
  %v764 = vlaneseq
  %v765 = vshrl.u32 %v764, 7
  %v766 = vsub.s32 %v763, %v765
  %v767 = vrot.slane %v753, %v766
  %v768 = vcombine.high %v760, %v760
  %v769 = vcombine.high %v767, %v767
  %v771 = vunpack.c.l.s4 1983009808
  %v772 = vunpack.c.0.s8 %v771
  %v773 = vlaneseq
  %v774 = vshrl.u32 %v773, 7
  %v775 = vsub.s32 %v772, %v774
  %v776 = vrot.slane %v750, %v775
  %v777 = vcombine.high %v776, %v776
  %v778 = vcombine.low %v760, %v760
  %v779 = vcombine.low %v768, %v767
  %v781 = vunpack.c.l.s4 1983009808
  %v782 = vunpack.c.0.s8 %v781
  %v783 = vlaneseq
  %v784 = vshrl.u32 %v783, 7
  %v785 = vsub.s32 %v782, %v784
  %v786 = vrot.slane %v778, %v785
  %v788 = vunpack.c.l.s4 1983009808
  %v789 = vunpack.c.0.s8 %v788
  %v790 = vlaneseq
  %v791 = vshrl.u32 %v790, 7
  %v792 = vsub.s32 %v789, %v791
  %v793 = vrot.slane %v779, %v792
  %v794 = vcombine.low %v786, %v793
  %v795 = vcombine.low %v769, %v769
  %v796 = vcombine.low %v776, %v777
  %v798 = vunpack.c.l.s4 1983009808
  %v799 = vunpack.c.0.s8 %v798
  %v800 = vlaneseq
  %v801 = vshrl.u32 %v800, 7
  %v802 = vsub.s32 %v799, %v801
  %v803 = vrot.slane %v795, %v802
  %v805 = vunpack.c.l.s4 1983009808
  %v806 = vunpack.c.0.s8 %v805
  %v807 = vlaneseq
  %v808 = vshrl.u32 %v807, 7
  %v809 = vsub.s32 %v806, %v808
  %v810 = vrot.slane %v796, %v809
  %v811 = vcombine.low %v803, %v810
  %v814 = vsel %vm76, 0.0, %v794
  %v815 = vsel %vm76, 0.0, %v811
  %v818 = vcombine.high %v814, %v814
  %v820 = vunpack.c.l.s4 1983009808
  %v821 = vunpack.c.0.s8 %v820
  %v822 = vlaneseq
  %v823 = vshrl.u32 %v822, 7
  %v824 = vsub.s32 %v821, %v823
  %v825 = vrot.slane %v814, %v824
  %v827 = vunpack.c.l.s4 1983009808
  %v828 = vunpack.c.0.s8 %v827
  %v829 = vlaneseq
  %v830 = vshrl.u32 %v829, 7
  %v831 = vsub.s32 %v828, %v830
  %v832 = vrot.slane %v818, %v831
  %v833 = vcombine.high %v825, %v825
  %v834 = vcombine.high %v815, %v815
  %v836 = vunpack.c.l.s4 1983009808
  %v837 = vunpack.c.0.s8 %v836
  %v838 = vlaneseq
  %v839 = vshrl.u32 %v838, 7
  %v840 = vsub.s32 %v837, %v839
  %v841 = vrot.slane %v815, %v840
  %v843 = vunpack.c.l.s4 1983009808
  %v844 = vunpack.c.0.s8 %v843
  %v845 = vlaneseq
  %v846 = vshrl.u32 %v845, 7
  %v847 = vsub.s32 %v844, %v846
  %v848 = vrot.slane %v834, %v847
  %v849 = vcombine.high %v841, %v841
  %v850 = vld [vmem:[%s5] sm:$0xff]
  %v851 = vld [vmem:[%s5 + $0x8] sm:$0xff]
  %v852 = vld [vmem:[%s5 + $0x10] sm:$0xff]
  %v853 = vld [vmem:[%s5 + $0x18] sm:$0xff]
  %v854 = vcombine.high %v832, %v832
  %v855 = vcombine.high %v848, %v848
  %v856 = vrot.slane %v825, 7
  %v857 = vrot.slane %v856, 2
  %v858 = vrot.slane %v833, 7
  %v859 = vsel %vm122, %v857, %v858
  %v860 = vrot.slane %v858, 2
  %v861 = vrot.slane %v832, 7
  %v862 = vsel %vm122, %v860, %v861
  %v863 = vrot.slane %v861, 2
  %v864 = vrot.slane %v854, 7
  %v865 = vsel %vm122, %v863, %v864
  %v866 = vrot.slane %v841, 7
  %v867 = vrot.slane %v866, 2
  %v868 = vrot.slane %v849, 7
  %v869 = vsel %vm122, %v867, %v868
  %v870 = vrot.slane %v868, 2
  %v871 = vrot.slane %v848, 7
  %v872 = vsel %vm122, %v870, %v871
  %v873 = vrot.slane %v871, 2
  %v874 = vrot.slane %v855, 7
  %v875 = vsel %vm122, %v873, %v874
  %s876 = scalar_lea.vmem %s5, 32
  %v877 = vld [vmem:[%s876] sm:$0xff]
  %v878 = vld [vmem:[%s876 + $0x8] sm:$0xff]
  %v879 = vld [vmem:[%s876 + $0x10] sm:$0xff]
  %v880 = vld [vmem:[%s876 + $0x18] sm:$0xff]
  %v881 = vcombine.low %v859, %v862
  %v882 = vcombine.low %v865, %v869
  %v884 = vunpack.c.l.s4 1983009808
  %v885 = vunpack.c.0.s8 %v884
  %v886 = vlaneseq
  %v887 = vshrl.u32 %v886, 7
  %v888 = vsub.s32 %v885, %v887
  %v889 = vrot.slane %v881, %v888
  %v891 = vunpack.c.l.s4 1983009808
  %v892 = vunpack.c.0.s8 %v891
  %v893 = vlaneseq
  %v894 = vshrl.u32 %v893, 7
  %v895 = vsub.s32 %v892, %v894
  %v896 = vrot.slane %v882, %v895
  %v897 = vcombine.low %v889, %v896
  %v898 = vcombine.low %v872, %v875
  %v900 = vunpack.c.l.s4 1983009808
  %v901 = vunpack.c.0.s8 %v900
  %v902 = vlaneseq
  %v903 = vshrl.u32 %v902, 7
  %v904 = vsub.s32 %v901, %v903
  %v905 = vrot.slane %v898, %v904
  %v906 = vsel %vm700, %v897, 0
  %v908 = vsel %vm700, %v905, 0
  %910 = vmatprep.subr.mxu0 0.0
  %911 = vmatpush1.msra.mxu0 %v877
  %912 = vmatprep.subr.mxu0 0.0
  %913 = vmatpush1.msra.mxu0 %v878
  %914 = vmatprep.subr.mxu0 0.0
  %915 = vmatpush1.msra.mxu0 %v879
  %916 = vmatprep.subr.mxu0 0.0
  %917 = vmatpush1.msra.mxu0 %v880
  %918 = vmatprep.subr.mxu0 0.0
  %919 = vmatpush1.msra.mxu0 0.0
  %920 = vmatprep.subr.mxu0 0.0
  %921 = vmatpush1.msra.mxu0 0.0
  %922 = vmatprep.subr.mxu0 0.0
  %923 = vmatpush1.msra.mxu0 0.0
  %924 = vmatprep.subr.mxu0 0.0
  %925 = vmatpush1.msra.mxu0 0.0
  %926 = vmatprep.subr.mxu0 0.0
  %927 = vmatpush1.msra.mxu0 0.0
  %928 = vmatprep.subr.mxu0 0.0
  %929 = vmatpush1.msra.mxu0 0.0
  %930 = vmatprep.subr.mxu0 0.0
  %931 = vmatpush1.msra.mxu0 0.0
  %932 = vmatprep.subr.mxu0 0.0
  %933 = vmatpush1.msra.mxu0 0.0
  %934 = vmatprep.subr.mxu0 0.0
  %935 = vmatpush1.msra.mxu0 0.0
  %936 = vmatprep.subr.mxu0 0.0
  %937 = vmatpush1.msra.mxu0 0.0
  %938 = vmatprep.subr.mxu0 0.0
  %939 = vmatpush1.msra.mxu0 0.0
  %940 = vmatprep.subr.mxu0 0.0
  %941 = vmatpush1.msra.mxu0 0.0
  %942 = vmatprep.subr.mxu0 0.0
  %943 = vmatpush1.msra.mxu0 0.0
  %944 = vmatprep.subr.mxu0 0.0
  %945 = vmatpush1.msra.mxu0 0.0
  %946 = vmatprep.subr.mxu0 0.0
  %947 = vmatpush1.msra.mxu0 0.0
  %948 = vmatprep.subr.mxu0 0.0
  %949 = vmatpush1.msra.mxu0 0.0
  %950 = vmatprep.subr.mxu0 0.0
  %951 = vmatpush1.msra.mxu0 0.0
  %952 = vmatprep.subr.mxu0 0.0
  %953 = vmatpush1.msra.mxu0 0.0
  %954 = vmatprep.subr.mxu0 0.0
  %955 = vmatpush1.msra.mxu0 0.0
  %956 = vmatprep.subr.mxu0 0.0
  %957 = vmatpush1.msra.mxu0 0.0
  %958 = vmatprep.subr.mxu0 0.0
  %959 = vmatpush1.msra.mxu0 0.0
  %960 = vmatprep.subr.mxu0 0.0
  %961 = vmatpush1.msra.mxu0 0.0
  %962 = vmatprep.subr.mxu0 0.0
  %963 = vmatpush1.msra.mxu0 0.0
  %964 = vmatprep.subr.mxu0 0.0
  %965 = vmatpush1.msra.mxu0 0.0
  %966 = vmatprep.subr.mxu0 0.0
  %967 = vmatpush1.msra.mxu0 0.0
  %968 = vmatprep.subr.mxu0 0.0
  %969 = vmatpush1.msra.mxu0 0.0
  %970 = vmatprep.subr.mxu0 0.0
  %971 = vmatpush1.msra.mxu0 0.0
  %972 = vmatprep.subr.mxu0 0.0
  %973 = vmatpush1.msra.mxu0 0.0
  %974 = vmatprep.mubr.f32.mxu0 0.0
  %975 = vmatmul.mubr.f32.gmra.mrb[0].mxu0 %v906
  %v976 = vpop.f32.mrb[0].mxu0
  %v977 = vadd.f32 0.0, %v976
  %v978 = vpop.f32.mrb[0].mxu0
  %979 = vmatprep.mubr.f32.mxu0 0.0
  %980 = vmatmul.mubr.f32.gmra.mrb[0].mxu0 %v908
  %v981 = vpop.f32.mrb[0].mxu0
  %v982 = vadd.f32 0.0, %v981
  %v983 = vpop.f32.mrb[0].mxu0
  %984 = vdwg.mxu0
  %v985 = vcombine.low %v825, %v833
  %v986 = vcombine.low %v832, %v841
  %v988 = vunpack.c.l.s4 1983009808
  %v989 = vunpack.c.0.s8 %v988
  %v990 = vlaneseq
  %v991 = vshrl.u32 %v990, 7
  %v992 = vsub.s32 %v989, %v991
  %v993 = vrot.slane %v985, %v992
  %v995 = vunpack.c.l.s4 1983009808
  %v996 = vunpack.c.0.s8 %v995
  %v997 = vlaneseq
  %v998 = vshrl.u32 %v997, 7
  %v999 = vsub.s32 %v996, %v998
  %v1000 = vrot.slane %v986, %v999
  %v1001 = vcombine.low %v993, %v1000
  %v1002 = vcombine.low %v849, %v848
  %v1004 = vunpack.c.l.s4 1983009808
  %v1005 = vunpack.c.0.s8 %v1004
  %v1006 = vlaneseq
  %v1007 = vshrl.u32 %v1006, 7
  %v1008 = vsub.s32 %v1005, %v1007
  %v1009 = vrot.slane %v1002, %v1008
  %v1010 = vsel %vm700, %v1001, 0
  %v1012 = vsel %vm700, %v1009, 0
  %1014 = vmatprep.subr.mxu0 0.0
  %1015 = vmatpush1.msra.mxu0 %v850
  %1016 = vmatprep.subr.mxu0 0.0
  %1017 = vmatpush1.msra.mxu0 %v851
  %1018 = vmatprep.subr.mxu0 0.0
  %1019 = vmatpush1.msra.mxu0 %v852
  %1020 = vmatprep.subr.mxu0 0.0
  %1021 = vmatpush1.msra.mxu0 %v853
  %1022 = vmatprep.subr.mxu0 0.0
  %1023 = vmatpush1.msra.mxu0 0.0
  %1024 = vmatprep.subr.mxu0 0.0
  %1025 = vmatpush1.msra.mxu0 0.0
  %1026 = vmatprep.subr.mxu0 0.0
  %1027 = vmatpush1.msra.mxu0 0.0
  %1028 = vmatprep.subr.mxu0 0.0
  %1029 = vmatpush1.msra.mxu0 0.0
  %1030 = vmatprep.subr.mxu0 0.0
  %1031 = vmatpush1.msra.mxu0 0.0
  %1032 = vmatprep.subr.mxu0 0.0
  %1033 = vmatpush1.msra.mxu0 0.0
  %1034 = vmatprep.subr.mxu0 0.0
  %1035 = vmatpush1.msra.mxu0 0.0
  %1036 = vmatprep.subr.mxu0 0.0
  %1037 = vmatpush1.msra.mxu0 0.0
  %1038 = vmatprep.subr.mxu0 0.0
  %1039 = vmatpush1.msra.mxu0 0.0
  %1040 = vmatprep.subr.mxu0 0.0
  %1041 = vmatpush1.msra.mxu0 0.0
  %1042 = vmatprep.subr.mxu0 0.0
  %1043 = vmatpush1.msra.mxu0 0.0
  %1044 = vmatprep.subr.mxu0 0.0
  %1045 = vmatpush1.msra.mxu0 0.0
  %1046 = vmatprep.subr.mxu0 0.0
  %1047 = vmatpush1.msra.mxu0 0.0
  %1048 = vmatprep.subr.mxu0 0.0
  %1049 = vmatpush1.msra.mxu0 0.0
  %1050 = vmatprep.subr.mxu0 0.0
  %1051 = vmatpush1.msra.mxu0 0.0
  %1052 = vmatprep.subr.mxu0 0.0
  %1053 = vmatpush1.msra.mxu0 0.0
  %1054 = vmatprep.subr.mxu0 0.0
  %1055 = vmatpush1.msra.mxu0 0.0
  %1056 = vmatprep.subr.mxu0 0.0
  %1057 = vmatpush1.msra.mxu0 0.0
  %1058 = vmatprep.subr.mxu0 0.0
  %1059 = vmatpush1.msra.mxu0 0.0
  %1060 = vmatprep.subr.mxu0 0.0
  %1061 = vmatpush1.msra.mxu0 0.0
  %1062 = vmatprep.subr.mxu0 0.0
  %1063 = vmatpush1.msra.mxu0 0.0
  %1064 = vmatprep.subr.mxu0 0.0
  %1065 = vmatpush1.msra.mxu0 0.0
  %1066 = vmatprep.subr.mxu0 0.0
  %1067 = vmatpush1.msra.mxu0 0.0
  %1068 = vmatprep.subr.mxu0 0.0
  %1069 = vmatpush1.msra.mxu0 0.0
  %1070 = vmatprep.subr.mxu0 0.0
  %1071 = vmatpush1.msra.mxu0 0.0
  %1072 = vmatprep.subr.mxu0 0.0
  %1073 = vmatpush1.msra.mxu0 0.0
  %1074 = vmatprep.subr.mxu0 0.0
  %1075 = vmatpush1.msra.mxu0 0.0
  %1076 = vmatprep.subr.mxu0 0.0
  %1077 = vmatpush1.msra.mxu0 0.0
  %1078 = vmatprep.mubr.f32.mxu0 0.0
  %1079 = vmatmul.mubr.f32.gmra.mrb[0].mxu0 %v1010
  %v1080 = vpop.f32.mrb[0].mxu0
  %v1081 = vadd.f32 %v977, %v1080
  %v1082 = vpop.f32.mrb[0].mxu0
  %1083 = vmatprep.mubr.f32.mxu0 0.0
  %1084 = vmatmul.mubr.f32.gmra.mrb[0].mxu0 %v1012
  %v1085 = vpop.f32.mrb[0].mxu0
  %v1086 = vadd.f32 %v982, %v1085
  %v1087 = vpop.f32.mrb[0].mxu0
  %1088 = vdwg.mxu0
  %s1089 = scalar_lea.vmem %s5, 64
  %v1090 = vld [vmem:[%s1089] sm:$0xff]
  %v1091 = vld [vmem:[%s1089 + $0x8] sm:$0xff]
  %v1092 = vld [vmem:[%s1089 + $0x10] sm:$0xff]
  %v1093 = vld [vmem:[%s1089 + $0x18] sm:$0xff]
  %v1094 = vcombine.low %v833, %v832
  %v1095 = vcombine.low %v854, %v849
  %v1097 = vunpack.c.l.s4 1983009808
  %v1098 = vunpack.c.0.s8 %v1097
  %v1099 = vlaneseq
  %v1100 = vshrl.u32 %v1099, 7
  %v1101 = vsub.s32 %v1098, %v1100
  %v1102 = vrot.slane %v1094, %v1101
  %v1104 = vunpack.c.l.s4 1983009808
  %v1105 = vunpack.c.0.s8 %v1104
  %v1106 = vlaneseq
  %v1107 = vshrl.u32 %v1106, 7
  %v1108 = vsub.s32 %v1105, %v1107
  %v1109 = vrot.slane %v1095, %v1108
  %v1110 = vcombine.low %v1102, %v1109
  %v1111 = vcombine.low %v848, %v855
  %v1113 = vunpack.c.l.s4 1983009808
  %v1114 = vunpack.c.0.s8 %v1113
  %v1115 = vlaneseq
  %v1116 = vshrl.u32 %v1115, 7
  %v1117 = vsub.s32 %v1114, %v1116
  %v1118 = vrot.slane %v1111, %v1117
  %v1119 = vsel %vm700, %v1110, 0
  %v1121 = vsel %vm700, %v1118, 0
  %1123 = vmatprep.subr.mxu0 0.0
  %1124 = vmatpush1.msra.mxu0 %v1090
  %1125 = vmatprep.subr.mxu0 0.0
  %1126 = vmatpush1.msra.mxu0 %v1091
  %1127 = vmatprep.subr.mxu0 0.0
  %1128 = vmatpush1.msra.mxu0 %v1092
  %1129 = vmatprep.subr.mxu0 0.0
  %1130 = vmatpush1.msra.mxu0 %v1093
  %1131 = vmatprep.subr.mxu0 0.0
  %1132 = vmatpush1.msra.mxu0 0.0
  %1133 = vmatprep.subr.mxu0 0.0
  %1134 = vmatpush1.msra.mxu0 0.0
  %1135 = vmatprep.subr.mxu0 0.0
  %1136 = vmatpush1.msra.mxu0 0.0
  %1137 = vmatprep.subr.mxu0 0.0
  %1138 = vmatpush1.msra.mxu0 0.0
  %1139 = vmatprep.subr.mxu0 0.0
  %1140 = vmatpush1.msra.mxu0 0.0
  %1141 = vmatprep.subr.mxu0 0.0
  %1142 = vmatpush1.msra.mxu0 0.0
  %1143 = vmatprep.subr.mxu0 0.0
  %1144 = vmatpush1.msra.mxu0 0.0
  %1145 = vmatprep.subr.mxu0 0.0
  %1146 = vmatpush1.msra.mxu0 0.0
  %1147 = vmatprep.subr.mxu0 0.0
  %1148 = vmatpush1.msra.mxu0 0.0
  %1149 = vmatprep.subr.mxu0 0.0
  %1150 = vmatpush1.msra.mxu0 0.0
  %1151 = vmatprep.subr.mxu0 0.0
  %1152 = vmatpush1.msra.mxu0 0.0
  %1153 = vmatprep.subr.mxu0 0.0
  %1154 = vmatpush1.msra.mxu0 0.0
  %1155 = vmatprep.subr.mxu0 0.0
  %1156 = vmatpush1.msra.mxu0 0.0
  %1157 = vmatprep.subr.mxu0 0.0
  %1158 = vmatpush1.msra.mxu0 0.0
  %1159 = vmatprep.subr.mxu0 0.0
  %1160 = vmatpush1.msra.mxu0 0.0
  %1161 = vmatprep.subr.mxu0 0.0
  %1162 = vmatpush1.msra.mxu0 0.0
  %1163 = vmatprep.subr.mxu0 0.0
  %1164 = vmatpush1.msra.mxu0 0.0
  %1165 = vmatprep.subr.mxu0 0.0
  %1166 = vmatpush1.msra.mxu0 0.0
  %1167 = vmatprep.subr.mxu0 0.0
  %1168 = vmatpush1.msra.mxu0 0.0
  %1169 = vmatprep.subr.mxu0 0.0
  %1170 = vmatpush1.msra.mxu0 0.0
  %1171 = vmatprep.subr.mxu0 0.0
  %1172 = vmatpush1.msra.mxu0 0.0
  %1173 = vmatprep.subr.mxu0 0.0
  %1174 = vmatpush1.msra.mxu0 0.0
  %1175 = vmatprep.subr.mxu0 0.0
  %1176 = vmatpush1.msra.mxu0 0.0
  %1177 = vmatprep.subr.mxu0 0.0
  %1178 = vmatpush1.msra.mxu0 0.0
  %1179 = vmatprep.subr.mxu0 0.0
  %1180 = vmatpush1.msra.mxu0 0.0
  %1181 = vmatprep.subr.mxu0 0.0
  %1182 = vmatpush1.msra.mxu0 0.0
  %1183 = vmatprep.subr.mxu0 0.0
  %1184 = vmatpush1.msra.mxu0 0.0
  %1185 = vmatprep.subr.mxu0 0.0
  %1186 = vmatpush1.msra.mxu0 0.0
  %1187 = vmatprep.mubr.f32.mxu0 0.0
  %1188 = vmatmul.mubr.f32.gmra.mrb[0].mxu0 %v1119
  %v1189 = vpop.f32.mrb[0].mxu0
  %v1190 = vadd.f32 0.0, %v1189
  %v1191 = vpop.f32.mrb[0].mxu0
  %1192 = vmatprep.mubr.f32.mxu0 0.0
  %1193 = vmatmul.mubr.f32.gmra.mrb[0].mxu0 %v1121
  %v1194 = vpop.f32.mrb[0].mxu0
  %v1195 = vadd.f32 0.0, %v1194
  %v1196 = vpop.f32.mrb[0].mxu0
  %1197 = vdwg.mxu0
  %v1198 = vadd.f32 %v1081, %v1190
  %v1199 = vadd.f32 %v1086, %v1195
  %v1200 = vrot.slane %v864, 2
  %v1201 = vsel %vm122, %v1200, %v471
  %v1202 = vrot.slane %v874, 2
  %v1203 = vsel %vm122, %v1202, %v471
  %s1204 = scalar_lea.vmem %s5, 96
  %v1205 = vld [vmem:[%s1204] sm:$0xff]
  %v1206 = vld [vmem:[%s1204 + $0x8] sm:$0xff]
  %v1207 = vld [vmem:[%s1204 + $0x10] sm:$0xff]
  %v1208 = vld [vmem:[%s1204 + $0x18] sm:$0xff]
  %v1209 = vcombine.low %v862, %v865
  %v1210 = vcombine.low %v1201, %v872
  %v1212 = vunpack.c.l.s4 1983009808
  %v1213 = vunpack.c.0.s8 %v1212
  %v1214 = vlaneseq
  %v1215 = vshrl.u32 %v1214, 7
  %v1216 = vsub.s32 %v1213, %v1215
  %v1217 = vrot.slane %v1209, %v1216
  %v1219 = vunpack.c.l.s4 1983009808
  %v1220 = vunpack.c.0.s8 %v1219
  %v1221 = vlaneseq
  %v1222 = vshrl.u32 %v1221, 7
  %v1223 = vsub.s32 %v1220, %v1222
  %v1224 = vrot.slane %v1210, %v1223
  %v1225 = vcombine.low %v1217, %v1224
  %v1226 = vcombine.low %v875, %v1203
  %v1228 = vunpack.c.l.s4 1983009808
  %v1229 = vunpack.c.0.s8 %v1228
  %v1230 = vlaneseq
  %v1231 = vshrl.u32 %v1230, 7
  %v1232 = vsub.s32 %v1229, %v1231
  %v1233 = vrot.slane %v1226, %v1232
  %v1234 = vsel %vm700, %v1225, 0
  %v1236 = vsel %vm700, %v1233, 0
  %1238 = vmatprep.subr.mxu0 0.0
  %1239 = vmatpush1.msra.mxu0 %v1205
  %1240 = vmatprep.subr.mxu0 0.0
  %1241 = vmatpush1.msra.mxu0 %v1206
  %1242 = vmatprep.subr.mxu0 0.0
  %1243 = vmatpush1.msra.mxu0 %v1207
  %1244 = vmatprep.subr.mxu0 0.0
  %1245 = vmatpush1.msra.mxu0 %v1208
  %1246 = vmatprep.subr.mxu0 0.0
  %1247 = vmatpush1.msra.mxu0 0.0
  %1248 = vmatprep.subr.mxu0 0.0
  %1249 = vmatpush1.msra.mxu0 0.0
  %1250 = vmatprep.subr.mxu0 0.0
  %1251 = vmatpush1.msra.mxu0 0.0
  %1252 = vmatprep.subr.mxu0 0.0
  %1253 = vmatpush1.msra.mxu0 0.0
  %1254 = vmatprep.subr.mxu0 0.0
  %1255 = vmatpush1.msra.mxu0 0.0
  %1256 = vmatprep.subr.mxu0 0.0
  %1257 = vmatpush1.msra.mxu0 0.0
  %1258 = vmatprep.subr.mxu0 0.0
  %1259 = vmatpush1.msra.mxu0 0.0
  %1260 = vmatprep.subr.mxu0 0.0
  %1261 = vmatpush1.msra.mxu0 0.0
  %1262 = vmatprep.subr.mxu0 0.0
  %1263 = vmatpush1.msra.mxu0 0.0
  %1264 = vmatprep.subr.mxu0 0.0
  %1265 = vmatpush1.msra.mxu0 0.0
  %1266 = vmatprep.subr.mxu0 0.0
  %1267 = vmatpush1.msra.mxu0 0.0
  %1268 = vmatprep.subr.mxu0 0.0
  %1269 = vmatpush1.msra.mxu0 0.0
  %1270 = vmatprep.subr.mxu0 0.0
  %1271 = vmatpush1.msra.mxu0 0.0
  %1272 = vmatprep.subr.mxu0 0.0
  %1273 = vmatpush1.msra.mxu0 0.0
  %1274 = vmatprep.subr.mxu0 0.0
  %1275 = vmatpush1.msra.mxu0 0.0
  %1276 = vmatprep.subr.mxu0 0.0
  %1277 = vmatpush1.msra.mxu0 0.0
  %1278 = vmatprep.subr.mxu0 0.0
  %1279 = vmatpush1.msra.mxu0 0.0
  %1280 = vmatprep.subr.mxu0 0.0
  %1281 = vmatpush1.msra.mxu0 0.0
  %1282 = vmatprep.subr.mxu0 0.0
  %1283 = vmatpush1.msra.mxu0 0.0
  %1284 = vmatprep.subr.mxu0 0.0
  %1285 = vmatpush1.msra.mxu0 0.0
  %1286 = vmatprep.subr.mxu0 0.0
  %1287 = vmatpush1.msra.mxu0 0.0
  %1288 = vmatprep.subr.mxu0 0.0
  %1289 = vmatpush1.msra.mxu0 0.0
  %1290 = vmatprep.subr.mxu0 0.0
  %1291 = vmatpush1.msra.mxu0 0.0
  %1292 = vmatprep.subr.mxu0 0.0
  %1293 = vmatpush1.msra.mxu0 0.0
  %1294 = vmatprep.subr.mxu0 0.0
  %1295 = vmatpush1.msra.mxu0 0.0
  %1296 = vmatprep.subr.mxu0 0.0
  %1297 = vmatpush1.msra.mxu0 0.0
  %1298 = vmatprep.subr.mxu0 0.0
  %1299 = vmatpush1.msra.mxu0 0.0
  %1300 = vmatprep.subr.mxu0 0.0
  %1301 = vmatpush1.msra.mxu0 0.0
  %1302 = vmatprep.mubr.f32.mxu0 0.0
  %1303 = vmatmul.mubr.f32.gmra.mrb[0].mxu0 %v1234
  %v1304 = vpop.f32.mrb[0].mxu0
  %v1305 = vadd.f32 0.0, %v1304
  %v1306 = vpop.f32.mrb[0].mxu0
  %1307 = vmatprep.mubr.f32.mxu0 0.0
  %1308 = vmatmul.mubr.f32.gmra.mrb[0].mxu0 %v1236
  %v1309 = vpop.f32.mrb[0].mxu0
  %v1310 = vadd.f32 0.0, %v1309
  %v1311 = vpop.f32.mrb[0].mxu0
  %1312 = vdwg.mxu0
  %v1313 = vadd.f32 %v1198, %v1305
  %v1314 = vadd.f32 %v1199, %v1310
  %s1315 = scalar_lea.vmem %s5, 128
  %v1316 = vld [vmem:[%s1315] sm:$0xff]
  %v1317 = vld [vmem:[%s1315 + $0x8] sm:$0xff]
  %v1318 = vld [vmem:[%s1315 + $0x10] sm:$0xff]
  %v1319 = vld [vmem:[%s1315 + $0x18] sm:$0xff]
  %v1320 = vcombine.low %v832, %v854
  %v1321 = vcombine.low %v469, %v848
  %v1323 = vunpack.c.l.s4 1983009808
  %v1324 = vunpack.c.0.s8 %v1323
  %v1325 = vlaneseq
  %v1326 = vshrl.u32 %v1325, 7
  %v1327 = vsub.s32 %v1324, %v1326
  %v1328 = vrot.slane %v1320, %v1327
  %v1330 = vunpack.c.l.s4 1983009808
  %v1331 = vunpack.c.0.s8 %v1330
  %v1332 = vlaneseq
  %v1333 = vshrl.u32 %v1332, 7
  %v1334 = vsub.s32 %v1331, %v1333
  %v1335 = vrot.slane %v1321, %v1334
  %v1336 = vcombine.low %v1328, %v1335
  %v1337 = vcombine.low %v855, %v469
  %v1339 = vunpack.c.l.s4 1983009808
  %v1340 = vunpack.c.0.s8 %v1339
  %v1341 = vlaneseq
  %v1342 = vshrl.u32 %v1341, 7
  %v1343 = vsub.s32 %v1340, %v1342
  %v1344 = vrot.slane %v1337, %v1343
  %v1345 = vsel %vm700, %v1336, 0
  %v1347 = vsel %vm700, %v1344, 0
  %1349 = vmatprep.subr.mxu0 0.0
  %1350 = vmatpush1.msra.mxu0 %v1316
  %1351 = vmatprep.subr.mxu0 0.0
  %1352 = vmatpush1.msra.mxu0 %v1317
  %1353 = vmatprep.subr.mxu0 0.0
  %1354 = vmatpush1.msra.mxu0 %v1318
  %1355 = vmatprep.subr.mxu0 0.0
  %1356 = vmatpush1.msra.mxu0 %v1319
  %1357 = vmatprep.subr.mxu0 0.0
  %1358 = vmatpush1.msra.mxu0 0.0
  %1359 = vmatprep.subr.mxu0 0.0
  %1360 = vmatpush1.msra.mxu0 0.0
  %1361 = vmatprep.subr.mxu0 0.0
  %1362 = vmatpush1.msra.mxu0 0.0
  %1363 = vmatprep.subr.mxu0 0.0
  %1364 = vmatpush1.msra.mxu0 0.0
  %1365 = vmatprep.subr.mxu0 0.0
  %1366 = vmatpush1.msra.mxu0 0.0
  %1367 = vmatprep.subr.mxu0 0.0
  %1368 = vmatpush1.msra.mxu0 0.0
  %1369 = vmatprep.subr.mxu0 0.0
  %1370 = vmatpush1.msra.mxu0 0.0
  %1371 = vmatprep.subr.mxu0 0.0
  %1372 = vmatpush1.msra.mxu0 0.0
  %1373 = vmatprep.subr.mxu0 0.0
  %1374 = vmatpush1.msra.mxu0 0.0
  %1375 = vmatprep.subr.mxu0 0.0
  %1376 = vmatpush1.msra.mxu0 0.0
  %1377 = vmatprep.subr.mxu0 0.0
  %1378 = vmatpush1.msra.mxu0 0.0
  %1379 = vmatprep.subr.mxu0 0.0
  %1380 = vmatpush1.msra.mxu0 0.0
  %1381 = vmatprep.subr.mxu0 0.0
  %1382 = vmatpush1.msra.mxu0 0.0
  %1383 = vmatprep.subr.mxu0 0.0
  %1384 = vmatpush1.msra.mxu0 0.0
  %1385 = vmatprep.subr.mxu0 0.0
  %1386 = vmatpush1.msra.mxu0 0.0
  %1387 = vmatprep.subr.mxu0 0.0
  %1388 = vmatpush1.msra.mxu0 0.0
  %1389 = vmatprep.subr.mxu0 0.0
  %1390 = vmatpush1.msra.mxu0 0.0
  %1391 = vmatprep.subr.mxu0 0.0
  %1392 = vmatpush1.msra.mxu0 0.0
  %1393 = vmatprep.subr.mxu0 0.0
  %1394 = vmatpush1.msra.mxu0 0.0
  %1395 = vmatprep.subr.mxu0 0.0
  %1396 = vmatpush1.msra.mxu0 0.0
  %1397 = vmatprep.subr.mxu0 0.0
  %1398 = vmatpush1.msra.mxu0 0.0
  %1399 = vmatprep.subr.mxu0 0.0
  %1400 = vmatpush1.msra.mxu0 0.0
  %1401 = vmatprep.subr.mxu0 0.0
  %1402 = vmatpush1.msra.mxu0 0.0
  %1403 = vmatprep.subr.mxu0 0.0
  %1404 = vmatpush1.msra.mxu0 0.0
  %1405 = vmatprep.subr.mxu0 0.0
  %1406 = vmatpush1.msra.mxu0 0.0
  %1407 = vmatprep.subr.mxu0 0.0
  %1408 = vmatpush1.msra.mxu0 0.0
  %1409 = vmatprep.subr.mxu0 0.0
  %1410 = vmatpush1.msra.mxu0 0.0
  %1411 = vmatprep.subr.mxu0 0.0
  %1412 = vmatpush1.msra.mxu0 0.0
  %1413 = vmatprep.mubr.f32.mxu0 0.0
  %1414 = vmatmul.mubr.f32.gmra.mrb[0].mxu0 %v1345
  %v1415 = vpop.f32.mrb[0].mxu0
  %v1416 = vadd.f32 0.0, %v1415
  %v1417 = vpop.f32.mrb[0].mxu0
  %1418 = vmatprep.mubr.f32.mxu0 0.0
  %1419 = vmatmul.mubr.f32.gmra.mrb[0].mxu0 %v1347
  %v1420 = vpop.f32.mrb[0].mxu0
  %v1421 = vadd.f32 0.0, %v1420
  %v1422 = vpop.f32.mrb[0].mxu0
  %1423 = vdwg.mxu0
  %v1424 = vadd.f32 %v1313, %v1416
  %v1425 = vadd.f32 %v1314, %v1421
  %v1426 = vld [vmem:[%s6] sm:$0x1]
  %v1428 = vlaneseq
  %v1429 = vshrl.u32 %v1428, 7
  %v1430 = vsub.s32 0, %v1429
  %v1431 = vrot.slane %v1426, %v1430
  %v1433 = vadd.f32 %v1424, %v1431
  %v1434 = vadd.f32 %v1425, %v1431
  %v1435 = vsel %vm700, %v1433, 0.0
  %v1436 = vsel %vm702, %v1434, 0.0
  %v1437 = vadd.f32 %v1435, %v1436
  %v1438 = vrot.slane %v1437, 4
  %v1439 = vadd.f32 %v1437, %v1438
  %v1440 = vrot.slane %v1439, 2
  %v1441 = vadd.f32 %v1439, %v1440
  %v1442 = vrot.slane %v1441, 1
  %v1443 = vadd.f32 %v1441, %v1442
  %v1444 = vmul.f32 %v1443, %v711
  %v1445 = vsub.f32 %v1433, %v1444
  %v1446 = vsub.f32 %v1434, %v1444
  %v1447 = vmul.f32 %v1445, %v1445
  %v1448 = vmul.f32 %v1446, %v1446
  %v1449 = vsel %vm700, %v1447, 0.0
  %v1450 = vsel %vm702, %v1448, 0.0
  %v1451 = vadd.f32 %v1449, %v1450
  %v1452 = vrot.slane %v1451, 4
  %v1453 = vadd.f32 %v1451, %v1452
  %v1454 = vrot.slane %v1453, 2
  %v1455 = vadd.f32 %v1453, %v1454
  %v1456 = vrot.slane %v1455, 1
  %v1457 = vadd.f32 %v1455, %v1456
  %v1458 = vmul.f32 %v1457, %v711
  %v1459 = vadd.f32 %v1458, 1e-05
  %v1460 = vrsqrt.pop %v1459
  %v1461 = vmul.f32 %v1445, %v1460
  %v1462 = vmul.f32 %v1446, %v1460
  %v1463 = vld [vmem:[%s7] sm:$0x1]
  %v1465 = vlaneseq
  %v1466 = vshrl.u32 %v1465, 7
  %v1467 = vsub.s32 0, %v1466
  %v1468 = vrot.slane %v1463, %v1467
  %v1470 = vmul.f32 %v1468, %v1461
  %v1471 = vmul.f32 %v1468, %v1462
  %v1472 = vld [vmem:[%s8] sm:$0x1]
  %v1474 = vlaneseq
  %v1475 = vshrl.u32 %v1474, 7
  %v1476 = vsub.s32 0, %v1475
  %v1477 = vrot.slane %v1472, %v1476
  %v1479 = vadd.f32 %v1470, %v1477
  %v1480 = vadd.f32 %v1471, %v1477
  %v1481 = vtanh.pop %v1479
  %v1482 = vtanh.pop %v1480
  %v1485 = vcombine.high %v1481, %v1481
  %v1487 = vunpack.c.l.s4 1983009808
  %v1488 = vunpack.c.0.s8 %v1487
  %v1489 = vlaneseq
  %v1490 = vshrl.u32 %v1489, 7
  %v1491 = vsub.s32 %v1488, %v1490
  %v1492 = vrot.slane %v1481, %v1491
  %v1494 = vunpack.c.l.s4 1983009808
  %v1495 = vunpack.c.0.s8 %v1494
  %v1496 = vlaneseq
  %v1497 = vshrl.u32 %v1496, 7
  %v1498 = vsub.s32 %v1495, %v1497
  %v1499 = vrot.slane %v1485, %v1498
  %v1500 = vcombine.high %v1492, %v1492
  %v1501 = vcombine.high %v1499, %v1499
  %v1503 = vunpack.c.l.s4 1983009808
  %v1504 = vunpack.c.0.s8 %v1503
  %v1505 = vlaneseq
  %v1506 = vshrl.u32 %v1505, 7
  %v1507 = vsub.s32 %v1504, %v1506
  %v1508 = vrot.slane %v1482, %v1507
  %v1509 = vcombine.high %v1508, %v1508
  %v1510 = vcombine.low %v1492, %v1492
  %v1511 = vcombine.low %v1500, %v1499
  %v1513 = vunpack.c.l.s4 1983009808
  %v1514 = vunpack.c.0.s8 %v1513
  %v1515 = vlaneseq
  %v1516 = vshrl.u32 %v1515, 7
  %v1517 = vsub.s32 %v1514, %v1516
  %v1518 = vrot.slane %v1510, %v1517
  %v1520 = vunpack.c.l.s4 1983009808
  %v1521 = vunpack.c.0.s8 %v1520
  %v1522 = vlaneseq
  %v1523 = vshrl.u32 %v1522, 7
  %v1524 = vsub.s32 %v1521, %v1523
  %v1525 = vrot.slane %v1511, %v1524
  %v1526 = vcombine.low %v1518, %v1525
  %v1527 = vcombine.low %v1501, %v1501
  %v1528 = vcombine.low %v1508, %v1509
  %v1530 = vunpack.c.l.s4 1983009808
  %v1531 = vunpack.c.0.s8 %v1530
  %v1532 = vlaneseq
  %v1533 = vshrl.u32 %v1532, 7
  %v1534 = vsub.s32 %v1531, %v1533
  %v1535 = vrot.slane %v1527, %v1534
  %v1537 = vunpack.c.l.s4 1983009808
  %v1538 = vunpack.c.0.s8 %v1537
  %v1539 = vlaneseq
  %v1540 = vshrl.u32 %v1539, 7
  %v1541 = vsub.s32 %v1538, %v1540
  %v1542 = vrot.slane %v1528, %v1541
  %v1543 = vcombine.low %v1535, %v1542
  %v1546 = vsel %vm76, 0.0, %v1526
  %v1547 = vsel %vm76, 0.0, %v1543
  %v1550 = vcombine.high %v1546, %v1546
  %v1552 = vunpack.c.l.s4 1983009808
  %v1553 = vunpack.c.0.s8 %v1552
  %v1554 = vlaneseq
  %v1555 = vshrl.u32 %v1554, 7
  %v1556 = vsub.s32 %v1553, %v1555
  %v1557 = vrot.slane %v1546, %v1556
  %v1559 = vunpack.c.l.s4 1983009808
  %v1560 = vunpack.c.0.s8 %v1559
  %v1561 = vlaneseq
  %v1562 = vshrl.u32 %v1561, 7
  %v1563 = vsub.s32 %v1560, %v1562
  %v1564 = vrot.slane %v1550, %v1563
  %v1565 = vcombine.high %v1557, %v1557
  %v1566 = vcombine.high %v1547, %v1547
  %v1568 = vunpack.c.l.s4 1983009808
  %v1569 = vunpack.c.0.s8 %v1568
  %v1570 = vlaneseq
  %v1571 = vshrl.u32 %v1570, 7
  %v1572 = vsub.s32 %v1569, %v1571
  %v1573 = vrot.slane %v1547, %v1572
  %v1575 = vunpack.c.l.s4 1983009808
  %v1576 = vunpack.c.0.s8 %v1575
  %v1577 = vlaneseq
  %v1578 = vshrl.u32 %v1577, 7
  %v1579 = vsub.s32 %v1576, %v1578
  %v1580 = vrot.slane %v1566, %v1579
  %v1581 = vcombine.high %v1573, %v1573
  %v1582 = vld [vmem:[%s9] sm:$0xff]
  %v1583 = vld [vmem:[%s9 + $0x8] sm:$0xff]
  %v1584 = vld [vmem:[%s9 + $0x10] sm:$0xff]
  %v1585 = vld [vmem:[%s9 + $0x18] sm:$0xff]
  %v1586 = vcombine.high %v1564, %v1564
  %v1587 = vcombine.high %v1580, %v1580
  %v1588 = vrot.slane %v1557, 7
  %v1589 = vrot.slane %v1588, 2
  %v1590 = vrot.slane %v1565, 7
  %v1591 = vsel %vm122, %v1589, %v1590
  %v1592 = vrot.slane %v1590, 2
  %v1593 = vrot.slane %v1564, 7
  %v1594 = vsel %vm122, %v1592, %v1593
  %v1595 = vrot.slane %v1593, 2
  %v1596 = vrot.slane %v1586, 7
  %v1597 = vsel %vm122, %v1595, %v1596
  %v1598 = vrot.slane %v1573, 7
  %v1599 = vrot.slane %v1598, 2
  %v1600 = vrot.slane %v1581, 7
  %v1601 = vsel %vm122, %v1599, %v1600
  %v1602 = vrot.slane %v1600, 2
  %v1603 = vrot.slane %v1580, 7
  %v1604 = vsel %vm122, %v1602, %v1603
  %v1605 = vrot.slane %v1603, 2
  %v1606 = vrot.slane %v1587, 7
  %v1607 = vsel %vm122, %v1605, %v1606
  %s1608 = scalar_lea.vmem %s9, 32
  %v1609 = vld [vmem:[%s1608] sm:$0xff]
  %v1610 = vld [vmem:[%s1608 + $0x8] sm:$0xff]
  %v1611 = vld [vmem:[%s1608 + $0x10] sm:$0xff]
  %v1612 = vld [vmem:[%s1608 + $0x18] sm:$0xff]
  %v1613 = vcombine.low %v1591, %v1594
  %v1614 = vcombine.low %v1597, %v1601
  %v1616 = vunpack.c.l.s4 1983009808
  %v1617 = vunpack.c.0.s8 %v1616
  %v1618 = vlaneseq
  %v1619 = vshrl.u32 %v1618, 7
  %v1620 = vsub.s32 %v1617, %v1619
  %v1621 = vrot.slane %v1613, %v1620
  %v1623 = vunpack.c.l.s4 1983009808
  %v1624 = vunpack.c.0.s8 %v1623
  %v1625 = vlaneseq
  %v1626 = vshrl.u32 %v1625, 7
  %v1627 = vsub.s32 %v1624, %v1626
  %v1628 = vrot.slane %v1614, %v1627
  %v1629 = vcombine.low %v1621, %v1628
  %v1630 = vcombine.low %v1604, %v1607
  %v1632 = vunpack.c.l.s4 1983009808
  %v1633 = vunpack.c.0.s8 %v1632
  %v1634 = vlaneseq
  %v1635 = vshrl.u32 %v1634, 7
  %v1636 = vsub.s32 %v1633, %v1635
  %v1637 = vrot.slane %v1630, %v1636
  %v1638 = vsel %vm700, %v1629, 0
  %v1640 = vsel %vm700, %v1637, 0
  %1642 = vmatprep.subr.mxu0 0.0
  %1643 = vmatpush1.msra.mxu0 %v1609
  %1644 = vmatprep.subr.mxu0 0.0
  %1645 = vmatpush1.msra.mxu0 %v1610
  %1646 = vmatprep.subr.mxu0 0.0
  %1647 = vmatpush1.msra.mxu0 %v1611
  %1648 = vmatprep.subr.mxu0 0.0
  %1649 = vmatpush1.msra.mxu0 %v1612
  %1650 = vmatprep.subr.mxu0 0.0
  %1651 = vmatpush1.msra.mxu0 0.0
  %1652 = vmatprep.subr.mxu0 0.0
  %1653 = vmatpush1.msra.mxu0 0.0
  %1654 = vmatprep.subr.mxu0 0.0
  %1655 = vmatpush1.msra.mxu0 0.0
  %1656 = vmatprep.subr.mxu0 0.0
  %1657 = vmatpush1.msra.mxu0 0.0
  %1658 = vmatprep.subr.mxu0 0.0
  %1659 = vmatpush1.msra.mxu0 0.0
  %1660 = vmatprep.subr.mxu0 0.0
  %1661 = vmatpush1.msra.mxu0 0.0
  %1662 = vmatprep.subr.mxu0 0.0
  %1663 = vmatpush1.msra.mxu0 0.0
  %1664 = vmatprep.subr.mxu0 0.0
  %1665 = vmatpush1.msra.mxu0 0.0
  %1666 = vmatprep.subr.mxu0 0.0
  %1667 = vmatpush1.msra.mxu0 0.0
  %1668 = vmatprep.subr.mxu0 0.0
  %1669 = vmatpush1.msra.mxu0 0.0
  %1670 = vmatprep.subr.mxu0 0.0
  %1671 = vmatpush1.msra.mxu0 0.0
  %1672 = vmatprep.subr.mxu0 0.0
  %1673 = vmatpush1.msra.mxu0 0.0
  %1674 = vmatprep.subr.mxu0 0.0
  %1675 = vmatpush1.msra.mxu0 0.0
  %1676 = vmatprep.subr.mxu0 0.0
  %1677 = vmatpush1.msra.mxu0 0.0
  %1678 = vmatprep.subr.mxu0 0.0
  %1679 = vmatpush1.msra.mxu0 0.0
  %1680 = vmatprep.subr.mxu0 0.0
  %1681 = vmatpush1.msra.mxu0 0.0
  %1682 = vmatprep.subr.mxu0 0.0
  %1683 = vmatpush1.msra.mxu0 0.0
  %1684 = vmatprep.subr.mxu0 0.0
  %1685 = vmatpush1.msra.mxu0 0.0
  %1686 = vmatprep.subr.mxu0 0.0
  %1687 = vmatpush1.msra.mxu0 0.0
  %1688 = vmatprep.subr.mxu0 0.0
  %1689 = vmatpush1.msra.mxu0 0.0
  %1690 = vmatprep.subr.mxu0 0.0
  %1691 = vmatpush1.msra.mxu0 0.0
  %1692 = vmatprep.subr.mxu0 0.0
  %1693 = vmatpush1.msra.mxu0 0.0
  %1694 = vmatprep.subr.mxu0 0.0
  %1695 = vmatpush1.msra.mxu0 0.0
  %1696 = vmatprep.subr.mxu0 0.0
  %1697 = vmatpush1.msra.mxu0 0.0
  %1698 = vmatprep.subr.mxu0 0.0
  %1699 = vmatpush1.msra.mxu0 0.0
  %1700 = vmatprep.subr.mxu0 0.0
  %1701 = vmatpush1.msra.mxu0 0.0
  %1702 = vmatprep.subr.mxu0 0.0
  %1703 = vmatpush1.msra.mxu0 0.0
  %1704 = vmatprep.subr.mxu0 0.0
  %1705 = vmatpush1.msra.mxu0 0.0
  %1706 = vmatprep.mubr.f32.mxu0 0.0
  %1707 = vmatmul.mubr.f32.gmra.mrb[0].mxu0 %v1638
  %v1708 = vpop.f32.mrb[0].mxu0
  %v1709 = vadd.f32 0.0, %v1708
  %v1710 = vpop.f32.mrb[0].mxu0
  %1711 = vmatprep.mubr.f32.mxu0 0.0
  %1712 = vmatmul.mubr.f32.gmra.mrb[0].mxu0 %v1640
  %v1713 = vpop.f32.mrb[0].mxu0
  %v1714 = vadd.f32 0.0, %v1713
  %v1715 = vpop.f32.mrb[0].mxu0
  %1716 = vdwg.mxu0
  %v1717 = vcombine.low %v1557, %v1565
  %v1718 = vcombine.low %v1564, %v1573
  %v1720 = vunpack.c.l.s4 1983009808
  %v1721 = vunpack.c.0.s8 %v1720
  %v1722 = vlaneseq
  %v1723 = vshrl.u32 %v1722, 7
  %v1724 = vsub.s32 %v1721, %v1723
  %v1725 = vrot.slane %v1717, %v1724
  %v1727 = vunpack.c.l.s4 1983009808
  %v1728 = vunpack.c.0.s8 %v1727
  %v1729 = vlaneseq
  %v1730 = vshrl.u32 %v1729, 7
  %v1731 = vsub.s32 %v1728, %v1730
  %v1732 = vrot.slane %v1718, %v1731
  %v1733 = vcombine.low %v1725, %v1732
  %v1734 = vcombine.low %v1581, %v1580
  %v1736 = vunpack.c.l.s4 1983009808
  %v1737 = vunpack.c.0.s8 %v1736
  %v1738 = vlaneseq
  %v1739 = vshrl.u32 %v1738, 7
  %v1740 = vsub.s32 %v1737, %v1739
  %v1741 = vrot.slane %v1734, %v1740
  %v1742 = vsel %vm700, %v1733, 0
  %v1744 = vsel %vm700, %v1741, 0
  %1746 = vmatprep.subr.mxu0 0.0
  %1747 = vmatpush1.msra.mxu0 %v1582
  %1748 = vmatprep.subr.mxu0 0.0
  %1749 = vmatpush1.msra.mxu0 %v1583
  %1750 = vmatprep.subr.mxu0 0.0
  %1751 = vmatpush1.msra.mxu0 %v1584
  %1752 = vmatprep.subr.mxu0 0.0
  %1753 = vmatpush1.msra.mxu0 %v1585
  %1754 = vmatprep.subr.mxu0 0.0
  %1755 = vmatpush1.msra.mxu0 0.0
  %1756 = vmatprep.subr.mxu0 0.0
  %1757 = vmatpush1.msra.mxu0 0.0
  %1758 = vmatprep.subr.mxu0 0.0
  %1759 = vmatpush1.msra.mxu0 0.0
  %1760 = vmatprep.subr.mxu0 0.0
  %1761 = vmatpush1.msra.mxu0 0.0
  %1762 = vmatprep.subr.mxu0 0.0
  %1763 = vmatpush1.msra.mxu0 0.0
  %1764 = vmatprep.subr.mxu0 0.0
  %1765 = vmatpush1.msra.mxu0 0.0
  %1766 = vmatprep.subr.mxu0 0.0
  %1767 = vmatpush1.msra.mxu0 0.0
  %1768 = vmatprep.subr.mxu0 0.0
  %1769 = vmatpush1.msra.mxu0 0.0
  %1770 = vmatprep.subr.mxu0 0.0
  %1771 = vmatpush1.msra.mxu0 0.0
  %1772 = vmatprep.subr.mxu0 0.0
  %1773 = vmatpush1.msra.mxu0 0.0
  %1774 = vmatprep.subr.mxu0 0.0
  %1775 = vmatpush1.msra.mxu0 0.0
  %1776 = vmatprep.subr.mxu0 0.0
  %1777 = vmatpush1.msra.mxu0 0.0
  %1778 = vmatprep.subr.mxu0 0.0
  %1779 = vmatpush1.msra.mxu0 0.0
  %1780 = vmatprep.subr.mxu0 0.0
  %1781 = vmatpush1.msra.mxu0 0.0
  %1782 = vmatprep.subr.mxu0 0.0
  %1783 = vmatpush1.msra.mxu0 0.0
  %1784 = vmatprep.subr.mxu0 0.0
  %1785 = vmatpush1.msra.mxu0 0.0
  %1786 = vmatprep.subr.mxu0 0.0
  %1787 = vmatpush1.msra.mxu0 0.0
  %1788 = vmatprep.subr.mxu0 0.0
  %1789 = vmatpush1.msra.mxu0 0.0
  %1790 = vmatprep.subr.mxu0 0.0
  %1791 = vmatpush1.msra.mxu0 0.0
  %1792 = vmatprep.subr.mxu0 0.0
  %1793 = vmatpush1.msra.mxu0 0.0
  %1794 = vmatprep.subr.mxu0 0.0
  %1795 = vmatpush1.msra.mxu0 0.0
  %1796 = vmatprep.subr.mxu0 0.0
  %1797 = vmatpush1.msra.mxu0 0.0
  %1798 = vmatprep.subr.mxu0 0.0
  %1799 = vmatpush1.msra.mxu0 0.0
  %1800 = vmatprep.subr.mxu0 0.0
  %1801 = vmatpush1.msra.mxu0 0.0
  %1802 = vmatprep.subr.mxu0 0.0
  %1803 = vmatpush1.msra.mxu0 0.0
  %1804 = vmatprep.subr.mxu0 0.0
  %1805 = vmatpush1.msra.mxu0 0.0
  %1806 = vmatprep.subr.mxu0 0.0
  %1807 = vmatpush1.msra.mxu0 0.0
  %1808 = vmatprep.subr.mxu0 0.0
  %1809 = vmatpush1.msra.mxu0 0.0
  %1810 = vmatprep.mubr.f32.mxu0 0.0
  %1811 = vmatmul.mubr.f32.gmra.mrb[0].mxu0 %v1742
  %v1812 = vpop.f32.mrb[0].mxu0
  %v1813 = vadd.f32 %v1709, %v1812
  %v1814 = vpop.f32.mrb[0].mxu0
  %1815 = vmatprep.mubr.f32.mxu0 0.0
  %1816 = vmatmul.mubr.f32.gmra.mrb[0].mxu0 %v1744
  %v1817 = vpop.f32.mrb[0].mxu0
  %v1818 = vadd.f32 %v1714, %v1817
  %v1819 = vpop.f32.mrb[0].mxu0
  %1820 = vdwg.mxu0
  %s1821 = scalar_lea.vmem %s9, 64
  %v1822 = vld [vmem:[%s1821] sm:$0xff]
  %v1823 = vld [vmem:[%s1821 + $0x8] sm:$0xff]
  %v1824 = vld [vmem:[%s1821 + $0x10] sm:$0xff]
  %v1825 = vld [vmem:[%s1821 + $0x18] sm:$0xff]
  %v1826 = vcombine.low %v1565, %v1564
  %v1827 = vcombine.low %v1586, %v1581
  %v1829 = vunpack.c.l.s4 1983009808
  %v1830 = vunpack.c.0.s8 %v1829
  %v1831 = vlaneseq
  %v1832 = vshrl.u32 %v1831, 7
  %v1833 = vsub.s32 %v1830, %v1832
  %v1834 = vrot.slane %v1826, %v1833
  %v1836 = vunpack.c.l.s4 1983009808
  %v1837 = vunpack.c.0.s8 %v1836
  %v1838 = vlaneseq
  %v1839 = vshrl.u32 %v1838, 7
  %v1840 = vsub.s32 %v1837, %v1839
  %v1841 = vrot.slane %v1827, %v1840
  %v1842 = vcombine.low %v1834, %v1841
  %v1843 = vcombine.low %v1580, %v1587
  %v1845 = vunpack.c.l.s4 1983009808
  %v1846 = vunpack.c.0.s8 %v1845
  %v1847 = vlaneseq
  %v1848 = vshrl.u32 %v1847, 7
  %v1849 = vsub.s32 %v1846, %v1848
  %v1850 = vrot.slane %v1843, %v1849
  %v1851 = vsel %vm700, %v1842, 0
  %v1853 = vsel %vm700, %v1850, 0
  %1855 = vmatprep.subr.mxu0 0.0
  %1856 = vmatpush1.msra.mxu0 %v1822
  %1857 = vmatprep.subr.mxu0 0.0
  %1858 = vmatpush1.msra.mxu0 %v1823
  %1859 = vmatprep.subr.mxu0 0.0
  %1860 = vmatpush1.msra.mxu0 %v1824
  %1861 = vmatprep.subr.mxu0 0.0
  %1862 = vmatpush1.msra.mxu0 %v1825
  %1863 = vmatprep.subr.mxu0 0.0
  %1864 = vmatpush1.msra.mxu0 0.0
  %1865 = vmatprep.subr.mxu0 0.0
  %1866 = vmatpush1.msra.mxu0 0.0
  %1867 = vmatprep.subr.mxu0 0.0
  %1868 = vmatpush1.msra.mxu0 0.0
  %1869 = vmatprep.subr.mxu0 0.0
  %1870 = vmatpush1.msra.mxu0 0.0
  %1871 = vmatprep.subr.mxu0 0.0
  %1872 = vmatpush1.msra.mxu0 0.0
  %1873 = vmatprep.subr.mxu0 0.0
  %1874 = vmatpush1.msra.mxu0 0.0
  %1875 = vmatprep.subr.mxu0 0.0
  %1876 = vmatpush1.msra.mxu0 0.0
  %1877 = vmatprep.subr.mxu0 0.0
  %1878 = vmatpush1.msra.mxu0 0.0
  %1879 = vmatprep.subr.mxu0 0.0
  %1880 = vmatpush1.msra.mxu0 0.0
  %1881 = vmatprep.subr.mxu0 0.0
  %1882 = vmatpush1.msra.mxu0 0.0
  %1883 = vmatprep.subr.mxu0 0.0
  %1884 = vmatpush1.msra.mxu0 0.0
  %1885 = vmatprep.subr.mxu0 0.0
  %1886 = vmatpush1.msra.mxu0 0.0
  %1887 = vmatprep.subr.mxu0 0.0
  %1888 = vmatpush1.msra.mxu0 0.0
  %1889 = vmatprep.subr.mxu0 0.0
  %1890 = vmatpush1.msra.mxu0 0.0
  %1891 = vmatprep.subr.mxu0 0.0
  %1892 = vmatpush1.msra.mxu0 0.0
  %1893 = vmatprep.subr.mxu0 0.0
  %1894 = vmatpush1.msra.mxu0 0.0
  %1895 = vmatprep.subr.mxu0 0.0
  %1896 = vmatpush1.msra.mxu0 0.0
  %1897 = vmatprep.subr.mxu0 0.0
  %1898 = vmatpush1.msra.mxu0 0.0
  %1899 = vmatprep.subr.mxu0 0.0
  %1900 = vmatpush1.msra.mxu0 0.0
  %1901 = vmatprep.subr.mxu0 0.0
  %1902 = vmatpush1.msra.mxu0 0.0
  %1903 = vmatprep.subr.mxu0 0.0
  %1904 = vmatpush1.msra.mxu0 0.0
  %1905 = vmatprep.subr.mxu0 0.0
  %1906 = vmatpush1.msra.mxu0 0.0
  %1907 = vmatprep.subr.mxu0 0.0
  %1908 = vmatpush1.msra.mxu0 0.0
  %1909 = vmatprep.subr.mxu0 0.0
  %1910 = vmatpush1.msra.mxu0 0.0
  %1911 = vmatprep.subr.mxu0 0.0
  %1912 = vmatpush1.msra.mxu0 0.0
  %1913 = vmatprep.subr.mxu0 0.0
  %1914 = vmatpush1.msra.mxu0 0.0
  %1915 = vmatprep.subr.mxu0 0.0
  %1916 = vmatpush1.msra.mxu0 0.0
  %1917 = vmatprep.subr.mxu0 0.0
  %1918 = vmatpush1.msra.mxu0 0.0
  %1919 = vmatprep.mubr.f32.mxu0 0.0
  %1920 = vmatmul.mubr.f32.gmra.mrb[0].mxu0 %v1851
  %v1921 = vpop.f32.mrb[0].mxu0
  %v1922 = vadd.f32 0.0, %v1921
  %v1923 = vpop.f32.mrb[0].mxu0
  %1924 = vmatprep.mubr.f32.mxu0 0.0
  %1925 = vmatmul.mubr.f32.gmra.mrb[0].mxu0 %v1853
  %v1926 = vpop.f32.mrb[0].mxu0
  %v1927 = vadd.f32 0.0, %v1926
  %v1928 = vpop.f32.mrb[0].mxu0
  %1929 = vdwg.mxu0
  %v1930 = vadd.f32 %v1813, %v1922
  %v1931 = vadd.f32 %v1818, %v1927
  %v1932 = vrot.slane %v1596, 2
  %v1933 = vsel %vm122, %v1932, %v471
  %v1934 = vrot.slane %v1606, 2
  %v1935 = vsel %vm122, %v1934, %v471
  %s1936 = scalar_lea.vmem %s9, 96
  %v1937 = vld [vmem:[%s1936] sm:$0xff]
  %v1938 = vld [vmem:[%s1936 + $0x8] sm:$0xff]
  %v1939 = vld [vmem:[%s1936 + $0x10] sm:$0xff]
  %v1940 = vld [vmem:[%s1936 + $0x18] sm:$0xff]
  %v1941 = vcombine.low %v1594, %v1597
  %v1942 = vcombine.low %v1933, %v1604
  %v1944 = vunpack.c.l.s4 1983009808
  %v1945 = vunpack.c.0.s8 %v1944
  %v1946 = vlaneseq
  %v1947 = vshrl.u32 %v1946, 7
  %v1948 = vsub.s32 %v1945, %v1947
  %v1949 = vrot.slane %v1941, %v1948
  %v1951 = vunpack.c.l.s4 1983009808
  %v1952 = vunpack.c.0.s8 %v1951
  %v1953 = vlaneseq
  %v1954 = vshrl.u32 %v1953, 7
  %v1955 = vsub.s32 %v1952, %v1954
  %v1956 = vrot.slane %v1942, %v1955
  %v1957 = vcombine.low %v1949, %v1956
  %v1958 = vcombine.low %v1607, %v1935
  %v1960 = vunpack.c.l.s4 1983009808
  %v1961 = vunpack.c.0.s8 %v1960
  %v1962 = vlaneseq
  %v1963 = vshrl.u32 %v1962, 7
  %v1964 = vsub.s32 %v1961, %v1963
  %v1965 = vrot.slane %v1958, %v1964
  %v1966 = vsel %vm700, %v1957, 0
  %v1968 = vsel %vm700, %v1965, 0
  %1970 = vmatprep.subr.mxu0 0.0
  %1971 = vmatpush1.msra.mxu0 %v1937
  %1972 = vmatprep.subr.mxu0 0.0
  %1973 = vmatpush1.msra.mxu0 %v1938
  %1974 = vmatprep.subr.mxu0 0.0
  %1975 = vmatpush1.msra.mxu0 %v1939
  %1976 = vmatprep.subr.mxu0 0.0
  %1977 = vmatpush1.msra.mxu0 %v1940
  %1978 = vmatprep.subr.mxu0 0.0
  %1979 = vmatpush1.msra.mxu0 0.0
  %1980 = vmatprep.subr.mxu0 0.0
  %1981 = vmatpush1.msra.mxu0 0.0
  %1982 = vmatprep.subr.mxu0 0.0
  %1983 = vmatpush1.msra.mxu0 0.0
  %1984 = vmatprep.subr.mxu0 0.0
  %1985 = vmatpush1.msra.mxu0 0.0
  %1986 = vmatprep.subr.mxu0 0.0
  %1987 = vmatpush1.msra.mxu0 0.0
  %1988 = vmatprep.subr.mxu0 0.0
  %1989 = vmatpush1.msra.mxu0 0.0
  %1990 = vmatprep.subr.mxu0 0.0
  %1991 = vmatpush1.msra.mxu0 0.0
  %1992 = vmatprep.subr.mxu0 0.0
  %1993 = vmatpush1.msra.mxu0 0.0
  %1994 = vmatprep.subr.mxu0 0.0
  %1995 = vmatpush1.msra.mxu0 0.0
  %1996 = vmatprep.subr.mxu0 0.0
  %1997 = vmatpush1.msra.mxu0 0.0
  %1998 = vmatprep.subr.mxu0 0.0
  %1999 = vmatpush1.msra.mxu0 0.0
  %2000 = vmatprep.subr.mxu0 0.0
  %2001 = vmatpush1.msra.mxu0 0.0
  %2002 = vmatprep.subr.mxu0 0.0
  %2003 = vmatpush1.msra.mxu0 0.0
  %2004 = vmatprep.subr.mxu0 0.0
  %2005 = vmatpush1.msra.mxu0 0.0
  %2006 = vmatprep.subr.mxu0 0.0
  %2007 = vmatpush1.msra.mxu0 0.0
  %2008 = vmatprep.subr.mxu0 0.0
  %2009 = vmatpush1.msra.mxu0 0.0
  %2010 = vmatprep.subr.mxu0 0.0
  %2011 = vmatpush1.msra.mxu0 0.0
  %2012 = vmatprep.subr.mxu0 0.0
  %2013 = vmatpush1.msra.mxu0 0.0
  %2014 = vmatprep.subr.mxu0 0.0
  %2015 = vmatpush1.msra.mxu0 0.0
  %2016 = vmatprep.subr.mxu0 0.0
  %2017 = vmatpush1.msra.mxu0 0.0
  %2018 = vmatprep.subr.mxu0 0.0
  %2019 = vmatpush1.msra.mxu0 0.0
  %2020 = vmatprep.subr.mxu0 0.0
  %2021 = vmatpush1.msra.mxu0 0.0
  %2022 = vmatprep.subr.mxu0 0.0
  %2023 = vmatpush1.msra.mxu0 0.0
  %2024 = vmatprep.subr.mxu0 0.0
  %2025 = vmatpush1.msra.mxu0 0.0
  %2026 = vmatprep.subr.mxu0 0.0
  %2027 = vmatpush1.msra.mxu0 0.0
  %2028 = vmatprep.subr.mxu0 0.0
  %2029 = vmatpush1.msra.mxu0 0.0
  %2030 = vmatprep.subr.mxu0 0.0
  %2031 = vmatpush1.msra.mxu0 0.0
  %2032 = vmatprep.subr.mxu0 0.0
  %2033 = vmatpush1.msra.mxu0 0.0
  %2034 = vmatprep.mubr.f32.mxu0 0.0
  %2035 = vmatmul.mubr.f32.gmra.mrb[0].mxu0 %v1966
  %v2036 = vpop.f32.mrb[0].mxu0
  %v2037 = vadd.f32 0.0, %v2036
  %v2038 = vpop.f32.mrb[0].mxu0
  %2039 = vmatprep.mubr.f32.mxu0 0.0
  %2040 = vmatmul.mubr.f32.gmra.mrb[0].mxu0 %v1968
  %v2041 = vpop.f32.mrb[0].mxu0
  %v2042 = vadd.f32 0.0, %v2041
  %v2043 = vpop.f32.mrb[0].mxu0
  %2044 = vdwg.mxu0
  %v2045 = vadd.f32 %v1930, %v2037
  %v2046 = vadd.f32 %v1931, %v2042
  %s2047 = scalar_lea.vmem %s9, 128
  %v2048 = vld [vmem:[%s2047] sm:$0xff]
  %v2049 = vld [vmem:[%s2047 + $0x8] sm:$0xff]
  %v2050 = vld [vmem:[%s2047 + $0x10] sm:$0xff]
  %v2051 = vld [vmem:[%s2047 + $0x18] sm:$0xff]
  %v2052 = vcombine.low %v1564, %v1586
  %v2053 = vcombine.low %v469, %v1580
  %v2055 = vunpack.c.l.s4 1983009808
  %v2056 = vunpack.c.0.s8 %v2055
  %v2057 = vlaneseq
  %v2058 = vshrl.u32 %v2057, 7
  %v2059 = vsub.s32 %v2056, %v2058
  %v2060 = vrot.slane %v2052, %v2059
  %v2062 = vunpack.c.l.s4 1983009808
  %v2063 = vunpack.c.0.s8 %v2062
  %v2064 = vlaneseq
  %v2065 = vshrl.u32 %v2064, 7
  %v2066 = vsub.s32 %v2063, %v2065
  %v2067 = vrot.slane %v2053, %v2066
  %v2068 = vcombine.low %v2060, %v2067
  %v2069 = vcombine.low %v1587, %v469
  %v2071 = vunpack.c.l.s4 1983009808
  %v2072 = vunpack.c.0.s8 %v2071
  %v2073 = vlaneseq
  %v2074 = vshrl.u32 %v2073, 7
  %v2075 = vsub.s32 %v2072, %v2074
  %v2076 = vrot.slane %v2069, %v2075
  %v2077 = vsel %vm700, %v2068, 0
  %v2079 = vsel %vm700, %v2076, 0
  %2081 = vmatprep.subr.mxu0 0.0
  %2082 = vmatpush1.msra.mxu0 %v2048
  %2083 = vmatprep.subr.mxu0 0.0
  %2084 = vmatpush1.msra.mxu0 %v2049
  %2085 = vmatprep.subr.mxu0 0.0
  %2086 = vmatpush1.msra.mxu0 %v2050
  %2087 = vmatprep.subr.mxu0 0.0
  %2088 = vmatpush1.msra.mxu0 %v2051
  %2089 = vmatprep.subr.mxu0 0.0
  %2090 = vmatpush1.msra.mxu0 0.0
  %2091 = vmatprep.subr.mxu0 0.0
  %2092 = vmatpush1.msra.mxu0 0.0
  %2093 = vmatprep.subr.mxu0 0.0
  %2094 = vmatpush1.msra.mxu0 0.0
  %2095 = vmatprep.subr.mxu0 0.0
  %2096 = vmatpush1.msra.mxu0 0.0
  %2097 = vmatprep.subr.mxu0 0.0
  %2098 = vmatpush1.msra.mxu0 0.0
  %2099 = vmatprep.subr.mxu0 0.0
  %2100 = vmatpush1.msra.mxu0 0.0
  %2101 = vmatprep.subr.mxu0 0.0
  %2102 = vmatpush1.msra.mxu0 0.0
  %2103 = vmatprep.subr.mxu0 0.0
  %2104 = vmatpush1.msra.mxu0 0.0
  %2105 = vmatprep.subr.mxu0 0.0
  %2106 = vmatpush1.msra.mxu0 0.0
  %2107 = vmatprep.subr.mxu0 0.0
  %2108 = vmatpush1.msra.mxu0 0.0
  %2109 = vmatprep.subr.mxu0 0.0
  %2110 = vmatpush1.msra.mxu0 0.0
  %2111 = vmatprep.subr.mxu0 0.0
  %2112 = vmatpush1.msra.mxu0 0.0
  %2113 = vmatprep.subr.mxu0 0.0
  %2114 = vmatpush1.msra.mxu0 0.0
  %2115 = vmatprep.subr.mxu0 0.0
  %2116 = vmatpush1.msra.mxu0 0.0
  %2117 = vmatprep.subr.mxu0 0.0
  %2118 = vmatpush1.msra.mxu0 0.0
  %2119 = vmatprep.subr.mxu0 0.0
  %2120 = vmatpush1.msra.mxu0 0.0
  %2121 = vmatprep.subr.mxu0 0.0
  %2122 = vmatpush1.msra.mxu0 0.0
  %2123 = vmatprep.subr.mxu0 0.0
  %2124 = vmatpush1.msra.mxu0 0.0
  %2125 = vmatprep.subr.mxu0 0.0
  %2126 = vmatpush1.msra.mxu0 0.0
  %2127 = vmatprep.subr.mxu0 0.0
  %2128 = vmatpush1.msra.mxu0 0.0
  %2129 = vmatprep.subr.mxu0 0.0
  %2130 = vmatpush1.msra.mxu0 0.0
  %2131 = vmatprep.subr.mxu0 0.0
  %2132 = vmatpush1.msra.mxu0 0.0
  %2133 = vmatprep.subr.mxu0 0.0
  %2134 = vmatpush1.msra.mxu0 0.0
  %2135 = vmatprep.subr.mxu0 0.0
  %2136 = vmatpush1.msra.mxu0 0.0
  %2137 = vmatprep.subr.mxu0 0.0
  %2138 = vmatpush1.msra.mxu0 0.0
  %2139 = vmatprep.subr.mxu0 0.0
  %2140 = vmatpush1.msra.mxu0 0.0
  %2141 = vmatprep.subr.mxu0 0.0
  %2142 = vmatpush1.msra.mxu0 0.0
  %2143 = vmatprep.subr.mxu0 0.0
  %2144 = vmatpush1.msra.mxu0 0.0
  %2145 = vmatprep.mubr.f32.mxu0 0.0
  %2146 = vmatmul.mubr.f32.gmra.mrb[0].mxu0 %v2077
  %v2147 = vpop.f32.mrb[0].mxu0
  %v2148 = vadd.f32 0.0, %v2147
  %v2149 = vpop.f32.mrb[0].mxu0
  %2150 = vmatprep.mubr.f32.mxu0 0.0
  %2151 = vmatmul.mubr.f32.gmra.mrb[0].mxu0 %v2079
  %v2152 = vpop.f32.mrb[0].mxu0
  %v2153 = vadd.f32 0.0, %v2152
  %v2154 = vpop.f32.mrb[0].mxu0
  %2155 = vdwg.mxu0
  %v2156 = vadd.f32 %v2045, %v2148
  %v2157 = vadd.f32 %v2046, %v2153
  %v2158 = vld [vmem:[%s10] sm:$0x1]
  %v2160 = vlaneseq
  %v2161 = vshrl.u32 %v2160, 7
  %v2162 = vsub.s32 0, %v2161
  %v2163 = vrot.slane %v2158, %v2162
  %v2165 = vadd.f32 %v2156, %v2163
  %v2166 = vadd.f32 %v2157, %v2163
  %v2167 = vsel %vm700, %v2165, 0.0
  %v2168 = vsel %vm702, %v2166, 0.0
  %v2169 = vadd.f32 %v2167, %v2168
  %v2170 = vrot.slane %v2169, 4
  %v2171 = vadd.f32 %v2169, %v2170
  %v2172 = vrot.slane %v2171, 2
  %v2173 = vadd.f32 %v2171, %v2172
  %v2174 = vrot.slane %v2173, 1
  %v2175 = vadd.f32 %v2173, %v2174
  %v2176 = vmul.f32 %v2175, %v711
  %v2177 = vsub.f32 %v2165, %v2176
  %v2178 = vsub.f32 %v2166, %v2176
  %v2179 = vmul.f32 %v2177, %v2177
  %v2180 = vmul.f32 %v2178, %v2178
  %v2181 = vsel %vm700, %v2179, 0.0
  %v2182 = vsel %vm702, %v2180, 0.0
  %v2183 = vadd.f32 %v2181, %v2182
  %v2184 = vrot.slane %v2183, 4
  %v2185 = vadd.f32 %v2183, %v2184
  %v2186 = vrot.slane %v2185, 2
  %v2187 = vadd.f32 %v2185, %v2186
  %v2188 = vrot.slane %v2187, 1
  %v2189 = vadd.f32 %v2187, %v2188
  %v2190 = vmul.f32 %v2189, %v711
  %v2191 = vadd.f32 %v2190, 1e-05
  %v2192 = vrsqrt.pop %v2191
  %v2193 = vmul.f32 %v2177, %v2192
  %v2194 = vmul.f32 %v2178, %v2192
  %v2195 = vld [vmem:[%s11] sm:$0x1]
  %v2197 = vlaneseq
  %v2198 = vshrl.u32 %v2197, 7
  %v2199 = vsub.s32 0, %v2198
  %v2200 = vrot.slane %v2195, %v2199
  %v2202 = vmul.f32 %v2200, %v2193
  %v2203 = vmul.f32 %v2200, %v2194
  %v2204 = vld [vmem:[%s12] sm:$0x1]
  %v2206 = vlaneseq
  %v2207 = vshrl.u32 %v2206, 7
  %v2208 = vsub.s32 0, %v2207
  %v2209 = vrot.slane %v2204, %v2208
  %v2211 = vadd.f32 %v2202, %v2209
  %v2212 = vadd.f32 %v2203, %v2209
  %v2213 = vtanh.pop %v2211
  %v2214 = vtanh.pop %v2212
  %v2217 = vcombine.high %v2213, %v2213
  %v2219 = vunpack.c.l.s4 1983009808
  %v2220 = vunpack.c.0.s8 %v2219
  %v2221 = vlaneseq
  %v2222 = vshrl.u32 %v2221, 7
  %v2223 = vsub.s32 %v2220, %v2222
  %v2224 = vrot.slane %v2213, %v2223
  %v2226 = vunpack.c.l.s4 1983009808
  %v2227 = vunpack.c.0.s8 %v2226
  %v2228 = vlaneseq
  %v2229 = vshrl.u32 %v2228, 7
  %v2230 = vsub.s32 %v2227, %v2229
  %v2231 = vrot.slane %v2217, %v2230
  %v2232 = vcombine.high %v2224, %v2224
  %v2233 = vcombine.high %v2231, %v2231
  %v2235 = vunpack.c.l.s4 1983009808
  %v2236 = vunpack.c.0.s8 %v2235
  %v2237 = vlaneseq
  %v2238 = vshrl.u32 %v2237, 7
  %v2239 = vsub.s32 %v2236, %v2238
  %v2240 = vrot.slane %v2214, %v2239
  %v2241 = vcombine.high %v2240, %v2240
  %v2242 = vcombine.low %v2224, %v2224
  %v2243 = vcombine.low %v2232, %v2231
  %v2245 = vunpack.c.l.s4 1983009808
  %v2246 = vunpack.c.0.s8 %v2245
  %v2247 = vlaneseq
  %v2248 = vshrl.u32 %v2247, 7
  %v2249 = vsub.s32 %v2246, %v2248
  %v2250 = vrot.slane %v2242, %v2249
  %v2252 = vunpack.c.l.s4 1983009808
  %v2253 = vunpack.c.0.s8 %v2252
  %v2254 = vlaneseq
  %v2255 = vshrl.u32 %v2254, 7
  %v2256 = vsub.s32 %v2253, %v2255
  %v2257 = vrot.slane %v2243, %v2256
  %v2258 = vcombine.low %v2250, %v2257
  %v2259 = vcombine.low %v2233, %v2233
  %v2260 = vcombine.low %v2240, %v2241
  %v2262 = vunpack.c.l.s4 1983009808
  %v2263 = vunpack.c.0.s8 %v2262
  %v2264 = vlaneseq
  %v2265 = vshrl.u32 %v2264, 7
  %v2266 = vsub.s32 %v2263, %v2265
  %v2267 = vrot.slane %v2259, %v2266
  %v2269 = vunpack.c.l.s4 1983009808
  %v2270 = vunpack.c.0.s8 %v2269
  %v2271 = vlaneseq
  %v2272 = vshrl.u32 %v2271, 7
  %v2273 = vsub.s32 %v2270, %v2272
  %v2274 = vrot.slane %v2260, %v2273
  %v2275 = vcombine.low %v2267, %v2274
  %v2278 = vsel %vm76, 0.0, %v2258
  %v2279 = vsel %vm76, 0.0, %v2275
  %v2282 = vcombine.high %v2278, %v2278
  %v2284 = vunpack.c.l.s4 1983009808
  %v2285 = vunpack.c.0.s8 %v2284
  %v2286 = vlaneseq
  %v2287 = vshrl.u32 %v2286, 7
  %v2288 = vsub.s32 %v2285, %v2287
  %v2289 = vrot.slane %v2278, %v2288
  %v2291 = vunpack.c.l.s4 1983009808
  %v2292 = vunpack.c.0.s8 %v2291
  %v2293 = vlaneseq
  %v2294 = vshrl.u32 %v2293, 7
  %v2295 = vsub.s32 %v2292, %v2294
  %v2296 = vrot.slane %v2282, %v2295
  %v2297 = vcombine.high %v2289, %v2289
  %v2298 = vcombine.high %v2279, %v2279
  %v2300 = vunpack.c.l.s4 1983009808
  %v2301 = vunpack.c.0.s8 %v2300
  %v2302 = vlaneseq
  %v2303 = vshrl.u32 %v2302, 7
  %v2304 = vsub.s32 %v2301, %v2303
  %v2305 = vrot.slane %v2279, %v2304
  %v2307 = vunpack.c.l.s4 1983009808
  %v2308 = vunpack.c.0.s8 %v2307
  %v2309 = vlaneseq
  %v2310 = vshrl.u32 %v2309, 7
  %v2311 = vsub.s32 %v2308, %v2310
  %v2312 = vrot.slane %v2298, %v2311
  %v2313 = vcombine.high %v2305, %v2305
  %v2314 = vld [vmem:[%s13] sm:$0xff]
  %v2315 = vld [vmem:[%s13 + $0x8] sm:$0xff]
  %v2316 = vld [vmem:[%s13 + $0x10] sm:$0xff]
  %v2317 = vld [vmem:[%s13 + $0x18] sm:$0xff]
  %v2318 = vcombine.high %v2296, %v2296
  %v2319 = vcombine.high %v2312, %v2312
  %v2320 = vrot.slane %v2289, 7
  %v2321 = vrot.slane %v2320, 2
  %v2322 = vrot.slane %v2297, 7
  %v2323 = vsel %vm122, %v2321, %v2322
  %v2324 = vrot.slane %v2322, 2
  %v2325 = vrot.slane %v2296, 7
  %v2326 = vsel %vm122, %v2324, %v2325
  %v2327 = vrot.slane %v2325, 2
  %v2328 = vrot.slane %v2318, 7
  %v2329 = vsel %vm122, %v2327, %v2328
  %v2330 = vrot.slane %v2305, 7
  %v2331 = vrot.slane %v2330, 2
  %v2332 = vrot.slane %v2313, 7
  %v2333 = vsel %vm122, %v2331, %v2332
  %v2334 = vrot.slane %v2332, 2
  %v2335 = vrot.slane %v2312, 7
  %v2336 = vsel %vm122, %v2334, %v2335
  %v2337 = vrot.slane %v2335, 2
  %v2338 = vrot.slane %v2319, 7
  %v2339 = vsel %vm122, %v2337, %v2338
  %s2340 = scalar_lea.vmem %s13, 32
  %v2341 = vld [vmem:[%s2340] sm:$0xff]
  %v2342 = vld [vmem:[%s2340 + $0x8] sm:$0xff]
  %v2343 = vld [vmem:[%s2340 + $0x10] sm:$0xff]
  %v2344 = vld [vmem:[%s2340 + $0x18] sm:$0xff]
  %v2345 = vcombine.low %v2323, %v2326
  %v2346 = vcombine.low %v2329, %v2333
  %v2348 = vunpack.c.l.s4 1983009808
  %v2349 = vunpack.c.0.s8 %v2348
  %v2350 = vlaneseq
  %v2351 = vshrl.u32 %v2350, 7
  %v2352 = vsub.s32 %v2349, %v2351
  %v2353 = vrot.slane %v2345, %v2352
  %v2355 = vunpack.c.l.s4 1983009808
  %v2356 = vunpack.c.0.s8 %v2355
  %v2357 = vlaneseq
  %v2358 = vshrl.u32 %v2357, 7
  %v2359 = vsub.s32 %v2356, %v2358
  %v2360 = vrot.slane %v2346, %v2359
  %v2361 = vcombine.low %v2353, %v2360
  %v2362 = vcombine.low %v2336, %v2339
  %v2364 = vunpack.c.l.s4 1983009808
  %v2365 = vunpack.c.0.s8 %v2364
  %v2366 = vlaneseq
  %v2367 = vshrl.u32 %v2366, 7
  %v2368 = vsub.s32 %v2365, %v2367
  %v2369 = vrot.slane %v2362, %v2368
  %v2370 = vsel %vm700, %v2361, 0
  %v2372 = vsel %vm700, %v2369, 0
  %2374 = vmatprep.subr.mxu0 0.0
  %2375 = vmatpush1.msra.mxu0 %v2341
  %2376 = vmatprep.subr.mxu0 0.0
  %2377 = vmatpush1.msra.mxu0 %v2342
  %2378 = vmatprep.subr.mxu0 0.0
  %2379 = vmatpush1.msra.mxu0 %v2343
  %2380 = vmatprep.subr.mxu0 0.0
  %2381 = vmatpush1.msra.mxu0 %v2344
  %2382 = vmatprep.subr.mxu0 0.0
  %2383 = vmatpush1.msra.mxu0 0.0
  %2384 = vmatprep.subr.mxu0 0.0
  %2385 = vmatpush1.msra.mxu0 0.0
  %2386 = vmatprep.subr.mxu0 0.0
  %2387 = vmatpush1.msra.mxu0 0.0
  %2388 = vmatprep.subr.mxu0 0.0
  %2389 = vmatpush1.msra.mxu0 0.0
  %2390 = vmatprep.subr.mxu0 0.0
  %2391 = vmatpush1.msra.mxu0 0.0
  %2392 = vmatprep.subr.mxu0 0.0
  %2393 = vmatpush1.msra.mxu0 0.0
  %2394 = vmatprep.subr.mxu0 0.0
  %2395 = vmatpush1.msra.mxu0 0.0
  %2396 = vmatprep.subr.mxu0 0.0
  %2397 = vmatpush1.msra.mxu0 0.0
  %2398 = vmatprep.subr.mxu0 0.0
  %2399 = vmatpush1.msra.mxu0 0.0
  %2400 = vmatprep.subr.mxu0 0.0
  %2401 = vmatpush1.msra.mxu0 0.0
  %2402 = vmatprep.subr.mxu0 0.0
  %2403 = vmatpush1.msra.mxu0 0.0
  %2404 = vmatprep.subr.mxu0 0.0
  %2405 = vmatpush1.msra.mxu0 0.0
  %2406 = vmatprep.subr.mxu0 0.0
  %2407 = vmatpush1.msra.mxu0 0.0
  %2408 = vmatprep.subr.mxu0 0.0
  %2409 = vmatpush1.msra.mxu0 0.0
  %2410 = vmatprep.subr.mxu0 0.0
  %2411 = vmatpush1.msra.mxu0 0.0
  %2412 = vmatprep.subr.mxu0 0.0
  %2413 = vmatpush1.msra.mxu0 0.0
  %2414 = vmatprep.subr.mxu0 0.0
  %2415 = vmatpush1.msra.mxu0 0.0
  %2416 = vmatprep.subr.mxu0 0.0
  %2417 = vmatpush1.msra.mxu0 0.0
  %2418 = vmatprep.subr.mxu0 0.0
  %2419 = vmatpush1.msra.mxu0 0.0
  %2420 = vmatprep.subr.mxu0 0.0
  %2421 = vmatpush1.msra.mxu0 0.0
  %2422 = vmatprep.subr.mxu0 0.0
  %2423 = vmatpush1.msra.mxu0 0.0
  %2424 = vmatprep.subr.mxu0 0.0
  %2425 = vmatpush1.msra.mxu0 0.0
  %2426 = vmatprep.subr.mxu0 0.0
  %2427 = vmatpush1.msra.mxu0 0.0
  %2428 = vmatprep.subr.mxu0 0.0
  %2429 = vmatpush1.msra.mxu0 0.0
  %2430 = vmatprep.subr.mxu0 0.0
  %2431 = vmatpush1.msra.mxu0 0.0
  %2432 = vmatprep.subr.mxu0 0.0
  %2433 = vmatpush1.msra.mxu0 0.0
  %2434 = vmatprep.subr.mxu0 0.0
  %2435 = vmatpush1.msra.mxu0 0.0
  %2436 = vmatprep.subr.mxu0 0.0
  %2437 = vmatpush1.msra.mxu0 0.0
  %2438 = vmatprep.mubr.f32.mxu0 0.0
  %2439 = vmatmul.mubr.f32.gmra.mrb[0].mxu0 %v2370
  %v2440 = vpop.f32.mrb[0].mxu0
  %v2441 = vadd.f32 0.0, %v2440
  %v2442 = vpop.f32.mrb[0].mxu0
  %2443 = vmatprep.mubr.f32.mxu0 0.0
  %2444 = vmatmul.mubr.f32.gmra.mrb[0].mxu0 %v2372
  %v2445 = vpop.f32.mrb[0].mxu0
  %v2446 = vadd.f32 0.0, %v2445
  %v2447 = vpop.f32.mrb[0].mxu0
  %2448 = vdwg.mxu0
  %v2449 = vcombine.low %v2289, %v2297
  %v2450 = vcombine.low %v2296, %v2305
  %v2452 = vunpack.c.l.s4 1983009808
  %v2453 = vunpack.c.0.s8 %v2452
  %v2454 = vlaneseq
  %v2455 = vshrl.u32 %v2454, 7
  %v2456 = vsub.s32 %v2453, %v2455
  %v2457 = vrot.slane %v2449, %v2456
  %v2459 = vunpack.c.l.s4 1983009808
  %v2460 = vunpack.c.0.s8 %v2459
  %v2461 = vlaneseq
  %v2462 = vshrl.u32 %v2461, 7
  %v2463 = vsub.s32 %v2460, %v2462
  %v2464 = vrot.slane %v2450, %v2463
  %v2465 = vcombine.low %v2457, %v2464
  %v2466 = vcombine.low %v2313, %v2312
  %v2468 = vunpack.c.l.s4 1983009808
  %v2469 = vunpack.c.0.s8 %v2468
  %v2470 = vlaneseq
  %v2471 = vshrl.u32 %v2470, 7
  %v2472 = vsub.s32 %v2469, %v2471
  %v2473 = vrot.slane %v2466, %v2472
  %v2474 = vsel %vm700, %v2465, 0
  %v2476 = vsel %vm700, %v2473, 0
  %2478 = vmatprep.subr.mxu0 0.0
  %2479 = vmatpush1.msra.mxu0 %v2314
  %2480 = vmatprep.subr.mxu0 0.0
  %2481 = vmatpush1.msra.mxu0 %v2315
  %2482 = vmatprep.subr.mxu0 0.0
  %2483 = vmatpush1.msra.mxu0 %v2316
  %2484 = vmatprep.subr.mxu0 0.0
  %2485 = vmatpush1.msra.mxu0 %v2317
  %2486 = vmatprep.subr.mxu0 0.0
  %2487 = vmatpush1.msra.mxu0 0.0
  %2488 = vmatprep.subr.mxu0 0.0
  %2489 = vmatpush1.msra.mxu0 0.0
  %2490 = vmatprep.subr.mxu0 0.0
  %2491 = vmatpush1.msra.mxu0 0.0
  %2492 = vmatprep.subr.mxu0 0.0
  %2493 = vmatpush1.msra.mxu0 0.0
  %2494 = vmatprep.subr.mxu0 0.0
  %2495 = vmatpush1.msra.mxu0 0.0
  %2496 = vmatprep.subr.mxu0 0.0
  %2497 = vmatpush1.msra.mxu0 0.0
  %2498 = vmatprep.subr.mxu0 0.0
  %2499 = vmatpush1.msra.mxu0 0.0
  %2500 = vmatprep.subr.mxu0 0.0
  %2501 = vmatpush1.msra.mxu0 0.0
  %2502 = vmatprep.subr.mxu0 0.0
  %2503 = vmatpush1.msra.mxu0 0.0
  %2504 = vmatprep.subr.mxu0 0.0
  %2505 = vmatpush1.msra.mxu0 0.0
  %2506 = vmatprep.subr.mxu0 0.0
  %2507 = vmatpush1.msra.mxu0 0.0
  %2508 = vmatprep.subr.mxu0 0.0
  %2509 = vmatpush1.msra.mxu0 0.0
  %2510 = vmatprep.subr.mxu0 0.0
  %2511 = vmatpush1.msra.mxu0 0.0
  %2512 = vmatprep.subr.mxu0 0.0
  %2513 = vmatpush1.msra.mxu0 0.0
  %2514 = vmatprep.subr.mxu0 0.0
  %2515 = vmatpush1.msra.mxu0 0.0
  %2516 = vmatprep.subr.mxu0 0.0
  %2517 = vmatpush1.msra.mxu0 0.0
  %2518 = vmatprep.subr.mxu0 0.0
  %2519 = vmatpush1.msra.mxu0 0.0
  %2520 = vmatprep.subr.mxu0 0.0
  %2521 = vmatpush1.msra.mxu0 0.0
  %2522 = vmatprep.subr.mxu0 0.0
  %2523 = vmatpush1.msra.mxu0 0.0
  %2524 = vmatprep.subr.mxu0 0.0
  %2525 = vmatpush1.msra.mxu0 0.0
  %2526 = vmatprep.subr.mxu0 0.0
  %2527 = vmatpush1.msra.mxu0 0.0
  %2528 = vmatprep.subr.mxu0 0.0
  %2529 = vmatpush1.msra.mxu0 0.0
  %2530 = vmatprep.subr.mxu0 0.0
  %2531 = vmatpush1.msra.mxu0 0.0
  %2532 = vmatprep.subr.mxu0 0.0
  %2533 = vmatpush1.msra.mxu0 0.0
  %2534 = vmatprep.subr.mxu0 0.0
  %2535 = vmatpush1.msra.mxu0 0.0
  %2536 = vmatprep.subr.mxu0 0.0
  %2537 = vmatpush1.msra.mxu0 0.0
  %2538 = vmatprep.subr.mxu0 0.0
  %2539 = vmatpush1.msra.mxu0 0.0
  %2540 = vmatprep.subr.mxu0 0.0
  %2541 = vmatpush1.msra.mxu0 0.0
  %2542 = vmatprep.mubr.f32.mxu0 0.0
  %2543 = vmatmul.mubr.f32.gmra.mrb[0].mxu0 %v2474
  %v2544 = vpop.f32.mrb[0].mxu0
  %v2545 = vadd.f32 %v2441, %v2544
  %v2546 = vpop.f32.mrb[0].mxu0
  %2547 = vmatprep.mubr.f32.mxu0 0.0
  %2548 = vmatmul.mubr.f32.gmra.mrb[0].mxu0 %v2476
  %v2549 = vpop.f32.mrb[0].mxu0
  %v2550 = vadd.f32 %v2446, %v2549
  %v2551 = vpop.f32.mrb[0].mxu0
  %2552 = vdwg.mxu0
  %s2553 = scalar_lea.vmem %s13, 64
  %v2554 = vld [vmem:[%s2553] sm:$0xff]
  %v2555 = vld [vmem:[%s2553 + $0x8] sm:$0xff]
  %v2556 = vld [vmem:[%s2553 + $0x10] sm:$0xff]
  %v2557 = vld [vmem:[%s2553 + $0x18] sm:$0xff]
  %v2558 = vcombine.low %v2297, %v2296
  %v2559 = vcombine.low %v2318, %v2313
  %v2561 = vunpack.c.l.s4 1983009808
  %v2562 = vunpack.c.0.s8 %v2561
  %v2563 = vlaneseq
  %v2564 = vshrl.u32 %v2563, 7
  %v2565 = vsub.s32 %v2562, %v2564
  %v2566 = vrot.slane %v2558, %v2565
  %v2568 = vunpack.c.l.s4 1983009808
  %v2569 = vunpack.c.0.s8 %v2568
  %v2570 = vlaneseq
  %v2571 = vshrl.u32 %v2570, 7
  %v2572 = vsub.s32 %v2569, %v2571
  %v2573 = vrot.slane %v2559, %v2572
  %v2574 = vcombine.low %v2566, %v2573
  %v2575 = vcombine.low %v2312, %v2319
  %v2577 = vunpack.c.l.s4 1983009808
  %v2578 = vunpack.c.0.s8 %v2577
  %v2579 = vlaneseq
  %v2580 = vshrl.u32 %v2579, 7
  %v2581 = vsub.s32 %v2578, %v2580
  %v2582 = vrot.slane %v2575, %v2581
  %v2583 = vsel %vm700, %v2574, 0
  %v2585 = vsel %vm700, %v2582, 0
  %2587 = vmatprep.subr.mxu0 0.0
  %2588 = vmatpush1.msra.mxu0 %v2554
  %2589 = vmatprep.subr.mxu0 0.0
  %2590 = vmatpush1.msra.mxu0 %v2555
  %2591 = vmatprep.subr.mxu0 0.0
  %2592 = vmatpush1.msra.mxu0 %v2556
  %2593 = vmatprep.subr.mxu0 0.0
  %2594 = vmatpush1.msra.mxu0 %v2557
  %2595 = vmatprep.subr.mxu0 0.0
  %2596 = vmatpush1.msra.mxu0 0.0
  %2597 = vmatprep.subr.mxu0 0.0
  %2598 = vmatpush1.msra.mxu0 0.0
  %2599 = vmatprep.subr.mxu0 0.0
  %2600 = vmatpush1.msra.mxu0 0.0
  %2601 = vmatprep.subr.mxu0 0.0
  %2602 = vmatpush1.msra.mxu0 0.0
  %2603 = vmatprep.subr.mxu0 0.0
  %2604 = vmatpush1.msra.mxu0 0.0
  %2605 = vmatprep.subr.mxu0 0.0
  %2606 = vmatpush1.msra.mxu0 0.0
  %2607 = vmatprep.subr.mxu0 0.0
  %2608 = vmatpush1.msra.mxu0 0.0
  %2609 = vmatprep.subr.mxu0 0.0
  %2610 = vmatpush1.msra.mxu0 0.0
  %2611 = vmatprep.subr.mxu0 0.0
  %2612 = vmatpush1.msra.mxu0 0.0
  %2613 = vmatprep.subr.mxu0 0.0
  %2614 = vmatpush1.msra.mxu0 0.0
  %2615 = vmatprep.subr.mxu0 0.0
  %2616 = vmatpush1.msra.mxu0 0.0
  %2617 = vmatprep.subr.mxu0 0.0
  %2618 = vmatpush1.msra.mxu0 0.0
  %2619 = vmatprep.subr.mxu0 0.0
  %2620 = vmatpush1.msra.mxu0 0.0
  %2621 = vmatprep.subr.mxu0 0.0
  %2622 = vmatpush1.msra.mxu0 0.0
  %2623 = vmatprep.subr.mxu0 0.0
  %2624 = vmatpush1.msra.mxu0 0.0
  %2625 = vmatprep.subr.mxu0 0.0
  %2626 = vmatpush1.msra.mxu0 0.0
  %2627 = vmatprep.subr.mxu0 0.0
  %2628 = vmatpush1.msra.mxu0 0.0
  %2629 = vmatprep.subr.mxu0 0.0
  %2630 = vmatpush1.msra.mxu0 0.0
  %2631 = vmatprep.subr.mxu0 0.0
  %2632 = vmatpush1.msra.mxu0 0.0
  %2633 = vmatprep.subr.mxu0 0.0
  %2634 = vmatpush1.msra.mxu0 0.0
  %2635 = vmatprep.subr.mxu0 0.0
  %2636 = vmatpush1.msra.mxu0 0.0
  %2637 = vmatprep.subr.mxu0 0.0
  %2638 = vmatpush1.msra.mxu0 0.0
  %2639 = vmatprep.subr.mxu0 0.0
  %2640 = vmatpush1.msra.mxu0 0.0
  %2641 = vmatprep.subr.mxu0 0.0
  %2642 = vmatpush1.msra.mxu0 0.0
  %2643 = vmatprep.subr.mxu0 0.0
  %2644 = vmatpush1.msra.mxu0 0.0
  %2645 = vmatprep.subr.mxu0 0.0
  %2646 = vmatpush1.msra.mxu0 0.0
  %2647 = vmatprep.subr.mxu0 0.0
  %2648 = vmatpush1.msra.mxu0 0.0
  %2649 = vmatprep.subr.mxu0 0.0
  %2650 = vmatpush1.msra.mxu0 0.0
  %2651 = vmatprep.mubr.f32.mxu0 0.0
  %2652 = vmatmul.mubr.f32.gmra.mrb[0].mxu0 %v2583
  %v2653 = vpop.f32.mrb[0].mxu0
  %v2654 = vadd.f32 0.0, %v2653
  %v2655 = vpop.f32.mrb[0].mxu0
  %2656 = vmatprep.mubr.f32.mxu0 0.0
  %2657 = vmatmul.mubr.f32.gmra.mrb[0].mxu0 %v2585
  %v2658 = vpop.f32.mrb[0].mxu0
  %v2659 = vadd.f32 0.0, %v2658
  %v2660 = vpop.f32.mrb[0].mxu0
  %2661 = vdwg.mxu0
  %v2662 = vadd.f32 %v2545, %v2654
  %v2663 = vadd.f32 %v2550, %v2659
  %v2664 = vrot.slane %v2328, 2
  %v2665 = vsel %vm122, %v2664, %v471
  %v2666 = vrot.slane %v2338, 2
  %v2667 = vsel %vm122, %v2666, %v471
  %s2668 = scalar_lea.vmem %s13, 96
  %v2669 = vld [vmem:[%s2668] sm:$0xff]
  %v2670 = vld [vmem:[%s2668 + $0x8] sm:$0xff]
  %v2671 = vld [vmem:[%s2668 + $0x10] sm:$0xff]
  %v2672 = vld [vmem:[%s2668 + $0x18] sm:$0xff]
  %v2673 = vcombine.low %v2326, %v2329
  %v2674 = vcombine.low %v2665, %v2336
  %v2676 = vunpack.c.l.s4 1983009808
  %v2677 = vunpack.c.0.s8 %v2676
  %v2678 = vlaneseq
  %v2679 = vshrl.u32 %v2678, 7
  %v2680 = vsub.s32 %v2677, %v2679
  %v2681 = vrot.slane %v2673, %v2680
  %v2683 = vunpack.c.l.s4 1983009808
  %v2684 = vunpack.c.0.s8 %v2683
  %v2685 = vlaneseq
  %v2686 = vshrl.u32 %v2685, 7
  %v2687 = vsub.s32 %v2684, %v2686
  %v2688 = vrot.slane %v2674, %v2687
  %v2689 = vcombine.low %v2681, %v2688
  %v2690 = vcombine.low %v2339, %v2667
  %v2692 = vunpack.c.l.s4 1983009808
  %v2693 = vunpack.c.0.s8 %v2692
  %v2694 = vlaneseq
  %v2695 = vshrl.u32 %v2694, 7
  %v2696 = vsub.s32 %v2693, %v2695
  %v2697 = vrot.slane %v2690, %v2696
  %v2698 = vsel %vm700, %v2689, 0
  %v2700 = vsel %vm700, %v2697, 0
  %2702 = vmatprep.subr.mxu0 0.0
  %2703 = vmatpush1.msra.mxu0 %v2669
  %2704 = vmatprep.subr.mxu0 0.0
  %2705 = vmatpush1.msra.mxu0 %v2670
  %2706 = vmatprep.subr.mxu0 0.0
  %2707 = vmatpush1.msra.mxu0 %v2671
  %2708 = vmatprep.subr.mxu0 0.0
  %2709 = vmatpush1.msra.mxu0 %v2672
  %2710 = vmatprep.subr.mxu0 0.0
  %2711 = vmatpush1.msra.mxu0 0.0
  %2712 = vmatprep.subr.mxu0 0.0
  %2713 = vmatpush1.msra.mxu0 0.0
  %2714 = vmatprep.subr.mxu0 0.0
  %2715 = vmatpush1.msra.mxu0 0.0
  %2716 = vmatprep.subr.mxu0 0.0
  %2717 = vmatpush1.msra.mxu0 0.0
  %2718 = vmatprep.subr.mxu0 0.0
  %2719 = vmatpush1.msra.mxu0 0.0
  %2720 = vmatprep.subr.mxu0 0.0
  %2721 = vmatpush1.msra.mxu0 0.0
  %2722 = vmatprep.subr.mxu0 0.0
  %2723 = vmatpush1.msra.mxu0 0.0
  %2724 = vmatprep.subr.mxu0 0.0
  %2725 = vmatpush1.msra.mxu0 0.0
  %2726 = vmatprep.subr.mxu0 0.0
  %2727 = vmatpush1.msra.mxu0 0.0
  %2728 = vmatprep.subr.mxu0 0.0
  %2729 = vmatpush1.msra.mxu0 0.0
  %2730 = vmatprep.subr.mxu0 0.0
  %2731 = vmatpush1.msra.mxu0 0.0
  %2732 = vmatprep.subr.mxu0 0.0
  %2733 = vmatpush1.msra.mxu0 0.0
  %2734 = vmatprep.subr.mxu0 0.0
  %2735 = vmatpush1.msra.mxu0 0.0
  %2736 = vmatprep.subr.mxu0 0.0
  %2737 = vmatpush1.msra.mxu0 0.0
  %2738 = vmatprep.subr.mxu0 0.0
  %2739 = vmatpush1.msra.mxu0 0.0
  %2740 = vmatprep.subr.mxu0 0.0
  %2741 = vmatpush1.msra.mxu0 0.0
  %2742 = vmatprep.subr.mxu0 0.0
  %2743 = vmatpush1.msra.mxu0 0.0
  %2744 = vmatprep.subr.mxu0 0.0
  %2745 = vmatpush1.msra.mxu0 0.0
  %2746 = vmatprep.subr.mxu0 0.0
  %2747 = vmatpush1.msra.mxu0 0.0
  %2748 = vmatprep.subr.mxu0 0.0
  %2749 = vmatpush1.msra.mxu0 0.0
  %2750 = vmatprep.subr.mxu0 0.0
  %2751 = vmatpush1.msra.mxu0 0.0
  %2752 = vmatprep.subr.mxu0 0.0
  %2753 = vmatpush1.msra.mxu0 0.0
  %2754 = vmatprep.subr.mxu0 0.0
  %2755 = vmatpush1.msra.mxu0 0.0
  %2756 = vmatprep.subr.mxu0 0.0
  %2757 = vmatpush1.msra.mxu0 0.0
  %2758 = vmatprep.subr.mxu0 0.0
  %2759 = vmatpush1.msra.mxu0 0.0
  %2760 = vmatprep.subr.mxu0 0.0
  %2761 = vmatpush1.msra.mxu0 0.0
  %2762 = vmatprep.subr.mxu0 0.0
  %2763 = vmatpush1.msra.mxu0 0.0
  %2764 = vmatprep.subr.mxu0 0.0
  %2765 = vmatpush1.msra.mxu0 0.0
  %2766 = vmatprep.mubr.f32.mxu0 0.0
  %2767 = vmatmul.mubr.f32.gmra.mrb[0].mxu0 %v2698
  %v2768 = vpop.f32.mrb[0].mxu0
  %v2769 = vadd.f32 0.0, %v2768
  %v2770 = vpop.f32.mrb[0].mxu0
  %2771 = vmatprep.mubr.f32.mxu0 0.0
  %2772 = vmatmul.mubr.f32.gmra.mrb[0].mxu0 %v2700
  %v2773 = vpop.f32.mrb[0].mxu0
  %v2774 = vadd.f32 0.0, %v2773
  %v2775 = vpop.f32.mrb[0].mxu0
  %2776 = vdwg.mxu0
  %v2777 = vadd.f32 %v2662, %v2769
  %v2778 = vadd.f32 %v2663, %v2774
  %s2779 = scalar_lea.vmem %s13, 128
  %v2780 = vld [vmem:[%s2779] sm:$0xff]
  %v2781 = vld [vmem:[%s2779 + $0x8] sm:$0xff]
  %v2782 = vld [vmem:[%s2779 + $0x10] sm:$0xff]
  %v2783 = vld [vmem:[%s2779 + $0x18] sm:$0xff]
  %v2784 = vcombine.low %v2296, %v2318
  %v2785 = vcombine.low %v469, %v2312
  %v2787 = vunpack.c.l.s4 1983009808
  %v2788 = vunpack.c.0.s8 %v2787
  %v2789 = vlaneseq
  %v2790 = vshrl.u32 %v2789, 7
  %v2791 = vsub.s32 %v2788, %v2790
  %v2792 = vrot.slane %v2784, %v2791
  %v2794 = vunpack.c.l.s4 1983009808
  %v2795 = vunpack.c.0.s8 %v2794
  %v2796 = vlaneseq
  %v2797 = vshrl.u32 %v2796, 7
  %v2798 = vsub.s32 %v2795, %v2797
  %v2799 = vrot.slane %v2785, %v2798
  %v2800 = vcombine.low %v2792, %v2799
  %v2801 = vcombine.low %v2319, %v469
  %v2803 = vunpack.c.l.s4 1983009808
  %v2804 = vunpack.c.0.s8 %v2803
  %v2805 = vlaneseq
  %v2806 = vshrl.u32 %v2805, 7
  %v2807 = vsub.s32 %v2804, %v2806
  %v2808 = vrot.slane %v2801, %v2807
  %v2809 = vsel %vm700, %v2800, 0
  %v2811 = vsel %vm700, %v2808, 0
  %2813 = vmatprep.subr.mxu0 0.0
  %2814 = vmatpush1.msra.mxu0 %v2780
  %2815 = vmatprep.subr.mxu0 0.0
  %2816 = vmatpush1.msra.mxu0 %v2781
  %2817 = vmatprep.subr.mxu0 0.0
  %2818 = vmatpush1.msra.mxu0 %v2782
  %2819 = vmatprep.subr.mxu0 0.0
  %2820 = vmatpush1.msra.mxu0 %v2783
  %2821 = vmatprep.subr.mxu0 0.0
  %2822 = vmatpush1.msra.mxu0 0.0
  %2823 = vmatprep.subr.mxu0 0.0
  %2824 = vmatpush1.msra.mxu0 0.0
  %2825 = vmatprep.subr.mxu0 0.0
  %2826 = vmatpush1.msra.mxu0 0.0
  %2827 = vmatprep.subr.mxu0 0.0
  %2828 = vmatpush1.msra.mxu0 0.0
  %2829 = vmatprep.subr.mxu0 0.0
  %2830 = vmatpush1.msra.mxu0 0.0
  %2831 = vmatprep.subr.mxu0 0.0
  %2832 = vmatpush1.msra.mxu0 0.0
  %2833 = vmatprep.subr.mxu0 0.0
  %2834 = vmatpush1.msra.mxu0 0.0
  %2835 = vmatprep.subr.mxu0 0.0
  %2836 = vmatpush1.msra.mxu0 0.0
  %2837 = vmatprep.subr.mxu0 0.0
  %2838 = vmatpush1.msra.mxu0 0.0
  %2839 = vmatprep.subr.mxu0 0.0
  %2840 = vmatpush1.msra.mxu0 0.0
  %2841 = vmatprep.subr.mxu0 0.0
  %2842 = vmatpush1.msra.mxu0 0.0
  %2843 = vmatprep.subr.mxu0 0.0
  %2844 = vmatpush1.msra.mxu0 0.0
  %2845 = vmatprep.subr.mxu0 0.0
  %2846 = vmatpush1.msra.mxu0 0.0
  %2847 = vmatprep.subr.mxu0 0.0
  %2848 = vmatpush1.msra.mxu0 0.0
  %2849 = vmatprep.subr.mxu0 0.0
  %2850 = vmatpush1.msra.mxu0 0.0
  %2851 = vmatprep.subr.mxu0 0.0
  %2852 = vmatpush1.msra.mxu0 0.0
  %2853 = vmatprep.subr.mxu0 0.0
  %2854 = vmatpush1.msra.mxu0 0.0
  %2855 = vmatprep.subr.mxu0 0.0
  %2856 = vmatpush1.msra.mxu0 0.0
  %2857 = vmatprep.subr.mxu0 0.0
  %2858 = vmatpush1.msra.mxu0 0.0
  %2859 = vmatprep.subr.mxu0 0.0
  %2860 = vmatpush1.msra.mxu0 0.0
  %2861 = vmatprep.subr.mxu0 0.0
  %2862 = vmatpush1.msra.mxu0 0.0
  %2863 = vmatprep.subr.mxu0 0.0
  %2864 = vmatpush1.msra.mxu0 0.0
  %2865 = vmatprep.subr.mxu0 0.0
  %2866 = vmatpush1.msra.mxu0 0.0
  %2867 = vmatprep.subr.mxu0 0.0
  %2868 = vmatpush1.msra.mxu0 0.0
  %2869 = vmatprep.subr.mxu0 0.0
  %2870 = vmatpush1.msra.mxu0 0.0
  %2871 = vmatprep.subr.mxu0 0.0
  %2872 = vmatpush1.msra.mxu0 0.0
  %2873 = vmatprep.subr.mxu0 0.0
  %2874 = vmatpush1.msra.mxu0 0.0
  %2875 = vmatprep.subr.mxu0 0.0
  %2876 = vmatpush1.msra.mxu0 0.0
  %2877 = vmatprep.mubr.f32.mxu0 0.0
  %2878 = vmatmul.mubr.f32.gmra.mrb[0].mxu0 %v2809
  %v2879 = vpop.f32.mrb[0].mxu0
  %v2880 = vadd.f32 0.0, %v2879
  %v2881 = vpop.f32.mrb[0].mxu0
  %2882 = vmatprep.mubr.f32.mxu0 0.0
  %2883 = vmatmul.mubr.f32.gmra.mrb[0].mxu0 %v2811
  %v2884 = vpop.f32.mrb[0].mxu0
  %v2885 = vadd.f32 0.0, %v2884
  %v2886 = vpop.f32.mrb[0].mxu0
  %2887 = vdwg.mxu0
  %v2888 = vadd.f32 %v2777, %v2880
  %v2889 = vadd.f32 %v2778, %v2885
  %v2890 = vld [vmem:[%s14] sm:$0x1]
  %v2892 = vlaneseq
  %v2893 = vshrl.u32 %v2892, 7
  %v2894 = vsub.s32 0, %v2893
  %v2895 = vrot.slane %v2890, %v2894
  %v2897 = vadd.f32 %v2888, %v2895
  %v2898 = vadd.f32 %v2889, %v2895
  %v2899 = vsel %vm700, %v2897, 0.0
  %v2900 = vsel %vm702, %v2898, 0.0
  %v2901 = vadd.f32 %v2899, %v2900
  %v2902 = vrot.slane %v2901, 4
  %v2903 = vadd.f32 %v2901, %v2902
  %v2904 = vrot.slane %v2903, 2
  %v2905 = vadd.f32 %v2903, %v2904
  %v2906 = vrot.slane %v2905, 1
  %v2907 = vadd.f32 %v2905, %v2906
  %v2908 = vmul.f32 %v2907, %v711
  %v2909 = vsub.f32 %v2897, %v2908
  %v2910 = vsub.f32 %v2898, %v2908
  %v2911 = vmul.f32 %v2909, %v2909
  %v2912 = vmul.f32 %v2910, %v2910
  %v2913 = vsel %vm700, %v2911, 0.0
  %v2914 = vsel %vm702, %v2912, 0.0
  %v2915 = vadd.f32 %v2913, %v2914
  %v2916 = vrot.slane %v2915, 4
  %v2917 = vadd.f32 %v2915, %v2916
  %v2918 = vrot.slane %v2917, 2
  %v2919 = vadd.f32 %v2917, %v2918
  %v2920 = vrot.slane %v2919, 1
  %v2921 = vadd.f32 %v2919, %v2920
  %v2922 = vmul.f32 %v2921, %v711
  %v2923 = vadd.f32 %v2922, 1e-05
  %v2924 = vrsqrt.pop %v2923
  %v2925 = vmul.f32 %v2909, %v2924
  %v2926 = vmul.f32 %v2910, %v2924
  %v2927 = vld [vmem:[%s15] sm:$0x1]
  %v2929 = vlaneseq
  %v2930 = vshrl.u32 %v2929, 7
  %v2931 = vsub.s32 0, %v2930
  %v2932 = vrot.slane %v2927, %v2931
  %v2934 = vmul.f32 %v2932, %v2925
  %v2935 = vmul.f32 %v2932, %v2926
  %v2936 = vld [vmem:[%s16] sm:$0x1]
  %v2938 = vlaneseq
  %v2939 = vshrl.u32 %v2938, 7
  %v2940 = vsub.s32 0, %v2939
  %v2941 = vrot.slane %v2936, %v2940
  %v2943 = vadd.f32 %v2934, %v2941
  %v2944 = vadd.f32 %v2935, %v2941
  %v2945 = vtanh.pop %v2943
  %v2946 = vtanh.pop %v2944
  %v2949 = vcombine.high %v2945, %v2945
  %v2951 = vunpack.c.l.s4 1983009808
  %v2952 = vunpack.c.0.s8 %v2951
  %v2953 = vlaneseq
  %v2954 = vshrl.u32 %v2953, 7
  %v2955 = vsub.s32 %v2952, %v2954
  %v2956 = vrot.slane %v2945, %v2955
  %v2958 = vunpack.c.l.s4 1983009808
  %v2959 = vunpack.c.0.s8 %v2958
  %v2960 = vlaneseq
  %v2961 = vshrl.u32 %v2960, 7
  %v2962 = vsub.s32 %v2959, %v2961
  %v2963 = vrot.slane %v2949, %v2962
  %v2964 = vcombine.high %v2956, %v2956
  %v2965 = vcombine.high %v2963, %v2963
  %v2967 = vunpack.c.l.s4 1983009808
  %v2968 = vunpack.c.0.s8 %v2967
  %v2969 = vlaneseq
  %v2970 = vshrl.u32 %v2969, 7
  %v2971 = vsub.s32 %v2968, %v2970
  %v2972 = vrot.slane %v2946, %v2971
  %v2973 = vcombine.high %v2972, %v2972
  %v2974 = vcombine.low %v2956, %v2956
  %v2975 = vcombine.low %v2964, %v2963
  %v2977 = vunpack.c.l.s4 1983009808
  %v2978 = vunpack.c.0.s8 %v2977
  %v2979 = vlaneseq
  %v2980 = vshrl.u32 %v2979, 7
  %v2981 = vsub.s32 %v2978, %v2980
  %v2982 = vrot.slane %v2974, %v2981
  %v2984 = vunpack.c.l.s4 1983009808
  %v2985 = vunpack.c.0.s8 %v2984
  %v2986 = vlaneseq
  %v2987 = vshrl.u32 %v2986, 7
  %v2988 = vsub.s32 %v2985, %v2987
  %v2989 = vrot.slane %v2975, %v2988
  %v2990 = vcombine.low %v2982, %v2989
  %v2991 = vcombine.low %v2965, %v2965
  %v2992 = vcombine.low %v2972, %v2973
  %v2994 = vunpack.c.l.s4 1983009808
  %v2995 = vunpack.c.0.s8 %v2994
  %v2996 = vlaneseq
  %v2997 = vshrl.u32 %v2996, 7
  %v2998 = vsub.s32 %v2995, %v2997
  %v2999 = vrot.slane %v2991, %v2998
  %v3001 = vunpack.c.l.s4 1983009808
  %v3002 = vunpack.c.0.s8 %v3001
  %v3003 = vlaneseq
  %v3004 = vshrl.u32 %v3003, 7
  %v3005 = vsub.s32 %v3002, %v3004
  %v3006 = vrot.slane %v2992, %v3005
  %v3007 = vcombine.low %v2999, %v3006
  %v3010 = vsel %vm76, 0.0, %v2990
  %v3011 = vsel %vm76, 0.0, %v3007
  %v3014 = vcombine.high %v3010, %v3010
  %v3016 = vunpack.c.l.s4 1983009808
  %v3017 = vunpack.c.0.s8 %v3016
  %v3018 = vlaneseq
  %v3019 = vshrl.u32 %v3018, 7
  %v3020 = vsub.s32 %v3017, %v3019
  %v3021 = vrot.slane %v3010, %v3020
  %v3023 = vunpack.c.l.s4 1983009808
  %v3024 = vunpack.c.0.s8 %v3023
  %v3025 = vlaneseq
  %v3026 = vshrl.u32 %v3025, 7
  %v3027 = vsub.s32 %v3024, %v3026
  %v3028 = vrot.slane %v3014, %v3027
  %v3029 = vcombine.high %v3021, %v3021
  %v3030 = vcombine.high %v3011, %v3011
  %v3032 = vunpack.c.l.s4 1983009808
  %v3033 = vunpack.c.0.s8 %v3032
  %v3034 = vlaneseq
  %v3035 = vshrl.u32 %v3034, 7
  %v3036 = vsub.s32 %v3033, %v3035
  %v3037 = vrot.slane %v3011, %v3036
  %v3039 = vunpack.c.l.s4 1983009808
  %v3040 = vunpack.c.0.s8 %v3039
  %v3041 = vlaneseq
  %v3042 = vshrl.u32 %v3041, 7
  %v3043 = vsub.s32 %v3040, %v3042
  %v3044 = vrot.slane %v3030, %v3043
  %v3045 = vcombine.high %v3037, %v3037
  %v3046 = vld [vmem:[%s17] sm:$0xff]
  %v3047 = vld [vmem:[%s17 + $0x8] sm:$0xff]
  %v3048 = vld [vmem:[%s17 + $0x10] sm:$0xff]
  %v3049 = vld [vmem:[%s17 + $0x18] sm:$0xff]
  %v3050 = vcombine.high %v3028, %v3028
  %v3051 = vcombine.high %v3044, %v3044
  %v3052 = vrot.slane %v3021, 7
  %v3053 = vrot.slane %v3052, 2
  %v3054 = vrot.slane %v3029, 7
  %v3055 = vsel %vm122, %v3053, %v3054
  %v3056 = vrot.slane %v3054, 2
  %v3057 = vrot.slane %v3028, 7
  %v3058 = vsel %vm122, %v3056, %v3057
  %v3059 = vrot.slane %v3057, 2
  %v3060 = vrot.slane %v3050, 7
  %v3061 = vsel %vm122, %v3059, %v3060
  %v3062 = vrot.slane %v3037, 7
  %v3063 = vrot.slane %v3062, 2
  %v3064 = vrot.slane %v3045, 7
  %v3065 = vsel %vm122, %v3063, %v3064
  %v3066 = vrot.slane %v3064, 2
  %v3067 = vrot.slane %v3044, 7
  %v3068 = vsel %vm122, %v3066, %v3067
  %v3069 = vrot.slane %v3067, 2
  %v3070 = vrot.slane %v3051, 7
  %v3071 = vsel %vm122, %v3069, %v3070
  %s3072 = scalar_lea.vmem %s17, 32
  %v3073 = vld [vmem:[%s3072] sm:$0xff]
  %v3074 = vld [vmem:[%s3072 + $0x8] sm:$0xff]
  %v3075 = vld [vmem:[%s3072 + $0x10] sm:$0xff]
  %v3076 = vld [vmem:[%s3072 + $0x18] sm:$0xff]
  %v3077 = vcombine.low %v3055, %v3058
  %v3078 = vcombine.low %v3061, %v3065
  %v3080 = vunpack.c.l.s4 1983009808
  %v3081 = vunpack.c.0.s8 %v3080
  %v3082 = vlaneseq
  %v3083 = vshrl.u32 %v3082, 7
  %v3084 = vsub.s32 %v3081, %v3083
  %v3085 = vrot.slane %v3077, %v3084
  %v3087 = vunpack.c.l.s4 1983009808
  %v3088 = vunpack.c.0.s8 %v3087
  %v3089 = vlaneseq
  %v3090 = vshrl.u32 %v3089, 7
  %v3091 = vsub.s32 %v3088, %v3090
  %v3092 = vrot.slane %v3078, %v3091
  %v3093 = vcombine.low %v3085, %v3092
  %v3094 = vcombine.low %v3068, %v3071
  %v3096 = vunpack.c.l.s4 1983009808
  %v3097 = vunpack.c.0.s8 %v3096
  %v3098 = vlaneseq
  %v3099 = vshrl.u32 %v3098, 7
  %v3100 = vsub.s32 %v3097, %v3099
  %v3101 = vrot.slane %v3094, %v3100
  %v3102 = vsel %vm700, %v3093, 0
  %v3104 = vsel %vm700, %v3101, 0
  %3106 = vmatprep.subr.mxu0 0.0
  %3107 = vmatpush1.msra.mxu0 %v3073
  %3108 = vmatprep.subr.mxu0 0.0
  %3109 = vmatpush1.msra.mxu0 %v3074
  %3110 = vmatprep.subr.mxu0 0.0
  %3111 = vmatpush1.msra.mxu0 %v3075
  %3112 = vmatprep.subr.mxu0 0.0
  %3113 = vmatpush1.msra.mxu0 %v3076
  %3114 = vmatprep.subr.mxu0 0.0
  %3115 = vmatpush1.msra.mxu0 0.0
  %3116 = vmatprep.subr.mxu0 0.0
  %3117 = vmatpush1.msra.mxu0 0.0
  %3118 = vmatprep.subr.mxu0 0.0
  %3119 = vmatpush1.msra.mxu0 0.0
  %3120 = vmatprep.subr.mxu0 0.0
  %3121 = vmatpush1.msra.mxu0 0.0
  %3122 = vmatprep.subr.mxu0 0.0
  %3123 = vmatpush1.msra.mxu0 0.0
  %3124 = vmatprep.subr.mxu0 0.0
  %3125 = vmatpush1.msra.mxu0 0.0
  %3126 = vmatprep.subr.mxu0 0.0
  %3127 = vmatpush1.msra.mxu0 0.0
  %3128 = vmatprep.subr.mxu0 0.0
  %3129 = vmatpush1.msra.mxu0 0.0
  %3130 = vmatprep.subr.mxu0 0.0
  %3131 = vmatpush1.msra.mxu0 0.0
  %3132 = vmatprep.subr.mxu0 0.0
  %3133 = vmatpush1.msra.mxu0 0.0
  %3134 = vmatprep.subr.mxu0 0.0
  %3135 = vmatpush1.msra.mxu0 0.0
  %3136 = vmatprep.subr.mxu0 0.0
  %3137 = vmatpush1.msra.mxu0 0.0
  %3138 = vmatprep.subr.mxu0 0.0
  %3139 = vmatpush1.msra.mxu0 0.0
  %3140 = vmatprep.subr.mxu0 0.0
  %3141 = vmatpush1.msra.mxu0 0.0
  %3142 = vmatprep.subr.mxu0 0.0
  %3143 = vmatpush1.msra.mxu0 0.0
  %3144 = vmatprep.subr.mxu0 0.0
  %3145 = vmatpush1.msra.mxu0 0.0
  %3146 = vmatprep.subr.mxu0 0.0
  %3147 = vmatpush1.msra.mxu0 0.0
  %3148 = vmatprep.subr.mxu0 0.0
  %3149 = vmatpush1.msra.mxu0 0.0
  %3150 = vmatprep.subr.mxu0 0.0
  %3151 = vmatpush1.msra.mxu0 0.0
  %3152 = vmatprep.subr.mxu0 0.0
  %3153 = vmatpush1.msra.mxu0 0.0
  %3154 = vmatprep.subr.mxu0 0.0
  %3155 = vmatpush1.msra.mxu0 0.0
  %3156 = vmatprep.subr.mxu0 0.0
  %3157 = vmatpush1.msra.mxu0 0.0
  %3158 = vmatprep.subr.mxu0 0.0
  %3159 = vmatpush1.msra.mxu0 0.0
  %3160 = vmatprep.subr.mxu0 0.0
  %3161 = vmatpush1.msra.mxu0 0.0
  %3162 = vmatprep.subr.mxu0 0.0
  %3163 = vmatpush1.msra.mxu0 0.0
  %3164 = vmatprep.subr.mxu0 0.0
  %3165 = vmatpush1.msra.mxu0 0.0
  %3166 = vmatprep.subr.mxu0 0.0
  %3167 = vmatpush1.msra.mxu0 0.0
  %3168 = vmatprep.subr.mxu0 0.0
  %3169 = vmatpush1.msra.mxu0 0.0
  %3170 = vmatprep.mubr.f32.mxu0 0.0
  %3171 = vmatmul.mubr.f32.gmra.mrb[0].mxu0 %v3102
  %v3172 = vpop.f32.mrb[0].mxu0
  %v3173 = vadd.f32 0.0, %v3172
  %v3174 = vpop.f32.mrb[0].mxu0
  %3175 = vmatprep.mubr.f32.mxu0 0.0
  %3176 = vmatmul.mubr.f32.gmra.mrb[0].mxu0 %v3104
  %v3177 = vpop.f32.mrb[0].mxu0
  %v3178 = vadd.f32 0.0, %v3177
  %v3179 = vpop.f32.mrb[0].mxu0
  %3180 = vdwg.mxu0
  %v3181 = vcombine.low %v3021, %v3029
  %v3182 = vcombine.low %v3028, %v3037
  %v3184 = vunpack.c.l.s4 1983009808
  %v3185 = vunpack.c.0.s8 %v3184
  %v3186 = vlaneseq
  %v3187 = vshrl.u32 %v3186, 7
  %v3188 = vsub.s32 %v3185, %v3187
  %v3189 = vrot.slane %v3181, %v3188
  %v3191 = vunpack.c.l.s4 1983009808
  %v3192 = vunpack.c.0.s8 %v3191
  %v3193 = vlaneseq
  %v3194 = vshrl.u32 %v3193, 7
  %v3195 = vsub.s32 %v3192, %v3194
  %v3196 = vrot.slane %v3182, %v3195
  %v3197 = vcombine.low %v3189, %v3196
  %v3198 = vcombine.low %v3045, %v3044
  %v3200 = vunpack.c.l.s4 1983009808
  %v3201 = vunpack.c.0.s8 %v3200
  %v3202 = vlaneseq
  %v3203 = vshrl.u32 %v3202, 7
  %v3204 = vsub.s32 %v3201, %v3203
  %v3205 = vrot.slane %v3198, %v3204
  %v3206 = vsel %vm700, %v3197, 0
  %v3208 = vsel %vm700, %v3205, 0
  %3210 = vmatprep.subr.mxu0 0.0
  %3211 = vmatpush1.msra.mxu0 %v3046
  %3212 = vmatprep.subr.mxu0 0.0
  %3213 = vmatpush1.msra.mxu0 %v3047
  %3214 = vmatprep.subr.mxu0 0.0
  %3215 = vmatpush1.msra.mxu0 %v3048
  %3216 = vmatprep.subr.mxu0 0.0
  %3217 = vmatpush1.msra.mxu0 %v3049
  %3218 = vmatprep.subr.mxu0 0.0
  %3219 = vmatpush1.msra.mxu0 0.0
  %3220 = vmatprep.subr.mxu0 0.0
  %3221 = vmatpush1.msra.mxu0 0.0
  %3222 = vmatprep.subr.mxu0 0.0
  %3223 = vmatpush1.msra.mxu0 0.0
  %3224 = vmatprep.subr.mxu0 0.0
  %3225 = vmatpush1.msra.mxu0 0.0
  %3226 = vmatprep.subr.mxu0 0.0
  %3227 = vmatpush1.msra.mxu0 0.0
  %3228 = vmatprep.subr.mxu0 0.0
  %3229 = vmatpush1.msra.mxu0 0.0
  %3230 = vmatprep.subr.mxu0 0.0
  %3231 = vmatpush1.msra.mxu0 0.0
  %3232 = vmatprep.subr.mxu0 0.0
  %3233 = vmatpush1.msra.mxu0 0.0
  %3234 = vmatprep.subr.mxu0 0.0
  %3235 = vmatpush1.msra.mxu0 0.0
  %3236 = vmatprep.subr.mxu0 0.0
  %3237 = vmatpush1.msra.mxu0 0.0
  %3238 = vmatprep.subr.mxu0 0.0
  %3239 = vmatpush1.msra.mxu0 0.0
  %3240 = vmatprep.subr.mxu0 0.0
  %3241 = vmatpush1.msra.mxu0 0.0
  %3242 = vmatprep.subr.mxu0 0.0
  %3243 = vmatpush1.msra.mxu0 0.0
  %3244 = vmatprep.subr.mxu0 0.0
  %3245 = vmatpush1.msra.mxu0 0.0
  %3246 = vmatprep.subr.mxu0 0.0
  %3247 = vmatpush1.msra.mxu0 0.0
  %3248 = vmatprep.subr.mxu0 0.0
  %3249 = vmatpush1.msra.mxu0 0.0
  %3250 = vmatprep.subr.mxu0 0.0
  %3251 = vmatpush1.msra.mxu0 0.0
  %3252 = vmatprep.subr.mxu0 0.0
  %3253 = vmatpush1.msra.mxu0 0.0
  %3254 = vmatprep.subr.mxu0 0.0
  %3255 = vmatpush1.msra.mxu0 0.0
  %3256 = vmatprep.subr.mxu0 0.0
  %3257 = vmatpush1.msra.mxu0 0.0
  %3258 = vmatprep.subr.mxu0 0.0
  %3259 = vmatpush1.msra.mxu0 0.0
  %3260 = vmatprep.subr.mxu0 0.0
  %3261 = vmatpush1.msra.mxu0 0.0
  %3262 = vmatprep.subr.mxu0 0.0
  %3263 = vmatpush1.msra.mxu0 0.0
  %3264 = vmatprep.subr.mxu0 0.0
  %3265 = vmatpush1.msra.mxu0 0.0
  %3266 = vmatprep.subr.mxu0 0.0
  %3267 = vmatpush1.msra.mxu0 0.0
  %3268 = vmatprep.subr.mxu0 0.0
  %3269 = vmatpush1.msra.mxu0 0.0
  %3270 = vmatprep.subr.mxu0 0.0
  %3271 = vmatpush1.msra.mxu0 0.0
  %3272 = vmatprep.subr.mxu0 0.0
  %3273 = vmatpush1.msra.mxu0 0.0
  %3274 = vmatprep.mubr.f32.mxu0 0.0
  %3275 = vmatmul.mubr.f32.gmra.mrb[0].mxu0 %v3206
  %v3276 = vpop.f32.mrb[0].mxu0
  %v3277 = vadd.f32 %v3173, %v3276
  %v3278 = vpop.f32.mrb[0].mxu0
  %3279 = vmatprep.mubr.f32.mxu0 0.0
  %3280 = vmatmul.mubr.f32.gmra.mrb[0].mxu0 %v3208
  %v3281 = vpop.f32.mrb[0].mxu0
  %v3282 = vadd.f32 %v3178, %v3281
  %v3283 = vpop.f32.mrb[0].mxu0
  %3284 = vdwg.mxu0
  %s3285 = scalar_lea.vmem %s17, 64
  %v3286 = vld [vmem:[%s3285] sm:$0xff]
  %v3287 = vld [vmem:[%s3285 + $0x8] sm:$0xff]
  %v3288 = vld [vmem:[%s3285 + $0x10] sm:$0xff]
  %v3289 = vld [vmem:[%s3285 + $0x18] sm:$0xff]
  %v3290 = vcombine.low %v3029, %v3028
  %v3291 = vcombine.low %v3050, %v3045
  %v3293 = vunpack.c.l.s4 1983009808
  %v3294 = vunpack.c.0.s8 %v3293
  %v3295 = vlaneseq
  %v3296 = vshrl.u32 %v3295, 7
  %v3297 = vsub.s32 %v3294, %v3296
  %v3298 = vrot.slane %v3290, %v3297
  %v3300 = vunpack.c.l.s4 1983009808
  %v3301 = vunpack.c.0.s8 %v3300
  %v3302 = vlaneseq
  %v3303 = vshrl.u32 %v3302, 7
  %v3304 = vsub.s32 %v3301, %v3303
  %v3305 = vrot.slane %v3291, %v3304
  %v3306 = vcombine.low %v3298, %v3305
  %v3307 = vcombine.low %v3044, %v3051
  %v3309 = vunpack.c.l.s4 1983009808
  %v3310 = vunpack.c.0.s8 %v3309
  %v3311 = vlaneseq
  %v3312 = vshrl.u32 %v3311, 7
  %v3313 = vsub.s32 %v3310, %v3312
  %v3314 = vrot.slane %v3307, %v3313
  %v3315 = vsel %vm700, %v3306, 0
  %v3317 = vsel %vm700, %v3314, 0
  %3319 = vmatprep.subr.mxu0 0.0
  %3320 = vmatpush1.msra.mxu0 %v3286
  %3321 = vmatprep.subr.mxu0 0.0
  %3322 = vmatpush1.msra.mxu0 %v3287
  %3323 = vmatprep.subr.mxu0 0.0
  %3324 = vmatpush1.msra.mxu0 %v3288
  %3325 = vmatprep.subr.mxu0 0.0
  %3326 = vmatpush1.msra.mxu0 %v3289
  %3327 = vmatprep.subr.mxu0 0.0
  %3328 = vmatpush1.msra.mxu0 0.0
  %3329 = vmatprep.subr.mxu0 0.0
  %3330 = vmatpush1.msra.mxu0 0.0
  %3331 = vmatprep.subr.mxu0 0.0
  %3332 = vmatpush1.msra.mxu0 0.0
  %3333 = vmatprep.subr.mxu0 0.0
  %3334 = vmatpush1.msra.mxu0 0.0
  %3335 = vmatprep.subr.mxu0 0.0
  %3336 = vmatpush1.msra.mxu0 0.0
  %3337 = vmatprep.subr.mxu0 0.0
  %3338 = vmatpush1.msra.mxu0 0.0
  %3339 = vmatprep.subr.mxu0 0.0
  %3340 = vmatpush1.msra.mxu0 0.0
  %3341 = vmatprep.subr.mxu0 0.0
  %3342 = vmatpush1.msra.mxu0 0.0
  %3343 = vmatprep.subr.mxu0 0.0
  %3344 = vmatpush1.msra.mxu0 0.0
  %3345 = vmatprep.subr.mxu0 0.0
  %3346 = vmatpush1.msra.mxu0 0.0
  %3347 = vmatprep.subr.mxu0 0.0
  %3348 = vmatpush1.msra.mxu0 0.0
  %3349 = vmatprep.subr.mxu0 0.0
  %3350 = vmatpush1.msra.mxu0 0.0
  %3351 = vmatprep.subr.mxu0 0.0
  %3352 = vmatpush1.msra.mxu0 0.0
  %3353 = vmatprep.subr.mxu0 0.0
  %3354 = vmatpush1.msra.mxu0 0.0
  %3355 = vmatprep.subr.mxu0 0.0
  %3356 = vmatpush1.msra.mxu0 0.0
  %3357 = vmatprep.subr.mxu0 0.0
  %3358 = vmatpush1.msra.mxu0 0.0
  %3359 = vmatprep.subr.mxu0 0.0
  %3360 = vmatpush1.msra.mxu0 0.0
  %3361 = vmatprep.subr.mxu0 0.0
  %3362 = vmatpush1.msra.mxu0 0.0
  %3363 = vmatprep.subr.mxu0 0.0
  %3364 = vmatpush1.msra.mxu0 0.0
  %3365 = vmatprep.subr.mxu0 0.0
  %3366 = vmatpush1.msra.mxu0 0.0
  %3367 = vmatprep.subr.mxu0 0.0
  %3368 = vmatpush1.msra.mxu0 0.0
  %3369 = vmatprep.subr.mxu0 0.0
  %3370 = vmatpush1.msra.mxu0 0.0
  %3371 = vmatprep.subr.mxu0 0.0
  %3372 = vmatpush1.msra.mxu0 0.0
  %3373 = vmatprep.subr.mxu0 0.0
  %3374 = vmatpush1.msra.mxu0 0.0
  %3375 = vmatprep.subr.mxu0 0.0
  %3376 = vmatpush1.msra.mxu0 0.0
  %3377 = vmatprep.subr.mxu0 0.0
  %3378 = vmatpush1.msra.mxu0 0.0
  %3379 = vmatprep.subr.mxu0 0.0
  %3380 = vmatpush1.msra.mxu0 0.0
  %3381 = vmatprep.subr.mxu0 0.0
  %3382 = vmatpush1.msra.mxu0 0.0
  %3383 = vmatprep.mubr.f32.mxu0 0.0
  %3384 = vmatmul.mubr.f32.gmra.mrb[0].mxu0 %v3315
  %v3385 = vpop.f32.mrb[0].mxu0
  %v3386 = vadd.f32 0.0, %v3385
  %v3387 = vpop.f32.mrb[0].mxu0
  %3388 = vmatprep.mubr.f32.mxu0 0.0
  %3389 = vmatmul.mubr.f32.gmra.mrb[0].mxu0 %v3317
  %v3390 = vpop.f32.mrb[0].mxu0
  %v3391 = vadd.f32 0.0, %v3390
  %v3392 = vpop.f32.mrb[0].mxu0
  %3393 = vdwg.mxu0
  %v3394 = vadd.f32 %v3277, %v3386
  %v3395 = vadd.f32 %v3282, %v3391
  %v3396 = vrot.slane %v3060, 2
  %v3397 = vsel %vm122, %v3396, %v471
  %v3398 = vrot.slane %v3070, 2
  %v3399 = vsel %vm122, %v3398, %v471
  %s3400 = scalar_lea.vmem %s17, 96
  %v3401 = vld [vmem:[%s3400] sm:$0xff]
  %v3402 = vld [vmem:[%s3400 + $0x8] sm:$0xff]
  %v3403 = vld [vmem:[%s3400 + $0x10] sm:$0xff]
  %v3404 = vld [vmem:[%s3400 + $0x18] sm:$0xff]
  %v3405 = vcombine.low %v3058, %v3061
  %v3406 = vcombine.low %v3397, %v3068
  %v3408 = vunpack.c.l.s4 1983009808
  %v3409 = vunpack.c.0.s8 %v3408
  %v3410 = vlaneseq
  %v3411 = vshrl.u32 %v3410, 7
  %v3412 = vsub.s32 %v3409, %v3411
  %v3413 = vrot.slane %v3405, %v3412
  %v3415 = vunpack.c.l.s4 1983009808
  %v3416 = vunpack.c.0.s8 %v3415
  %v3417 = vlaneseq
  %v3418 = vshrl.u32 %v3417, 7
  %v3419 = vsub.s32 %v3416, %v3418
  %v3420 = vrot.slane %v3406, %v3419
  %v3421 = vcombine.low %v3413, %v3420
  %v3422 = vcombine.low %v3071, %v3399
  %v3424 = vunpack.c.l.s4 1983009808
  %v3425 = vunpack.c.0.s8 %v3424
  %v3426 = vlaneseq
  %v3427 = vshrl.u32 %v3426, 7
  %v3428 = vsub.s32 %v3425, %v3427
  %v3429 = vrot.slane %v3422, %v3428
  %v3430 = vsel %vm700, %v3421, 0
  %v3432 = vsel %vm700, %v3429, 0
  %3434 = vmatprep.subr.mxu0 0.0
  %3435 = vmatpush1.msra.mxu0 %v3401
  %3436 = vmatprep.subr.mxu0 0.0
  %3437 = vmatpush1.msra.mxu0 %v3402
  %3438 = vmatprep.subr.mxu0 0.0
  %3439 = vmatpush1.msra.mxu0 %v3403
  %3440 = vmatprep.subr.mxu0 0.0
  %3441 = vmatpush1.msra.mxu0 %v3404
  %3442 = vmatprep.subr.mxu0 0.0
  %3443 = vmatpush1.msra.mxu0 0.0
  %3444 = vmatprep.subr.mxu0 0.0
  %3445 = vmatpush1.msra.mxu0 0.0
  %3446 = vmatprep.subr.mxu0 0.0
  %3447 = vmatpush1.msra.mxu0 0.0
  %3448 = vmatprep.subr.mxu0 0.0
  %3449 = vmatpush1.msra.mxu0 0.0
  %3450 = vmatprep.subr.mxu0 0.0
  %3451 = vmatpush1.msra.mxu0 0.0
  %3452 = vmatprep.subr.mxu0 0.0
  %3453 = vmatpush1.msra.mxu0 0.0
  %3454 = vmatprep.subr.mxu0 0.0
  %3455 = vmatpush1.msra.mxu0 0.0
  %3456 = vmatprep.subr.mxu0 0.0
  %3457 = vmatpush1.msra.mxu0 0.0
  %3458 = vmatprep.subr.mxu0 0.0
  %3459 = vmatpush1.msra.mxu0 0.0
  %3460 = vmatprep.subr.mxu0 0.0
  %3461 = vmatpush1.msra.mxu0 0.0
  %3462 = vmatprep.subr.mxu0 0.0
  %3463 = vmatpush1.msra.mxu0 0.0
  %3464 = vmatprep.subr.mxu0 0.0
  %3465 = vmatpush1.msra.mxu0 0.0
  %3466 = vmatprep.subr.mxu0 0.0
  %3467 = vmatpush1.msra.mxu0 0.0
  %3468 = vmatprep.subr.mxu0 0.0
  %3469 = vmatpush1.msra.mxu0 0.0
  %3470 = vmatprep.subr.mxu0 0.0
  %3471 = vmatpush1.msra.mxu0 0.0
  %3472 = vmatprep.subr.mxu0 0.0
  %3473 = vmatpush1.msra.mxu0 0.0
  %3474 = vmatprep.subr.mxu0 0.0
  %3475 = vmatpush1.msra.mxu0 0.0
  %3476 = vmatprep.subr.mxu0 0.0
  %3477 = vmatpush1.msra.mxu0 0.0
  %3478 = vmatprep.subr.mxu0 0.0
  %3479 = vmatpush1.msra.mxu0 0.0
  %3480 = vmatprep.subr.mxu0 0.0
  %3481 = vmatpush1.msra.mxu0 0.0
  %3482 = vmatprep.subr.mxu0 0.0
  %3483 = vmatpush1.msra.mxu0 0.0
  %3484 = vmatprep.subr.mxu0 0.0
  %3485 = vmatpush1.msra.mxu0 0.0
  %3486 = vmatprep.subr.mxu0 0.0
  %3487 = vmatpush1.msra.mxu0 0.0
  %3488 = vmatprep.subr.mxu0 0.0
  %3489 = vmatpush1.msra.mxu0 0.0
  %3490 = vmatprep.subr.mxu0 0.0
  %3491 = vmatpush1.msra.mxu0 0.0
  %3492 = vmatprep.subr.mxu0 0.0
  %3493 = vmatpush1.msra.mxu0 0.0
  %3494 = vmatprep.subr.mxu0 0.0
  %3495 = vmatpush1.msra.mxu0 0.0
  %3496 = vmatprep.subr.mxu0 0.0
  %3497 = vmatpush1.msra.mxu0 0.0
  %3498 = vmatprep.mubr.f32.mxu0 0.0
  %3499 = vmatmul.mubr.f32.gmra.mrb[0].mxu0 %v3430
  %v3500 = vpop.f32.mrb[0].mxu0
  %v3501 = vadd.f32 0.0, %v3500
  %v3502 = vpop.f32.mrb[0].mxu0
  %3503 = vmatprep.mubr.f32.mxu0 0.0
  %3504 = vmatmul.mubr.f32.gmra.mrb[0].mxu0 %v3432
  %v3505 = vpop.f32.mrb[0].mxu0
  %v3506 = vadd.f32 0.0, %v3505
  %v3507 = vpop.f32.mrb[0].mxu0
  %3508 = vdwg.mxu0
  %v3509 = vadd.f32 %v3394, %v3501
  %v3510 = vadd.f32 %v3395, %v3506
  %s3511 = scalar_lea.vmem %s17, 128
  %v3512 = vld [vmem:[%s3511] sm:$0xff]
  %v3513 = vld [vmem:[%s3511 + $0x8] sm:$0xff]
  %v3514 = vld [vmem:[%s3511 + $0x10] sm:$0xff]
  %v3515 = vld [vmem:[%s3511 + $0x18] sm:$0xff]
  %v3516 = vcombine.low %v3028, %v3050
  %v3517 = vcombine.low %v469, %v3044
  %v3519 = vunpack.c.l.s4 1983009808
  %v3520 = vunpack.c.0.s8 %v3519
  %v3521 = vlaneseq
  %v3522 = vshrl.u32 %v3521, 7
  %v3523 = vsub.s32 %v3520, %v3522
  %v3524 = vrot.slane %v3516, %v3523
  %v3526 = vunpack.c.l.s4 1983009808
  %v3527 = vunpack.c.0.s8 %v3526
  %v3528 = vlaneseq
  %v3529 = vshrl.u32 %v3528, 7
  %v3530 = vsub.s32 %v3527, %v3529
  %v3531 = vrot.slane %v3517, %v3530
  %v3532 = vcombine.low %v3524, %v3531
  %v3533 = vcombine.low %v3051, %v469
  %v3535 = vunpack.c.l.s4 1983009808
  %v3536 = vunpack.c.0.s8 %v3535
  %v3537 = vlaneseq
  %v3538 = vshrl.u32 %v3537, 7
  %v3539 = vsub.s32 %v3536, %v3538
  %v3540 = vrot.slane %v3533, %v3539
  %v3541 = vsel %vm700, %v3532, 0
  %v3543 = vsel %vm700, %v3540, 0
  %3545 = vmatprep.subr.mxu0 0.0
  %3546 = vmatpush1.msra.mxu0 %v3512
  %3547 = vmatprep.subr.mxu0 0.0
  %3548 = vmatpush1.msra.mxu0 %v3513
  %3549 = vmatprep.subr.mxu0 0.0
  %3550 = vmatpush1.msra.mxu0 %v3514
  %3551 = vmatprep.subr.mxu0 0.0
  %3552 = vmatpush1.msra.mxu0 %v3515
  %3553 = vmatprep.subr.mxu0 0.0
  %3554 = vmatpush1.msra.mxu0 0.0
  %3555 = vmatprep.subr.mxu0 0.0
  %3556 = vmatpush1.msra.mxu0 0.0
  %3557 = vmatprep.subr.mxu0 0.0
  %3558 = vmatpush1.msra.mxu0 0.0
  %3559 = vmatprep.subr.mxu0 0.0
  %3560 = vmatpush1.msra.mxu0 0.0
  %3561 = vmatprep.subr.mxu0 0.0
  %3562 = vmatpush1.msra.mxu0 0.0
  %3563 = vmatprep.subr.mxu0 0.0
  %3564 = vmatpush1.msra.mxu0 0.0
  %3565 = vmatprep.subr.mxu0 0.0
  %3566 = vmatpush1.msra.mxu0 0.0
  %3567 = vmatprep.subr.mxu0 0.0
  %3568 = vmatpush1.msra.mxu0 0.0
  %3569 = vmatprep.subr.mxu0 0.0
  %3570 = vmatpush1.msra.mxu0 0.0
  %3571 = vmatprep.subr.mxu0 0.0
  %3572 = vmatpush1.msra.mxu0 0.0
  %3573 = vmatprep.subr.mxu0 0.0
  %3574 = vmatpush1.msra.mxu0 0.0
  %3575 = vmatprep.subr.mxu0 0.0
  %3576 = vmatpush1.msra.mxu0 0.0
  %3577 = vmatprep.subr.mxu0 0.0
  %3578 = vmatpush1.msra.mxu0 0.0
  %3579 = vmatprep.subr.mxu0 0.0
  %3580 = vmatpush1.msra.mxu0 0.0
  %3581 = vmatprep.subr.mxu0 0.0
  %3582 = vmatpush1.msra.mxu0 0.0
  %3583 = vmatprep.subr.mxu0 0.0
  %3584 = vmatpush1.msra.mxu0 0.0
  %3585 = vmatprep.subr.mxu0 0.0
  %3586 = vmatpush1.msra.mxu0 0.0
  %3587 = vmatprep.subr.mxu0 0.0
  %3588 = vmatpush1.msra.mxu0 0.0
  %3589 = vmatprep.subr.mxu0 0.0
  %3590 = vmatpush1.msra.mxu0 0.0
  %3591 = vmatprep.subr.mxu0 0.0
  %3592 = vmatpush1.msra.mxu0 0.0
  %3593 = vmatprep.subr.mxu0 0.0
  %3594 = vmatpush1.msra.mxu0 0.0
  %3595 = vmatprep.subr.mxu0 0.0
  %3596 = vmatpush1.msra.mxu0 0.0
  %3597 = vmatprep.subr.mxu0 0.0
  %3598 = vmatpush1.msra.mxu0 0.0
  %3599 = vmatprep.subr.mxu0 0.0
  %3600 = vmatpush1.msra.mxu0 0.0
  %3601 = vmatprep.subr.mxu0 0.0
  %3602 = vmatpush1.msra.mxu0 0.0
  %3603 = vmatprep.subr.mxu0 0.0
  %3604 = vmatpush1.msra.mxu0 0.0
  %3605 = vmatprep.subr.mxu0 0.0
  %3606 = vmatpush1.msra.mxu0 0.0
  %3607 = vmatprep.subr.mxu0 0.0
  %3608 = vmatpush1.msra.mxu0 0.0
  %3609 = vmatprep.mubr.f32.mxu0 0.0
  %3610 = vmatmul.mubr.f32.gmra.mrb[0].mxu0 %v3541
  %v3611 = vpop.f32.mrb[0].mxu0
  %v3612 = vadd.f32 0.0, %v3611
  %v3613 = vpop.f32.mrb[0].mxu0
  %3614 = vmatprep.mubr.f32.mxu0 0.0
  %3615 = vmatmul.mubr.f32.gmra.mrb[0].mxu0 %v3543
  %v3616 = vpop.f32.mrb[0].mxu0
  %v3617 = vadd.f32 0.0, %v3616
  %v3618 = vpop.f32.mrb[0].mxu0
  %3619 = vdwg.mxu0
  %v3620 = vadd.f32 %v3509, %v3612
  %v3621 = vadd.f32 %v3510, %v3617
  %v3622 = vld [vmem:[%s18] sm:$0x1]
  %v3624 = vlaneseq
  %v3625 = vshrl.u32 %v3624, 7
  %v3626 = vsub.s32 0, %v3625
  %v3627 = vrot.slane %v3622, %v3626
  %v3629 = vadd.f32 %v3620, %v3627
  %v3630 = vadd.f32 %v3621, %v3627
  %v3631 = vsel %vm170, %v3629, 0.0
  %vm3632 = vcmask 60416
  %v3633 = vsel %vm3632, %v3630, 0.0
  %v3634 = vadd.f32 %v3631, %v3633
  %v3635 = vrot.slane %v3634, 4
  %v3636 = vadd.f32 %v3634, %v3635
  %v3637 = vrot.slane %v3636, 2
  %v3638 = vadd.f32 %v3636, %v3637
  %v3639 = vrot.slane %v3638, 1
  %v3640 = vadd.f32 %v3638, %v3639
  %v3641 = vmul.f32 %v3640, %v711
  %v3642 = vsub.f32 %v3629, %v3641
  %v3643 = vsub.f32 %v3630, %v3641
  %v3644 = vmul.f32 %v3642, %v3642
  %v3645 = vmul.f32 %v3643, %v3643
  %v3646 = vsel %vm170, %v3644, 0.0
  %v3647 = vsel %vm3632, %v3645, 0.0
  %v3648 = vadd.f32 %v3646, %v3647
  %v3649 = vrot.slane %v3648, 4
  %v3650 = vadd.f32 %v3648, %v3649
  %v3651 = vrot.slane %v3650, 2
  %v3652 = vadd.f32 %v3650, %v3651
  %v3653 = vrot.slane %v3652, 1
  %v3654 = vadd.f32 %v3652, %v3653
  %v3655 = vmul.f32 %v3654, %v711
  %v3656 = vadd.f32 %v3655, 1e-05
  %v3657 = vrsqrt.pop %v3656
  %v3658 = vmul.f32 %v3642, %v3657
  %v3659 = vmul.f32 %v3643, %v3657
  %v3660 = vld [vmem:[%s19] sm:$0x1]
  %v3662 = vlaneseq
  %v3663 = vshrl.u32 %v3662, 7
  %v3664 = vsub.s32 0, %v3663
  %v3665 = vrot.slane %v3660, %v3664
  %v3667 = vmul.f32 %v3665, %v3658
  %v3668 = vmul.f32 %v3665, %v3659
  %v3669 = vld [vmem:[%s20] sm:$0x1]
  %v3671 = vlaneseq
  %v3672 = vshrl.u32 %v3671, 7
  %v3673 = vsub.s32 0, %v3672
  %v3674 = vrot.slane %v3669, %v3673
  %v3676 = vadd.f32 %v3667, %v3674
  %v3677 = vadd.f32 %v3668, %v3674
  %v3680 = vcombine.high %v3676, %v3676
  %v3682 = vunpack.c.l.s4 1983009808
  %v3683 = vunpack.c.0.s8 %v3682
  %v3684 = vlaneseq
  %v3685 = vshrl.u32 %v3684, 7
  %v3686 = vsub.s32 %v3683, %v3685
  %v3687 = vrot.slane %v3676, %v3686
  %v3689 = vunpack.c.l.s4 1983009808
  %v3690 = vunpack.c.0.s8 %v3689
  %v3691 = vlaneseq
  %v3692 = vshrl.u32 %v3691, 7
  %v3693 = vsub.s32 %v3690, %v3692
  %v3694 = vrot.slane %v3680, %v3693
  %v3695 = vcombine.high %v3687, %v3687
  %v3696 = vcombine.high %v3694, %v3694
  %v3698 = vunpack.c.l.s4 1983009808
  %v3699 = vunpack.c.0.s8 %v3698
  %v3700 = vlaneseq
  %v3701 = vshrl.u32 %v3700, 7
  %v3702 = vsub.s32 %v3699, %v3701
  %v3703 = vrot.slane %v3677, %v3702
  %v3704 = vcombine.high %v3703, %v3703
  %v3705 = vcombine.low %v3687, %v3695
  %v3707 = vunpack.c.l.s4 1983009808
  %v3708 = vunpack.c.0.s8 %v3707
  %v3709 = vlaneseq
  %v3710 = vshrl.u32 %v3709, 7
  %v3711 = vsub.s32 %v3708, %v3710
  %v3712 = vrot.slane %v3705, %v3711
  %v3714 = vunpack.c.l.s4 1983009808
  %v3715 = vunpack.c.0.s8 %v3714
  %v3716 = vlaneseq
  %v3717 = vshrl.u32 %v3716, 7
  %v3718 = vsub.s32 %v3715, %v3717
  %v3719 = vrot.slane %v3694, %v3718
  %v3720 = vcombine.low %v3712, %v3719
  %v3721 = vcombine.low %v3696, %v3703
  %v3723 = vunpack.c.l.s4 1983009808
  %v3724 = vunpack.c.0.s8 %v3723
  %v3725 = vlaneseq
  %v3726 = vshrl.u32 %v3725, 7
  %v3727 = vsub.s32 %v3724, %v3726
  %v3728 = vrot.slane %v3721, %v3727
  %v3730 = vunpack.c.l.s4 1983009808
  %v3731 = vunpack.c.0.s8 %v3730
  %v3732 = vlaneseq
  %v3733 = vshrl.u32 %v3732, 7
  %v3734 = vsub.s32 %v3731, %v3733
  %v3735 = vrot.slane %v3704, %v3734
  %v3736 = vcombine.low %v3728, %v3735
  %vm3739 = vcmask 62464
  %3740 = vst.msk [vmem:[%s21] sm:$0x3f] %vm3739, %v3720
  %3741 = vst.msk [vmem:[%s21 + $0x8] sm:$0x3f] %vm3739, %v3736
  // Predicated region
  $region86: #{tacotron2_forward.13} parent=0 // pred_check
    _
  $region87: #{tacotron2_forward.13} parent=0 // pred_check_branch
    %3743 = sbr.rel (0) target = $region89
  $region88: #{tacotron2_forward.13} parent=0 // pred_region
    _
  $region89: #{tacotron2_forward.13} parent=0 // pred_fallthru
    _
  // Predicated region
  $region90: #{tacotron2_forward.13} parent=0 // pred_check
    _
  $region91: #{tacotron2_forward.13} parent=0 // pred_check_branch
    %3745 = sbr.rel (0) target = $region93
  $region92: #{tacotron2_forward.13} parent=0 // pred_region
    _
  $region93: #{tacotron2_forward.13} parent=0 // pred_fallthru
    _

</llo_original>
